<compile_context>
chip_gen: v7x
topology: tpu7x:2x2x1
jax: 0.10.0
libtpu: 0.0.40
codegen_flags: <defaults>
</compile_context>

<pallas_src>
import functools

import numpy as np
import jax
import jax.numpy as jnp
from jax.experimental import pallas as pl
from jax.experimental.pallas import tpu as pltpu


MATMUL_DTYPE = jnp.bfloat16   # MXU operand dtype; accumulation is always f32.


# --------------------------------------------------------------------------
# helpers
# --------------------------------------------------------------------------
def _largest_divisor_leq(n, cap):
    d = min(n, cap)
    while n % d:
        d -= 1
    return d


def _pick_row_tile(m, cap=512):
    if m <= cap:
        return m
    start = cap - cap % 8
    for t in range(start, 7, -8):
        if m % t == 0:
            return t
    return m


# --------------------------------------------------------------------------
# Pallas kernels
# --------------------------------------------------------------------------
def _window_msa_body(x_ref, bias_ref, qkvw_ref, qkvb_ref, projw_ref, projb_ref,
                     g_ref, b_ref, o_ref, *, num_heads, apply_ln, mask_ref):
    blk = x_ref.shape[1]
    N = x_ref.shape[2]
    C = x_ref.shape[3]
    hd = C // num_heads
    cdt = qkvw_ref.dtype                               # matmul operand dtype

    x = x_ref[0].reshape(blk * N, C).astype(jnp.float32)

    if apply_ln:                                       # fused norm1 (f32 math)
        mean = jnp.mean(x, axis=-1, keepdims=True)
        var = jnp.mean((x - mean) ** 2, axis=-1, keepdims=True)
        xn = (x - mean) * jax.lax.rsqrt(var + 1e-5) * g_ref[0] + b_ref[0]
    else:
        xn = x

    # QKV projection on all windows of the group at once (tall matmul).
    qkv = jnp.dot(xn.astype(cdt), qkvw_ref[...],
                  preferred_element_type=jnp.float32) + qkvb_ref[0]   # (blk*N, 3C)

    if mask_ref is not None:
        mask = mask_ref[...].astype(jnp.float32)       # (blk, N, N)

    acc = jnp.zeros((blk * N, C), jnp.float32)
    for h in range(num_heads):
        q = qkv[:, h * hd:(h + 1) * hd].reshape(blk, N, hd).astype(cdt)
        k = qkv[:, C + h * hd:C + (h + 1) * hd].reshape(blk, N, hd).astype(cdt)
        v = qkv[:, 2 * C + h * hd:2 * C + (h + 1) * hd].reshape(blk, N, hd).astype(cdt)

        # window-batched attention scores; qk scale is folded into qkv_w/q bias
        s = jnp.einsum('bnd,bmd->bnm', q, k,
                       preferred_element_type=jnp.float32)            # (blk, N, N)
        s = s + bias_ref[h]
        if mask_ref is not None:
            s = s + mask

        s = s - jnp.max(s, axis=-1, keepdims=True)
        p = jnp.exp(s)
        p = p * pl.reciprocal(jnp.sum(p, axis=-1, keepdims=True), approx=True)

        o = jnp.einsum('bnm,bmd->bnd', p.astype(cdt), v,
                       preferred_element_type=jnp.float32)            # (blk, N, hd)

        # Accumulate the output projection per head (replaces the concat):
        # heads_out @ proj_w == sum_h out_h @ proj_w[h*hd:(h+1)*hd, :]
        acc = acc + jnp.dot(o.reshape(blk * N, hd).astype(cdt),
                            projw_ref[h * hd:(h + 1) * hd, :],
                            preferred_element_type=jnp.float32)

    y = acc + projb_ref[0]
    o_ref[0] = y.reshape(blk, N, C).astype(o_ref.dtype)


def _wmsa_kernel(x_ref, bias_ref, qkvw_ref, qkvb_ref, projw_ref, projb_ref,
                 g_ref, b_ref, o_ref, *, num_heads, apply_ln):
    _window_msa_body(x_ref, bias_ref, qkvw_ref, qkvb_ref, projw_ref, projb_ref,
                     g_ref, b_ref, o_ref, num_heads=num_heads,
                     apply_ln=apply_ln, mask_ref=None)


def _wmsa_masked_kernel(x_ref, mask_ref, bias_ref, qkvw_ref, qkvb_ref,
                        projw_ref, projb_ref, g_ref, b_ref, o_ref,
                        *, num_heads, apply_ln):
    _window_msa_body(x_ref, bias_ref, qkvw_ref, qkvb_ref, projw_ref, projb_ref,
                     g_ref, b_ref, o_ref, num_heads=num_heads,
                     apply_ln=apply_ln, mask_ref=mask_ref)


def window_msa(x_windows, attn_mask, rel_bias, qkv_w, qkv_b, proj_w, proj_b,
               ln_g, ln_b, num_heads, wblk, apply_ln):
    """x_windows: (B, nW, N, C); attn_mask: (nW, N, N) or None."""
    B, nW, N, C = x_windows.shape
    grid = (B, nW // wblk)

    x_spec = pl.BlockSpec((1, wblk, N, C), lambda b, g: (b, g, 0, 0))
    out_spec = pl.BlockSpec((1, wblk, N, C), lambda b, g: (b, g, 0, 0))
    common_specs = [
        pl.BlockSpec((num_heads, N, N), lambda b, g: (0, 0, 0)),   # rel bias
        pl.BlockSpec((C, 3 * C), lambda b, g: (0, 0)),             # qkv_w
        pl.BlockSpec((1, 3 * C), lambda b, g: (0, 0)),             # qkv_b
        pl.BlockSpec((C, C), lambda b, g: (0, 0)),                 # proj_w
        pl.BlockSpec((1, C), lambda b, g: (0, 0)),                 # proj_b
        pl.BlockSpec((1, C), lambda b, g: (0, 0)),                 # ln1 gamma
        pl.BlockSpec((1, C), lambda b, g: (0, 0)),                 # ln1 beta
    ]

    if attn_mask is not None:
        kernel = functools.partial(_wmsa_masked_kernel,
                                   num_heads=num_heads, apply_ln=apply_ln)
        in_specs = ([x_spec,
                     pl.BlockSpec((wblk, N, N), lambda b, g: (g, 0, 0))]
                    + common_specs)
        args = (x_windows, attn_mask, rel_bias, qkv_w, qkv_b, proj_w, proj_b,
                ln_g, ln_b)
    else:
        kernel = functools.partial(_wmsa_kernel,
                                   num_heads=num_heads, apply_ln=apply_ln)
        in_specs = [x_spec] + common_specs
        args = (x_windows, rel_bias, qkv_w, qkv_b, proj_w, proj_b, ln_g, ln_b)

    return pl.pallas_call(
        kernel,
        out_shape=jax.ShapeDtypeStruct((B, nW, N, C), x_windows.dtype),
        grid=grid,
        in_specs=in_specs,
        out_specs=out_spec,
        compiler_params=pltpu.CompilerParams(
            dimension_semantics=("parallel", "parallel")),
    )(*args)


def _res_ln_ffn_kernel(y_ref, idn_ref, g_ref, b_ref, w1_ref, b1_ref,
                       w2_ref, b2_ref, o_ref):
    cdt = w1_ref.dtype
    # residual add (attention output + block input), f32
    x = y_ref[...].astype(jnp.float32) + idn_ref[...].astype(jnp.float32)
    # LayerNorm2, f32
    mean = jnp.mean(x, axis=-1, keepdims=True)
    var = jnp.mean((x - mean) ** 2, axis=-1, keepdims=True)
    xn = (x - mean) * jax.lax.rsqrt(var + 1e-5) * g_ref[0] + b_ref[0]
    # FFN: Linear -> GELU(erf) -> Linear, bf16 operands / f32 accumulation
    h = jnp.dot(xn.astype(cdt), w1_ref[...],
                preferred_element_type=jnp.float32) + b1_ref[0]
    h = 0.5 * h * (1.0 + jax.lax.erf(h * 0.7071067811865476))
    y2 = jnp.dot(h.astype(cdt), w2_ref[...],
                 preferred_element_type=jnp.float32) + b2_ref[0]
    o_ref[...] = (x + y2).astype(o_ref.dtype)


def res_ln_ffn(attn_out2d, identity2d, ln_g, ln_b, w1, b1, w2, b2, row_tile):
    M, C = attn_out2d.shape
    Fd = w1.shape[1]
    return pl.pallas_call(
        _res_ln_ffn_kernel,
        out_shape=jax.ShapeDtypeStruct((M, C), attn_out2d.dtype),
        grid=(M // row_tile,),
        in_specs=[
            pl.BlockSpec((row_tile, C), lambda i: (i, 0)),
            pl.BlockSpec((row_tile, C), lambda i: (i, 0)),
            pl.BlockSpec((1, C), lambda i: (0, 0)),
            pl.BlockSpec((1, C), lambda i: (0, 0)),
            pl.BlockSpec((C, Fd), lambda i: (0, 0)),
            pl.BlockSpec((1, Fd), lambda i: (0, 0)),
            pl.BlockSpec((Fd, C), lambda i: (0, 0)),
            pl.BlockSpec((1, C), lambda i: (0, 0)),
        ],
        out_specs=pl.BlockSpec((row_tile, C), lambda i: (i, 0)),
        compiler_params=pltpu.CompilerParams(dimension_semantics=("parallel",)),
    )(attn_out2d, identity2d, ln_g, ln_b, w1, b1, w2, b2)


def _layernorm_kernel(x_ref, g_ref, b_ref, o_ref):
    x = x_ref[...].astype(jnp.float32)
    mean = jnp.mean(x, axis=-1, keepdims=True)
    var = jnp.mean((x - mean) ** 2, axis=-1, keepdims=True)
    o_ref[...] = ((x - mean) * jax.lax.rsqrt(var + 1e-5) * g_ref[0]
                  + b_ref[0]).astype(o_ref.dtype)


def layernorm(x2d, gamma, beta, row_tile):
    # only used on the (rare) padded-resolution path, where norm1 must be
    # applied before zero padding to match the reference.
    M, C = x2d.shape
    return pl.pallas_call(
        _layernorm_kernel,
        out_shape=jax.ShapeDtypeStruct((M, C), x2d.dtype),
        grid=(M // row_tile,),
        in_specs=[pl.BlockSpec((row_tile, C), lambda i: (i, 0)),
                  pl.BlockSpec((1, C), lambda i: (0, 0)),
                  pl.BlockSpec((1, C), lambda i: (0, 0))],
        out_specs=pl.BlockSpec((row_tile, C), lambda i: (i, 0)),
        compiler_params=pltpu.CompilerParams(dimension_semantics=("parallel",)),
    )(x2d, gamma, beta)


# --------------------------------------------------------------------------
# window partition / reverse / shift mask / relative position bias (XLA glue)
# TODO(synk): the partition/reverse transposes could move into BlockSpec
#             index maps over the (B, Hp, Wp, C) image to drop two more
#             full-tensor HBM passes per block.
# --------------------------------------------------------------------------
def window_partition(x, ws):
    B, H, W, C = x.shape
    x = x.reshape(B, H // ws, ws, W // ws, ws, C)
    x = x.transpose(0, 1, 3, 2, 4, 5)
    return x.reshape(B, (H // ws) * (W // ws), ws * ws, C)      # (B, nW, N, C)


def window_reverse(windows, H, W, ws):
    B, nW, N, C = windows.shape
    x = windows.reshape(B, H // ws, W // ws, ws, ws, C)
    x = x.transpose(0, 1, 3, 2, 4, 5)
    return x.reshape(B, H, W, C)


def build_attn_mask(Hp, Wp, ws, shift):
    # mirrors ShiftWindowMSA's mask construction (static -> numpy)
    img_mask = np.zeros((1, Hp, Wp, 1), dtype=np.float32)
    slices = (slice(0, -ws), slice(-ws, -shift), slice(-shift, None))
    cnt = 0
    for h in slices:
        for w in slices:
            img_mask[:, h, w, :] = cnt
            cnt += 1
    m = img_mask.reshape(1, Hp // ws, ws, Wp // ws, ws, 1)
    m = m.transpose(0, 1, 3, 2, 4, 5).reshape(-1, ws * ws)       # (nW, N)
    attn_mask = m[:, None, :] - m[:, :, None]                    # (nW, N, N)
    attn_mask = np.where(attn_mask != 0, -100.0, 0.0).astype(np.float32)
    return jnp.asarray(attn_mask)


def compute_rel_bias(table, ws, num_heads):
    # double_step_seq + flip(1), as in WindowMSA.__init__
    Wh = Ww = ws
    seq1 = np.arange(0, (2 * Ww - 1) * Wh, 2 * Ww - 1)
    seq2 = np.arange(0, Ww, 1)
    coords = (seq1[:, None] + seq2[None, :]).reshape(1, -1)      # (1, N)
    idx = coords + coords.T                                      # (N, N)
    idx = idx[:, ::-1]                                           # flip(1)
    bias = table[idx.reshape(-1)].reshape(Wh * Ww, Wh * Ww, num_heads)
    return jnp.asarray(np.transpose(bias, (2, 0, 1)).astype(np.float32))


def shift_window_attention(x, hw_shape, shift, ws, p, num_heads, row_tile):
    B, L, C = x.shape
    H, W = hw_shape
    pad_r = (ws - W % ws) % ws
    pad_b = (ws - H % ws) % ws
    needs_pad = (pad_r > 0) or (pad_b > 0)

    if needs_pad:
        # Reference applies norm1 before zero-padding; keep that order here
        # and disable the in-kernel LN fusion for this (rare) path.
        img = layernorm(x.reshape(B * L, C), p["ln1_g"], p["ln1_b"],
                        row_tile).reshape(B, H, W, C)
        img = jnp.pad(img, ((0, 0), (0, pad_b), (0, pad_r), (0, 0)))
        apply_ln = False
    else:
        img = x.reshape(B, H, W, C)
        apply_ln = True            # norm1 fused into the attention kernel

    Hp, Wp = img.shape[1], img.shape[2]
    nW = (Hp // ws) * (Wp // ws)

    if shift > 0:
        img = jnp.roll(img, (-shift, -shift), axis=(1, 2))
        attn_mask = build_attn_mask(Hp, Wp, ws, shift)           # (nW, N, N)
    else:
        attn_mask = None                                         # mask-free kernel

    xw = window_partition(img, ws)                               # (B, nW, N, C)
    wblk = _largest_divisor_leq(nW, 16)                          # windows / grid step

    out_w = window_msa(xw, attn_mask, p["rel_bias"], p["qkv_w"], p["qkv_b"],
                       p["proj_w"], p["proj_b"], p["ln1_g"], p["ln1_b"],
                       num_heads, wblk, apply_ln)

    out = window_reverse(out_w, Hp, Wp, ws)
    if shift > 0:
        out = jnp.roll(out, (shift, shift), axis=(1, 2))
    if needs_pad:
        out = out[:, :H, :W, :]
    return out.reshape(B, H * W, C)


# --------------------------------------------------------------------------
# SwinBlockSequence forward
# --------------------------------------------------------------------------
@functools.partial(jax.jit, static_argnames=("hw_shape", "num_heads", "window_size"))
def _forward_impl(x, blocks_params, hw_shape, num_heads, window_size):
    B, L, C = x.shape
    row_tile = _pick_row_tile(B * L, 512)
    for i, p in enumerate(blocks_params):
        shift = 0 if i % 2 == 0 else window_size // 2
        # 1) fused LN1 + shifted-window MSA + proj
        attn_out = shift_window_attention(x, hw_shape, shift, window_size, p,
                                          num_heads, row_tile)
        # 2) fused residual + LN2 + FFN(+residual), row-tiled
        x = res_ln_ffn(attn_out.reshape(B * L, C), x.reshape(B * L, C),
                       p["ln2_g"], p["ln2_b"], p["w1"], p["b1"],
                       p["w2"], p["b2"], row_tile).reshape(B, L, C)
    return x


def swin_block_sequence_forward(x, hw_shape, blocks_params, num_heads, window_size):
    out = _forward_impl(x, blocks_params, hw_shape=tuple(hw_shape),
                        num_heads=num_heads, window_size=window_size)
    # downsample is None -> (x, hw_shape, x, hw_shape)
    return out, hw_shape, out, hw_shape


# --------------------------------------------------------------------------
# Deterministic parameter init
# --------------------------------------------------------------------------
def init_block_params(key, C, num_heads, Fd, ws, matmul_dtype=MATMUL_DTYPE):
    ks = jax.random.split(key, 8)
    hd = C // num_heads
    scale = hd ** -0.5
    table = 0.02 * jax.random.normal(ks[0], ((2 * ws - 1) ** 2, num_heads),
                                     jnp.float32)

    # Linear weights stored already transposed to (in, out): y = x @ W + b
    qkv_w = 0.05 * jax.random.normal(ks[1], (C, 3 * C), jnp.float32)
    qkv_b = 0.01 * jax.random.normal(ks[2], (3 * C,), jnp.float32)
    # pre-fold the qk scale into the Q projection (weight + bias)
    q_scale = jnp.concatenate([jnp.full((C,), scale, jnp.float32),
                               jnp.ones((2 * C,), jnp.float32)])
    qkv_w = qkv_w * q_scale[None, :]
    qkv_b = qkv_b * q_scale

    proj_w = 0.05 * jax.random.normal(ks[3], (C, C), jnp.float32)
    proj_b = 0.01 * jax.random.normal(ks[4], (C,), jnp.float32)
    w1 = 0.05 * jax.random.normal(ks[5], (C, Fd), jnp.float32)
    b1 = 0.01 * jax.random.normal(ks[6], (Fd,), jnp.float32)
    w2 = 0.05 * jax.random.normal(ks[7], (Fd, C), jnp.float32)
    b2 = jnp.zeros((C,), jnp.float32)

    return {
        "ln1_g": jnp.ones((1, C), jnp.float32),
        "ln1_b": jnp.zeros((1, C), jnp.float32),
        "ln2_g": jnp.ones((1, C), jnp.float32),
        "ln2_b": jnp.zeros((1, C), jnp.float32),
        "qkv_w": qkv_w.astype(matmul_dtype),          # bf16 MXU operands
        "qkv_b": qkv_b.reshape(1, 3 * C),             # biases stay f32
        "proj_w": proj_w.astype(matmul_dtype),
        "proj_b": proj_b.reshape(1, C),
        "rel_bias": compute_rel_bias(np.asarray(table), ws, num_heads),
        "w1": w1.astype(matmul_dtype),
        "b1": b1.reshape(1, Fd),
        "w2": w2.astype(matmul_dtype),
        "b2": b2.reshape(1, C),
    }


if __name__ == "__main__":
    key = jax.random.PRNGKey(0)
    B, H, W = 2, 8, 8
    C, num_heads, Fd, depth, ws = 32, 4, 64, 2, 4

    k_x, k_p = jax.random.split(key)
    x = jax.random.normal(k_x, (B, H * W, C), dtype=jnp.float32)

    block_keys = jax.random.split(k_p, depth)
    blocks_params = [init_block_params(bk, C, num_heads, Fd, ws)
                     for bk in block_keys]

    out, hw, out_pre, hw_pre = swin_block_sequence_forward(
        x, (H, W), blocks_params, num_heads, ws)
    jax.block_until_ready(out)
    assert out.shape == (B, H * W, C)
    assert tuple(hw) == (H, W)
    print("KERNEL_OK")
</pallas_src>

<mosaic_0001>
module attributes {stable_mosaic.version = 11 : i64} {
  func.func @_wmsa_kernel(%arg0: i32, %arg1: i32, %arg2: memref<1x4x16x32xf32, #tpu.memory_space<vmem>>, %arg3: memref<4x16x16xf32, #tpu.memory_space<vmem>>, %arg4: memref<32x96xbf16, #tpu.memory_space<vmem>>, %arg5: memref<1x96xf32, #tpu.memory_space<vmem>>, %arg6: memref<32x32xbf16, #tpu.memory_space<vmem>>, %arg7: memref<1x32xf32, #tpu.memory_space<vmem>>, %arg8: memref<1x32xf32, #tpu.memory_space<vmem>>, %arg9: memref<1x32xf32, #tpu.memory_space<vmem>>, %arg10: memref<1x4x16x32xf32, #tpu.memory_space<vmem>>) attributes {dimension_semantics = [#tpu.dimension_semantics<parallel>, #tpu.dimension_semantics<parallel>], iteration_bounds = array<i64: 2, 1>, scalar_prefetch = 0 : i64, scratch_operands = 0 : i64, tpu.core_type = #tpu.core_type<tc>, window_params = [{transform_indices = @transform_0, window_bounds = array<i64: 1, 4, 16, 32>}, {pipeline_mode = #tpu.pipeline_mode<synchronous>, transform_indices = @transform_1, window_bounds = array<i64: 4, 16, 16>}, {pipeline_mode = #tpu.pipeline_mode<synchronous>, transform_indices = @transform_2, window_bounds = array<i64: 32, 96>}, {pipeline_mode = #tpu.pipeline_mode<synchronous>, transform_indices = @transform_3, window_bounds = array<i64: 1, 96>}, {pipeline_mode = #tpu.pipeline_mode<synchronous>, transform_indices = @transform_4, window_bounds = array<i64: 32, 32>}, {pipeline_mode = #tpu.pipeline_mode<synchronous>, transform_indices = @transform_5, window_bounds = array<i64: 1, 32>}, {pipeline_mode = #tpu.pipeline_mode<synchronous>, transform_indices = @transform_6, window_bounds = array<i64: 1, 32>}, {pipeline_mode = #tpu.pipeline_mode<synchronous>, transform_indices = @transform_7, window_bounds = array<i64: 1, 32>}, {transform_indices = @transform_8, window_bounds = array<i64: 1, 4, 16, 32>}]} {
    %c0 = arith.constant 0 : index
    %c0_0 = arith.constant 0 : index
    %c0_1 = arith.constant 0 : index
    %c0_2 = arith.constant 0 : index
    %0 = vector.load %arg2[%c0, %c0_0, %c0_1, %c0_2] : memref<1x4x16x32xf32, #tpu.memory_space<vmem>>, vector<1x4x16x32xf32>
    %1 = vector.shape_cast %0 : vector<1x4x16x32xf32> to vector<4x16x32xf32>
    %2 = vector.shape_cast %1 : vector<4x16x32xf32> to vector<64x32xf32>
    %cst = arith.constant dense<0.000000e+00> : vector<64xf32>
    %3 = vector.multi_reduction <add>, %2, %cst [1] : vector<64x32xf32> to vector<64xf32>
    %4 = vector.shape_cast %3 : vector<64xf32> to vector<64x1xf32>
    %cst_3 = arith.constant 3.200000e+01 : f32
    %5 = vector.broadcast %cst_3 : f32 to vector<64x1xf32>
    %6 = arith.divf %4, %5 : vector<64x1xf32>
    %7 = vector.broadcast %6 : vector<64x1xf32> to vector<64x32xf32>
    %8 = arith.subf %2, %7 : vector<64x32xf32>
    %9 = arith.mulf %8, %8 : vector<64x32xf32>
    %cst_4 = arith.constant dense<0.000000e+00> : vector<64xf32>
    %10 = vector.multi_reduction <add>, %9, %cst_4 [1] : vector<64x32xf32> to vector<64xf32>
    %11 = vector.shape_cast %10 : vector<64xf32> to vector<64x1xf32>
    %cst_5 = arith.constant 3.200000e+01 : f32
    %12 = vector.broadcast %cst_5 : f32 to vector<64x1xf32>
    %13 = arith.divf %11, %12 : vector<64x1xf32>
    %14 = vector.broadcast %6 : vector<64x1xf32> to vector<64x32xf32>
    %15 = arith.subf %2, %14 : vector<64x32xf32>
    %cst_6 = arith.constant 9.99999974E-6 : f32
    %16 = vector.broadcast %cst_6 : f32 to vector<64x1xf32>
    %17 = arith.addf %13, %16 : vector<64x1xf32>
    %18 = math.rsqrt %17 : vector<64x1xf32>
    %19 = vector.broadcast %18 : vector<64x1xf32> to vector<64x32xf32>
    %20 = arith.mulf %15, %19 : vector<64x32xf32>
    %c0_7 = arith.constant 0 : index
    %c0_8 = arith.constant 0 : index
    %21 = vector.load %arg8[%c0_7, %c0_8] : memref<1x32xf32, #tpu.memory_space<vmem>>, vector<1x32xf32>
    %22 = vector.shape_cast %21 : vector<1x32xf32> to vector<32xf32>
    %23 = vector.shape_cast %22 : vector<32xf32> to vector<1x32xf32>
    %24 = vector.broadcast %23 : vector<1x32xf32> to vector<64x32xf32>
    %25 = arith.mulf %20, %24 : vector<64x32xf32>
    %c0_9 = arith.constant 0 : index
    %c0_10 = arith.constant 0 : index
    %26 = vector.load %arg9[%c0_9, %c0_10] : memref<1x32xf32, #tpu.memory_space<vmem>>, vector<1x32xf32>
    %27 = vector.shape_cast %26 : vector<1x32xf32> to vector<32xf32>
    %28 = vector.shape_cast %27 : vector<32xf32> to vector<1x32xf32>
    %29 = vector.broadcast %28 : vector<1x32xf32> to vector<64x32xf32>
    %30 = arith.addf %25, %29 : vector<64x32xf32>
    %31 = arith.truncf %30 : vector<64x32xf32> to vector<64x32xbf16>
    %c0_11 = arith.constant 0 : index
    %c0_12 = arith.constant 0 : index
    %32 = vector.load %arg4[%c0_11, %c0_12] : memref<32x96xbf16, #tpu.memory_space<vmem>>, vector<32x96xbf16>
    %cst_13 = arith.constant dense<0.000000e+00> : vector<64x96xf32>
    %33 = tpu.matmul %31, %32, %cst_13 {dimension_numbers = #tpu.dot_dimension_numbers<[1], [0], [0], [1], [0, 0, 1, 1], [], []>} : vector<64x32xbf16>, vector<32x96xbf16>, vector<64x96xf32> -> vector<64x96xf32>
    %c0_14 = arith.constant 0 : index
    %c0_15 = arith.constant 0 : index
    %34 = vector.load %arg5[%c0_14, %c0_15] : memref<1x96xf32, #tpu.memory_space<vmem>>, vector<1x96xf32>
    %35 = vector.shape_cast %34 : vector<1x96xf32> to vector<96xf32>
    %36 = vector.shape_cast %35 : vector<96xf32> to vector<1x96xf32>
    %37 = vector.broadcast %36 : vector<1x96xf32> to vector<64x96xf32>
    %38 = arith.addf %33, %37 : vector<64x96xf32>
    %cst_16 = arith.constant 0.000000e+00 : f32
    %39 = vector.broadcast %cst_16 : f32 to vector<64x32xf32>
    %40 = vector.extract_strided_slice %38 {offsets = [0, 0], sizes = [64, 8], strides = [1, 1]} : vector<64x96xf32> to vector<64x8xf32>
    %41 = vector.shape_cast %40 : vector<64x8xf32> to vector<4x16x8xf32>
    %42 = arith.truncf %41 : vector<4x16x8xf32> to vector<4x16x8xbf16>
    %43 = vector.extract_strided_slice %38 {offsets = [0, 32], sizes = [64, 8], strides = [1, 1]} : vector<64x96xf32> to vector<64x8xf32>
    %44 = vector.shape_cast %43 : vector<64x8xf32> to vector<4x16x8xf32>
    %45 = arith.truncf %44 : vector<4x16x8xf32> to vector<4x16x8xbf16>
    %46 = vector.extract_strided_slice %38 {offsets = [0, 64], sizes = [64, 8], strides = [1, 1]} : vector<64x96xf32> to vector<64x8xf32>
    %47 = vector.shape_cast %46 : vector<64x8xf32> to vector<4x16x8xf32>
    %48 = arith.truncf %47 : vector<4x16x8xf32> to vector<4x16x8xbf16>
    "tpu.trace_start"() <{level = 10 : i32, message = "bnd,bmd->bnm"}> : () -> ()
    %cst_17 = arith.constant dense<0.000000e+00> : vector<4x16x16xf32>
    %49 = tpu.matmul %42, %45, %cst_17 {dimension_numbers = #tpu.dot_dimension_numbers<[2], [2], [1], [1], [0, 0, 0, 1, 1, 1], [0], [0]>} : vector<4x16x8xbf16>, vector<4x16x8xbf16>, vector<4x16x16xf32> -> vector<4x16x16xf32>
    "tpu.trace_stop"() : () -> ()
    %c0_18 = arith.constant 0 : index
    %c0_19 = arith.constant 0 : index
    %c0_20 = arith.constant 0 : index
    %50 = vector.load %arg3[%c0_18, %c0_19, %c0_20] : memref<4x16x16xf32, #tpu.memory_space<vmem>>, vector<1x16x16xf32>
    %51 = vector.shape_cast %50 : vector<1x16x16xf32> to vector<16x16xf32>
    %52 = vector.shape_cast %51 : vector<16x16xf32> to vector<1x16x16xf32>
    %53 = vector.broadcast %52 : vector<1x16x16xf32> to vector<4x16x16xf32>
    %54 = arith.addf %49, %53 : vector<4x16x16xf32>
    %cst_21 = arith.constant dense<0xFF800000> : vector<4x16xf32>
    %55 = vector.multi_reduction <maximumf>, %54, %cst_21 [2] : vector<4x16x16xf32> to vector<4x16xf32>
    %56 = vector.shape_cast %55 : vector<4x16xf32> to vector<4x16x1xf32>
    %57 = vector.broadcast %56 : vector<4x16x1xf32> to vector<4x16x16xf32>
    %58 = arith.subf %54, %57 : vector<4x16x16xf32>
    %59 = math.exp %58 : vector<4x16x16xf32>
    %cst_22 = arith.constant dense<0.000000e+00> : vector<4x16xf32>
    %60 = vector.multi_reduction <add>, %59, %cst_22 [2] : vector<4x16x16xf32> to vector<4x16xf32>
    %61 = vector.shape_cast %60 : vector<4x16xf32> to vector<4x16x1xf32>
    %62 = tpu.reciprocal %61 {approx = true} : vector<4x16x1xf32> -> vector<4x16x1xf32>
    %63 = vector.broadcast %62 : vector<4x16x1xf32> to vector<4x16x16xf32>
    %64 = arith.mulf %59, %63 : vector<4x16x16xf32>
    %65 = arith.truncf %64 : vector<4x16x16xf32> to vector<4x16x16xbf16>
    "tpu.trace_start"() <{level = 10 : i32, message = "bnm,bmd->bnd"}> : () -> ()
    %cst_23 = arith.constant dense<0.000000e+00> : vector<4x16x8xf32>
    %66 = tpu.matmul %65, %48, %cst_23 {dimension_numbers = #tpu.dot_dimension_numbers<[2], [1], [1], [2], [0, 0, 0, 1, 1, 2], [0], [0]>} : vector<4x16x16xbf16>, vector<4x16x8xbf16>, vector<4x16x8xf32> -> vector<4x16x8xf32>
    "tpu.trace_stop"() : () -> ()
    %67 = vector.shape_cast %66 : vector<4x16x8xf32> to vector<64x8xf32>
    %68 = arith.truncf %67 : vector<64x8xf32> to vector<64x8xbf16>
    %c0_24 = arith.constant 0 : index
    %c0_25 = arith.constant 0 : index
    %69 = vector.load %arg6[%c0_24, %c0_25] : memref<32x32xbf16, #tpu.memory_space<vmem>>, vector<8x32xbf16>
    %cst_26 = arith.constant dense<0.000000e+00> : vector<64x32xf32>
    %70 = tpu.matmul %68, %69, %cst_26 {dimension_numbers = #tpu.dot_dimension_numbers<[1], [0], [0], [1], [0, 0, 1, 1], [], []>} : vector<64x8xbf16>, vector<8x32xbf16>, vector<64x32xf32> -> vector<64x32xf32>
    %71 = arith.addf %39, %70 : vector<64x32xf32>
    %72 = vector.extract_strided_slice %38 {offsets = [0, 8], sizes = [64, 8], strides = [1, 1]} : vector<64x96xf32> to vector<64x8xf32>
    %73 = vector.shape_cast %72 : vector<64x8xf32> to vector<4x16x8xf32>
    %74 = arith.truncf %73 : vector<4x16x8xf32> to vector<4x16x8xbf16>
    %75 = vector.extract_strided_slice %38 {offsets = [0, 40], sizes = [64, 8], strides = [1, 1]} : vector<64x96xf32> to vector<64x8xf32>
    %76 = vector.shape_cast %75 : vector<64x8xf32> to vector<4x16x8xf32>
    %77 = arith.truncf %76 : vector<4x16x8xf32> to vector<4x16x8xbf16>
    %78 = vector.extract_strided_slice %38 {offsets = [0, 72], sizes = [64, 8], strides = [1, 1]} : vector<64x96xf32> to vector<64x8xf32>
    %79 = vector.shape_cast %78 : vector<64x8xf32> to vector<4x16x8xf32>
    %80 = arith.truncf %79 : vector<4x16x8xf32> to vector<4x16x8xbf16>
    "tpu.trace_start"() <{level = 10 : i32, message = "bnd,bmd->bnm"}> : () -> ()
    %cst_27 = arith.constant dense<0.000000e+00> : vector<4x16x16xf32>
    %81 = tpu.matmul %74, %77, %cst_27 {dimension_numbers = #tpu.dot_dimension_numbers<[2], [2], [1], [1], [0, 0, 0, 1, 1, 1], [0], [0]>} : vector<4x16x8xbf16>, vector<4x16x8xbf16>, vector<4x16x16xf32> -> vector<4x16x16xf32>
    "tpu.trace_stop"() : () -> ()
    %c1 = arith.constant 1 : index
    %c0_28 = arith.constant 0 : index
    %c0_29 = arith.constant 0 : index
    %82 = vector.load %arg3[%c1, %c0_28, %c0_29] : memref<4x16x16xf32, #tpu.memory_space<vmem>>, vector<1x16x16xf32>
    %83 = vector.shape_cast %82 : vector<1x16x16xf32> to vector<16x16xf32>
    %84 = vector.shape_cast %83 : vector<16x16xf32> to vector<1x16x16xf32>
    %85 = vector.broadcast %84 : vector<1x16x16xf32> to vector<4x16x16xf32>
    %86 = arith.addf %81, %85 : vector<4x16x16xf32>
    %cst_30 = arith.constant dense<0xFF800000> : vector<4x16xf32>
    %87 = vector.multi_reduction <maximumf>, %86, %cst_30 [2] : vector<4x16x16xf32> to vector<4x16xf32>
    %88 = vector.shape_cast %87 : vector<4x16xf32> to vector<4x16x1xf32>
    %89 = vector.broadcast %88 : vector<4x16x1xf32> to vector<4x16x16xf32>
    %90 = arith.subf %86, %89 : vector<4x16x16xf32>
    %91 = math.exp %90 : vector<4x16x16xf32>
    %cst_31 = arith.constant dense<0.000000e+00> : vector<4x16xf32>
    %92 = vector.multi_reduction <add>, %91, %cst_31 [2] : vector<4x16x16xf32> to vector<4x16xf32>
    %93 = vector.shape_cast %92 : vector<4x16xf32> to vector<4x16x1xf32>
    %94 = tpu.reciprocal %93 {approx = true} : vector<4x16x1xf32> -> vector<4x16x1xf32>
    %95 = vector.broadcast %94 : vector<4x16x1xf32> to vector<4x16x16xf32>
    %96 = arith.mulf %91, %95 : vector<4x16x16xf32>
    %97 = arith.truncf %96 : vector<4x16x16xf32> to vector<4x16x16xbf16>
    "tpu.trace_start"() <{level = 10 : i32, message = "bnm,bmd->bnd"}> : () -> ()
    %cst_32 = arith.constant dense<0.000000e+00> : vector<4x16x8xf32>
    %98 = tpu.matmul %97, %80, %cst_32 {dimension_numbers = #tpu.dot_dimension_numbers<[2], [1], [1], [2], [0, 0, 0, 1, 1, 2], [0], [0]>} : vector<4x16x16xbf16>, vector<4x16x8xbf16>, vector<4x16x8xf32> -> vector<4x16x8xf32>
    "tpu.trace_stop"() : () -> ()
    %99 = vector.shape_cast %98 : vector<4x16x8xf32> to vector<64x8xf32>
    %100 = arith.truncf %99 : vector<64x8xf32> to vector<64x8xbf16>
    %c8 = arith.constant 8 : index
    %c0_33 = arith.constant 0 : index
    %101 = vector.load %arg6[%c8, %c0_33] : memref<32x32xbf16, #tpu.memory_space<vmem>>, vector<8x32xbf16>
    %cst_34 = arith.constant dense<0.000000e+00> : vector<64x32xf32>
    %102 = tpu.matmul %100, %101, %cst_34 {dimension_numbers = #tpu.dot_dimension_numbers<[1], [0], [0], [1], [0, 0, 1, 1], [], []>} : vector<64x8xbf16>, vector<8x32xbf16>, vector<64x32xf32> -> vector<64x32xf32>
    %103 = arith.addf %71, %102 : vector<64x32xf32>
    %104 = vector.extract_strided_slice %38 {offsets = [0, 16], sizes = [64, 8], strides = [1, 1]} : vector<64x96xf32> to vector<64x8xf32>
    %105 = vector.shape_cast %104 : vector<64x8xf32> to vector<4x16x8xf32>
    %106 = arith.truncf %105 : vector<4x16x8xf32> to vector<4x16x8xbf16>
    %107 = vector.extract_strided_slice %38 {offsets = [0, 48], sizes = [64, 8], strides = [1, 1]} : vector<64x96xf32> to vector<64x8xf32>
    %108 = vector.shape_cast %107 : vector<64x8xf32> to vector<4x16x8xf32>
    %109 = arith.truncf %108 : vector<4x16x8xf32> to vector<4x16x8xbf16>
    %110 = vector.extract_strided_slice %38 {offsets = [0, 80], sizes = [64, 8], strides = [1, 1]} : vector<64x96xf32> to vector<64x8xf32>
    %111 = vector.shape_cast %110 : vector<64x8xf32> to vector<4x16x8xf32>
    %112 = arith.truncf %111 : vector<4x16x8xf32> to vector<4x16x8xbf16>
    "tpu.trace_start"() <{level = 10 : i32, message = "bnd,bmd->bnm"}> : () -> ()
    %cst_35 = arith.constant dense<0.000000e+00> : vector<4x16x16xf32>
    %113 = tpu.matmul %106, %109, %cst_35 {dimension_numbers = #tpu.dot_dimension_numbers<[2], [2], [1], [1], [0, 0, 0, 1, 1, 1], [0], [0]>} : vector<4x16x8xbf16>, vector<4x16x8xbf16>, vector<4x16x16xf32> -> vector<4x16x16xf32>
    "tpu.trace_stop"() : () -> ()
    %c2 = arith.constant 2 : index
    %c0_36 = arith.constant 0 : index
    %c0_37 = arith.constant 0 : index
    %114 = vector.load %arg3[%c2, %c0_36, %c0_37] : memref<4x16x16xf32, #tpu.memory_space<vmem>>, vector<1x16x16xf32>
    %115 = vector.shape_cast %114 : vector<1x16x16xf32> to vector<16x16xf32>
    %116 = vector.shape_cast %115 : vector<16x16xf32> to vector<1x16x16xf32>
    %117 = vector.broadcast %116 : vector<1x16x16xf32> to vector<4x16x16xf32>
    %118 = arith.addf %113, %117 : vector<4x16x16xf32>
    %cst_38 = arith.constant dense<0xFF800000> : vector<4x16xf32>
    %119 = vector.multi_reduction <maximumf>, %118, %cst_38 [2] : vector<4x16x16xf32> to vector<4x16xf32>
    %120 = vector.shape_cast %119 : vector<4x16xf32> to vector<4x16x1xf32>
    %121 = vector.broadcast %120 : vector<4x16x1xf32> to vector<4x16x16xf32>
    %122 = arith.subf %118, %121 : vector<4x16x16xf32>
    %123 = math.exp %122 : vector<4x16x16xf32>
    %cst_39 = arith.constant dense<0.000000e+00> : vector<4x16xf32>
    %124 = vector.multi_reduction <add>, %123, %cst_39 [2] : vector<4x16x16xf32> to vector<4x16xf32>
    %125 = vector.shape_cast %124 : vector<4x16xf32> to vector<4x16x1xf32>
    %126 = tpu.reciprocal %125 {approx = true} : vector<4x16x1xf32> -> vector<4x16x1xf32>
    %127 = vector.broadcast %126 : vector<4x16x1xf32> to vector<4x16x16xf32>
    %128 = arith.mulf %123, %127 : vector<4x16x16xf32>
    %129 = arith.truncf %128 : vector<4x16x16xf32> to vector<4x16x16xbf16>
    "tpu.trace_start"() <{level = 10 : i32, message = "bnm,bmd->bnd"}> : () -> ()
    %cst_40 = arith.constant dense<0.000000e+00> : vector<4x16x8xf32>
    %130 = tpu.matmul %129, %112, %cst_40 {dimension_numbers = #tpu.dot_dimension_numbers<[2], [1], [1], [2], [0, 0, 0, 1, 1, 2], [0], [0]>} : vector<4x16x16xbf16>, vector<4x16x8xbf16>, vector<4x16x8xf32> -> vector<4x16x8xf32>
    "tpu.trace_stop"() : () -> ()
    %131 = vector.shape_cast %130 : vector<4x16x8xf32> to vector<64x8xf32>
    %132 = arith.truncf %131 : vector<64x8xf32> to vector<64x8xbf16>
    %c16 = arith.constant 16 : index
    %c0_41 = arith.constant 0 : index
    %133 = vector.load %arg6[%c16, %c0_41] : memref<32x32xbf16, #tpu.memory_space<vmem>>, vector<8x32xbf16>
    %cst_42 = arith.constant dense<0.000000e+00> : vector<64x32xf32>
    %134 = tpu.matmul %132, %133, %cst_42 {dimension_numbers = #tpu.dot_dimension_numbers<[1], [0], [0], [1], [0, 0, 1, 1], [], []>} : vector<64x8xbf16>, vector<8x32xbf16>, vector<64x32xf32> -> vector<64x32xf32>
    %135 = arith.addf %103, %134 : vector<64x32xf32>
    %136 = vector.extract_strided_slice %38 {offsets = [0, 24], sizes = [64, 8], strides = [1, 1]} : vector<64x96xf32> to vector<64x8xf32>
    %137 = vector.shape_cast %136 : vector<64x8xf32> to vector<4x16x8xf32>
    %138 = arith.truncf %137 : vector<4x16x8xf32> to vector<4x16x8xbf16>
    %139 = vector.extract_strided_slice %38 {offsets = [0, 56], sizes = [64, 8], strides = [1, 1]} : vector<64x96xf32> to vector<64x8xf32>
    %140 = vector.shape_cast %139 : vector<64x8xf32> to vector<4x16x8xf32>
    %141 = arith.truncf %140 : vector<4x16x8xf32> to vector<4x16x8xbf16>
    %142 = vector.extract_strided_slice %38 {offsets = [0, 88], sizes = [64, 8], strides = [1, 1]} : vector<64x96xf32> to vector<64x8xf32>
    %143 = vector.shape_cast %142 : vector<64x8xf32> to vector<4x16x8xf32>
    %144 = arith.truncf %143 : vector<4x16x8xf32> to vector<4x16x8xbf16>
    "tpu.trace_start"() <{level = 10 : i32, message = "bnd,bmd->bnm"}> : () -> ()
    %cst_43 = arith.constant dense<0.000000e+00> : vector<4x16x16xf32>
    %145 = tpu.matmul %138, %141, %cst_43 {dimension_numbers = #tpu.dot_dimension_numbers<[2], [2], [1], [1], [0, 0, 0, 1, 1, 1], [0], [0]>} : vector<4x16x8xbf16>, vector<4x16x8xbf16>, vector<4x16x16xf32> -> vector<4x16x16xf32>
    "tpu.trace_stop"() : () -> ()
    %c3 = arith.constant 3 : index
    %c0_44 = arith.constant 0 : index
    %c0_45 = arith.constant 0 : index
    %146 = vector.load %arg3[%c3, %c0_44, %c0_45] : memref<4x16x16xf32, #tpu.memory_space<vmem>>, vector<1x16x16xf32>
    %147 = vector.shape_cast %146 : vector<1x16x16xf32> to vector<16x16xf32>
    %148 = vector.shape_cast %147 : vector<16x16xf32> to vector<1x16x16xf32>
    %149 = vector.broadcast %148 : vector<1x16x16xf32> to vector<4x16x16xf32>
    %150 = arith.addf %145, %149 : vector<4x16x16xf32>
    %cst_46 = arith.constant dense<0xFF800000> : vector<4x16xf32>
    %151 = vector.multi_reduction <maximumf>, %150, %cst_46 [2] : vector<4x16x16xf32> to vector<4x16xf32>
    %152 = vector.shape_cast %151 : vector<4x16xf32> to vector<4x16x1xf32>
    %153 = vector.broadcast %152 : vector<4x16x1xf32> to vector<4x16x16xf32>
    %154 = arith.subf %150, %153 : vector<4x16x16xf32>
    %155 = math.exp %154 : vector<4x16x16xf32>
    %cst_47 = arith.constant dense<0.000000e+00> : vector<4x16xf32>
    %156 = vector.multi_reduction <add>, %155, %cst_47 [2] : vector<4x16x16xf32> to vector<4x16xf32>
    %157 = vector.shape_cast %156 : vector<4x16xf32> to vector<4x16x1xf32>
    %158 = tpu.reciprocal %157 {approx = true} : vector<4x16x1xf32> -> vector<4x16x1xf32>
    %159 = vector.broadcast %158 : vector<4x16x1xf32> to vector<4x16x16xf32>
    %160 = arith.mulf %155, %159 : vector<4x16x16xf32>
    %161 = arith.truncf %160 : vector<4x16x16xf32> to vector<4x16x16xbf16>
    "tpu.trace_start"() <{level = 10 : i32, message = "bnm,bmd->bnd"}> : () -> ()
    %cst_48 = arith.constant dense<0.000000e+00> : vector<4x16x8xf32>
    %162 = tpu.matmul %161, %144, %cst_48 {dimension_numbers = #tpu.dot_dimension_numbers<[2], [1], [1], [2], [0, 0, 0, 1, 1, 2], [0], [0]>} : vector<4x16x16xbf16>, vector<4x16x8xbf16>, vector<4x16x8xf32> -> vector<4x16x8xf32>
    "tpu.trace_stop"() : () -> ()
    %163 = vector.shape_cast %162 : vector<4x16x8xf32> to vector<64x8xf32>
    %164 = arith.truncf %163 : vector<64x8xf32> to vector<64x8xbf16>
    %c24 = arith.constant 24 : index
    %c0_49 = arith.constant 0 : index
    %165 = vector.load %arg6[%c24, %c0_49] : memref<32x32xbf16, #tpu.memory_space<vmem>>, vector<8x32xbf16>
    %cst_50 = arith.constant dense<0.000000e+00> : vector<64x32xf32>
    %166 = tpu.matmul %164, %165, %cst_50 {dimension_numbers = #tpu.dot_dimension_numbers<[1], [0], [0], [1], [0, 0, 1, 1], [], []>} : vector<64x8xbf16>, vector<8x32xbf16>, vector<64x32xf32> -> vector<64x32xf32>
    %167 = arith.addf %135, %166 : vector<64x32xf32>
    %c0_51 = arith.constant 0 : index
    %c0_52 = arith.constant 0 : index
    %168 = vector.load %arg7[%c0_51, %c0_52] : memref<1x32xf32, #tpu.memory_space<vmem>>, vector<1x32xf32>
    %169 = vector.shape_cast %168 : vector<1x32xf32> to vector<32xf32>
    %170 = vector.shape_cast %169 : vector<32xf32> to vector<1x32xf32>
    %171 = vector.broadcast %170 : vector<1x32xf32> to vector<64x32xf32>
    %172 = arith.addf %167, %171 : vector<64x32xf32>
    %173 = vector.shape_cast %172 : vector<64x32xf32> to vector<4x16x32xf32>
    %c0_53 = arith.constant 0 : index
    %c0_54 = arith.constant 0 : index
    %c0_55 = arith.constant 0 : index
    %c0_56 = arith.constant 0 : index
    %174 = vector.load %arg10[%c0_53, %c0_54, %c0_55, %c0_56] : memref<1x4x16x32xf32, #tpu.memory_space<vmem>>, vector<1x4x16x32xf32>
    %175 = vector.shape_cast %174 : vector<1x4x16x32xf32> to vector<4x16x32xf32>
    %176 = vector.shape_cast %173 : vector<4x16x32xf32> to vector<1x4x16x32xf32>
    tpu.vector_store %arg10[%c0_53, %c0_54, %c0_55, %c0_56], %176 {strides = array<i32>} : memref<1x4x16x32xf32, #tpu.memory_space<vmem>>, vector<1x4x16x32xf32>,
    return
  }
  func.func @transform_0(%arg0: i32, %arg1: i32) -> (i32, i32, i32, i32) {
    %c0_i32 = arith.constant 0 : i32
    %c0_i32_0 = arith.constant 0 : i32
    %c0_i32_1 = arith.constant 0 : i32
    return %arg0, %arg1, %c0_i32, %c0_i32_0 : i32, i32, i32, i32
  }
  func.func @transform_1(%arg0: i32, %arg1: i32) -> (i32, i32, i32) {
    %c0_i32 = arith.constant 0 : i32
    %c0_i32_0 = arith.constant 0 : i32
    %c0_i32_1 = arith.constant 0 : i32
    %c0_i32_2 = arith.constant 0 : i32
    return %c0_i32, %c0_i32_0, %c0_i32_1 : i32, i32, i32
  }
  func.func @transform_2(%arg0: i32, %arg1: i32) -> (i32, i32) {
    %c0_i32 = arith.constant 0 : i32
    %c0_i32_0 = arith.constant 0 : i32
    %c0_i32_1 = arith.constant 0 : i32
    return %c0_i32, %c0_i32_0 : i32, i32
  }
  func.func @transform_3(%arg0: i32, %arg1: i32) -> (i32, i32) {
    %c0_i32 = arith.constant 0 : i32
    %c0_i32_0 = arith.constant 0 : i32
    %c0_i32_1 = arith.constant 0 : i32
    return %c0_i32, %c0_i32_0 : i32, i32
  }
  func.func @transform_4(%arg0: i32, %arg1: i32) -> (i32, i32) {
    %c0_i32 = arith.constant 0 : i32
    %c0_i32_0 = arith.constant 0 : i32
    %c0_i32_1 = arith.constant 0 : i32
    return %c0_i32, %c0_i32_0 : i32, i32
  }
  func.func @transform_5(%arg0: i32, %arg1: i32) -> (i32, i32) {
    %c0_i32 = arith.constant 0 : i32
    %c0_i32_0 = arith.constant 0 : i32
    %c0_i32_1 = arith.constant 0 : i32
    return %c0_i32, %c0_i32_0 : i32, i32
  }
  func.func @transform_6(%arg0: i32, %arg1: i32) -> (i32, i32) {
    %c0_i32 = arith.constant 0 : i32
    %c0_i32_0 = arith.constant 0 : i32
    %c0_i32_1 = arith.constant 0 : i32
    return %c0_i32, %c0_i32_0 : i32, i32
  }
  func.func @transform_7(%arg0: i32, %arg1: i32) -> (i32, i32) {
    %c0_i32 = arith.constant 0 : i32
    %c0_i32_0 = arith.constant 0 : i32
    %c0_i32_1 = arith.constant 0 : i32
    return %c0_i32, %c0_i32_0 : i32, i32
  }
  func.func @transform_8(%arg0: i32, %arg1: i32) -> (i32, i32, i32, i32) {
    %c0_i32 = arith.constant 0 : i32
    %c0_i32_0 = arith.constant 0 : i32
    %c0_i32_1 = arith.constant 0 : i32
    return %arg0, %arg1, %c0_i32, %c0_i32_0 : i32, i32, i32, i32
  }
}

module attributes {stable_mosaic.version = 11 : i64} {
  func.func @_res_ln_ffn_kernel(%arg0: i32, %arg1: memref<128x32xf32, #tpu.memory_space<vmem>>, %arg2: memref<128x32xf32, #tpu.memory_space<vmem>>, %arg3: memref<1x32xf32, #tpu.memory_space<vmem>>, %arg4: memref<1x32xf32, #tpu.memory_space<vmem>>, %arg5: memref<32x64xbf16, #tpu.memory_space<vmem>>, %arg6: memref<1x64xf32, #tpu.memory_space<vmem>>, %arg7: memref<64x32xbf16, #tpu.memory_space<vmem>>, %arg8: memref<1x32xf32, #tpu.memory_space<vmem>>, %arg9: memref<128x32xf32, #tpu.memory_space<vmem>>) attributes {dimension_semantics = [#tpu.dimension_semantics<parallel>], iteration_bounds = array<i64: 1>, scalar_prefetch = 0 : i64, scratch_operands = 0 : i64, tpu.core_type = #tpu.core_type<tc>, window_params = [{transform_indices = @transform_0, window_bounds = array<i64: 128, 32>}, {transform_indices = @transform_1, window_bounds = array<i64: 128, 32>}, {pipeline_mode = #tpu.pipeline_mode<synchronous>, transform_indices = @transform_2, window_bounds = array<i64: 1, 32>}, {pipeline_mode = #tpu.pipeline_mode<synchronous>, transform_indices = @transform_3, window_bounds = array<i64: 1, 32>}, {pipeline_mode = #tpu.pipeline_mode<synchronous>, transform_indices = @transform_4, window_bounds = array<i64: 32, 64>}, {pipeline_mode = #tpu.pipeline_mode<synchronous>, transform_indices = @transform_5, window_bounds = array<i64: 1, 64>}, {pipeline_mode = #tpu.pipeline_mode<synchronous>, transform_indices = @transform_6, window_bounds = array<i64: 64, 32>}, {pipeline_mode = #tpu.pipeline_mode<synchronous>, transform_indices = @transform_7, window_bounds = array<i64: 1, 32>}, {transform_indices = @transform_8, window_bounds = array<i64: 128, 32>}]} {
    %c0 = arith.constant 0 : index
    %c0_0 = arith.constant 0 : index
    %0 = vector.load %arg1[%c0, %c0_0] : memref<128x32xf32, #tpu.memory_space<vmem>>, vector<128x32xf32>
    %c0_1 = arith.constant 0 : index
    %c0_2 = arith.constant 0 : index
    %1 = vector.load %arg2[%c0_1, %c0_2] : memref<128x32xf32, #tpu.memory_space<vmem>>, vector<128x32xf32>
    %2 = arith.addf %0, %1 : vector<128x32xf32>
    %cst = arith.constant dense<0.000000e+00> : vector<128xf32>
    %3 = vector.multi_reduction <add>, %2, %cst [1] : vector<128x32xf32> to vector<128xf32>
    %4 = vector.shape_cast %3 : vector<128xf32> to vector<128x1xf32>
    %cst_3 = arith.constant 3.200000e+01 : f32
    %5 = vector.broadcast %cst_3 : f32 to vector<128x1xf32>
    %6 = arith.divf %4, %5 : vector<128x1xf32>
    %7 = vector.broadcast %6 : vector<128x1xf32> to vector<128x32xf32>
    %8 = arith.subf %2, %7 : vector<128x32xf32>
    %9 = arith.mulf %8, %8 : vector<128x32xf32>
    %cst_4 = arith.constant dense<0.000000e+00> : vector<128xf32>
    %10 = vector.multi_reduction <add>, %9, %cst_4 [1] : vector<128x32xf32> to vector<128xf32>
    %11 = vector.shape_cast %10 : vector<128xf32> to vector<128x1xf32>
    %cst_5 = arith.constant 3.200000e+01 : f32
    %12 = vector.broadcast %cst_5 : f32 to vector<128x1xf32>
    %13 = arith.divf %11, %12 : vector<128x1xf32>
    %14 = vector.broadcast %6 : vector<128x1xf32> to vector<128x32xf32>
    %15 = arith.subf %2, %14 : vector<128x32xf32>
    %cst_6 = arith.constant 9.99999974E-6 : f32
    %16 = vector.broadcast %cst_6 : f32 to vector<128x1xf32>
    %17 = arith.addf %13, %16 : vector<128x1xf32>
    %18 = math.rsqrt %17 : vector<128x1xf32>
    %19 = vector.broadcast %18 : vector<128x1xf32> to vector<128x32xf32>
    %20 = arith.mulf %15, %19 : vector<128x32xf32>
    %c0_7 = arith.constant 0 : index
    %c0_8 = arith.constant 0 : index
    %21 = vector.load %arg3[%c0_7, %c0_8] : memref<1x32xf32, #tpu.memory_space<vmem>>, vector<1x32xf32>
    %22 = vector.shape_cast %21 : vector<1x32xf32> to vector<32xf32>
    %23 = vector.shape_cast %22 : vector<32xf32> to vector<1x32xf32>
    %24 = vector.broadcast %23 : vector<1x32xf32> to vector<128x32xf32>
    %25 = arith.mulf %20, %24 : vector<128x32xf32>
    %c0_9 = arith.constant 0 : index
    %c0_10 = arith.constant 0 : index
    %26 = vector.load %arg4[%c0_9, %c0_10] : memref<1x32xf32, #tpu.memory_space<vmem>>, vector<1x32xf32>
    %27 = vector.shape_cast %26 : vector<1x32xf32> to vector<32xf32>
    %28 = vector.shape_cast %27 : vector<32xf32> to vector<1x32xf32>
    %29 = vector.broadcast %28 : vector<1x32xf32> to vector<128x32xf32>
    %30 = arith.addf %25, %29 : vector<128x32xf32>
    %31 = arith.truncf %30 : vector<128x32xf32> to vector<128x32xbf16>
    %c0_11 = arith.constant 0 : index
    %c0_12 = arith.constant 0 : index
    %32 = vector.load %arg5[%c0_11, %c0_12] : memref<32x64xbf16, #tpu.memory_space<vmem>>, vector<32x64xbf16>
    %cst_13 = arith.constant dense<0.000000e+00> : vector<128x64xf32>
    %33 = tpu.matmul %31, %32, %cst_13 {dimension_numbers = #tpu.dot_dimension_numbers<[1], [0], [0], [1], [0, 0, 1, 1], [], []>} : vector<128x32xbf16>, vector<32x64xbf16>, vector<128x64xf32> -> vector<128x64xf32>
    %c0_14 = arith.constant 0 : index
    %c0_15 = arith.constant 0 : index
    %34 = vector.load %arg6[%c0_14, %c0_15] : memref<1x64xf32, #tpu.memory_space<vmem>>, vector<1x64xf32>
    %35 = vector.shape_cast %34 : vector<1x64xf32> to vector<64xf32>
    %36 = vector.shape_cast %35 : vector<64xf32> to vector<1x64xf32>
    %37 = vector.broadcast %36 : vector<1x64xf32> to vector<128x64xf32>
    %38 = arith.addf %33, %37 : vector<128x64xf32>
    %cst_16 = arith.constant 5.000000e-01 : f32
    %39 = vector.broadcast %cst_16 : f32 to vector<128x64xf32>
    %40 = arith.mulf %39, %38 : vector<128x64xf32>
    %cst_17 = arith.constant 0.707106769 : f32
    %41 = vector.broadcast %cst_17 : f32 to vector<128x64xf32>
    %42 = arith.mulf %38, %41 : vector<128x64xf32>
    %43 = math.erf %42 : vector<128x64xf32>
    %cst_18 = arith.constant 1.000000e+00 : f32
    %44 = vector.broadcast %cst_18 : f32 to vector<128x64xf32>
    %45 = arith.addf %44, %43 : vector<128x64xf32>
    %46 = arith.mulf %40, %45 : vector<128x64xf32>
    %47 = arith.truncf %46 : vector<128x64xf32> to vector<128x64xbf16>
    %c0_19 = arith.constant 0 : index
    %c0_20 = arith.constant 0 : index
    %48 = vector.load %arg7[%c0_19, %c0_20] : memref<64x32xbf16, #tpu.memory_space<vmem>>, vector<64x32xbf16>
    %cst_21 = arith.constant dense<0.000000e+00> : vector<128x32xf32>
    %49 = tpu.matmul %47, %48, %cst_21 {dimension_numbers = #tpu.dot_dimension_numbers<[1], [0], [0], [1], [0, 0, 1, 1], [], []>} : vector<128x64xbf16>, vector<64x32xbf16>, vector<128x32xf32> -> vector<128x32xf32>
    %c0_22 = arith.constant 0 : index
    %c0_23 = arith.constant 0 : index
    %50 = vector.load %arg8[%c0_22, %c0_23] : memref<1x32xf32, #tpu.memory_space<vmem>>, vector<1x32xf32>
    %51 = vector.shape_cast %50 : vector<1x32xf32> to vector<32xf32>
    %52 = vector.shape_cast %51 : vector<32xf32> to vector<1x32xf32>
    %53 = vector.broadcast %52 : vector<1x32xf32> to vector<128x32xf32>
    %54 = arith.addf %49, %53 : vector<128x32xf32>
    %55 = arith.addf %2, %54 : vector<128x32xf32>
    %c0_24 = arith.constant 0 : index
    %c0_25 = arith.constant 0 : index
    %56 = vector.load %arg9[%c0_24, %c0_25] : memref<128x32xf32, #tpu.memory_space<vmem>>, vector<128x32xf32>
    tpu.vector_store %arg9[%c0_24, %c0_25], %55 {strides = array<i32>} : memref<128x32xf32, #tpu.memory_space<vmem>>, vector<128x32xf32>,
    return
  }
  func.func @transform_0(%arg0: i32) -> (i32, i32) {
    %c0_i32 = arith.constant 0 : i32
    %c0_i32_0 = arith.constant 0 : i32
    return %arg0, %c0_i32 : i32, i32
  }
  func.func @transform_1(%arg0: i32) -> (i32, i32) {
    %c0_i32 = arith.constant 0 : i32
    %c0_i32_0 = arith.constant 0 : i32
    return %arg0, %c0_i32 : i32, i32
  }
  func.func @transform_2(%arg0: i32) -> (i32, i32) {
    %c0_i32 = arith.constant 0 : i32
    %c0_i32_0 = arith.constant 0 : i32
    %c0_i32_1 = arith.constant 0 : i32
    return %c0_i32, %c0_i32_0 : i32, i32
  }
  func.func @transform_3(%arg0: i32) -> (i32, i32) {
    %c0_i32 = arith.constant 0 : i32
    %c0_i32_0 = arith.constant 0 : i32
    %c0_i32_1 = arith.constant 0 : i32
    return %c0_i32, %c0_i32_0 : i32, i32
  }
  func.func @transform_4(%arg0: i32) -> (i32, i32) {
    %c0_i32 = arith.constant 0 : i32
    %c0_i32_0 = arith.constant 0 : i32
    %c0_i32_1 = arith.constant 0 : i32
    return %c0_i32, %c0_i32_0 : i32, i32
  }
  func.func @transform_5(%arg0: i32) -> (i32, i32) {
    %c0_i32 = arith.constant 0 : i32
    %c0_i32_0 = arith.constant 0 : i32
    %c0_i32_1 = arith.constant 0 : i32
    return %c0_i32, %c0_i32_0 : i32, i32
  }
  func.func @transform_6(%arg0: i32) -> (i32, i32) {
    %c0_i32 = arith.constant 0 : i32
    %c0_i32_0 = arith.constant 0 : i32
    %c0_i32_1 = arith.constant 0 : i32
    return %c0_i32, %c0_i32_0 : i32, i32
  }
  func.func @transform_7(%arg0: i32) -> (i32, i32) {
    %c0_i32 = arith.constant 0 : i32
    %c0_i32_0 = arith.constant 0 : i32
    %c0_i32_1 = arith.constant 0 : i32
    return %c0_i32, %c0_i32_0 : i32, i32
  }
  func.func @transform_8(%arg0: i32) -> (i32, i32) {
    %c0_i32 = arith.constant 0 : i32
    %c0_i32_0 = arith.constant 0 : i32
    return %arg0, %c0_i32 : i32, i32
  }
}

module attributes {stable_mosaic.version = 11 : i64} {
  func.func @_wmsa_masked_kernel(%arg0: i32, %arg1: i32, %arg2: memref<1x4x16x32xf32, #tpu.memory_space<vmem>>, %arg3: memref<4x16x16xf32, #tpu.memory_space<vmem>>, %arg4: memref<4x16x16xf32, #tpu.memory_space<vmem>>, %arg5: memref<32x96xbf16, #tpu.memory_space<vmem>>, %arg6: memref<1x96xf32, #tpu.memory_space<vmem>>, %arg7: memref<32x32xbf16, #tpu.memory_space<vmem>>, %arg8: memref<1x32xf32, #tpu.memory_space<vmem>>, %arg9: memref<1x32xf32, #tpu.memory_space<vmem>>, %arg10: memref<1x32xf32, #tpu.memory_space<vmem>>, %arg11: memref<1x4x16x32xf32, #tpu.memory_space<vmem>>) attributes {dimension_semantics = [#tpu.dimension_semantics<parallel>, #tpu.dimension_semantics<parallel>], iteration_bounds = array<i64: 2, 1>, scalar_prefetch = 0 : i64, scratch_operands = 0 : i64, tpu.core_type = #tpu.core_type<tc>, window_params = [{transform_indices = @transform_0, window_bounds = array<i64: 1, 4, 16, 32>}, {transform_indices = @transform_1, window_bounds = array<i64: 4, 16, 16>}, {pipeline_mode = #tpu.pipeline_mode<synchronous>, transform_indices = @transform_2, window_bounds = array<i64: 4, 16, 16>}, {pipeline_mode = #tpu.pipeline_mode<synchronous>, transform_indices = @transform_3, window_bounds = array<i64: 32, 96>}, {pipeline_mode = #tpu.pipeline_mode<synchronous>, transform_indices = @transform_4, window_bounds = array<i64: 1, 96>}, {pipeline_mode = #tpu.pipeline_mode<synchronous>, transform_indices = @transform_5, window_bounds = array<i64: 32, 32>}, {pipeline_mode = #tpu.pipeline_mode<synchronous>, transform_indices = @transform_6, window_bounds = array<i64: 1, 32>}, {pipeline_mode = #tpu.pipeline_mode<synchronous>, transform_indices = @transform_7, window_bounds = array<i64: 1, 32>}, {pipeline_mode = #tpu.pipeline_mode<synchronous>, transform_indices = @transform_8, window_bounds = array<i64: 1, 32>}, {transform_indices = @transform_9, window_bounds = array<i64: 1, 4, 16, 32>}]} {
    %c0 = arith.constant 0 : index
    %c0_0 = arith.constant 0 : index
    %c0_1 = arith.constant 0 : index
    %c0_2 = arith.constant 0 : index
    %0 = vector.load %arg2[%c0, %c0_0, %c0_1, %c0_2] : memref<1x4x16x32xf32, #tpu.memory_space<vmem>>, vector<1x4x16x32xf32>
    %1 = vector.shape_cast %0 : vector<1x4x16x32xf32> to vector<4x16x32xf32>
    %2 = vector.shape_cast %1 : vector<4x16x32xf32> to vector<64x32xf32>
    %cst = arith.constant dense<0.000000e+00> : vector<64xf32>
    %3 = vector.multi_reduction <add>, %2, %cst [1] : vector<64x32xf32> to vector<64xf32>
    %4 = vector.shape_cast %3 : vector<64xf32> to vector<64x1xf32>
    %cst_3 = arith.constant 3.200000e+01 : f32
    %5 = vector.broadcast %cst_3 : f32 to vector<64x1xf32>
    %6 = arith.divf %4, %5 : vector<64x1xf32>
    %7 = vector.broadcast %6 : vector<64x1xf32> to vector<64x32xf32>
    %8 = arith.subf %2, %7 : vector<64x32xf32>
    %9 = arith.mulf %8, %8 : vector<64x32xf32>
    %cst_4 = arith.constant dense<0.000000e+00> : vector<64xf32>
    %10 = vector.multi_reduction <add>, %9, %cst_4 [1] : vector<64x32xf32> to vector<64xf32>
    %11 = vector.shape_cast %10 : vector<64xf32> to vector<64x1xf32>
    %cst_5 = arith.constant 3.200000e+01 : f32
    %12 = vector.broadcast %cst_5 : f32 to vector<64x1xf32>
    %13 = arith.divf %11, %12 : vector<64x1xf32>
    %14 = vector.broadcast %6 : vector<64x1xf32> to vector<64x32xf32>
    %15 = arith.subf %2, %14 : vector<64x32xf32>
    %cst_6 = arith.constant 9.99999974E-6 : f32
    %16 = vector.broadcast %cst_6 : f32 to vector<64x1xf32>
    %17 = arith.addf %13, %16 : vector<64x1xf32>
    %18 = math.rsqrt %17 : vector<64x1xf32>
    %19 = vector.broadcast %18 : vector<64x1xf32> to vector<64x32xf32>
    %20 = arith.mulf %15, %19 : vector<64x32xf32>
    %c0_7 = arith.constant 0 : index
    %c0_8 = arith.constant 0 : index
    %21 = vector.load %arg9[%c0_7, %c0_8] : memref<1x32xf32, #tpu.memory_space<vmem>>, vector<1x32xf32>
    %22 = vector.shape_cast %21 : vector<1x32xf32> to vector<32xf32>
    %23 = vector.shape_cast %22 : vector<32xf32> to vector<1x32xf32>
    %24 = vector.broadcast %23 : vector<1x32xf32> to vector<64x32xf32>
    %25 = arith.mulf %20, %24 : vector<64x32xf32>
    %c0_9 = arith.constant 0 : index
    %c0_10 = arith.constant 0 : index
    %26 = vector.load %arg10[%c0_9, %c0_10] : memref<1x32xf32, #tpu.memory_space<vmem>>, vector<1x32xf32>
    %27 = vector.shape_cast %26 : vector<1x32xf32> to vector<32xf32>
    %28 = vector.shape_cast %27 : vector<32xf32> to vector<1x32xf32>
    %29 = vector.broadcast %28 : vector<1x32xf32> to vector<64x32xf32>
    %30 = arith.addf %25, %29 : vector<64x32xf32>
    %31 = arith.truncf %30 : vector<64x32xf32> to vector<64x32xbf16>
    %c0_11 = arith.constant 0 : index
    %c0_12 = arith.constant 0 : index
    %32 = vector.load %arg5[%c0_11, %c0_12] : memref<32x96xbf16, #tpu.memory_space<vmem>>, vector<32x96xbf16>
    %cst_13 = arith.constant dense<0.000000e+00> : vector<64x96xf32>
    %33 = tpu.matmul %31, %32, %cst_13 {dimension_numbers = #tpu.dot_dimension_numbers<[1], [0], [0], [1], [0, 0, 1, 1], [], []>} : vector<64x32xbf16>, vector<32x96xbf16>, vector<64x96xf32> -> vector<64x96xf32>
    %c0_14 = arith.constant 0 : index
    %c0_15 = arith.constant 0 : index
    %34 = vector.load %arg6[%c0_14, %c0_15] : memref<1x96xf32, #tpu.memory_space<vmem>>, vector<1x96xf32>
    %35 = vector.shape_cast %34 : vector<1x96xf32> to vector<96xf32>
    %36 = vector.shape_cast %35 : vector<96xf32> to vector<1x96xf32>
    %37 = vector.broadcast %36 : vector<1x96xf32> to vector<64x96xf32>
    %38 = arith.addf %33, %37 : vector<64x96xf32>
    %c0_16 = arith.constant 0 : index
    %c0_17 = arith.constant 0 : index
    %c0_18 = arith.constant 0 : index
    %39 = vector.load %arg3[%c0_16, %c0_17, %c0_18] : memref<4x16x16xf32, #tpu.memory_space<vmem>>, vector<4x16x16xf32>
    %cst_19 = arith.constant 0.000000e+00 : f32
    %40 = vector.broadcast %cst_19 : f32 to vector<64x32xf32>
    %41 = vector.extract_strided_slice %38 {offsets = [0, 0], sizes = [64, 8], strides = [1, 1]} : vector<64x96xf32> to vector<64x8xf32>
    %42 = vector.shape_cast %41 : vector<64x8xf32> to vector<4x16x8xf32>
    %43 = arith.truncf %42 : vector<4x16x8xf32> to vector<4x16x8xbf16>
    %44 = vector.extract_strided_slice %38 {offsets = [0, 32], sizes = [64, 8], strides = [1, 1]} : vector<64x96xf32> to vector<64x8xf32>
    %45 = vector.shape_cast %44 : vector<64x8xf32> to vector<4x16x8xf32>
    %46 = arith.truncf %45 : vector<4x16x8xf32> to vector<4x16x8xbf16>
    %47 = vector.extract_strided_slice %38 {offsets = [0, 64], sizes = [64, 8], strides = [1, 1]} : vector<64x96xf32> to vector<64x8xf32>
    %48 = vector.shape_cast %47 : vector<64x8xf32> to vector<4x16x8xf32>
    %49 = arith.truncf %48 : vector<4x16x8xf32> to vector<4x16x8xbf16>
    "tpu.trace_start"() <{level = 10 : i32, message = "bnd,bmd->bnm"}> : () -> ()
    %cst_20 = arith.constant dense<0.000000e+00> : vector<4x16x16xf32>
    %50 = tpu.matmul %43, %46, %cst_20 {dimension_numbers = #tpu.dot_dimension_numbers<[2], [2], [1], [1], [0, 0, 0, 1, 1, 1], [0], [0]>} : vector<4x16x8xbf16>, vector<4x16x8xbf16>, vector<4x16x16xf32> -> vector<4x16x16xf32>
    "tpu.trace_stop"() : () -> ()
    %c0_21 = arith.constant 0 : index
    %c0_22 = arith.constant 0 : index
    %c0_23 = arith.constant 0 : index
    %51 = vector.load %arg4[%c0_21, %c0_22, %c0_23] : memref<4x16x16xf32, #tpu.memory_space<vmem>>, vector<1x16x16xf32>
    %52 = vector.shape_cast %51 : vector<1x16x16xf32> to vector<16x16xf32>
    %53 = vector.shape_cast %52 : vector<16x16xf32> to vector<1x16x16xf32>
    %54 = vector.broadcast %53 : vector<1x16x16xf32> to vector<4x16x16xf32>
    %55 = arith.addf %50, %54 : vector<4x16x16xf32>
    %56 = arith.addf %55, %39 : vector<4x16x16xf32>
    %cst_24 = arith.constant dense<0xFF800000> : vector<4x16xf32>
    %57 = vector.multi_reduction <maximumf>, %56, %cst_24 [2] : vector<4x16x16xf32> to vector<4x16xf32>
    %58 = vector.shape_cast %57 : vector<4x16xf32> to vector<4x16x1xf32>
    %59 = vector.broadcast %58 : vector<4x16x1xf32> to vector<4x16x16xf32>
    %60 = arith.subf %56, %59 : vector<4x16x16xf32>
    %61 = math.exp %60 : vector<4x16x16xf32>
    %cst_25 = arith.constant dense<0.000000e+00> : vector<4x16xf32>
    %62 = vector.multi_reduction <add>, %61, %cst_25 [2] : vector<4x16x16xf32> to vector<4x16xf32>
    %63 = vector.shape_cast %62 : vector<4x16xf32> to vector<4x16x1xf32>
    %64 = tpu.reciprocal %63 {approx = true} : vector<4x16x1xf32> -> vector<4x16x1xf32>
    %65 = vector.broadcast %64 : vector<4x16x1xf32> to vector<4x16x16xf32>
    %66 = arith.mulf %61, %65 : vector<4x16x16xf32>
    %67 = arith.truncf %66 : vector<4x16x16xf32> to vector<4x16x16xbf16>
    "tpu.trace_start"() <{level = 10 : i32, message = "bnm,bmd->bnd"}> : () -> ()
    %cst_26 = arith.constant dense<0.000000e+00> : vector<4x16x8xf32>
    %68 = tpu.matmul %67, %49, %cst_26 {dimension_numbers = #tpu.dot_dimension_numbers<[2], [1], [1], [2], [0, 0, 0, 1, 1, 2], [0], [0]>} : vector<4x16x16xbf16>, vector<4x16x8xbf16>, vector<4x16x8xf32> -> vector<4x16x8xf32>
    "tpu.trace_stop"() : () -> ()
    %69 = vector.shape_cast %68 : vector<4x16x8xf32> to vector<64x8xf32>
    %70 = arith.truncf %69 : vector<64x8xf32> to vector<64x8xbf16>
    %c0_27 = arith.constant 0 : index
    %c0_28 = arith.constant 0 : index
    %71 = vector.load %arg7[%c0_27, %c0_28] : memref<32x32xbf16, #tpu.memory_space<vmem>>, vector<8x32xbf16>
    %cst_29 = arith.constant dense<0.000000e+00> : vector<64x32xf32>
    %72 = tpu.matmul %70, %71, %cst_29 {dimension_numbers = #tpu.dot_dimension_numbers<[1], [0], [0], [1], [0, 0, 1, 1], [], []>} : vector<64x8xbf16>, vector<8x32xbf16>, vector<64x32xf32> -> vector<64x32xf32>
    %73 = arith.addf %40, %72 : vector<64x32xf32>
    %74 = vector.extract_strided_slice %38 {offsets = [0, 8], sizes = [64, 8], strides = [1, 1]} : vector<64x96xf32> to vector<64x8xf32>
    %75 = vector.shape_cast %74 : vector<64x8xf32> to vector<4x16x8xf32>
    %76 = arith.truncf %75 : vector<4x16x8xf32> to vector<4x16x8xbf16>
    %77 = vector.extract_strided_slice %38 {offsets = [0, 40], sizes = [64, 8], strides = [1, 1]} : vector<64x96xf32> to vector<64x8xf32>
    %78 = vector.shape_cast %77 : vector<64x8xf32> to vector<4x16x8xf32>
    %79 = arith.truncf %78 : vector<4x16x8xf32> to vector<4x16x8xbf16>
    %80 = vector.extract_strided_slice %38 {offsets = [0, 72], sizes = [64, 8], strides = [1, 1]} : vector<64x96xf32> to vector<64x8xf32>
    %81 = vector.shape_cast %80 : vector<64x8xf32> to vector<4x16x8xf32>
    %82 = arith.truncf %81 : vector<4x16x8xf32> to vector<4x16x8xbf16>
    "tpu.trace_start"() <{level = 10 : i32, message = "bnd,bmd->bnm"}> : () -> ()
    %cst_30 = arith.constant dense<0.000000e+00> : vector<4x16x16xf32>
    %83 = tpu.matmul %76, %79, %cst_30 {dimension_numbers = #tpu.dot_dimension_numbers<[2], [2], [1], [1], [0, 0, 0, 1, 1, 1], [0], [0]>} : vector<4x16x8xbf16>, vector<4x16x8xbf16>, vector<4x16x16xf32> -> vector<4x16x16xf32>
    "tpu.trace_stop"() : () -> ()
    %c1 = arith.constant 1 : index
    %c0_31 = arith.constant 0 : index
    %c0_32 = arith.constant 0 : index
    %84 = vector.load %arg4[%c1, %c0_31, %c0_32] : memref<4x16x16xf32, #tpu.memory_space<vmem>>, vector<1x16x16xf32>
    %85 = vector.shape_cast %84 : vector<1x16x16xf32> to vector<16x16xf32>
    %86 = vector.shape_cast %85 : vector<16x16xf32> to vector<1x16x16xf32>
    %87 = vector.broadcast %86 : vector<1x16x16xf32> to vector<4x16x16xf32>
    %88 = arith.addf %83, %87 : vector<4x16x16xf32>
    %89 = arith.addf %88, %39 : vector<4x16x16xf32>
    %cst_33 = arith.constant dense<0xFF800000> : vector<4x16xf32>
    %90 = vector.multi_reduction <maximumf>, %89, %cst_33 [2] : vector<4x16x16xf32> to vector<4x16xf32>
    %91 = vector.shape_cast %90 : vector<4x16xf32> to vector<4x16x1xf32>
    %92 = vector.broadcast %91 : vector<4x16x1xf32> to vector<4x16x16xf32>
    %93 = arith.subf %89, %92 : vector<4x16x16xf32>
    %94 = math.exp %93 : vector<4x16x16xf32>
    %cst_34 = arith.constant dense<0.000000e+00> : vector<4x16xf32>
    %95 = vector.multi_reduction <add>, %94, %cst_34 [2] : vector<4x16x16xf32> to vector<4x16xf32>
    %96 = vector.shape_cast %95 : vector<4x16xf32> to vector<4x16x1xf32>
    %97 = tpu.reciprocal %96 {approx = true} : vector<4x16x1xf32> -> vector<4x16x1xf32>
    %98 = vector.broadcast %97 : vector<4x16x1xf32> to vector<4x16x16xf32>
    %99 = arith.mulf %94, %98 : vector<4x16x16xf32>
    %100 = arith.truncf %99 : vector<4x16x16xf32> to vector<4x16x16xbf16>
    "tpu.trace_start"() <{level = 10 : i32, message = "bnm,bmd->bnd"}> : () -> ()
    %cst_35 = arith.constant dense<0.000000e+00> : vector<4x16x8xf32>
    %101 = tpu.matmul %100, %82, %cst_35 {dimension_numbers = #tpu.dot_dimension_numbers<[2], [1], [1], [2], [0, 0, 0, 1, 1, 2], [0], [0]>} : vector<4x16x16xbf16>, vector<4x16x8xbf16>, vector<4x16x8xf32> -> vector<4x16x8xf32>
    "tpu.trace_stop"() : () -> ()
    %102 = vector.shape_cast %101 : vector<4x16x8xf32> to vector<64x8xf32>
    %103 = arith.truncf %102 : vector<64x8xf32> to vector<64x8xbf16>
    %c8 = arith.constant 8 : index
    %c0_36 = arith.constant 0 : index
    %104 = vector.load %arg7[%c8, %c0_36] : memref<32x32xbf16, #tpu.memory_space<vmem>>, vector<8x32xbf16>
    %cst_37 = arith.constant dense<0.000000e+00> : vector<64x32xf32>
    %105 = tpu.matmul %103, %104, %cst_37 {dimension_numbers = #tpu.dot_dimension_numbers<[1], [0], [0], [1], [0, 0, 1, 1], [], []>} : vector<64x8xbf16>, vector<8x32xbf16>, vector<64x32xf32> -> vector<64x32xf32>
    %106 = arith.addf %73, %105 : vector<64x32xf32>
    %107 = vector.extract_strided_slice %38 {offsets = [0, 16], sizes = [64, 8], strides = [1, 1]} : vector<64x96xf32> to vector<64x8xf32>
    %108 = vector.shape_cast %107 : vector<64x8xf32> to vector<4x16x8xf32>
    %109 = arith.truncf %108 : vector<4x16x8xf32> to vector<4x16x8xbf16>
    %110 = vector.extract_strided_slice %38 {offsets = [0, 48], sizes = [64, 8], strides = [1, 1]} : vector<64x96xf32> to vector<64x8xf32>
    %111 = vector.shape_cast %110 : vector<64x8xf32> to vector<4x16x8xf32>
    %112 = arith.truncf %111 : vector<4x16x8xf32> to vector<4x16x8xbf16>
    %113 = vector.extract_strided_slice %38 {offsets = [0, 80], sizes = [64, 8], strides = [1, 1]} : vector<64x96xf32> to vector<64x8xf32>
    %114 = vector.shape_cast %113 : vector<64x8xf32> to vector<4x16x8xf32>
    %115 = arith.truncf %114 : vector<4x16x8xf32> to vector<4x16x8xbf16>
    "tpu.trace_start"() <{level = 10 : i32, message = "bnd,bmd->bnm"}> : () -> ()
    %cst_38 = arith.constant dense<0.000000e+00> : vector<4x16x16xf32>
    %116 = tpu.matmul %109, %112, %cst_38 {dimension_numbers = #tpu.dot_dimension_numbers<[2], [2], [1], [1], [0, 0, 0, 1, 1, 1], [0], [0]>} : vector<4x16x8xbf16>, vector<4x16x8xbf16>, vector<4x16x16xf32> -> vector<4x16x16xf32>
    "tpu.trace_stop"() : () -> ()
    %c2 = arith.constant 2 : index
    %c0_39 = arith.constant 0 : index
    %c0_40 = arith.constant 0 : index
    %117 = vector.load %arg4[%c2, %c0_39, %c0_40] : memref<4x16x16xf32, #tpu.memory_space<vmem>>, vector<1x16x16xf32>
    %118 = vector.shape_cast %117 : vector<1x16x16xf32> to vector<16x16xf32>
    %119 = vector.shape_cast %118 : vector<16x16xf32> to vector<1x16x16xf32>
    %120 = vector.broadcast %119 : vector<1x16x16xf32> to vector<4x16x16xf32>
    %121 = arith.addf %116, %120 : vector<4x16x16xf32>
    %122 = arith.addf %121, %39 : vector<4x16x16xf32>
    %cst_41 = arith.constant dense<0xFF800000> : vector<4x16xf32>
    %123 = vector.multi_reduction <maximumf>, %122, %cst_41 [2] : vector<4x16x16xf32> to vector<4x16xf32>
    %124 = vector.shape_cast %123 : vector<4x16xf32> to vector<4x16x1xf32>
    %125 = vector.broadcast %124 : vector<4x16x1xf32> to vector<4x16x16xf32>
    %126 = arith.subf %122, %125 : vector<4x16x16xf32>
    %127 = math.exp %126 : vector<4x16x16xf32>
    %cst_42 = arith.constant dense<0.000000e+00> : vector<4x16xf32>
    %128 = vector.multi_reduction <add>, %127, %cst_42 [2] : vector<4x16x16xf32> to vector<4x16xf32>
    %129 = vector.shape_cast %128 : vector<4x16xf32> to vector<4x16x1xf32>
    %130 = tpu.reciprocal %129 {approx = true} : vector<4x16x1xf32> -> vector<4x16x1xf32>
    %131 = vector.broadcast %130 : vector<4x16x1xf32> to vector<4x16x16xf32>
    %132 = arith.mulf %127, %131 : vector<4x16x16xf32>
    %133 = arith.truncf %132 : vector<4x16x16xf32> to vector<4x16x16xbf16>
    "tpu.trace_start"() <{level = 10 : i32, message = "bnm,bmd->bnd"}> : () -> ()
    %cst_43 = arith.constant dense<0.000000e+00> : vector<4x16x8xf32>
    %134 = tpu.matmul %133, %115, %cst_43 {dimension_numbers = #tpu.dot_dimension_numbers<[2], [1], [1], [2], [0, 0, 0, 1, 1, 2], [0], [0]>} : vector<4x16x16xbf16>, vector<4x16x8xbf16>, vector<4x16x8xf32> -> vector<4x16x8xf32>
    "tpu.trace_stop"() : () -> ()
    %135 = vector.shape_cast %134 : vector<4x16x8xf32> to vector<64x8xf32>
    %136 = arith.truncf %135 : vector<64x8xf32> to vector<64x8xbf16>
    %c16 = arith.constant 16 : index
    %c0_44 = arith.constant 0 : index
    %137 = vector.load %arg7[%c16, %c0_44] : memref<32x32xbf16, #tpu.memory_space<vmem>>, vector<8x32xbf16>
    %cst_45 = arith.constant dense<0.000000e+00> : vector<64x32xf32>
    %138 = tpu.matmul %136, %137, %cst_45 {dimension_numbers = #tpu.dot_dimension_numbers<[1], [0], [0], [1], [0, 0, 1, 1], [], []>} : vector<64x8xbf16>, vector<8x32xbf16>, vector<64x32xf32> -> vector<64x32xf32>
    %139 = arith.addf %106, %138 : vector<64x32xf32>
    %140 = vector.extract_strided_slice %38 {offsets = [0, 24], sizes = [64, 8], strides = [1, 1]} : vector<64x96xf32> to vector<64x8xf32>
    %141 = vector.shape_cast %140 : vector<64x8xf32> to vector<4x16x8xf32>
    %142 = arith.truncf %141 : vector<4x16x8xf32> to vector<4x16x8xbf16>
    %143 = vector.extract_strided_slice %38 {offsets = [0, 56], sizes = [64, 8], strides = [1, 1]} : vector<64x96xf32> to vector<64x8xf32>
    %144 = vector.shape_cast %143 : vector<64x8xf32> to vector<4x16x8xf32>
    %145 = arith.truncf %144 : vector<4x16x8xf32> to vector<4x16x8xbf16>
    %146 = vector.extract_strided_slice %38 {offsets = [0, 88], sizes = [64, 8], strides = [1, 1]} : vector<64x96xf32> to vector<64x8xf32>
    %147 = vector.shape_cast %146 : vector<64x8xf32> to vector<4x16x8xf32>
    %148 = arith.truncf %147 : vector<4x16x8xf32> to vector<4x16x8xbf16>
    "tpu.trace_start"() <{level = 10 : i32, message = "bnd,bmd->bnm"}> : () -> ()
    %cst_46 = arith.constant dense<0.000000e+00> : vector<4x16x16xf32>
    %149 = tpu.matmul %142, %145, %cst_46 {dimension_numbers = #tpu.dot_dimension_numbers<[2], [2], [1], [1], [0, 0, 0, 1, 1, 1], [0], [0]>} : vector<4x16x8xbf16>, vector<4x16x8xbf16>, vector<4x16x16xf32> -> vector<4x16x16xf32>
    "tpu.trace_stop"() : () -> ()
    %c3 = arith.constant 3 : index
    %c0_47 = arith.constant 0 : index
    %c0_48 = arith.constant 0 : index
    %150 = vector.load %arg4[%c3, %c0_47, %c0_48] : memref<4x16x16xf32, #tpu.memory_space<vmem>>, vector<1x16x16xf32>
    %151 = vector.shape_cast %150 : vector<1x16x16xf32> to vector<16x16xf32>
    %152 = vector.shape_cast %151 : vector<16x16xf32> to vector<1x16x16xf32>
    %153 = vector.broadcast %152 : vector<1x16x16xf32> to vector<4x16x16xf32>
    %154 = arith.addf %149, %153 : vector<4x16x16xf32>
    %155 = arith.addf %154, %39 : vector<4x16x16xf32>
    %cst_49 = arith.constant dense<0xFF800000> : vector<4x16xf32>
    %156 = vector.multi_reduction <maximumf>, %155, %cst_49 [2] : vector<4x16x16xf32> to vector<4x16xf32>
    %157 = vector.shape_cast %156 : vector<4x16xf32> to vector<4x16x1xf32>
    %158 = vector.broadcast %157 : vector<4x16x1xf32> to vector<4x16x16xf32>
    %159 = arith.subf %155, %158 : vector<4x16x16xf32>
    %160 = math.exp %159 : vector<4x16x16xf32>
    %cst_50 = arith.constant dense<0.000000e+00> : vector<4x16xf32>
    %161 = vector.multi_reduction <add>, %160, %cst_50 [2] : vector<4x16x16xf32> to vector<4x16xf32>
    %162 = vector.shape_cast %161 : vector<4x16xf32> to vector<4x16x1xf32>
    %163 = tpu.reciprocal %162 {approx = true} : vector<4x16x1xf32> -> vector<4x16x1xf32>
    %164 = vector.broadcast %163 : vector<4x16x1xf32> to vector<4x16x16xf32>
    %165 = arith.mulf %160, %164 : vector<4x16x16xf32>
    %166 = arith.truncf %165 : vector<4x16x16xf32> to vector<4x16x16xbf16>
    "tpu.trace_start"() <{level = 10 : i32, message = "bnm,bmd->bnd"}> : () -> ()
    %cst_51 = arith.constant dense<0.000000e+00> : vector<4x16x8xf32>
    %167 = tpu.matmul %166, %148, %cst_51 {dimension_numbers = #tpu.dot_dimension_numbers<[2], [1], [1], [2], [0, 0, 0, 1, 1, 2], [0], [0]>} : vector<4x16x16xbf16>, vector<4x16x8xbf16>, vector<4x16x8xf32> -> vector<4x16x8xf32>
    "tpu.trace_stop"() : () -> ()
    %168 = vector.shape_cast %167 : vector<4x16x8xf32> to vector<64x8xf32>
    %169 = arith.truncf %168 : vector<64x8xf32> to vector<64x8xbf16>
    %c24 = arith.constant 24 : index
    %c0_52 = arith.constant 0 : index
    %170 = vector.load %arg7[%c24, %c0_52] : memref<32x32xbf16, #tpu.memory_space<vmem>>, vector<8x32xbf16>
    %cst_53 = arith.constant dense<0.000000e+00> : vector<64x32xf32>
    %171 = tpu.matmul %169, %170, %cst_53 {dimension_numbers = #tpu.dot_dimension_numbers<[1], [0], [0], [1], [0, 0, 1, 1], [], []>} : vector<64x8xbf16>, vector<8x32xbf16>, vector<64x32xf32> -> vector<64x32xf32>
    %172 = arith.addf %139, %171 : vector<64x32xf32>
    %c0_54 = arith.constant 0 : index
    %c0_55 = arith.constant 0 : index
    %173 = vector.load %arg8[%c0_54, %c0_55] : memref<1x32xf32, #tpu.memory_space<vmem>>, vector<1x32xf32>
    %174 = vector.shape_cast %173 : vector<1x32xf32> to vector<32xf32>
    %175 = vector.shape_cast %174 : vector<32xf32> to vector<1x32xf32>
    %176 = vector.broadcast %175 : vector<1x32xf32> to vector<64x32xf32>
    %177 = arith.addf %172, %176 : vector<64x32xf32>
    %178 = vector.shape_cast %177 : vector<64x32xf32> to vector<4x16x32xf32>
    %c0_56 = arith.constant 0 : index
    %c0_57 = arith.constant 0 : index
    %c0_58 = arith.constant 0 : index
    %c0_59 = arith.constant 0 : index
    %179 = vector.load %arg11[%c0_56, %c0_57, %c0_58, %c0_59] : memref<1x4x16x32xf32, #tpu.memory_space<vmem>>, vector<1x4x16x32xf32>
    %180 = vector.shape_cast %179 : vector<1x4x16x32xf32> to vector<4x16x32xf32>
    %181 = vector.shape_cast %178 : vector<4x16x32xf32> to vector<1x4x16x32xf32>
    tpu.vector_store %arg11[%c0_56, %c0_57, %c0_58, %c0_59], %181 {strides = array<i32>} : memref<1x4x16x32xf32, #tpu.memory_space<vmem>>, vector<1x4x16x32xf32>,
    return
  }
  func.func @transform_0(%arg0: i32, %arg1: i32) -> (i32, i32, i32, i32) {
    %c0_i32 = arith.constant 0 : i32
    %c0_i32_0 = arith.constant 0 : i32
    %c0_i32_1 = arith.constant 0 : i32
    return %arg0, %arg1, %c0_i32, %c0_i32_0 : i32, i32, i32, i32
  }
  func.func @transform_1(%arg0: i32, %arg1: i32) -> (i32, i32, i32) {
    %c0_i32 = arith.constant 0 : i32
    %c0_i32_0 = arith.constant 0 : i32
    %c0_i32_1 = arith.constant 0 : i32
    return %arg1, %c0_i32, %c0_i32_0 : i32, i32, i32
  }
  func.func @transform_2(%arg0: i32, %arg1: i32) -> (i32, i32, i32) {
    %c0_i32 = arith.constant 0 : i32
    %c0_i32_0 = arith.constant 0 : i32
    %c0_i32_1 = arith.constant 0 : i32
    %c0_i32_2 = arith.constant 0 : i32
    return %c0_i32, %c0_i32_0, %c0_i32_1 : i32, i32, i32
  }
  func.func @transform_3(%arg0: i32, %arg1: i32) -> (i32, i32) {
    %c0_i32 = arith.constant 0 : i32
    %c0_i32_0 = arith.constant 0 : i32
    %c0_i32_1 = arith.constant 0 : i32
    return %c0_i32, %c0_i32_0 : i32, i32
  }
  func.func @transform_4(%arg0: i32, %arg1: i32) -> (i32, i32) {
    %c0_i32 = arith.constant 0 : i32
    %c0_i32_0 = arith.constant 0 : i32
    %c0_i32_1 = arith.constant 0 : i32
    return %c0_i32, %c0_i32_0 : i32, i32
  }
  func.func @transform_5(%arg0: i32, %arg1: i32) -> (i32, i32) {
    %c0_i32 = arith.constant 0 : i32
    %c0_i32_0 = arith.constant 0 : i32
    %c0_i32_1 = arith.constant 0 : i32
    return %c0_i32, %c0_i32_0 : i32, i32
  }
  func.func @transform_6(%arg0: i32, %arg1: i32) -> (i32, i32) {
    %c0_i32 = arith.constant 0 : i32
    %c0_i32_0 = arith.constant 0 : i32
    %c0_i32_1 = arith.constant 0 : i32
    return %c0_i32, %c0_i32_0 : i32, i32
  }
  func.func @transform_7(%arg0: i32, %arg1: i32) -> (i32, i32) {
    %c0_i32 = arith.constant 0 : i32
    %c0_i32_0 = arith.constant 0 : i32
    %c0_i32_1 = arith.constant 0 : i32
    return %c0_i32, %c0_i32_0 : i32, i32
  }
  func.func @transform_8(%arg0: i32, %arg1: i32) -> (i32, i32) {
    %c0_i32 = arith.constant 0 : i32
    %c0_i32_0 = arith.constant 0 : i32
    %c0_i32_1 = arith.constant 0 : i32
    return %c0_i32, %c0_i32_0 : i32, i32
  }
  func.func @transform_9(%arg0: i32, %arg1: i32) -> (i32, i32, i32, i32) {
    %c0_i32 = arith.constant 0 : i32
    %c0_i32_0 = arith.constant 0 : i32
    %c0_i32_1 = arith.constant 0 : i32
    return %arg0, %arg1, %c0_i32, %c0_i32_0 : i32, i32, i32, i32
  }
}

</mosaic_0001>

<llo_original>
// kernel: _forward_impl.5
$region0: #{_forward_impl.5}
  #allocation0 [shape = 'u32[]', space=smem, size = 0x4, offset = 0x4, fixed_abs, tag = 'smem constant byte address 0x4 - core index']
  #allocation1 [shape = 'u32[144,128]{1,0:T(1,128)}', space=vmem, size = 0x12000, scoped, tag = 'internal scratch']
  %s0 = inlined_call_operand.vmem [shape: f32[128,32], index: 0, kind: input, shape index: {}]
  %s1 = inlined_call_operand.vmem [shape: f32[128,32], index: 1, kind: input, shape index: {}]
  %s2 = inlined_call_operand.vmem [shape: f32[1,32], index: 2, kind: input, shape index: {}]
  %s3 = inlined_call_operand.vmem [shape: f32[1,32], index: 3, kind: input, shape index: {}]
  %s4 = inlined_call_operand.vmem [shape: bf16[32,64], index: 4, kind: input, shape index: {}]
  %s5 = inlined_call_operand.vmem [shape: f32[1,64], index: 5, kind: input, shape index: {}]
  %s6 = inlined_call_operand.vmem [shape: bf16[64,32], index: 6, kind: input, shape index: {}]
  %s7 = inlined_call_operand.vmem [shape: f32[1,32], index: 7, kind: input, shape index: {}]
  %s8 = inlined_call_operand.vmem [shape: f32[128,32], index: 8, kind: output, shape index: {}]
  %s9 = sld [smem:[#allocation0]]
  $region42: #{_forward_impl.5} parent=0
    _
  %s11 = ssub.s32 1, %s9
  %s12 = scalar_select 0, %s11, %s9
  // Predicated region
  $region2: #{_forward_impl.5} parent=0 // pred_check
    _
  $region3: #{_forward_impl.5} parent=0 // pred_check_branch
    %14 = sbr.rel (0) target = $region5
  $region4: #{_forward_impl.5} parent=0 // pred_region
    _
  $region5: #{_forward_impl.5} parent=0 // pred_fallthru
    _
  // Predicated region
  $region6: #{_forward_impl.5} parent=0 // pred_check
    _
  $region7: #{_forward_impl.5} parent=0 // pred_check_branch
    %16 = sbr.rel (0) target = $region9
  $region8: #{_forward_impl.5} parent=0 // pred_region
    _
  $region9: #{_forward_impl.5} parent=0 // pred_fallthru
    _
  // Predicated region
  $region10: #{_forward_impl.5} parent=0 // pred_check
    _
  $region11: #{_forward_impl.5} parent=0 // pred_check_branch
    %18 = sbr.rel (0) target = $region13
  $region12: #{_forward_impl.5} parent=0 // pred_region
    _
  $region13: #{_forward_impl.5} parent=0 // pred_fallthru
    _
  // Predicated region
  $region14: #{_forward_impl.5} parent=0 // pred_check
    _
  $region15: #{_forward_impl.5} parent=0 // pred_check_branch
    %20 = sbr.rel (0) target = $region17
  $region16: #{_forward_impl.5} parent=0 // pred_region
    _
  $region17: #{_forward_impl.5} parent=0 // pred_fallthru
    _
  // Predicated region
  $region18: #{_forward_impl.5} parent=0 // pred_check
    _
  $region19: #{_forward_impl.5} parent=0 // pred_check_branch
    %22 = sbr.rel (0) target = $region21
  $region20: #{_forward_impl.5} parent=0 // pred_region
    _
  $region21: #{_forward_impl.5} parent=0 // pred_fallthru
    _
  // Predicated region
  $region22: #{_forward_impl.5} parent=0 // pred_check
    _
  $region23: #{_forward_impl.5} parent=0 // pred_check_branch
    %24 = sbr.rel (0) target = $region25
  $region24: #{_forward_impl.5} parent=0 // pred_region
    _
  $region25: #{_forward_impl.5} parent=0 // pred_fallthru
    _
  // Predicated region
  $region26: #{_forward_impl.5} parent=0 // pred_check
    _
  $region27: #{_forward_impl.5} parent=0 // pred_check_branch
    %26 = sbr.rel (0) target = $region29
  $region28: #{_forward_impl.5} parent=0 // pred_region
    _
  $region29: #{_forward_impl.5} parent=0 // pred_fallthru
    _
  // Predicated region
  $region30: #{_forward_impl.5} parent=0 // pred_check
    _
  $region31: #{_forward_impl.5} parent=0 // pred_check_branch
    %28 = sbr.rel (0) target = $region33
  $region32: #{_forward_impl.5} parent=0 // pred_region
    _
  $region33: #{_forward_impl.5} parent=0 // pred_fallthru
    _
  %v30 = vld [vmem:[%s0] sm:$0xff]
  %v31 = vld [vmem:[%s0 + $0x8] sm:$0xff]
  %v32 = vld [vmem:[%s0 + $0x10] sm:$0xff]
  %v33 = vld [vmem:[%s0 + $0x18] sm:$0xff]
  %v34 = vld [vmem:[%s0 + $0x20] sm:$0xff]
  %v35 = vld [vmem:[%s0 + $0x28] sm:$0xff]
  %v36 = vld [vmem:[%s0 + $0x30] sm:$0xff]
  %v37 = vld [vmem:[%s0 + $0x38] sm:$0xff]
  %v38 = vld [vmem:[%s0 + $0x40] sm:$0xff]
  %v39 = vld [vmem:[%s0 + $0x48] sm:$0xff]
  %v40 = vld [vmem:[%s0 + $0x50] sm:$0xff]
  %v41 = vld [vmem:[%s0 + $0x58] sm:$0xff]
  %v42 = vld [vmem:[%s0 + $0x60] sm:$0xff]
  %v43 = vld [vmem:[%s0 + $0x68] sm:$0xff]
  %v44 = vld [vmem:[%s0 + $0x70] sm:$0xff]
  %v45 = vld [vmem:[%s0 + $0x78] sm:$0xff]
  %v46 = vld [vmem:[%s1] sm:$0xff]
  %v47 = vld [vmem:[%s1 + $0x8] sm:$0xff]
  %v48 = vld [vmem:[%s1 + $0x10] sm:$0xff]
  %v49 = vld [vmem:[%s1 + $0x18] sm:$0xff]
  %v50 = vld [vmem:[%s1 + $0x20] sm:$0xff]
  %v51 = vld [vmem:[%s1 + $0x28] sm:$0xff]
  %v52 = vld [vmem:[%s1 + $0x30] sm:$0xff]
  %v53 = vld [vmem:[%s1 + $0x38] sm:$0xff]
  %v54 = vld [vmem:[%s1 + $0x40] sm:$0xff]
  %v55 = vld [vmem:[%s1 + $0x48] sm:$0xff]
  %v56 = vld [vmem:[%s1 + $0x50] sm:$0xff]
  %v57 = vld [vmem:[%s1 + $0x58] sm:$0xff]
  %v58 = vld [vmem:[%s1 + $0x60] sm:$0xff]
  %v59 = vld [vmem:[%s1 + $0x68] sm:$0xff]
  %v60 = vld [vmem:[%s1 + $0x70] sm:$0xff]
  %v61 = vld [vmem:[%s1 + $0x78] sm:$0xff]
  %v62 = vadd.f32 %v30, %v46
  %v63 = vadd.f32 %v31, %v47
  %v64 = vadd.f32 %v32, %v48
  %v65 = vadd.f32 %v33, %v49
  %v66 = vadd.f32 %v34, %v50
  %v67 = vadd.f32 %v35, %v51
  %v68 = vadd.f32 %v36, %v52
  %v69 = vadd.f32 %v37, %v53
  %v70 = vadd.f32 %v38, %v54
  %v71 = vadd.f32 %v39, %v55
  %v72 = vadd.f32 %v40, %v56
  %v73 = vadd.f32 %v41, %v57
  %v74 = vadd.f32 %v42, %v58
  %v75 = vadd.f32 %v43, %v59
  %v76 = vadd.f32 %v44, %v60
  %v77 = vadd.f32 %v45, %v61
  %vm78 = vcmask 261120
  %v79 = vsel %vm78, %v62, 0.0
  %80 = vadd.xlane.f32.xlu0 %v79
  %v81 = vpop.xlane.xlu0 %80
  %v82 = vsel %vm78, %v63, 0.0
  %83 = vadd.xlane.f32.xlu0 %v82
  %v84 = vpop.xlane.xlu0 %83
  %v85 = vsel %vm78, %v64, 0.0
  %86 = vadd.xlane.f32.xlu0 %v85
  %v87 = vpop.xlane.xlu0 %86
  %v88 = vsel %vm78, %v65, 0.0
  %89 = vadd.xlane.f32.xlu0 %v88
  %v90 = vpop.xlane.xlu0 %89
  %v91 = vsel %vm78, %v66, 0.0
  %92 = vadd.xlane.f32.xlu0 %v91
  %v93 = vpop.xlane.xlu0 %92
  %v94 = vsel %vm78, %v67, 0.0
  %95 = vadd.xlane.f32.xlu0 %v94
  %v96 = vpop.xlane.xlu0 %95
  %v97 = vsel %vm78, %v68, 0.0
  %98 = vadd.xlane.f32.xlu0 %v97
  %v99 = vpop.xlane.xlu0 %98
  %v100 = vsel %vm78, %v69, 0.0
  %101 = vadd.xlane.f32.xlu0 %v100
  %v102 = vpop.xlane.xlu0 %101
  %v103 = vsel %vm78, %v70, 0.0
  %104 = vadd.xlane.f32.xlu0 %v103
  %v105 = vpop.xlane.xlu0 %104
  %v106 = vsel %vm78, %v71, 0.0
  %107 = vadd.xlane.f32.xlu0 %v106
  %v108 = vpop.xlane.xlu0 %107
  %v109 = vsel %vm78, %v72, 0.0
  %110 = vadd.xlane.f32.xlu0 %v109
  %v111 = vpop.xlane.xlu0 %110
  %v112 = vsel %vm78, %v73, 0.0
  %113 = vadd.xlane.f32.xlu0 %v112
  %v114 = vpop.xlane.xlu0 %113
  %v115 = vsel %vm78, %v74, 0.0
  %116 = vadd.xlane.f32.xlu0 %v115
  %v117 = vpop.xlane.xlu0 %116
  %v118 = vsel %vm78, %v75, 0.0
  %119 = vadd.xlane.f32.xlu0 %v118
  %v120 = vpop.xlane.xlu0 %119
  %v121 = vsel %vm78, %v76, 0.0
  %122 = vadd.xlane.f32.xlu0 %v121
  %v123 = vpop.xlane.xlu0 %122
  %v124 = vsel %vm78, %v77, 0.0
  %125 = vadd.xlane.f32.xlu0 %v124
  %v126 = vpop.xlane.xlu0 %125
  %v127 = vrcp.pop 32.0
  %v128 = vmul.f32 %v81, %v127
  %v129 = vmul.f32 %v84, %v127
  %v130 = vmul.f32 %v87, %v127
  %v131 = vmul.f32 %v90, %v127
  %v132 = vmul.f32 %v93, %v127
  %v133 = vmul.f32 %v96, %v127
  %v134 = vmul.f32 %v99, %v127
  %v135 = vmul.f32 %v102, %v127
  %v136 = vmul.f32 %v105, %v127
  %v137 = vmul.f32 %v108, %v127
  %v138 = vmul.f32 %v111, %v127
  %v139 = vmul.f32 %v114, %v127
  %v140 = vmul.f32 %v117, %v127
  %v141 = vmul.f32 %v120, %v127
  %v142 = vmul.f32 %v123, %v127
  %v143 = vmul.f32 %v126, %v127
  %v144 = vsub.f32 %v62, %v128
  %v145 = vsub.f32 %v63, %v129
  %v146 = vsub.f32 %v64, %v130
  %v147 = vsub.f32 %v65, %v131
  %v148 = vsub.f32 %v66, %v132
  %v149 = vsub.f32 %v67, %v133
  %v150 = vsub.f32 %v68, %v134
  %v151 = vsub.f32 %v69, %v135
  %v152 = vsub.f32 %v70, %v136
  %v153 = vsub.f32 %v71, %v137
  %v154 = vsub.f32 %v72, %v138
  %v155 = vsub.f32 %v73, %v139
  %v156 = vsub.f32 %v74, %v140
  %v157 = vsub.f32 %v75, %v141
  %v158 = vsub.f32 %v76, %v142
  %v159 = vsub.f32 %v77, %v143
  %v160 = vmul.f32 %v144, %v144
  %v161 = vmul.f32 %v145, %v145
  %v162 = vmul.f32 %v146, %v146
  %v163 = vmul.f32 %v147, %v147
  %v164 = vmul.f32 %v148, %v148
  %v165 = vmul.f32 %v149, %v149
  %v166 = vmul.f32 %v150, %v150
  %v167 = vmul.f32 %v151, %v151
  %v168 = vmul.f32 %v152, %v152
  %v169 = vmul.f32 %v153, %v153
  %v170 = vmul.f32 %v154, %v154
  %v171 = vmul.f32 %v155, %v155
  %v172 = vmul.f32 %v156, %v156
  %v173 = vmul.f32 %v157, %v157
  %v174 = vmul.f32 %v158, %v158
  %v175 = vmul.f32 %v159, %v159
  %v176 = vsel %vm78, %v160, 0.0
  %177 = vadd.xlane.f32.xlu0 %v176
  %v178 = vpop.xlane.xlu0 %177
  %v179 = vsel %vm78, %v161, 0.0
  %180 = vadd.xlane.f32.xlu0 %v179
  %v181 = vpop.xlane.xlu0 %180
  %v182 = vsel %vm78, %v162, 0.0
  %183 = vadd.xlane.f32.xlu0 %v182
  %v184 = vpop.xlane.xlu0 %183
  %v185 = vsel %vm78, %v163, 0.0
  %186 = vadd.xlane.f32.xlu0 %v185
  %v187 = vpop.xlane.xlu0 %186
  %v188 = vsel %vm78, %v164, 0.0
  %189 = vadd.xlane.f32.xlu0 %v188
  %v190 = vpop.xlane.xlu0 %189
  %v191 = vsel %vm78, %v165, 0.0
  %192 = vadd.xlane.f32.xlu0 %v191
  %v193 = vpop.xlane.xlu0 %192
  %v194 = vsel %vm78, %v166, 0.0
  %195 = vadd.xlane.f32.xlu0 %v194
  %v196 = vpop.xlane.xlu0 %195
  %v197 = vsel %vm78, %v167, 0.0
  %198 = vadd.xlane.f32.xlu0 %v197
  %v199 = vpop.xlane.xlu0 %198
  %v200 = vsel %vm78, %v168, 0.0
  %201 = vadd.xlane.f32.xlu0 %v200
  %v202 = vpop.xlane.xlu0 %201
  %v203 = vsel %vm78, %v169, 0.0
  %204 = vadd.xlane.f32.xlu0 %v203
  %v205 = vpop.xlane.xlu0 %204
  %v206 = vsel %vm78, %v170, 0.0
  %207 = vadd.xlane.f32.xlu0 %v206
  %v208 = vpop.xlane.xlu0 %207
  %v209 = vsel %vm78, %v171, 0.0
  %210 = vadd.xlane.f32.xlu0 %v209
  %v211 = vpop.xlane.xlu0 %210
  %v212 = vsel %vm78, %v172, 0.0
  %213 = vadd.xlane.f32.xlu0 %v212
  %v214 = vpop.xlane.xlu0 %213
  %v215 = vsel %vm78, %v173, 0.0
  %216 = vadd.xlane.f32.xlu0 %v215
  %v217 = vpop.xlane.xlu0 %216
  %v218 = vsel %vm78, %v174, 0.0
  %219 = vadd.xlane.f32.xlu0 %v218
  %v220 = vpop.xlane.xlu0 %219
  %v221 = vsel %vm78, %v175, 0.0
  %222 = vadd.xlane.f32.xlu0 %v221
  %v223 = vpop.xlane.xlu0 %222
  %v224 = vmul.f32 %v178, %v127
  %v225 = vmul.f32 %v181, %v127
  %v226 = vmul.f32 %v184, %v127
  %v227 = vmul.f32 %v187, %v127
  %v228 = vmul.f32 %v190, %v127
  %v229 = vmul.f32 %v193, %v127
  %v230 = vmul.f32 %v196, %v127
  %v231 = vmul.f32 %v199, %v127
  %v232 = vmul.f32 %v202, %v127
  %v233 = vmul.f32 %v205, %v127
  %v234 = vmul.f32 %v208, %v127
  %v235 = vmul.f32 %v211, %v127
  %v236 = vmul.f32 %v214, %v127
  %v237 = vmul.f32 %v217, %v127
  %v238 = vmul.f32 %v220, %v127
  %v239 = vmul.f32 %v223, %v127
  %v240 = vadd.f32 %v224, 1e-05
  %v241 = vadd.f32 %v225, 1e-05
  %v242 = vadd.f32 %v226, 1e-05
  %v243 = vadd.f32 %v227, 1e-05
  %v244 = vadd.f32 %v228, 1e-05
  %v245 = vadd.f32 %v229, 1e-05
  %v246 = vadd.f32 %v230, 1e-05
  %v247 = vadd.f32 %v231, 1e-05
  %v248 = vadd.f32 %v232, 1e-05
  %v249 = vadd.f32 %v233, 1e-05
  %v250 = vadd.f32 %v234, 1e-05
  %v251 = vadd.f32 %v235, 1e-05
  %v252 = vadd.f32 %v236, 1e-05
  %v253 = vadd.f32 %v237, 1e-05
  %v254 = vadd.f32 %v238, 1e-05
  %v255 = vadd.f32 %v239, 1e-05
  %v256 = vrsqrt.pop %v240
  %v257 = vrsqrt.pop %v241
  %v258 = vrsqrt.pop %v242
  %v259 = vrsqrt.pop %v243
  %v260 = vrsqrt.pop %v244
  %v261 = vrsqrt.pop %v245
  %v262 = vrsqrt.pop %v246
  %v263 = vrsqrt.pop %v247
  %v264 = vrsqrt.pop %v248
  %v265 = vrsqrt.pop %v249
  %v266 = vrsqrt.pop %v250
  %v267 = vrsqrt.pop %v251
  %v268 = vrsqrt.pop %v252
  %v269 = vrsqrt.pop %v253
  %v270 = vrsqrt.pop %v254
  %v271 = vrsqrt.pop %v255
  %v272 = vmul.f32 %v144, %v256
  %v273 = vmul.f32 %v145, %v257
  %v274 = vmul.f32 %v146, %v258
  %v275 = vmul.f32 %v147, %v259
  %v276 = vmul.f32 %v148, %v260
  %v277 = vmul.f32 %v149, %v261
  %v278 = vmul.f32 %v150, %v262
  %v279 = vmul.f32 %v151, %v263
  %v280 = vmul.f32 %v152, %v264
  %v281 = vmul.f32 %v153, %v265
  %v282 = vmul.f32 %v154, %v266
  %v283 = vmul.f32 %v155, %v267
  %v284 = vmul.f32 %v156, %v268
  %v285 = vmul.f32 %v157, %v269
  %v286 = vmul.f32 %v158, %v270
  %v287 = vmul.f32 %v159, %v271
  %v288 = vld [vmem:[%s2] sm:$0x1]
  %v290 = vlaneseq
  %v291 = vshrl.u32 %v290, 7
  %v292 = vsub.s32 0, %v291
  %v293 = vrot.slane %v288, %v292
  %v295 = vmul.f32 %v272, %v293
  %v296 = vmul.f32 %v273, %v293
  %v297 = vmul.f32 %v274, %v293
  %v298 = vmul.f32 %v275, %v293
  %v299 = vmul.f32 %v276, %v293
  %v300 = vmul.f32 %v277, %v293
  %v301 = vmul.f32 %v278, %v293
  %v302 = vmul.f32 %v279, %v293
  %v303 = vmul.f32 %v280, %v293
  %v304 = vmul.f32 %v281, %v293
  %v305 = vmul.f32 %v282, %v293
  %v306 = vmul.f32 %v283, %v293
  %v307 = vmul.f32 %v284, %v293
  %v308 = vmul.f32 %v285, %v293
  %v309 = vmul.f32 %v286, %v293
  %v310 = vmul.f32 %v287, %v293
  %v311 = vld [vmem:[%s3] sm:$0x1]
  %v313 = vlaneseq
  %v314 = vshrl.u32 %v313, 7
  %v315 = vsub.s32 0, %v314
  %v316 = vrot.slane %v311, %v315
  %v318 = vadd.f32 %v295, %v316
  %v319 = vadd.f32 %v296, %v316
  %v320 = vadd.f32 %v297, %v316
  %v321 = vadd.f32 %v298, %v316
  %v322 = vadd.f32 %v299, %v316
  %v323 = vadd.f32 %v300, %v316
  %v324 = vadd.f32 %v301, %v316
  %v325 = vadd.f32 %v302, %v316
  %v326 = vadd.f32 %v303, %v316
  %v327 = vadd.f32 %v304, %v316
  %v328 = vadd.f32 %v305, %v316
  %v329 = vadd.f32 %v306, %v316
  %v330 = vadd.f32 %v307, %v316
  %v331 = vadd.f32 %v308, %v316
  %v332 = vadd.f32 %v309, %v316
  %v333 = vadd.f32 %v310, %v316
  %v334 = vpack.c.bf16 %v319, %v318
  %v335 = vpack.c.bf16 %v321, %v320
  %v336 = vpack.c.bf16 %v323, %v322
  %v337 = vpack.c.bf16 %v325, %v324
  %v338 = vpack.c.bf16 %v327, %v326
  %v339 = vpack.c.bf16 %v329, %v328
  %v340 = vpack.c.bf16 %v331, %v330
  %v341 = vpack.c.bf16 %v333, %v332
  %v342 = vld [vmem:[%s4] sm:$0xf]
  %v343 = vld [vmem:[%s4 + $0x4] sm:$0xf]
  %v344 = vld [vmem:[%s4 + $0x8] sm:$0xf]
  %v345 = vld [vmem:[%s4 + $0xc] sm:$0xf]
  %v346 = vld [vmem:[%s5] sm:$0x1]
  %v348 = vlaneseq
  %v349 = vshrl.u32 %v348, 7
  %v350 = vsub.s32 0, %v349
  %v351 = vrot.slane %v346, %v350
  %v357 = vunpack.c.l.b16 %v342
  %v358 = vunpack.c.l.b16 %v343
  %v359 = vunpack.c.l.b16 %v344
  %v360 = vunpack.c.l.b16 %v345
  %v361 = vpack.c.b16 %v358, %v357
  %v362 = vpack.c.b16 %v360, %v359
  %v366 = vsel %vm78, %v334, 0
  %v369 = vsel %vm78, %v335, 0
  %v372 = vsel %vm78, %v336, 0
  %v375 = vsel %vm78, %v337, 0
  %v378 = vsel %vm78, %v338, 0
  %v381 = vsel %vm78, %v339, 0
  %v384 = vsel %vm78, %v340, 0
  %v387 = vsel %vm78, %v341, 0
  %389 = vmatprep.subr.bf16.mxu0 0
  %390 = vmatpush1.bf16.msra.mxu0 %v361
  %391 = vmatprep.subr.bf16.mxu0 0
  %392 = vmatpush1.bf16.msra.mxu0 %v362
  %393 = vmatprep.subr.bf16.mxu0 0
  %394 = vmatpush1.bf16.msra.mxu0 0
  %395 = vmatprep.subr.bf16.mxu0 0
  %396 = vmatpush1.bf16.msra.mxu0 0
  %397 = vmatprep.subr.bf16.mxu0 0
  %398 = vmatpush1.bf16.msra.mxu0 0
  %399 = vmatprep.subr.bf16.mxu0 0
  %400 = vmatpush1.bf16.msra.mxu0 0
  %401 = vmatprep.subr.bf16.mxu0 0
  %402 = vmatpush1.bf16.msra.mxu0 0
  %403 = vmatprep.subr.bf16.mxu0 0
  %404 = vmatpush1.bf16.msra.mxu0 0
  %405 = vmatprep.subr.bf16.mxu0 0
  %406 = vmatpush1.bf16.msra.mxu0 0
  %407 = vmatprep.subr.bf16.mxu0 0
  %408 = vmatpush1.bf16.msra.mxu0 0
  %409 = vmatprep.subr.bf16.mxu0 0
  %410 = vmatpush1.bf16.msra.mxu0 0
  %411 = vmatprep.subr.bf16.mxu0 0
  %412 = vmatpush1.bf16.msra.mxu0 0
  %413 = vmatprep.subr.bf16.mxu0 0
  %414 = vmatpush1.bf16.msra.mxu0 0
  %415 = vmatprep.subr.bf16.mxu0 0
  %416 = vmatpush1.bf16.msra.mxu0 0
  %417 = vmatprep.subr.bf16.mxu0 0
  %418 = vmatpush1.bf16.msra.mxu0 0
  %419 = vmatprep.subr.bf16.mxu0 0
  %420 = vmatpush1.bf16.msra.mxu0 0
  %421 = vmatprep.mubr.bf16.mxu0 0
  %422 = vmatmul.mubr.bf16.gmra.mrb[0].mxu0 %v366
  %v423 = vpop.f32.mrb[0].mxu0
  %v424 = vadd.f32 %v351, %v423
  %v425 = vpop.f32.mrb[0].mxu0
  %v426 = vpop.f32.mrb[0].mxu0
  %v427 = vadd.f32 %v351, %v426
  %v428 = vpop.f32.mrb[0].mxu0
  %429 = vmatprep.mubr.bf16.mxu0 0
  %430 = vmatmul.mubr.bf16.gmra.mrb[0].mxu0 %v369
  %v431 = vpop.f32.mrb[0].mxu0
  %v432 = vadd.f32 %v351, %v431
  %v433 = vpop.f32.mrb[0].mxu0
  %v434 = vpop.f32.mrb[0].mxu0
  %v435 = vadd.f32 %v351, %v434
  %v436 = vpop.f32.mrb[0].mxu0
  %437 = vmatprep.mubr.bf16.mxu0 0
  %438 = vmatmul.mubr.bf16.gmra.mrb[0].mxu0 %v372
  %v439 = vpop.f32.mrb[0].mxu0
  %v440 = vadd.f32 %v351, %v439
  %v441 = vpop.f32.mrb[0].mxu0
  %v442 = vpop.f32.mrb[0].mxu0
  %v443 = vadd.f32 %v351, %v442
  %v444 = vpop.f32.mrb[0].mxu0
  %445 = vmatprep.mubr.bf16.mxu0 0
  %446 = vmatmul.mubr.bf16.gmra.mrb[0].mxu0 %v375
  %v447 = vpop.f32.mrb[0].mxu0
  %v448 = vadd.f32 %v351, %v447
  %v449 = vpop.f32.mrb[0].mxu0
  %v450 = vpop.f32.mrb[0].mxu0
  %v451 = vadd.f32 %v351, %v450
  %v452 = vpop.f32.mrb[0].mxu0
  %453 = vmatprep.mubr.bf16.mxu0 0
  %454 = vmatmul.mubr.bf16.gmra.mrb[0].mxu0 %v378
  %v455 = vpop.f32.mrb[0].mxu0
  %v456 = vadd.f32 %v351, %v455
  %v457 = vpop.f32.mrb[0].mxu0
  %v458 = vpop.f32.mrb[0].mxu0
  %v459 = vadd.f32 %v351, %v458
  %v460 = vpop.f32.mrb[0].mxu0
  %461 = vmatprep.mubr.bf16.mxu0 0
  %462 = vmatmul.mubr.bf16.gmra.mrb[0].mxu0 %v381
  %v463 = vpop.f32.mrb[0].mxu0
  %v464 = vadd.f32 %v351, %v463
  %v465 = vpop.f32.mrb[0].mxu0
  %v466 = vpop.f32.mrb[0].mxu0
  %v467 = vadd.f32 %v351, %v466
  %v468 = vpop.f32.mrb[0].mxu0
  %469 = vmatprep.mubr.bf16.mxu0 0
  %470 = vmatmul.mubr.bf16.gmra.mrb[0].mxu0 %v384
  %v471 = vpop.f32.mrb[0].mxu0
  %v472 = vadd.f32 %v351, %v471
  %v473 = vpop.f32.mrb[0].mxu0
  %v474 = vpop.f32.mrb[0].mxu0
  %v475 = vadd.f32 %v351, %v474
  %v476 = vpop.f32.mrb[0].mxu0
  %477 = vmatprep.mubr.bf16.mxu0 0
  %478 = vmatmul.mubr.bf16.gmra.mrb[0].mxu0 %v387
  %v479 = vpop.f32.mrb[0].mxu0
  %v480 = vadd.f32 %v351, %v479
  %v481 = vpop.f32.mrb[0].mxu0
  %v482 = vpop.f32.mrb[0].mxu0
  %v483 = vadd.f32 %v351, %v482
  %v484 = vpop.f32.mrb[0].mxu0
  %485 = vdwg.mxu0
  %v486 = vmul.f32 %v424, 0.5
  %v487 = vmul.f32 %v427, 0.5
  %v488 = vmul.f32 %v432, 0.5
  %v489 = vmul.f32 %v435, 0.5
  %v490 = vmul.f32 %v440, 0.5
  %v491 = vmul.f32 %v443, 0.5
  %v492 = vmul.f32 %v448, 0.5
  %v493 = vmul.f32 %v451, 0.5
  %v494 = vmul.f32 %v456, 0.5
  %v495 = vmul.f32 %v459, 0.5
  %v496 = vmul.f32 %v464, 0.5
  %v497 = vmul.f32 %v467, 0.5
  %v498 = vmul.f32 %v472, 0.5
  %v499 = vmul.f32 %v475, 0.5
  %v500 = vmul.f32 %v480, 0.5
  %v501 = vmul.f32 %v483, 0.5
  %v502 = vmul.f32 %v424, 0.70710677
  %v503 = vmul.f32 %v427, 0.70710677
  %v504 = vmul.f32 %v432, 0.70710677
  %v505 = vmul.f32 %v435, 0.70710677
  %v506 = vmul.f32 %v440, 0.70710677
  %v507 = vmul.f32 %v443, 0.70710677
  %v508 = vmul.f32 %v448, 0.70710677
  %v509 = vmul.f32 %v451, 0.70710677
  %v510 = vmul.f32 %v456, 0.70710677
  %v511 = vmul.f32 %v459, 0.70710677
  %v512 = vmul.f32 %v464, 0.70710677
  %v513 = vmul.f32 %v467, 0.70710677
  %v514 = vmul.f32 %v472, 0.70710677
  %v515 = vmul.f32 %v475, 0.70710677
  %v516 = vmul.f32 %v480, 0.70710677
  %v517 = vmul.f32 %v483, 0.70710677
  %v518 = verf.f32.pop %v502
  %v519 = verf.f32.pop %v503
  %v520 = verf.f32.pop %v504
  %v521 = verf.f32.pop %v505
  %v522 = verf.f32.pop %v506
  %v523 = verf.f32.pop %v507
  %v524 = verf.f32.pop %v508
  %v525 = verf.f32.pop %v509
  %v526 = verf.f32.pop %v510
  %v527 = verf.f32.pop %v511
  %v528 = verf.f32.pop %v512
  %v529 = verf.f32.pop %v513
  %v530 = verf.f32.pop %v514
  %v531 = verf.f32.pop %v515
  %v532 = verf.f32.pop %v516
  %v533 = verf.f32.pop %v517
  %v534 = vadd.f32 %v518, 1.0
  %v535 = vadd.f32 %v519, 1.0
  %v536 = vadd.f32 %v520, 1.0
  %v537 = vadd.f32 %v521, 1.0
  %v538 = vadd.f32 %v522, 1.0
  %v539 = vadd.f32 %v523, 1.0
  %v540 = vadd.f32 %v524, 1.0
  %v541 = vadd.f32 %v525, 1.0
  %v542 = vadd.f32 %v526, 1.0
  %v543 = vadd.f32 %v527, 1.0
  %v544 = vadd.f32 %v528, 1.0
  %v545 = vadd.f32 %v529, 1.0
  %v546 = vadd.f32 %v530, 1.0
  %v547 = vadd.f32 %v531, 1.0
  %v548 = vadd.f32 %v532, 1.0
  %v549 = vadd.f32 %v533, 1.0
  %v550 = vmul.f32 %v486, %v534
  %v551 = vmul.f32 %v487, %v535
  %v552 = vmul.f32 %v488, %v536
  %v553 = vmul.f32 %v489, %v537
  %v554 = vmul.f32 %v490, %v538
  %v555 = vmul.f32 %v491, %v539
  %v556 = vmul.f32 %v492, %v540
  %v557 = vmul.f32 %v493, %v541
  %v558 = vmul.f32 %v494, %v542
  %v559 = vmul.f32 %v495, %v543
  %v560 = vmul.f32 %v496, %v544
  %v561 = vmul.f32 %v497, %v545
  %v562 = vmul.f32 %v498, %v546
  %v563 = vmul.f32 %v499, %v547
  %v564 = vmul.f32 %v500, %v548
  %v565 = vmul.f32 %v501, %v549
  %v566 = vpack.c.bf16 %v551, %v550
  %v567 = vpack.c.bf16 %v553, %v552
  %v568 = vpack.c.bf16 %v555, %v554
  %v569 = vpack.c.bf16 %v557, %v556
  %v570 = vpack.c.bf16 %v559, %v558
  %v571 = vpack.c.bf16 %v561, %v560
  %v572 = vpack.c.bf16 %v563, %v562
  %v573 = vpack.c.bf16 %v565, %v564
  %v574 = vld [vmem:[%s6] sm:$0xf]
  %v575 = vld [vmem:[%s6 + $0x4] sm:$0xf]
  %v576 = vld [vmem:[%s6 + $0x8] sm:$0xf]
  %v577 = vld [vmem:[%s6 + $0xc] sm:$0xf]
  %v578 = vld [vmem:[%s6 + $0x10] sm:$0xf]
  %v579 = vld [vmem:[%s6 + $0x14] sm:$0xf]
  %v580 = vld [vmem:[%s6 + $0x18] sm:$0xf]
  %v581 = vld [vmem:[%s6 + $0x1c] sm:$0xf]
  %v582 = vld [vmem:[%s7] sm:$0x1]
  %v584 = vlaneseq
  %v585 = vshrl.u32 %v584, 7
  %v586 = vsub.s32 0, %v585
  %v587 = vrot.slane %v582, %v586
  %v597 = vunpack.c.l.b16 %v574
  %v598 = vunpack.c.l.b16 %v575
  %v599 = vunpack.c.l.b16 %v576
  %v600 = vunpack.c.l.b16 %v577
  %v601 = vunpack.c.l.b16 %v578
  %v602 = vunpack.c.l.b16 %v579
  %v603 = vunpack.c.l.b16 %v580
  %v604 = vunpack.c.l.b16 %v581
  %v605 = vpack.c.b16 %v598, %v597
  %v606 = vpack.c.b16 %v600, %v599
  %v607 = vpack.c.b16 %v602, %v601
  %v608 = vpack.c.b16 %v604, %v603
  %vm613 = vcmask 523264
  %v615 = vsel %vm613, %v566, 0
  %v618 = vsel %vm613, %v567, 0
  %v621 = vsel %vm613, %v568, 0
  %v624 = vsel %vm613, %v569, 0
  %v627 = vsel %vm613, %v570, 0
  %v630 = vsel %vm613, %v571, 0
  %v633 = vsel %vm613, %v572, 0
  %v636 = vsel %vm613, %v573, 0
  %638 = vmatprep.subr.bf16.mxu0 0
  %639 = vmatpush1.bf16.msra.mxu0 %v605
  %640 = vmatprep.subr.bf16.mxu0 0
  %641 = vmatpush1.bf16.msra.mxu0 %v606
  %642 = vmatprep.subr.bf16.mxu0 0
  %643 = vmatpush1.bf16.msra.mxu0 %v607
  %644 = vmatprep.subr.bf16.mxu0 0
  %645 = vmatpush1.bf16.msra.mxu0 %v608
  %646 = vmatprep.subr.bf16.mxu0 0
  %647 = vmatpush1.bf16.msra.mxu0 0
  %648 = vmatprep.subr.bf16.mxu0 0
  %649 = vmatpush1.bf16.msra.mxu0 0
  %650 = vmatprep.subr.bf16.mxu0 0
  %651 = vmatpush1.bf16.msra.mxu0 0
  %652 = vmatprep.subr.bf16.mxu0 0
  %653 = vmatpush1.bf16.msra.mxu0 0
  %654 = vmatprep.subr.bf16.mxu0 0
  %655 = vmatpush1.bf16.msra.mxu0 0
  %656 = vmatprep.subr.bf16.mxu0 0
  %657 = vmatpush1.bf16.msra.mxu0 0
  %658 = vmatprep.subr.bf16.mxu0 0
  %659 = vmatpush1.bf16.msra.mxu0 0
  %660 = vmatprep.subr.bf16.mxu0 0
  %661 = vmatpush1.bf16.msra.mxu0 0
  %662 = vmatprep.subr.bf16.mxu0 0
  %663 = vmatpush1.bf16.msra.mxu0 0
  %664 = vmatprep.subr.bf16.mxu0 0
  %665 = vmatpush1.bf16.msra.mxu0 0
  %666 = vmatprep.subr.bf16.mxu0 0
  %667 = vmatpush1.bf16.msra.mxu0 0
  %668 = vmatprep.subr.bf16.mxu0 0
  %669 = vmatpush1.bf16.msra.mxu0 0
  %670 = vmatprep.mubr.bf16.mxu0 0
  %671 = vmatmul.mubr.bf16.gmra.mrb[0].mxu0 %v615
  %v672 = vpop.f32.mrb[0].mxu0
  %v673 = vadd.f32 %v587, %v672
  %v674 = vpop.f32.mrb[0].mxu0
  %v675 = vpop.f32.mrb[0].mxu0
  %v676 = vadd.f32 %v587, %v675
  %v677 = vpop.f32.mrb[0].mxu0
  %678 = vmatprep.mubr.bf16.mxu0 0
  %679 = vmatmul.mubr.bf16.gmra.mrb[0].mxu0 %v618
  %v680 = vpop.f32.mrb[0].mxu0
  %v681 = vadd.f32 %v587, %v680
  %v682 = vpop.f32.mrb[0].mxu0
  %v683 = vpop.f32.mrb[0].mxu0
  %v684 = vadd.f32 %v587, %v683
  %v685 = vpop.f32.mrb[0].mxu0
  %686 = vmatprep.mubr.bf16.mxu0 0
  %687 = vmatmul.mubr.bf16.gmra.mrb[0].mxu0 %v621
  %v688 = vpop.f32.mrb[0].mxu0
  %v689 = vadd.f32 %v587, %v688
  %v690 = vpop.f32.mrb[0].mxu0
  %v691 = vpop.f32.mrb[0].mxu0
  %v692 = vadd.f32 %v587, %v691
  %v693 = vpop.f32.mrb[0].mxu0
  %694 = vmatprep.mubr.bf16.mxu0 0
  %695 = vmatmul.mubr.bf16.gmra.mrb[0].mxu0 %v624
  %v696 = vpop.f32.mrb[0].mxu0
  %v697 = vadd.f32 %v587, %v696
  %v698 = vpop.f32.mrb[0].mxu0
  %v699 = vpop.f32.mrb[0].mxu0
  %v700 = vadd.f32 %v587, %v699
  %v701 = vpop.f32.mrb[0].mxu0
  %702 = vmatprep.mubr.bf16.mxu0 0
  %703 = vmatmul.mubr.bf16.gmra.mrb[0].mxu0 %v627
  %v704 = vpop.f32.mrb[0].mxu0
  %v705 = vadd.f32 %v587, %v704
  %v706 = vpop.f32.mrb[0].mxu0
  %v707 = vpop.f32.mrb[0].mxu0
  %v708 = vadd.f32 %v587, %v707
  %v709 = vpop.f32.mrb[0].mxu0
  %710 = vmatprep.mubr.bf16.mxu0 0
  %711 = vmatmul.mubr.bf16.gmra.mrb[0].mxu0 %v630
  %v712 = vpop.f32.mrb[0].mxu0
  %v713 = vadd.f32 %v587, %v712
  %v714 = vpop.f32.mrb[0].mxu0
  %v715 = vpop.f32.mrb[0].mxu0
  %v716 = vadd.f32 %v587, %v715
  %v717 = vpop.f32.mrb[0].mxu0
  %718 = vmatprep.mubr.bf16.mxu0 0
  %719 = vmatmul.mubr.bf16.gmra.mrb[0].mxu0 %v633
  %v720 = vpop.f32.mrb[0].mxu0
  %v721 = vadd.f32 %v587, %v720
  %v722 = vpop.f32.mrb[0].mxu0
  %v723 = vpop.f32.mrb[0].mxu0
  %v724 = vadd.f32 %v587, %v723
  %v725 = vpop.f32.mrb[0].mxu0
  %726 = vmatprep.mubr.bf16.mxu0 0
  %727 = vmatmul.mubr.bf16.gmra.mrb[0].mxu0 %v636
  %v728 = vpop.f32.mrb[0].mxu0
  %v729 = vadd.f32 %v587, %v728
  %v730 = vpop.f32.mrb[0].mxu0
  %v731 = vpop.f32.mrb[0].mxu0
  %v732 = vadd.f32 %v587, %v731
  %v733 = vpop.f32.mrb[0].mxu0
  %734 = vdwg.mxu0
  %v735 = vadd.f32 %v62, %v673
  %v736 = vadd.f32 %v63, %v676
  %v737 = vadd.f32 %v64, %v681
  %v738 = vadd.f32 %v65, %v684
  %v739 = vadd.f32 %v66, %v689
  %v740 = vadd.f32 %v67, %v692
  %v741 = vadd.f32 %v68, %v697
  %v742 = vadd.f32 %v69, %v700
  %v743 = vadd.f32 %v70, %v705
  %v744 = vadd.f32 %v71, %v708
  %v745 = vadd.f32 %v72, %v713
  %v746 = vadd.f32 %v73, %v716
  %v747 = vadd.f32 %v74, %v721
  %v748 = vadd.f32 %v75, %v724
  %v749 = vadd.f32 %v76, %v729
  %v750 = vadd.f32 %v77, %v732
  %751 = vst.msk [vmem:[%s8] sm:$0xff] %vm78, %v735
  %752 = vst.msk [vmem:[%s8 + $0x8] sm:$0xff] %vm78, %v736
  %753 = vst.msk [vmem:[%s8 + $0x10] sm:$0xff] %vm78, %v737
  %754 = vst.msk [vmem:[%s8 + $0x18] sm:$0xff] %vm78, %v738
  %755 = vst.msk [vmem:[%s8 + $0x20] sm:$0xff] %vm78, %v739
  %756 = vst.msk [vmem:[%s8 + $0x28] sm:$0xff] %vm78, %v740
  %757 = vst.msk [vmem:[%s8 + $0x30] sm:$0xff] %vm78, %v741
  %758 = vst.msk [vmem:[%s8 + $0x38] sm:$0xff] %vm78, %v742
  %759 = vst.msk [vmem:[%s8 + $0x40] sm:$0xff] %vm78, %v743
  %760 = vst.msk [vmem:[%s8 + $0x48] sm:$0xff] %vm78, %v744
  %761 = vst.msk [vmem:[%s8 + $0x50] sm:$0xff] %vm78, %v745
  %762 = vst.msk [vmem:[%s8 + $0x58] sm:$0xff] %vm78, %v746
  %763 = vst.msk [vmem:[%s8 + $0x60] sm:$0xff] %vm78, %v747
  %764 = vst.msk [vmem:[%s8 + $0x68] sm:$0xff] %vm78, %v748
  %765 = vst.msk [vmem:[%s8 + $0x70] sm:$0xff] %vm78, %v749
  %766 = vst.msk [vmem:[%s8 + $0x78] sm:$0xff] %vm78, %v750
  // Predicated region
  $region34: #{_forward_impl.5} parent=0 // pred_check
    _
  $region35: #{_forward_impl.5} parent=0 // pred_check_branch
    %768 = sbr.rel (0) target = $region37
  $region36: #{_forward_impl.5} parent=0 // pred_region
    _
  $region37: #{_forward_impl.5} parent=0 // pred_fallthru
    _
  // Predicated region
  $region38: #{_forward_impl.5} parent=0 // pred_check
    _
  $region39: #{_forward_impl.5} parent=0 // pred_check_branch
    %770 = sbr.rel (0) target = $region41
  $region40: #{_forward_impl.5} parent=0 // pred_region
    _
  $region41: #{_forward_impl.5} parent=0 // pred_fallthru
    _

// kernel: _forward_impl.4
$region0: #{_forward_impl.4}
  #allocation0 [shape = 'u32[]', space=smem, size = 0x4, offset = 0x4, fixed_abs, tag = 'smem constant byte address 0x4 - core index']
  #allocation1 [shape = 'u32[144,128]{1,0:T(1,128)}', space=vmem, size = 0x12000, scoped, tag = 'internal scratch']
  %s0 = inlined_call_operand.vmem [shape: f32[2,4,16,32], index: 0, kind: input, shape index: {}]
  %s1 = inlined_call_operand.vmem [shape: f32[4,16,16], index: 1, kind: input, shape index: {}]
  %s2 = inlined_call_operand.vmem [shape: bf16[32,96], index: 2, kind: input, shape index: {}]
  %s3 = inlined_call_operand.vmem [shape: f32[1,96], index: 3, kind: input, shape index: {}]
  %s4 = inlined_call_operand.vmem [shape: bf16[32,32], index: 4, kind: input, shape index: {}]
  %s5 = inlined_call_operand.vmem [shape: f32[1,32], index: 5, kind: input, shape index: {}]
  %s6 = inlined_call_operand.vmem [shape: f32[1,32], index: 6, kind: input, shape index: {}]
  %s7 = inlined_call_operand.vmem [shape: f32[1,32], index: 7, kind: input, shape index: {}]
  %s8 = inlined_call_operand.vmem [shape: f32[2,4,16,32], index: 8, kind: output, shape index: {}]
  %s9 = sld [smem:[#allocation0]]
  $region65: #{_forward_impl.4} parent=0
    _
  %s11 = ssub.s32 1, %s9
  %s12 = scalar_select 0, %s11, %s9
  loop: start=0, step=1, limit=4
  $region2: #{_forward_impl.4} parent=0 // loop_pre_header
    _
  $region3: #{_forward_impl.4} parent=0 // loop_header
    %s14 = sphi 0, %s18
    %p15 = scmp.ge.s32.totalorder %s14, 4
    %s21 = sphi 0, %s33
    %s22 = sphi 0, %s29
    %s23 = sphi 0, %s21
    %s24 = sphi 0, %s22
    %s25 = sphi 0, %s23
    %s26 = sphi 0, %s24
    %s38 = sphi 0, %s40
    %s41 = sphi 0, %s38
    %s42 = sphi 0, %s41
    %s58 = sphi 0, %s42
    %s62 = sphi 0, %s62
    %s64 = sphi 0, %s62
    %s65 = sphi 0, %s64
    %s79 = sphi 0, %s65
    %s83 = sphi 0, %s83
    %s85 = sphi 0, %s83
    %s86 = sphi 0, %s85
    %s100 = sphi 0, %s86
    %s104 = sphi 0, %s104
    %s106 = sphi 0, %s104
    %s107 = sphi 0, %s106
    %s121 = sphi 0, %s107
    %s125 = sphi 0, %s125
    %s127 = sphi 0, %s125
    %s128 = sphi 0, %s127
    %s142 = sphi 0, %s128
    %s146 = sphi 0, %s146
    %s148 = sphi 0, %s146
    %s149 = sphi 0, %s148
    %s163 = sphi 0, %s149
    %s167 = sphi 0, %s167
    %s169 = sphi 0, %s167
    %s170 = sphi 0, %s169
    %s184 = sphi 0, %s170
    %s188 = sphi 0, %s188
    %s190 = sphi 0, %s188
    %s191 = sphi 0, %s190
    %s205 = sphi 0, %s191
    %s213 = sphi 0, %s215
    %s216 = sphi 0, %s213
    %s217 = sphi 0, %s216
    %s233 = sphi 0, %s217
  $region4: #{_forward_impl.4} parent=0 // loop_header_branch
    %17 = sbr.rel (%p15) target = $region8
  $region5: #{_forward_impl.4} parent=0 // loop_body
    %s19 = ssub.s32 %s14, 1
    %s20 = ssub.s32 %s14, 2
    %s27 = sadd.s32 1, %s22
    %p28 = scmp.ge.s32.totalorder %s27, 1
    %s29 = scalar_select %p28, 0, %s27
    %s30 = sadd.s32 1, %s21
    %s31 = scalar_select %p28, %s30, %s21
    %p32 = scmp.ge.s32.totalorder %s31, 2
    %s33 = scalar_select %p32, 0, %s31
    %s34 = ssub.s32 %s21, %s33
    %s35 = ssub.s32 %s22, %s29
    %s36 = sor.u32 %s34, %s35
    %p37 = scmp.eq.s32.totalorder %s36, 0
    %s39 = sadd.s32 %s38, 1
    %s40 = scalar_select %p37, %s38, %s39
    %p43 = pneg %p37
    %p44 = scmp.eq.s32.totalorder %s14, 1
    %p45 = por %p43, %p44
    %p46 = scmp.ne.s32.totalorder %s38, %s41
    %p47 = scmp.eq.s32.totalorder %s14, 0
    %p48 = por %p46, %p47
    %p49 = scmp.ne.s32.totalorder %s38, %s41
    %p50 = scmp.eq.s32.totalorder %s19, 1
    %p51 = por %p49, %p50
    %p52 = scmp.ne.s32.totalorder %s41, %s42
    %p53 = scmp.eq.s32.totalorder %s19, 0
    %p54 = por %p52, %p53
    %p55 = scmp.ne.s32.totalorder %s41, %s42
    %p56 = scmp.eq.s32.totalorder %s20, 1
    %p57 = por %p55, %p56
    %p59 = scmp.ne.s32.totalorder %s42, %s58
    %p60 = scmp.eq.s32.totalorder %s20, 0
    %p61 = por %p59, %p60
    %s63 = sadd.s32 %s62, 1
    %p66 = scmp.eq.s32.totalorder %s14, 1
    %p67 = scmp.ne.s32.totalorder %s62, %s64
    %p68 = scmp.eq.s32.totalorder %s14, 0
    %p69 = por %p67, %p68
    %p70 = scmp.ne.s32.totalorder %s62, %s64
    %p71 = scmp.eq.s32.totalorder %s19, 1
    %p72 = por %p70, %p71
    %p73 = scmp.ne.s32.totalorder %s64, %s65
    %p74 = scmp.eq.s32.totalorder %s19, 0
    %p75 = por %p73, %p74
    %p76 = scmp.ne.s32.totalorder %s64, %s65
    %p77 = scmp.eq.s32.totalorder %s20, 1
    %p78 = por %p76, %p77
    %p80 = scmp.ne.s32.totalorder %s65, %s79
    %p81 = scmp.eq.s32.totalorder %s20, 0
    %p82 = por %p80, %p81
    %s84 = sadd.s32 %s83, 1
    %p87 = scmp.eq.s32.totalorder %s14, 1
    %p88 = scmp.ne.s32.totalorder %s83, %s85
    %p89 = scmp.eq.s32.totalorder %s14, 0
    %p90 = por %p88, %p89
    %p91 = scmp.ne.s32.totalorder %s83, %s85
    %p92 = scmp.eq.s32.totalorder %s19, 1
    %p93 = por %p91, %p92
    %p94 = scmp.ne.s32.totalorder %s85, %s86
    %p95 = scmp.eq.s32.totalorder %s19, 0
    %p96 = por %p94, %p95
    %p97 = scmp.ne.s32.totalorder %s85, %s86
    %p98 = scmp.eq.s32.totalorder %s20, 1
    %p99 = por %p97, %p98
    %p101 = scmp.ne.s32.totalorder %s86, %s100
    %p102 = scmp.eq.s32.totalorder %s20, 0
    %p103 = por %p101, %p102
    %s105 = sadd.s32 %s104, 1
    %p108 = scmp.eq.s32.totalorder %s14, 1
    %p109 = scmp.ne.s32.totalorder %s104, %s106
    %p110 = scmp.eq.s32.totalorder %s14, 0
    %p111 = por %p109, %p110
    %p112 = scmp.ne.s32.totalorder %s104, %s106
    %p113 = scmp.eq.s32.totalorder %s19, 1
    %p114 = por %p112, %p113
    %p115 = scmp.ne.s32.totalorder %s106, %s107
    %p116 = scmp.eq.s32.totalorder %s19, 0
    %p117 = por %p115, %p116
    %p118 = scmp.ne.s32.totalorder %s106, %s107
    %p119 = scmp.eq.s32.totalorder %s20, 1
    %p120 = por %p118, %p119
    %p122 = scmp.ne.s32.totalorder %s107, %s121
    %p123 = scmp.eq.s32.totalorder %s20, 0
    %p124 = por %p122, %p123
    %s126 = sadd.s32 %s125, 1
    %p129 = scmp.eq.s32.totalorder %s14, 1
    %p130 = scmp.ne.s32.totalorder %s125, %s127
    %p131 = scmp.eq.s32.totalorder %s14, 0
    %p132 = por %p130, %p131
    %p133 = scmp.ne.s32.totalorder %s125, %s127
    %p134 = scmp.eq.s32.totalorder %s19, 1
    %p135 = por %p133, %p134
    %p136 = scmp.ne.s32.totalorder %s127, %s128
    %p137 = scmp.eq.s32.totalorder %s19, 0
    %p138 = por %p136, %p137
    %p139 = scmp.ne.s32.totalorder %s127, %s128
    %p140 = scmp.eq.s32.totalorder %s20, 1
    %p141 = por %p139, %p140
    %p143 = scmp.ne.s32.totalorder %s128, %s142
    %p144 = scmp.eq.s32.totalorder %s20, 0
    %p145 = por %p143, %p144
    %s147 = sadd.s32 %s146, 1
    %p150 = scmp.eq.s32.totalorder %s14, 1
    %p151 = scmp.ne.s32.totalorder %s146, %s148
    %p152 = scmp.eq.s32.totalorder %s14, 0
    %p153 = por %p151, %p152
    %p154 = scmp.ne.s32.totalorder %s146, %s148
    %p155 = scmp.eq.s32.totalorder %s19, 1
    %p156 = por %p154, %p155
    %p157 = scmp.ne.s32.totalorder %s148, %s149
    %p158 = scmp.eq.s32.totalorder %s19, 0
    %p159 = por %p157, %p158
    %p160 = scmp.ne.s32.totalorder %s148, %s149
    %p161 = scmp.eq.s32.totalorder %s20, 1
    %p162 = por %p160, %p161
    %p164 = scmp.ne.s32.totalorder %s149, %s163
    %p165 = scmp.eq.s32.totalorder %s20, 0
    %p166 = por %p164, %p165
    %s168 = sadd.s32 %s167, 1
    %p171 = scmp.eq.s32.totalorder %s14, 1
    %p172 = scmp.ne.s32.totalorder %s167, %s169
    %p173 = scmp.eq.s32.totalorder %s14, 0
    %p174 = por %p172, %p173
    %p175 = scmp.ne.s32.totalorder %s167, %s169
    %p176 = scmp.eq.s32.totalorder %s19, 1
    %p177 = por %p175, %p176
    %p178 = scmp.ne.s32.totalorder %s169, %s170
    %p179 = scmp.eq.s32.totalorder %s19, 0
    %p180 = por %p178, %p179
    %p181 = scmp.ne.s32.totalorder %s169, %s170
    %p182 = scmp.eq.s32.totalorder %s20, 1
    %p183 = por %p181, %p182
    %p185 = scmp.ne.s32.totalorder %s170, %s184
    %p186 = scmp.eq.s32.totalorder %s20, 0
    %p187 = por %p185, %p186
    %s189 = sadd.s32 %s188, 1
    %p192 = scmp.eq.s32.totalorder %s14, 1
    %p193 = scmp.ne.s32.totalorder %s188, %s190
    %p194 = scmp.eq.s32.totalorder %s14, 0
    %p195 = por %p193, %p194
    %p196 = scmp.ne.s32.totalorder %s188, %s190
    %p197 = scmp.eq.s32.totalorder %s19, 1
    %p198 = por %p196, %p197
    %p199 = scmp.ne.s32.totalorder %s190, %s191
    %p200 = scmp.eq.s32.totalorder %s19, 0
    %p201 = por %p199, %p200
    %p202 = scmp.ne.s32.totalorder %s190, %s191
    %p203 = scmp.eq.s32.totalorder %s20, 1
    %p204 = por %p202, %p203
    %p206 = scmp.ne.s32.totalorder %s191, %s205
    %p207 = scmp.eq.s32.totalorder %s20, 0
    %p208 = por %p206, %p207
    %s209 = ssub.s32 %s21, %s33
    %s210 = ssub.s32 %s22, %s29
    %s211 = sor.u32 %s209, %s210
    %p212 = scmp.eq.s32.totalorder %s211, 0
    %s214 = sadd.s32 %s213, 1
    %s215 = scalar_select %p212, %s213, %s214
    %p218 = pneg %p212
    %p219 = scmp.eq.s32.totalorder %s14, 1
    %p220 = por %p218, %p219
    %p221 = scmp.ne.s32.totalorder %s213, %s216
    %p222 = scmp.eq.s32.totalorder %s14, 0
    %p223 = por %p221, %p222
    %p224 = scmp.ne.s32.totalorder %s213, %s216
    %p225 = scmp.eq.s32.totalorder %s19, 1
    %p226 = por %p224, %p225
    %p227 = scmp.ne.s32.totalorder %s216, %s217
    %p228 = scmp.eq.s32.totalorder %s19, 0
    %p229 = por %p227, %p228
    %p230 = scmp.ne.s32.totalorder %s216, %s217
    %p231 = scmp.eq.s32.totalorder %s20, 1
    %p232 = por %p230, %p231
    %p234 = scmp.ne.s32.totalorder %s217, %s233
    %p235 = scmp.eq.s32.totalorder %s20, 0
    %p236 = por %p234, %p235
    %p237 = scmp.le.s32.totalorder 1, %s14
    %p238 = scmp.lt.s32.totalorder %s14, 3
    %p239 = pnand %p237, %p238
    %p240 = pneg %p239
    // Predicated region
    $region9: #{_forward_impl.4} parent=5 // pred_check
      _
    $region10: #{_forward_impl.4} parent=5 // pred_check_branch
      %242 = sbr.rel (%p239) target = $region12
    $region11: #{_forward_impl.4} parent=5 // pred_region
      %s243 = ssub.s32 %s14, 1
      // Predicated region
      $region13: #{_forward_impl.4} parent=11 // pred_check
        %p244 = pneg %p75
      $region14: #{_forward_impl.4} parent=11 // pred_check_branch
        %246 = sbr.rel (%p244) target = $region16
      $region15: #{_forward_impl.4} parent=11 // pred_region
        _
      $region16: #{_forward_impl.4} parent=11 // pred_fallthru
        _
      // Predicated region
      $region17: #{_forward_impl.4} parent=11 // pred_check
        %p247 = pneg %p96
      $region18: #{_forward_impl.4} parent=11 // pred_check_branch
        %249 = sbr.rel (%p247) target = $region20
      $region19: #{_forward_impl.4} parent=11 // pred_region
        _
      $region20: #{_forward_impl.4} parent=11 // pred_fallthru
        _
      // Predicated region
      $region21: #{_forward_impl.4} parent=11 // pred_check
        %p250 = pneg %p117
      $region22: #{_forward_impl.4} parent=11 // pred_check_branch
        %252 = sbr.rel (%p250) target = $region24
      $region23: #{_forward_impl.4} parent=11 // pred_region
        _
      $region24: #{_forward_impl.4} parent=11 // pred_fallthru
        _
      // Predicated region
      $region25: #{_forward_impl.4} parent=11 // pred_check
        %p253 = pneg %p138
      $region26: #{_forward_impl.4} parent=11 // pred_check_branch
        %255 = sbr.rel (%p253) target = $region28
      $region27: #{_forward_impl.4} parent=11 // pred_region
        _
      $region28: #{_forward_impl.4} parent=11 // pred_fallthru
        _
      // Predicated region
      $region29: #{_forward_impl.4} parent=11 // pred_check
        %p256 = pneg %p159
      $region30: #{_forward_impl.4} parent=11 // pred_check_branch
        %258 = sbr.rel (%p256) target = $region32
      $region31: #{_forward_impl.4} parent=11 // pred_region
        _
      $region32: #{_forward_impl.4} parent=11 // pred_fallthru
        _
      // Predicated region
      $region33: #{_forward_impl.4} parent=11 // pred_check
        %p259 = pneg %p180
      $region34: #{_forward_impl.4} parent=11 // pred_check_branch
        %261 = sbr.rel (%p259) target = $region36
      $region35: #{_forward_impl.4} parent=11 // pred_region
        _
      $region36: #{_forward_impl.4} parent=11 // pred_fallthru
        _
      // Predicated region
      $region37: #{_forward_impl.4} parent=11 // pred_check
        %p262 = pneg %p201
      $region38: #{_forward_impl.4} parent=11 // pred_check_branch
        %264 = sbr.rel (%p262) target = $region40
      $region39: #{_forward_impl.4} parent=11 // pred_region
        _
      $region40: #{_forward_impl.4} parent=11 // pred_fallthru
        _
    $region12: #{_forward_impl.4} parent=5 // pred_fallthru
      _
    %p265 = scmp.lt.s32.totalorder %s14, 2
    // Predicated region
    $region41: #{_forward_impl.4} parent=5 // pred_check
      %p266 = pneg %p265
    $region42: #{_forward_impl.4} parent=5 // pred_check_branch
      %268 = sbr.rel (%p266) target = $region44
    $region43: #{_forward_impl.4} parent=5 // pred_region
      // Predicated region
      $region45: #{_forward_impl.4} parent=43 // pred_check
        %p269 = pneg %p48
      $region46: #{_forward_impl.4} parent=43 // pred_check_branch
        %271 = sbr.rel (%p269) target = $region48
      $region47: #{_forward_impl.4} parent=43 // pred_region
        %s272 = smul.u32 4, %s22
        %p273 = scmp.lt.s32.totalorder %s21, 1
        %s274 = scalar_select %p273, %s21, 1
        %p275 = scmp.lt.s32.totalorder %s272, 3
        %s276 = scalar_select %p275, %s272, 3
        %s277 = smul.addr %s276, 2
        %s278 = smul.addr %s274, 8
        %s279 = sadd.s32 %s277, %s278
        %s280 = smul.addr %s279, 8
        %s281 = scalar_lea.vmem %s0, %s280
        %s282 = smul.u32 4, %s22
      $region48: #{_forward_impl.4} parent=43 // pred_fallthru
        _
    $region44: #{_forward_impl.4} parent=5 // pred_fallthru
      _
    %p283 = scmp.le.s32.totalorder 1, %s14
    %p284 = scmp.lt.s32.totalorder %s14, 3
    %p285 = pnand %p283, %p284
    %p286 = pneg %p285
    // Predicated region
    $region49: #{_forward_impl.4} parent=5 // pred_check
      _
    $region50: #{_forward_impl.4} parent=5 // pred_check_branch
      %288 = sbr.rel (%p285) target = $region52
    $region51: #{_forward_impl.4} parent=5 // pred_region
      %s289 = ssub.s32 %s14, 1
      %s290 = smul.u32 4, %s24
      %p291 = scmp.lt.s32.totalorder %s23, 1
      %s292 = scalar_select %p291, %s23, 1
      %p293 = scmp.lt.s32.totalorder %s290, 3
      %s294 = scalar_select %p293, %s290, 3
      %s295 = smul.addr %s294, 2
      %s296 = smul.addr %s292, 8
      %s297 = sadd.s32 %s295, %s296
      %s298 = smul.addr %s297, 8
      %s299 = scalar_lea.vmem %s0, %s298
      %p300 = pneg %p54
      %p301 = pneg %p51
      %p302 = pneg %p75
      %p303 = pneg %p72
      %p304 = pneg %p96
      %p305 = pneg %p93
      %p306 = pneg %p117
      %p307 = pneg %p114
      %p308 = pneg %p138
      %p309 = pneg %p135
      %p310 = pneg %p159
      %p311 = pneg %p156
      %p312 = pneg %p180
      %p313 = pneg %p177
      %p314 = pneg %p201
      %p315 = pneg %p198
      %p316 = pneg %p229
      %p317 = pneg %p226
      %s318 = smul.u32 4, %s24
      %p319 = scmp.lt.s32.totalorder %s23, 1
      %s320 = scalar_select %p319, %s23, 1
      %p321 = scmp.lt.s32.totalorder %s318, 3
      %s322 = scalar_select %p321, %s318, 3
      %s323 = smul.addr %s322, 2
      %s324 = smul.addr %s320, 8
      %s325 = sadd.s32 %s323, %s324
      %s326 = smul.addr %s325, 8
      %s327 = scalar_lea.vmem %s8, %s326
      %s328 = smul.u32 4, %s24
      %p329 = scmp.lt.s32.totalorder %s23, 1
      %s330 = scalar_select %p329, %s23, 1
      %p331 = scmp.lt.s32.totalorder %s328, 3
      %s332 = scalar_select %p331, %s328, 3
      %s333 = smul.addr %s332, 2
      %s334 = smul.addr %s330, 8
      %s335 = sadd.s32 %s333, %s334
      %s336 = smul.addr %s335, 8
      %s337 = scalar_lea.vmem %s0, %s336
      %s338 = smul.u32 4, %s24
      %s339 = smul.u32 4, %s24
      %p340 = scmp.lt.s32.totalorder %s23, 1
      %s341 = scalar_select %p340, %s23, 1
      %p342 = scmp.lt.s32.totalorder %s339, 3
      %s343 = scalar_select %p342, %s339, 3
      %s344 = smul.addr %s343, 2
      %s345 = smul.addr %s341, 8
      %s346 = sadd.s32 %s344, %s345
      %s347 = smul.addr %s346, 8
      %s348 = scalar_lea.vmem %s8, %s347
      %s349 = smul.u32 4, %s24
      %v351 = vld [vmem:[%s337] sm:$0xff]
      %v352 = vld [vmem:[%s337 + $0x8] sm:$0xff]
      %v353 = vld [vmem:[%s337 + $0x10] sm:$0xff]
      %v354 = vld [vmem:[%s337 + $0x18] sm:$0xff]
      %v355 = vld [vmem:[%s337 + $0x20] sm:$0xff]
      %v356 = vld [vmem:[%s337 + $0x28] sm:$0xff]
      %v357 = vld [vmem:[%s337 + $0x30] sm:$0xff]
      %v358 = vld [vmem:[%s337 + $0x38] sm:$0xff]
      %vm359 = vcmask 261120
      %v360 = vsel %vm359, %v351, 0.0
      %361 = vadd.xlane.f32.xlu0 %v360
      %v362 = vpop.xlane.xlu0 %361
      %v363 = vsel %vm359, %v352, 0.0
      %364 = vadd.xlane.f32.xlu0 %v363
      %v365 = vpop.xlane.xlu0 %364
      %v366 = vsel %vm359, %v353, 0.0
      %367 = vadd.xlane.f32.xlu0 %v366
      %v368 = vpop.xlane.xlu0 %367
      %v369 = vsel %vm359, %v354, 0.0
      %370 = vadd.xlane.f32.xlu0 %v369
      %v371 = vpop.xlane.xlu0 %370
      %v372 = vsel %vm359, %v355, 0.0
      %373 = vadd.xlane.f32.xlu0 %v372
      %v374 = vpop.xlane.xlu0 %373
      %v375 = vsel %vm359, %v356, 0.0
      %376 = vadd.xlane.f32.xlu0 %v375
      %v377 = vpop.xlane.xlu0 %376
      %v378 = vsel %vm359, %v357, 0.0
      %379 = vadd.xlane.f32.xlu0 %v378
      %v380 = vpop.xlane.xlu0 %379
      %v381 = vsel %vm359, %v358, 0.0
      %382 = vadd.xlane.f32.xlu0 %v381
      %v383 = vpop.xlane.xlu0 %382
      %v384 = vrcp.pop 32.0
      %v385 = vmul.f32 %v362, %v384
      %v386 = vmul.f32 %v365, %v384
      %v387 = vmul.f32 %v368, %v384
      %v388 = vmul.f32 %v371, %v384
      %v389 = vmul.f32 %v374, %v384
      %v390 = vmul.f32 %v377, %v384
      %v391 = vmul.f32 %v380, %v384
      %v392 = vmul.f32 %v383, %v384
      %v393 = vsub.f32 %v351, %v385
      %v394 = vsub.f32 %v352, %v386
      %v395 = vsub.f32 %v353, %v387
      %v396 = vsub.f32 %v354, %v388
      %v397 = vsub.f32 %v355, %v389
      %v398 = vsub.f32 %v356, %v390
      %v399 = vsub.f32 %v357, %v391
      %v400 = vsub.f32 %v358, %v392
      %v401 = vmul.f32 %v393, %v393
      %v402 = vmul.f32 %v394, %v394
      %v403 = vmul.f32 %v395, %v395
      %v404 = vmul.f32 %v396, %v396
      %v405 = vmul.f32 %v397, %v397
      %v406 = vmul.f32 %v398, %v398
      %v407 = vmul.f32 %v399, %v399
      %v408 = vmul.f32 %v400, %v400
      %v409 = vsel %vm359, %v401, 0.0
      %410 = vadd.xlane.f32.xlu0 %v409
      %v411 = vpop.xlane.xlu0 %410
      %v412 = vsel %vm359, %v402, 0.0
      %413 = vadd.xlane.f32.xlu0 %v412
      %v414 = vpop.xlane.xlu0 %413
      %v415 = vsel %vm359, %v403, 0.0
      %416 = vadd.xlane.f32.xlu0 %v415
      %v417 = vpop.xlane.xlu0 %416
      %v418 = vsel %vm359, %v404, 0.0
      %419 = vadd.xlane.f32.xlu0 %v418
      %v420 = vpop.xlane.xlu0 %419
      %v421 = vsel %vm359, %v405, 0.0
      %422 = vadd.xlane.f32.xlu0 %v421
      %v423 = vpop.xlane.xlu0 %422
      %v424 = vsel %vm359, %v406, 0.0
      %425 = vadd.xlane.f32.xlu0 %v424
      %v426 = vpop.xlane.xlu0 %425
      %v427 = vsel %vm359, %v407, 0.0
      %428 = vadd.xlane.f32.xlu0 %v427
      %v429 = vpop.xlane.xlu0 %428
      %v430 = vsel %vm359, %v408, 0.0
      %431 = vadd.xlane.f32.xlu0 %v430
      %v432 = vpop.xlane.xlu0 %431
      %v433 = vmul.f32 %v411, %v384
      %v434 = vmul.f32 %v414, %v384
      %v435 = vmul.f32 %v417, %v384
      %v436 = vmul.f32 %v420, %v384
      %v437 = vmul.f32 %v423, %v384
      %v438 = vmul.f32 %v426, %v384
      %v439 = vmul.f32 %v429, %v384
      %v440 = vmul.f32 %v432, %v384
      %v441 = vadd.f32 %v433, 1e-05
      %v442 = vadd.f32 %v434, 1e-05
      %v443 = vadd.f32 %v435, 1e-05
      %v444 = vadd.f32 %v436, 1e-05
      %v445 = vadd.f32 %v437, 1e-05
      %v446 = vadd.f32 %v438, 1e-05
      %v447 = vadd.f32 %v439, 1e-05
      %v448 = vadd.f32 %v440, 1e-05
      %v449 = vrsqrt.pop %v441
      %v450 = vrsqrt.pop %v442
      %v451 = vrsqrt.pop %v443
      %v452 = vrsqrt.pop %v444
      %v453 = vrsqrt.pop %v445
      %v454 = vrsqrt.pop %v446
      %v455 = vrsqrt.pop %v447
      %v456 = vrsqrt.pop %v448
      %v457 = vmul.f32 %v393, %v449
      %v458 = vmul.f32 %v394, %v450
      %v459 = vmul.f32 %v395, %v451
      %v460 = vmul.f32 %v396, %v452
      %v461 = vmul.f32 %v397, %v453
      %v462 = vmul.f32 %v398, %v454
      %v463 = vmul.f32 %v399, %v455
      %v464 = vmul.f32 %v400, %v456
      %v465 = vld [vmem:[%s6] sm:$0x1]
      %v467 = vlaneseq
      %v468 = vshrl.u32 %v467, 7
      %v469 = vsub.s32 0, %v468
      %v470 = vrot.slane %v465, %v469
      %v472 = vmul.f32 %v457, %v470
      %v473 = vmul.f32 %v458, %v470
      %v474 = vmul.f32 %v459, %v470
      %v475 = vmul.f32 %v460, %v470
      %v476 = vmul.f32 %v461, %v470
      %v477 = vmul.f32 %v462, %v470
      %v478 = vmul.f32 %v463, %v470
      %v479 = vmul.f32 %v464, %v470
      %v480 = vld [vmem:[%s7] sm:$0x1]
      %v482 = vlaneseq
      %v483 = vshrl.u32 %v482, 7
      %v484 = vsub.s32 0, %v483
      %v485 = vrot.slane %v480, %v484
      %v487 = vadd.f32 %v472, %v485
      %v488 = vadd.f32 %v473, %v485
      %v489 = vadd.f32 %v474, %v485
      %v490 = vadd.f32 %v475, %v485
      %v491 = vadd.f32 %v476, %v485
      %v492 = vadd.f32 %v477, %v485
      %v493 = vadd.f32 %v478, %v485
      %v494 = vadd.f32 %v479, %v485
      %v495 = vpack.c.bf16 %v488, %v487
      %v496 = vpack.c.bf16 %v490, %v489
      %v497 = vpack.c.bf16 %v492, %v491
      %v498 = vpack.c.bf16 %v494, %v493
      %v499 = vld [vmem:[%s2] sm:$0xf]
      %v500 = vld [vmem:[%s2 + $0x4] sm:$0xf]
      %v501 = vld [vmem:[%s2 + $0x8] sm:$0xf]
      %v502 = vld [vmem:[%s2 + $0xc] sm:$0xf]
      %v503 = vld [vmem:[%s3] sm:$0x1]
      %v505 = vlaneseq
      %v506 = vshrl.u32 %v505, 7
      %v507 = vsub.s32 0, %v506
      %v508 = vrot.slane %v503, %v507
      %v514 = vunpack.c.l.b16 %v499
      %v515 = vunpack.c.l.b16 %v500
      %v516 = vunpack.c.l.b16 %v501
      %v517 = vunpack.c.l.b16 %v502
      %v518 = vpack.c.b16 %v515, %v514
      %v519 = vpack.c.b16 %v517, %v516
      %v523 = vsel %vm359, %v495, 0
      %v526 = vsel %vm359, %v496, 0
      %v529 = vsel %vm359, %v497, 0
      %v532 = vsel %vm359, %v498, 0
      %534 = vmatprep.subr.bf16.mxu0 0
      %535 = vmatpush1.bf16.msra.mxu0 %v518
      %536 = vmatprep.subr.bf16.mxu0 0
      %537 = vmatpush1.bf16.msra.mxu0 %v519
      %538 = vmatprep.subr.bf16.mxu0 0
      %539 = vmatpush1.bf16.msra.mxu0 0
      %540 = vmatprep.subr.bf16.mxu0 0
      %541 = vmatpush1.bf16.msra.mxu0 0
      %542 = vmatprep.subr.bf16.mxu0 0
      %543 = vmatpush1.bf16.msra.mxu0 0
      %544 = vmatprep.subr.bf16.mxu0 0
      %545 = vmatpush1.bf16.msra.mxu0 0
      %546 = vmatprep.subr.bf16.mxu0 0
      %547 = vmatpush1.bf16.msra.mxu0 0
      %548 = vmatprep.subr.bf16.mxu0 0
      %549 = vmatpush1.bf16.msra.mxu0 0
      %550 = vmatprep.subr.bf16.mxu0 0
      %551 = vmatpush1.bf16.msra.mxu0 0
      %552 = vmatprep.subr.bf16.mxu0 0
      %553 = vmatpush1.bf16.msra.mxu0 0
      %554 = vmatprep.subr.bf16.mxu0 0
      %555 = vmatpush1.bf16.msra.mxu0 0
      %556 = vmatprep.subr.bf16.mxu0 0
      %557 = vmatpush1.bf16.msra.mxu0 0
      %558 = vmatprep.subr.bf16.mxu0 0
      %559 = vmatpush1.bf16.msra.mxu0 0
      %560 = vmatprep.subr.bf16.mxu0 0
      %561 = vmatpush1.bf16.msra.mxu0 0
      %562 = vmatprep.subr.bf16.mxu0 0
      %563 = vmatpush1.bf16.msra.mxu0 0
      %564 = vmatprep.subr.bf16.mxu0 0
      %565 = vmatpush1.bf16.msra.mxu0 0
      %566 = vmatprep.mubr.bf16.mxu0 0
      %567 = vmatmul.mubr.bf16.gmra.mrb[0].mxu0 %v523
      %v568 = vpop.f32.mrb[0].mxu0
      %v569 = vadd.f32 %v508, %v568
      %v570 = vpop.f32.mrb[0].mxu0
      %v571 = vpop.f32.mrb[0].mxu0
      %v572 = vadd.f32 %v508, %v571
      %v573 = vpop.f32.mrb[0].mxu0
      %574 = vmatprep.mubr.bf16.mxu0 0
      %575 = vmatmul.mubr.bf16.gmra.mrb[0].mxu0 %v526
      %v576 = vpop.f32.mrb[0].mxu0
      %v577 = vadd.f32 %v508, %v576
      %v578 = vpop.f32.mrb[0].mxu0
      %v579 = vpop.f32.mrb[0].mxu0
      %v580 = vadd.f32 %v508, %v579
      %v581 = vpop.f32.mrb[0].mxu0
      %582 = vmatprep.mubr.bf16.mxu0 0
      %583 = vmatmul.mubr.bf16.gmra.mrb[0].mxu0 %v529
      %v584 = vpop.f32.mrb[0].mxu0
      %v585 = vadd.f32 %v508, %v584
      %v586 = vpop.f32.mrb[0].mxu0
      %v587 = vpop.f32.mrb[0].mxu0
      %v588 = vadd.f32 %v508, %v587
      %v589 = vpop.f32.mrb[0].mxu0
      %590 = vmatprep.mubr.bf16.mxu0 0
      %591 = vmatmul.mubr.bf16.gmra.mrb[0].mxu0 %v532
      %v592 = vpop.f32.mrb[0].mxu0
      %v593 = vadd.f32 %v508, %v592
      %v594 = vpop.f32.mrb[0].mxu0
      %v595 = vpop.f32.mrb[0].mxu0
      %v596 = vadd.f32 %v508, %v595
      %v597 = vpop.f32.mrb[0].mxu0
      %598 = vdwg.mxu0
      %v599 = vpack.c.bf16 %v572, %v569
      %v600 = vpack.c.bf16 %v580, %v577
      %v601 = vpack.c.bf16 %v588, %v585
      %v602 = vpack.c.bf16 %v596, %v593
      %v603 = vld [vmem:[%s1] sm:$0xff]
      %v604 = vld [vmem:[%s1 + $0x8] sm:$0xff]
      %606 = vrot.lane.b32.xlu0 %v599, 96
      %v607 = vpop.permute.xlu0 %606
      %vm608 = vcmask 64512
      %v610 = vsel %vm608, %v599, 0
      %v613 = vsel %vm608, %v607, 0
      %615 = vmatprep.subr.bf16.mxu0 0
      %616 = vmatpush1.bf16.xpose.msra.mxu0 %v613
      %617 = vmatprep.subr.bf16.mxu0 0
      %618 = vmatpush1.bf16.xpose.msra.mxu0 0
      %619 = vmatprep.subr.bf16.mxu0 0
      %620 = vmatpush1.bf16.xpose.msra.mxu0 0
      %621 = vmatprep.subr.bf16.mxu0 0
      %622 = vmatpush1.bf16.xpose.msra.mxu0 0
      %623 = vmatprep.subr.bf16.mxu0 0
      %624 = vmatpush1.bf16.xpose.msra.mxu0 0
      %625 = vmatprep.subr.bf16.mxu0 0
      %626 = vmatpush1.bf16.xpose.msra.mxu0 0
      %627 = vmatprep.subr.bf16.mxu0 0
      %628 = vmatpush1.bf16.xpose.msra.mxu0 0
      %629 = vmatprep.subr.bf16.mxu0 0
      %630 = vmatpush1.bf16.xpose.msra.mxu0 0
      %631 = vmatprep.subr.bf16.mxu0 0
      %632 = vmatpush1.bf16.xpose.msra.mxu0 0
      %633 = vmatprep.subr.bf16.mxu0 0
      %634 = vmatpush1.bf16.xpose.msra.mxu0 0
      %635 = vmatprep.subr.bf16.mxu0 0
      %636 = vmatpush1.bf16.xpose.msra.mxu0 0
      %637 = vmatprep.subr.bf16.mxu0 0
      %638 = vmatpush1.bf16.xpose.msra.mxu0 0
      %639 = vmatprep.subr.bf16.mxu0 0
      %640 = vmatpush1.bf16.xpose.msra.mxu0 0
      %641 = vmatprep.subr.bf16.mxu0 0
      %642 = vmatpush1.bf16.xpose.msra.mxu0 0
      %643 = vmatprep.subr.bf16.mxu0 0
      %644 = vmatpush1.bf16.xpose.msra.mxu0 0
      %645 = vmatprep.subr.bf16.mxu0 0
      %646 = vmatpush1.bf16.xpose.msra.mxu0 0
      %647 = vmatprep.mubr.bf16.mxu0 0
      %648 = vmatmul.mubr.bf16.gmra.mrb[0].mxu0 %v610
      %v649 = vpop.f32.mrb[0].mxu0
      %v650 = vadd.f32 %v603, %v649
      %v651 = vpop.f32.mrb[0].mxu0
      %v652 = vpop.f32.mrb[0].mxu0
      %v653 = vadd.f32 %v604, %v652
      %v654 = vpop.f32.mrb[0].mxu0
      %655 = vdwg.mxu0
      %657 = vrot.lane.b32.xlu0 %v600, 96
      %v658 = vpop.permute.xlu0 %657
      %v660 = vsel %vm608, %v600, 0
      %v663 = vsel %vm608, %v658, 0
      %665 = vmatprep.subr.bf16.mxu0 0
      %666 = vmatpush1.bf16.xpose.msra.mxu0 %v663
      %667 = vmatprep.subr.bf16.mxu0 0
      %668 = vmatpush1.bf16.xpose.msra.mxu0 0
      %669 = vmatprep.subr.bf16.mxu0 0
      %670 = vmatpush1.bf16.xpose.msra.mxu0 0
      %671 = vmatprep.subr.bf16.mxu0 0
      %672 = vmatpush1.bf16.xpose.msra.mxu0 0
      %673 = vmatprep.subr.bf16.mxu0 0
      %674 = vmatpush1.bf16.xpose.msra.mxu0 0
      %675 = vmatprep.subr.bf16.mxu0 0
      %676 = vmatpush1.bf16.xpose.msra.mxu0 0
      %677 = vmatprep.subr.bf16.mxu0 0
      %678 = vmatpush1.bf16.xpose.msra.mxu0 0
      %679 = vmatprep.subr.bf16.mxu0 0
      %680 = vmatpush1.bf16.xpose.msra.mxu0 0
      %681 = vmatprep.subr.bf16.mxu0 0
      %682 = vmatpush1.bf16.xpose.msra.mxu0 0
      %683 = vmatprep.subr.bf16.mxu0 0
      %684 = vmatpush1.bf16.xpose.msra.mxu0 0
      %685 = vmatprep.subr.bf16.mxu0 0
      %686 = vmatpush1.bf16.xpose.msra.mxu0 0
      %687 = vmatprep.subr.bf16.mxu0 0
      %688 = vmatpush1.bf16.xpose.msra.mxu0 0
      %689 = vmatprep.subr.bf16.mxu0 0
      %690 = vmatpush1.bf16.xpose.msra.mxu0 0
      %691 = vmatprep.subr.bf16.mxu0 0
      %692 = vmatpush1.bf16.xpose.msra.mxu0 0
      %693 = vmatprep.subr.bf16.mxu0 0
      %694 = vmatpush1.bf16.xpose.msra.mxu0 0
      %695 = vmatprep.subr.bf16.mxu0 0
      %696 = vmatpush1.bf16.xpose.msra.mxu0 0
      %697 = vmatprep.mubr.bf16.mxu0 0
      %698 = vmatmul.mubr.bf16.gmra.mrb[0].mxu0 %v660
      %v699 = vpop.f32.mrb[0].mxu0
      %v700 = vadd.f32 %v603, %v699
      %v701 = vpop.f32.mrb[0].mxu0
      %v702 = vpop.f32.mrb[0].mxu0
      %v703 = vadd.f32 %v604, %v702
      %v704 = vpop.f32.mrb[0].mxu0
      %705 = vdwg.mxu0
      %707 = vrot.lane.b32.xlu0 %v601, 96
      %v708 = vpop.permute.xlu0 %707
      %v710 = vsel %vm608, %v601, 0
      %v713 = vsel %vm608, %v708, 0
      %715 = vmatprep.subr.bf16.mxu0 0
      %716 = vmatpush1.bf16.xpose.msra.mxu0 %v713
      %717 = vmatprep.subr.bf16.mxu0 0
      %718 = vmatpush1.bf16.xpose.msra.mxu0 0
      %719 = vmatprep.subr.bf16.mxu0 0
      %720 = vmatpush1.bf16.xpose.msra.mxu0 0
      %721 = vmatprep.subr.bf16.mxu0 0
      %722 = vmatpush1.bf16.xpose.msra.mxu0 0
      %723 = vmatprep.subr.bf16.mxu0 0
      %724 = vmatpush1.bf16.xpose.msra.mxu0 0
      %725 = vmatprep.subr.bf16.mxu0 0
      %726 = vmatpush1.bf16.xpose.msra.mxu0 0
      %727 = vmatprep.subr.bf16.mxu0 0
      %728 = vmatpush1.bf16.xpose.msra.mxu0 0
      %729 = vmatprep.subr.bf16.mxu0 0
      %730 = vmatpush1.bf16.xpose.msra.mxu0 0
      %731 = vmatprep.subr.bf16.mxu0 0
      %732 = vmatpush1.bf16.xpose.msra.mxu0 0
      %733 = vmatprep.subr.bf16.mxu0 0
      %734 = vmatpush1.bf16.xpose.msra.mxu0 0
      %735 = vmatprep.subr.bf16.mxu0 0
      %736 = vmatpush1.bf16.xpose.msra.mxu0 0
      %737 = vmatprep.subr.bf16.mxu0 0
      %738 = vmatpush1.bf16.xpose.msra.mxu0 0
      %739 = vmatprep.subr.bf16.mxu0 0
      %740 = vmatpush1.bf16.xpose.msra.mxu0 0
      %741 = vmatprep.subr.bf16.mxu0 0
      %742 = vmatpush1.bf16.xpose.msra.mxu0 0
      %743 = vmatprep.subr.bf16.mxu0 0
      %744 = vmatpush1.bf16.xpose.msra.mxu0 0
      %745 = vmatprep.subr.bf16.mxu0 0
      %746 = vmatpush1.bf16.xpose.msra.mxu0 0
      %747 = vmatprep.mubr.bf16.mxu0 0
      %748 = vmatmul.mubr.bf16.gmra.mrb[0].mxu0 %v710
      %v749 = vpop.f32.mrb[0].mxu0
      %v750 = vadd.f32 %v603, %v749
      %v751 = vpop.f32.mrb[0].mxu0
      %v752 = vpop.f32.mrb[0].mxu0
      %v753 = vadd.f32 %v604, %v752
      %v754 = vpop.f32.mrb[0].mxu0
      %755 = vdwg.mxu0
      %757 = vrot.lane.b32.xlu0 %v602, 96
      %v758 = vpop.permute.xlu0 %757
      %v760 = vsel %vm608, %v602, 0
      %v763 = vsel %vm608, %v758, 0
      %765 = vmatprep.subr.bf16.mxu0 0
      %766 = vmatpush1.bf16.xpose.msra.mxu0 %v763
      %767 = vmatprep.subr.bf16.mxu0 0
      %768 = vmatpush1.bf16.xpose.msra.mxu0 0
      %769 = vmatprep.subr.bf16.mxu0 0
      %770 = vmatpush1.bf16.xpose.msra.mxu0 0
      %771 = vmatprep.subr.bf16.mxu0 0
      %772 = vmatpush1.bf16.xpose.msra.mxu0 0
      %773 = vmatprep.subr.bf16.mxu0 0
      %774 = vmatpush1.bf16.xpose.msra.mxu0 0
      %775 = vmatprep.subr.bf16.mxu0 0
      %776 = vmatpush1.bf16.xpose.msra.mxu0 0
      %777 = vmatprep.subr.bf16.mxu0 0
      %778 = vmatpush1.bf16.xpose.msra.mxu0 0
      %779 = vmatprep.subr.bf16.mxu0 0
      %780 = vmatpush1.bf16.xpose.msra.mxu0 0
      %781 = vmatprep.subr.bf16.mxu0 0
      %782 = vmatpush1.bf16.xpose.msra.mxu0 0
      %783 = vmatprep.subr.bf16.mxu0 0
      %784 = vmatpush1.bf16.xpose.msra.mxu0 0
      %785 = vmatprep.subr.bf16.mxu0 0
      %786 = vmatpush1.bf16.xpose.msra.mxu0 0
      %787 = vmatprep.subr.bf16.mxu0 0
      %788 = vmatpush1.bf16.xpose.msra.mxu0 0
      %789 = vmatprep.subr.bf16.mxu0 0
      %790 = vmatpush1.bf16.xpose.msra.mxu0 0
      %791 = vmatprep.subr.bf16.mxu0 0
      %792 = vmatpush1.bf16.xpose.msra.mxu0 0
      %793 = vmatprep.subr.bf16.mxu0 0
      %794 = vmatpush1.bf16.xpose.msra.mxu0 0
      %795 = vmatprep.subr.bf16.mxu0 0
      %796 = vmatpush1.bf16.xpose.msra.mxu0 0
      %797 = vmatprep.mubr.bf16.mxu0 0
      %798 = vmatmul.mubr.bf16.gmra.mrb[0].mxu0 %v760
      %v799 = vpop.f32.mrb[0].mxu0
      %v800 = vadd.f32 %v603, %v799
      %v801 = vpop.f32.mrb[0].mxu0
      %v802 = vpop.f32.mrb[0].mxu0
      %v803 = vadd.f32 %v604, %v802
      %v804 = vpop.f32.mrb[0].mxu0
      %805 = vdwg.mxu0
      %vm806 = vcmask 130048
      %v807 = vsel %vm806, %v650, -inf
      %808 = vmax.xlane.f32.xlu0 %v807
      %v809 = vpop.xlane.xlu0 %808
      %v810 = vsel %vm806, %v653, -inf
      %811 = vmax.xlane.f32.xlu0 %v810
      %v812 = vpop.xlane.xlu0 %811
      %v813 = vsel %vm806, %v700, -inf
      %814 = vmax.xlane.f32.xlu0 %v813
      %v815 = vpop.xlane.xlu0 %814
      %v816 = vsel %vm806, %v703, -inf
      %817 = vmax.xlane.f32.xlu0 %v816
      %v818 = vpop.xlane.xlu0 %817
      %v819 = vsel %vm806, %v750, -inf
      %820 = vmax.xlane.f32.xlu0 %v819
      %v821 = vpop.xlane.xlu0 %820
      %v822 = vsel %vm806, %v753, -inf
      %823 = vmax.xlane.f32.xlu0 %v822
      %v824 = vpop.xlane.xlu0 %823
      %v825 = vsel %vm806, %v800, -inf
      %826 = vmax.xlane.f32.xlu0 %v825
      %v827 = vpop.xlane.xlu0 %826
      %v828 = vsel %vm806, %v803, -inf
      %829 = vmax.xlane.f32.xlu0 %v828
      %v830 = vpop.xlane.xlu0 %829
      %v831 = vsub.f32 %v650, %v809
      %v832 = vsub.f32 %v653, %v812
      %v833 = vsub.f32 %v700, %v815
      %v834 = vsub.f32 %v703, %v818
      %v835 = vsub.f32 %v750, %v821
      %v836 = vsub.f32 %v753, %v824
      %v837 = vsub.f32 %v800, %v827
      %v838 = vsub.f32 %v803, %v830
      %v839 = vmul.f32 %v831, 1.442695
      %v840 = vpow.pop %v839
      %v841 = vmul.f32 %v832, 1.442695
      %v842 = vpow.pop %v841
      %v843 = vmul.f32 %v833, 1.442695
      %v844 = vpow.pop %v843
      %v845 = vmul.f32 %v834, 1.442695
      %v846 = vpow.pop %v845
      %v847 = vmul.f32 %v835, 1.442695
      %v848 = vpow.pop %v847
      %v849 = vmul.f32 %v836, 1.442695
      %v850 = vpow.pop %v849
      %v851 = vmul.f32 %v837, 1.442695
      %v852 = vpow.pop %v851
      %v853 = vmul.f32 %v838, 1.442695
      %v854 = vpow.pop %v853
      %v855 = vsel %vm806, %v840, 0.0
      %856 = vadd.xlane.f32.xlu0 %v855
      %v857 = vpop.xlane.xlu0 %856
      %v858 = vsel %vm806, %v842, 0.0
      %859 = vadd.xlane.f32.xlu0 %v858
      %v860 = vpop.xlane.xlu0 %859
      %v861 = vsel %vm806, %v844, 0.0
      %862 = vadd.xlane.f32.xlu0 %v861
      %v863 = vpop.xlane.xlu0 %862
      %v864 = vsel %vm806, %v846, 0.0
      %865 = vadd.xlane.f32.xlu0 %v864
      %v866 = vpop.xlane.xlu0 %865
      %v867 = vsel %vm806, %v848, 0.0
      %868 = vadd.xlane.f32.xlu0 %v867
      %v869 = vpop.xlane.xlu0 %868
      %v870 = vsel %vm806, %v850, 0.0
      %871 = vadd.xlane.f32.xlu0 %v870
      %v872 = vpop.xlane.xlu0 %871
      %v873 = vsel %vm806, %v852, 0.0
      %874 = vadd.xlane.f32.xlu0 %v873
      %v875 = vpop.xlane.xlu0 %874
      %v876 = vsel %vm806, %v854, 0.0
      %877 = vadd.xlane.f32.xlu0 %v876
      %v878 = vpop.xlane.xlu0 %877
      %v879 = vrcp.pop %v857
      %v880 = vrcp.pop %v860
      %v881 = vrcp.pop %v863
      %v882 = vrcp.pop %v866
      %v883 = vrcp.pop %v869
      %v884 = vrcp.pop %v872
      %v885 = vrcp.pop %v875
      %v886 = vrcp.pop %v878
      %v887 = vmul.f32 %v840, %v879
      %v888 = vmul.f32 %v842, %v880
      %v889 = vmul.f32 %v844, %v881
      %v890 = vmul.f32 %v846, %v882
      %v891 = vmul.f32 %v848, %v883
      %v892 = vmul.f32 %v850, %v884
      %v893 = vmul.f32 %v852, %v885
      %v894 = vmul.f32 %v854, %v886
      %v895 = vpack.c.bf16 %v888, %v887
      %v896 = vpack.c.bf16 %v890, %v889
      %v897 = vpack.c.bf16 %v892, %v891
      %v898 = vpack.c.bf16 %v894, %v893
      %899 = vrot.lane.b32.xlu0 %v599, 64
      %v900 = vpop.permute.xlu0 %899
      %v903 = vsel %vm806, %v895, 0
      %905 = vmatprep.subr.bf16.mxu0 0
      %906 = vmatpush1.bf16.msra.mxu0 %v900
      %907 = vmatprep.subr.bf16.mxu0 0
      %908 = vmatpush1.bf16.msra.mxu0 0
      %909 = vmatprep.subr.bf16.mxu0 0
      %910 = vmatpush1.bf16.msra.mxu0 0
      %911 = vmatprep.subr.bf16.mxu0 0
      %912 = vmatpush1.bf16.msra.mxu0 0
      %913 = vmatprep.subr.bf16.mxu0 0
      %914 = vmatpush1.bf16.msra.mxu0 0
      %915 = vmatprep.subr.bf16.mxu0 0
      %916 = vmatpush1.bf16.msra.mxu0 0
      %917 = vmatprep.subr.bf16.mxu0 0
      %918 = vmatpush1.bf16.msra.mxu0 0
      %919 = vmatprep.subr.bf16.mxu0 0
      %920 = vmatpush1.bf16.msra.mxu0 0
      %921 = vmatprep.subr.bf16.mxu0 0
      %922 = vmatpush1.bf16.msra.mxu0 0
      %923 = vmatprep.subr.bf16.mxu0 0
      %924 = vmatpush1.bf16.msra.mxu0 0
      %925 = vmatprep.subr.bf16.mxu0 0
      %926 = vmatpush1.bf16.msra.mxu0 0
      %927 = vmatprep.subr.bf16.mxu0 0
      %928 = vmatpush1.bf16.msra.mxu0 0
      %929 = vmatprep.subr.bf16.mxu0 0
      %930 = vmatpush1.bf16.msra.mxu0 0
      %931 = vmatprep.subr.bf16.mxu0 0
      %932 = vmatpush1.bf16.msra.mxu0 0
      %933 = vmatprep.subr.bf16.mxu0 0
      %934 = vmatpush1.bf16.msra.mxu0 0
      %935 = vmatprep.subr.bf16.mxu0 0
      %936 = vmatpush1.bf16.msra.mxu0 0
      %937 = vmatprep.mubr.bf16.mxu0 0
      %938 = vmatmul.mubr.bf16.gmra.mrb[0].mxu0 %v903
      %v939 = vpop.f32.mrb[0].mxu0
      %v940 = vadd.f32 0.0, %v939
      %v941 = vpop.f32.mrb[0].mxu0
      %v942 = vpop.f32.mrb[0].mxu0
      %v943 = vadd.f32 0.0, %v942
      %v944 = vpop.f32.mrb[0].mxu0
      %945 = vdwg.mxu0
      %946 = vrot.lane.b32.xlu0 %v600, 64
      %v947 = vpop.permute.xlu0 %946
      %v950 = vsel %vm806, %v896, 0
      %952 = vmatprep.subr.bf16.mxu0 0
      %953 = vmatpush1.bf16.msra.mxu0 %v947
      %954 = vmatprep.subr.bf16.mxu0 0
      %955 = vmatpush1.bf16.msra.mxu0 0
      %956 = vmatprep.subr.bf16.mxu0 0
      %957 = vmatpush1.bf16.msra.mxu0 0
      %958 = vmatprep.subr.bf16.mxu0 0
      %959 = vmatpush1.bf16.msra.mxu0 0
      %960 = vmatprep.subr.bf16.mxu0 0
      %961 = vmatpush1.bf16.msra.mxu0 0
      %962 = vmatprep.subr.bf16.mxu0 0
      %963 = vmatpush1.bf16.msra.mxu0 0
      %964 = vmatprep.subr.bf16.mxu0 0
      %965 = vmatpush1.bf16.msra.mxu0 0
      %966 = vmatprep.subr.bf16.mxu0 0
      %967 = vmatpush1.bf16.msra.mxu0 0
      %968 = vmatprep.subr.bf16.mxu0 0
      %969 = vmatpush1.bf16.msra.mxu0 0
      %970 = vmatprep.subr.bf16.mxu0 0
      %971 = vmatpush1.bf16.msra.mxu0 0
      %972 = vmatprep.subr.bf16.mxu0 0
      %973 = vmatpush1.bf16.msra.mxu0 0
      %974 = vmatprep.subr.bf16.mxu0 0
      %975 = vmatpush1.bf16.msra.mxu0 0
      %976 = vmatprep.subr.bf16.mxu0 0
      %977 = vmatpush1.bf16.msra.mxu0 0
      %978 = vmatprep.subr.bf16.mxu0 0
      %979 = vmatpush1.bf16.msra.mxu0 0
      %980 = vmatprep.subr.bf16.mxu0 0
      %981 = vmatpush1.bf16.msra.mxu0 0
      %982 = vmatprep.subr.bf16.mxu0 0
      %983 = vmatpush1.bf16.msra.mxu0 0
      %984 = vmatprep.mubr.bf16.mxu0 0
      %985 = vmatmul.mubr.bf16.gmra.mrb[0].mxu0 %v950
      %v986 = vpop.f32.mrb[0].mxu0
      %v987 = vadd.f32 0.0, %v986
      %v988 = vpop.f32.mrb[0].mxu0
      %v989 = vpop.f32.mrb[0].mxu0
      %v990 = vadd.f32 0.0, %v989
      %v991 = vpop.f32.mrb[0].mxu0
      %992 = vdwg.mxu0
      %993 = vrot.lane.b32.xlu0 %v601, 64
      %v994 = vpop.permute.xlu0 %993
      %v997 = vsel %vm806, %v897, 0
      %999 = vmatprep.subr.bf16.mxu0 0
      %1000 = vmatpush1.bf16.msra.mxu0 %v994
      %1001 = vmatprep.subr.bf16.mxu0 0
      %1002 = vmatpush1.bf16.msra.mxu0 0
      %1003 = vmatprep.subr.bf16.mxu0 0
      %1004 = vmatpush1.bf16.msra.mxu0 0
      %1005 = vmatprep.subr.bf16.mxu0 0
      %1006 = vmatpush1.bf16.msra.mxu0 0
      %1007 = vmatprep.subr.bf16.mxu0 0
      %1008 = vmatpush1.bf16.msra.mxu0 0
      %1009 = vmatprep.subr.bf16.mxu0 0
      %1010 = vmatpush1.bf16.msra.mxu0 0
      %1011 = vmatprep.subr.bf16.mxu0 0
      %1012 = vmatpush1.bf16.msra.mxu0 0
      %1013 = vmatprep.subr.bf16.mxu0 0
      %1014 = vmatpush1.bf16.msra.mxu0 0
      %1015 = vmatprep.subr.bf16.mxu0 0
      %1016 = vmatpush1.bf16.msra.mxu0 0
      %1017 = vmatprep.subr.bf16.mxu0 0
      %1018 = vmatpush1.bf16.msra.mxu0 0
      %1019 = vmatprep.subr.bf16.mxu0 0
      %1020 = vmatpush1.bf16.msra.mxu0 0
      %1021 = vmatprep.subr.bf16.mxu0 0
      %1022 = vmatpush1.bf16.msra.mxu0 0
      %1023 = vmatprep.subr.bf16.mxu0 0
      %1024 = vmatpush1.bf16.msra.mxu0 0
      %1025 = vmatprep.subr.bf16.mxu0 0
      %1026 = vmatpush1.bf16.msra.mxu0 0
      %1027 = vmatprep.subr.bf16.mxu0 0
      %1028 = vmatpush1.bf16.msra.mxu0 0
      %1029 = vmatprep.subr.bf16.mxu0 0
      %1030 = vmatpush1.bf16.msra.mxu0 0
      %1031 = vmatprep.mubr.bf16.mxu0 0
      %1032 = vmatmul.mubr.bf16.gmra.mrb[0].mxu0 %v997
      %v1033 = vpop.f32.mrb[0].mxu0
      %v1034 = vadd.f32 0.0, %v1033
      %v1035 = vpop.f32.mrb[0].mxu0
      %v1036 = vpop.f32.mrb[0].mxu0
      %v1037 = vadd.f32 0.0, %v1036
      %v1038 = vpop.f32.mrb[0].mxu0
      %1039 = vdwg.mxu0
      %1040 = vrot.lane.b32.xlu0 %v602, 64
      %v1041 = vpop.permute.xlu0 %1040
      %v1044 = vsel %vm806, %v898, 0
      %1046 = vmatprep.subr.bf16.mxu0 0
      %1047 = vmatpush1.bf16.msra.mxu0 %v1041
      %1048 = vmatprep.subr.bf16.mxu0 0
      %1049 = vmatpush1.bf16.msra.mxu0 0
      %1050 = vmatprep.subr.bf16.mxu0 0
      %1051 = vmatpush1.bf16.msra.mxu0 0
      %1052 = vmatprep.subr.bf16.mxu0 0
      %1053 = vmatpush1.bf16.msra.mxu0 0
      %1054 = vmatprep.subr.bf16.mxu0 0
      %1055 = vmatpush1.bf16.msra.mxu0 0
      %1056 = vmatprep.subr.bf16.mxu0 0
      %1057 = vmatpush1.bf16.msra.mxu0 0
      %1058 = vmatprep.subr.bf16.mxu0 0
      %1059 = vmatpush1.bf16.msra.mxu0 0
      %1060 = vmatprep.subr.bf16.mxu0 0
      %1061 = vmatpush1.bf16.msra.mxu0 0
      %1062 = vmatprep.subr.bf16.mxu0 0
      %1063 = vmatpush1.bf16.msra.mxu0 0
      %1064 = vmatprep.subr.bf16.mxu0 0
      %1065 = vmatpush1.bf16.msra.mxu0 0
      %1066 = vmatprep.subr.bf16.mxu0 0
      %1067 = vmatpush1.bf16.msra.mxu0 0
      %1068 = vmatprep.subr.bf16.mxu0 0
      %1069 = vmatpush1.bf16.msra.mxu0 0
      %1070 = vmatprep.subr.bf16.mxu0 0
      %1071 = vmatpush1.bf16.msra.mxu0 0
      %1072 = vmatprep.subr.bf16.mxu0 0
      %1073 = vmatpush1.bf16.msra.mxu0 0
      %1074 = vmatprep.subr.bf16.mxu0 0
      %1075 = vmatpush1.bf16.msra.mxu0 0
      %1076 = vmatprep.subr.bf16.mxu0 0
      %1077 = vmatpush1.bf16.msra.mxu0 0
      %1078 = vmatprep.mubr.bf16.mxu0 0
      %1079 = vmatmul.mubr.bf16.gmra.mrb[0].mxu0 %v1044
      %v1080 = vpop.f32.mrb[0].mxu0
      %v1081 = vadd.f32 0.0, %v1080
      %v1082 = vpop.f32.mrb[0].mxu0
      %v1083 = vpop.f32.mrb[0].mxu0
      %v1084 = vadd.f32 0.0, %v1083
      %v1085 = vpop.f32.mrb[0].mxu0
      %1086 = vdwg.mxu0
      %v1087 = vpack.c.bf16 %v943, %v940
      %v1088 = vpack.c.bf16 %v990, %v987
      %v1089 = vpack.c.bf16 %v1037, %v1034
      %v1090 = vpack.c.bf16 %v1084, %v1081
      %v1091 = vld [vmem:[%s4] sm:$0xf]
      %s1092 = scalar_lea.vmem %s1, 16
      %v1093 = vld [vmem:[%s1092] sm:$0xff]
      %v1094 = vld [vmem:[%s1092 + $0x8] sm:$0xff]
      %1095 = vrot.lane.b32.xlu0 %v599, 120
      %v1096 = vpop.permute.xlu0 %1095
      %1097 = vrot.lane.b32.xlu0 %v599, 88
      %v1098 = vpop.permute.xlu0 %1097
      %v1100 = vsel %vm608, %v1096, 0
      %v1103 = vsel %vm608, %v1098, 0
      %1105 = vmatprep.subr.bf16.mxu0 0
      %1106 = vmatpush1.bf16.xpose.msra.mxu0 %v1103
      %1107 = vmatprep.subr.bf16.mxu0 0
      %1108 = vmatpush1.bf16.xpose.msra.mxu0 0
      %1109 = vmatprep.subr.bf16.mxu0 0
      %1110 = vmatpush1.bf16.xpose.msra.mxu0 0
      %1111 = vmatprep.subr.bf16.mxu0 0
      %1112 = vmatpush1.bf16.xpose.msra.mxu0 0
      %1113 = vmatprep.subr.bf16.mxu0 0
      %1114 = vmatpush1.bf16.xpose.msra.mxu0 0
      %1115 = vmatprep.subr.bf16.mxu0 0
      %1116 = vmatpush1.bf16.xpose.msra.mxu0 0
      %1117 = vmatprep.subr.bf16.mxu0 0
      %1118 = vmatpush1.bf16.xpose.msra.mxu0 0
      %1119 = vmatprep.subr.bf16.mxu0 0
      %1120 = vmatpush1.bf16.xpose.msra.mxu0 0
      %1121 = vmatprep.subr.bf16.mxu0 0
      %1122 = vmatpush1.bf16.xpose.msra.mxu0 0
      %1123 = vmatprep.subr.bf16.mxu0 0
      %1124 = vmatpush1.bf16.xpose.msra.mxu0 0
      %1125 = vmatprep.subr.bf16.mxu0 0
      %1126 = vmatpush1.bf16.xpose.msra.mxu0 0
      %1127 = vmatprep.subr.bf16.mxu0 0
      %1128 = vmatpush1.bf16.xpose.msra.mxu0 0
      %1129 = vmatprep.subr.bf16.mxu0 0
      %1130 = vmatpush1.bf16.xpose.msra.mxu0 0
      %1131 = vmatprep.subr.bf16.mxu0 0
      %1132 = vmatpush1.bf16.xpose.msra.mxu0 0
      %1133 = vmatprep.subr.bf16.mxu0 0
      %1134 = vmatpush1.bf16.xpose.msra.mxu0 0
      %1135 = vmatprep.subr.bf16.mxu0 0
      %1136 = vmatpush1.bf16.xpose.msra.mxu0 0
      %1137 = vmatprep.mubr.bf16.mxu0 0
      %1138 = vmatmul.mubr.bf16.gmra.mrb[0].mxu0 %v1100
      %v1139 = vpop.f32.mrb[0].mxu0
      %v1140 = vadd.f32 %v1093, %v1139
      %v1141 = vpop.f32.mrb[0].mxu0
      %v1142 = vpop.f32.mrb[0].mxu0
      %v1143 = vadd.f32 %v1094, %v1142
      %v1144 = vpop.f32.mrb[0].mxu0
      %1145 = vdwg.mxu0
      %1146 = vrot.lane.b32.xlu0 %v600, 120
      %v1147 = vpop.permute.xlu0 %1146
      %1148 = vrot.lane.b32.xlu0 %v600, 88
      %v1149 = vpop.permute.xlu0 %1148
      %v1151 = vsel %vm608, %v1147, 0
      %v1154 = vsel %vm608, %v1149, 0
      %1156 = vmatprep.subr.bf16.mxu0 0
      %1157 = vmatpush1.bf16.xpose.msra.mxu0 %v1154
      %1158 = vmatprep.subr.bf16.mxu0 0
      %1159 = vmatpush1.bf16.xpose.msra.mxu0 0
      %1160 = vmatprep.subr.bf16.mxu0 0
      %1161 = vmatpush1.bf16.xpose.msra.mxu0 0
      %1162 = vmatprep.subr.bf16.mxu0 0
      %1163 = vmatpush1.bf16.xpose.msra.mxu0 0
      %1164 = vmatprep.subr.bf16.mxu0 0
      %1165 = vmatpush1.bf16.xpose.msra.mxu0 0
      %1166 = vmatprep.subr.bf16.mxu0 0
      %1167 = vmatpush1.bf16.xpose.msra.mxu0 0
      %1168 = vmatprep.subr.bf16.mxu0 0
      %1169 = vmatpush1.bf16.xpose.msra.mxu0 0
      %1170 = vmatprep.subr.bf16.mxu0 0
      %1171 = vmatpush1.bf16.xpose.msra.mxu0 0
      %1172 = vmatprep.subr.bf16.mxu0 0
      %1173 = vmatpush1.bf16.xpose.msra.mxu0 0
      %1174 = vmatprep.subr.bf16.mxu0 0
      %1175 = vmatpush1.bf16.xpose.msra.mxu0 0
      %1176 = vmatprep.subr.bf16.mxu0 0
      %1177 = vmatpush1.bf16.xpose.msra.mxu0 0
      %1178 = vmatprep.subr.bf16.mxu0 0
      %1179 = vmatpush1.bf16.xpose.msra.mxu0 0
      %1180 = vmatprep.subr.bf16.mxu0 0
      %1181 = vmatpush1.bf16.xpose.msra.mxu0 0
      %1182 = vmatprep.subr.bf16.mxu0 0
      %1183 = vmatpush1.bf16.xpose.msra.mxu0 0
      %1184 = vmatprep.subr.bf16.mxu0 0
      %1185 = vmatpush1.bf16.xpose.msra.mxu0 0
      %1186 = vmatprep.subr.bf16.mxu0 0
      %1187 = vmatpush1.bf16.xpose.msra.mxu0 0
      %1188 = vmatprep.mubr.bf16.mxu0 0
      %1189 = vmatmul.mubr.bf16.gmra.mrb[0].mxu0 %v1151
      %v1190 = vpop.f32.mrb[0].mxu0
      %v1191 = vadd.f32 %v1093, %v1190
      %v1192 = vpop.f32.mrb[0].mxu0
      %v1193 = vpop.f32.mrb[0].mxu0
      %v1194 = vadd.f32 %v1094, %v1193
      %v1195 = vpop.f32.mrb[0].mxu0
      %1196 = vdwg.mxu0
      %1197 = vrot.lane.b32.xlu0 %v601, 120
      %v1198 = vpop.permute.xlu0 %1197
      %1199 = vrot.lane.b32.xlu0 %v601, 88
      %v1200 = vpop.permute.xlu0 %1199
      %v1202 = vsel %vm608, %v1198, 0
      %v1205 = vsel %vm608, %v1200, 0
      %1207 = vmatprep.subr.bf16.mxu0 0
      %1208 = vmatpush1.bf16.xpose.msra.mxu0 %v1205
      %1209 = vmatprep.subr.bf16.mxu0 0
      %1210 = vmatpush1.bf16.xpose.msra.mxu0 0
      %1211 = vmatprep.subr.bf16.mxu0 0
      %1212 = vmatpush1.bf16.xpose.msra.mxu0 0
      %1213 = vmatprep.subr.bf16.mxu0 0
      %1214 = vmatpush1.bf16.xpose.msra.mxu0 0
      %1215 = vmatprep.subr.bf16.mxu0 0
      %1216 = vmatpush1.bf16.xpose.msra.mxu0 0
      %1217 = vmatprep.subr.bf16.mxu0 0
      %1218 = vmatpush1.bf16.xpose.msra.mxu0 0
      %1219 = vmatprep.subr.bf16.mxu0 0
      %1220 = vmatpush1.bf16.xpose.msra.mxu0 0
      %1221 = vmatprep.subr.bf16.mxu0 0
      %1222 = vmatpush1.bf16.xpose.msra.mxu0 0
      %1223 = vmatprep.subr.bf16.mxu0 0
      %1224 = vmatpush1.bf16.xpose.msra.mxu0 0
      %1225 = vmatprep.subr.bf16.mxu0 0
      %1226 = vmatpush1.bf16.xpose.msra.mxu0 0
      %1227 = vmatprep.subr.bf16.mxu0 0
      %1228 = vmatpush1.bf16.xpose.msra.mxu0 0
      %1229 = vmatprep.subr.bf16.mxu0 0
      %1230 = vmatpush1.bf16.xpose.msra.mxu0 0
      %1231 = vmatprep.subr.bf16.mxu0 0
      %1232 = vmatpush1.bf16.xpose.msra.mxu0 0
      %1233 = vmatprep.subr.bf16.mxu0 0
      %1234 = vmatpush1.bf16.xpose.msra.mxu0 0
      %1235 = vmatprep.subr.bf16.mxu0 0
      %1236 = vmatpush1.bf16.xpose.msra.mxu0 0
      %1237 = vmatprep.subr.bf16.mxu0 0
      %1238 = vmatpush1.bf16.xpose.msra.mxu0 0
      %1239 = vmatprep.mubr.bf16.mxu0 0
      %1240 = vmatmul.mubr.bf16.gmra.mrb[0].mxu0 %v1202
      %v1241 = vpop.f32.mrb[0].mxu0
      %v1242 = vadd.f32 %v1093, %v1241
      %v1243 = vpop.f32.mrb[0].mxu0
      %v1244 = vpop.f32.mrb[0].mxu0
      %v1245 = vadd.f32 %v1094, %v1244
      %v1246 = vpop.f32.mrb[0].mxu0
      %1247 = vdwg.mxu0
      %1248 = vrot.lane.b32.xlu0 %v602, 120
      %v1249 = vpop.permute.xlu0 %1248
      %1250 = vrot.lane.b32.xlu0 %v602, 88
      %v1251 = vpop.permute.xlu0 %1250
      %v1253 = vsel %vm608, %v1249, 0
      %v1256 = vsel %vm608, %v1251, 0
      %1258 = vmatprep.subr.bf16.mxu0 0
      %1259 = vmatpush1.bf16.xpose.msra.mxu0 %v1256
      %1260 = vmatprep.subr.bf16.mxu0 0
      %1261 = vmatpush1.bf16.xpose.msra.mxu0 0
      %1262 = vmatprep.subr.bf16.mxu0 0
      %1263 = vmatpush1.bf16.xpose.msra.mxu0 0
      %1264 = vmatprep.subr.bf16.mxu0 0
      %1265 = vmatpush1.bf16.xpose.msra.mxu0 0
      %1266 = vmatprep.subr.bf16.mxu0 0
      %1267 = vmatpush1.bf16.xpose.msra.mxu0 0
      %1268 = vmatprep.subr.bf16.mxu0 0
      %1269 = vmatpush1.bf16.xpose.msra.mxu0 0
      %1270 = vmatprep.subr.bf16.mxu0 0
      %1271 = vmatpush1.bf16.xpose.msra.mxu0 0
      %1272 = vmatprep.subr.bf16.mxu0 0
      %1273 = vmatpush1.bf16.xpose.msra.mxu0 0
      %1274 = vmatprep.subr.bf16.mxu0 0
      %1275 = vmatpush1.bf16.xpose.msra.mxu0 0
      %1276 = vmatprep.subr.bf16.mxu0 0
      %1277 = vmatpush1.bf16.xpose.msra.mxu0 0
      %1278 = vmatprep.subr.bf16.mxu0 0
      %1279 = vmatpush1.bf16.xpose.msra.mxu0 0
      %1280 = vmatprep.subr.bf16.mxu0 0
      %1281 = vmatpush1.bf16.xpose.msra.mxu0 0
      %1282 = vmatprep.subr.bf16.mxu0 0
      %1283 = vmatpush1.bf16.xpose.msra.mxu0 0
      %1284 = vmatprep.subr.bf16.mxu0 0
      %1285 = vmatpush1.bf16.xpose.msra.mxu0 0
      %1286 = vmatprep.subr.bf16.mxu0 0
      %1287 = vmatpush1.bf16.xpose.msra.mxu0 0
      %1288 = vmatprep.subr.bf16.mxu0 0
      %1289 = vmatpush1.bf16.xpose.msra.mxu0 0
      %1290 = vmatprep.mubr.bf16.mxu0 0
      %1291 = vmatmul.mubr.bf16.gmra.mrb[0].mxu0 %v1253
      %v1292 = vpop.f32.mrb[0].mxu0
      %v1293 = vadd.f32 %v1093, %v1292
      %v1294 = vpop.f32.mrb[0].mxu0
      %v1295 = vpop.f32.mrb[0].mxu0
      %v1296 = vadd.f32 %v1094, %v1295
      %v1297 = vpop.f32.mrb[0].mxu0
      %1298 = vdwg.mxu0
      %v1299 = vsel %vm806, %v1140, -inf
      %1300 = vmax.xlane.f32.xlu0 %v1299
      %v1301 = vpop.xlane.xlu0 %1300
      %v1302 = vsel %vm806, %v1143, -inf
      %1303 = vmax.xlane.f32.xlu0 %v1302
      %v1304 = vpop.xlane.xlu0 %1303
      %v1305 = vsel %vm806, %v1191, -inf
      %1306 = vmax.xlane.f32.xlu0 %v1305
      %v1307 = vpop.xlane.xlu0 %1306
      %v1308 = vsel %vm806, %v1194, -inf
      %1309 = vmax.xlane.f32.xlu0 %v1308
      %v1310 = vpop.xlane.xlu0 %1309
      %v1311 = vsel %vm806, %v1242, -inf
      %1312 = vmax.xlane.f32.xlu0 %v1311
      %v1313 = vpop.xlane.xlu0 %1312
      %v1314 = vsel %vm806, %v1245, -inf
      %1315 = vmax.xlane.f32.xlu0 %v1314
      %v1316 = vpop.xlane.xlu0 %1315
      %v1317 = vsel %vm806, %v1293, -inf
      %1318 = vmax.xlane.f32.xlu0 %v1317
      %v1319 = vpop.xlane.xlu0 %1318
      %v1320 = vsel %vm806, %v1296, -inf
      %1321 = vmax.xlane.f32.xlu0 %v1320
      %v1322 = vpop.xlane.xlu0 %1321
      %v1323 = vsub.f32 %v1140, %v1301
      %v1324 = vsub.f32 %v1143, %v1304
      %v1325 = vsub.f32 %v1191, %v1307
      %v1326 = vsub.f32 %v1194, %v1310
      %v1327 = vsub.f32 %v1242, %v1313
      %v1328 = vsub.f32 %v1245, %v1316
      %v1329 = vsub.f32 %v1293, %v1319
      %v1330 = vsub.f32 %v1296, %v1322
      %v1331 = vmul.f32 %v1323, 1.442695
      %v1332 = vpow.pop %v1331
      %v1333 = vmul.f32 %v1324, 1.442695
      %v1334 = vpow.pop %v1333
      %v1335 = vmul.f32 %v1325, 1.442695
      %v1336 = vpow.pop %v1335
      %v1337 = vmul.f32 %v1326, 1.442695
      %v1338 = vpow.pop %v1337
      %v1339 = vmul.f32 %v1327, 1.442695
      %v1340 = vpow.pop %v1339
      %v1341 = vmul.f32 %v1328, 1.442695
      %v1342 = vpow.pop %v1341
      %v1343 = vmul.f32 %v1329, 1.442695
      %v1344 = vpow.pop %v1343
      %v1345 = vmul.f32 %v1330, 1.442695
      %v1346 = vpow.pop %v1345
      %v1347 = vsel %vm806, %v1332, 0.0
      %1348 = vadd.xlane.f32.xlu0 %v1347
      %v1349 = vpop.xlane.xlu0 %1348
      %v1350 = vsel %vm806, %v1334, 0.0
      %1351 = vadd.xlane.f32.xlu0 %v1350
      %v1352 = vpop.xlane.xlu0 %1351
      %v1353 = vsel %vm806, %v1336, 0.0
      %1354 = vadd.xlane.f32.xlu0 %v1353
      %v1355 = vpop.xlane.xlu0 %1354
      %v1356 = vsel %vm806, %v1338, 0.0
      %1357 = vadd.xlane.f32.xlu0 %v1356
      %v1358 = vpop.xlane.xlu0 %1357
      %v1359 = vsel %vm806, %v1340, 0.0
      %1360 = vadd.xlane.f32.xlu0 %v1359
      %v1361 = vpop.xlane.xlu0 %1360
      %v1362 = vsel %vm806, %v1342, 0.0
      %1363 = vadd.xlane.f32.xlu0 %v1362
      %v1364 = vpop.xlane.xlu0 %1363
      %v1365 = vsel %vm806, %v1344, 0.0
      %1366 = vadd.xlane.f32.xlu0 %v1365
      %v1367 = vpop.xlane.xlu0 %1366
      %v1368 = vsel %vm806, %v1346, 0.0
      %1369 = vadd.xlane.f32.xlu0 %v1368
      %v1370 = vpop.xlane.xlu0 %1369
      %v1371 = vrcp.pop %v1349
      %v1372 = vrcp.pop %v1352
      %v1373 = vrcp.pop %v1355
      %v1374 = vrcp.pop %v1358
      %v1375 = vrcp.pop %v1361
      %v1376 = vrcp.pop %v1364
      %v1377 = vrcp.pop %v1367
      %v1378 = vrcp.pop %v1370
      %v1379 = vmul.f32 %v1332, %v1371
      %v1380 = vmul.f32 %v1334, %v1372
      %v1381 = vmul.f32 %v1336, %v1373
      %v1382 = vmul.f32 %v1338, %v1374
      %v1383 = vmul.f32 %v1340, %v1375
      %v1384 = vmul.f32 %v1342, %v1376
      %v1385 = vmul.f32 %v1344, %v1377
      %v1386 = vmul.f32 %v1346, %v1378
      %v1387 = vpack.c.bf16 %v1380, %v1379
      %v1388 = vpack.c.bf16 %v1382, %v1381
      %v1389 = vpack.c.bf16 %v1384, %v1383
      %v1390 = vpack.c.bf16 %v1386, %v1385
      %1391 = vrot.lane.b32.xlu0 %v599, 56
      %v1392 = vpop.permute.xlu0 %1391
      %v1395 = vsel %vm806, %v1387, 0
      %1397 = vmatprep.subr.bf16.mxu0 0
      %1398 = vmatpush1.bf16.msra.mxu0 %v1392
      %1399 = vmatprep.subr.bf16.mxu0 0
      %1400 = vmatpush1.bf16.msra.mxu0 0
      %1401 = vmatprep.subr.bf16.mxu0 0
      %1402 = vmatpush1.bf16.msra.mxu0 0
      %1403 = vmatprep.subr.bf16.mxu0 0
      %1404 = vmatpush1.bf16.msra.mxu0 0
      %1405 = vmatprep.subr.bf16.mxu0 0
      %1406 = vmatpush1.bf16.msra.mxu0 0
      %1407 = vmatprep.subr.bf16.mxu0 0
      %1408 = vmatpush1.bf16.msra.mxu0 0
      %1409 = vmatprep.subr.bf16.mxu0 0
      %1410 = vmatpush1.bf16.msra.mxu0 0
      %1411 = vmatprep.subr.bf16.mxu0 0
      %1412 = vmatpush1.bf16.msra.mxu0 0
      %1413 = vmatprep.subr.bf16.mxu0 0
      %1414 = vmatpush1.bf16.msra.mxu0 0
      %1415 = vmatprep.subr.bf16.mxu0 0
      %1416 = vmatpush1.bf16.msra.mxu0 0
      %1417 = vmatprep.subr.bf16.mxu0 0
      %1418 = vmatpush1.bf16.msra.mxu0 0
      %1419 = vmatprep.subr.bf16.mxu0 0
      %1420 = vmatpush1.bf16.msra.mxu0 0
      %1421 = vmatprep.subr.bf16.mxu0 0
      %1422 = vmatpush1.bf16.msra.mxu0 0
      %1423 = vmatprep.subr.bf16.mxu0 0
      %1424 = vmatpush1.bf16.msra.mxu0 0
      %1425 = vmatprep.subr.bf16.mxu0 0
      %1426 = vmatpush1.bf16.msra.mxu0 0
      %1427 = vmatprep.subr.bf16.mxu0 0
      %1428 = vmatpush1.bf16.msra.mxu0 0
      %1429 = vmatprep.mubr.bf16.mxu0 0
      %1430 = vmatmul.mubr.bf16.gmra.mrb[0].mxu0 %v1395
      %v1431 = vpop.f32.mrb[0].mxu0
      %v1432 = vadd.f32 0.0, %v1431
      %v1433 = vpop.f32.mrb[0].mxu0
      %v1434 = vpop.f32.mrb[0].mxu0
      %v1435 = vadd.f32 0.0, %v1434
      %v1436 = vpop.f32.mrb[0].mxu0
      %1437 = vdwg.mxu0
      %1438 = vrot.lane.b32.xlu0 %v600, 56
      %v1439 = vpop.permute.xlu0 %1438
      %v1442 = vsel %vm806, %v1388, 0
      %1444 = vmatprep.subr.bf16.mxu0 0
      %1445 = vmatpush1.bf16.msra.mxu0 %v1439
      %1446 = vmatprep.subr.bf16.mxu0 0
      %1447 = vmatpush1.bf16.msra.mxu0 0
      %1448 = vmatprep.subr.bf16.mxu0 0
      %1449 = vmatpush1.bf16.msra.mxu0 0
      %1450 = vmatprep.subr.bf16.mxu0 0
      %1451 = vmatpush1.bf16.msra.mxu0 0
      %1452 = vmatprep.subr.bf16.mxu0 0
      %1453 = vmatpush1.bf16.msra.mxu0 0
      %1454 = vmatprep.subr.bf16.mxu0 0
      %1455 = vmatpush1.bf16.msra.mxu0 0
      %1456 = vmatprep.subr.bf16.mxu0 0
      %1457 = vmatpush1.bf16.msra.mxu0 0
      %1458 = vmatprep.subr.bf16.mxu0 0
      %1459 = vmatpush1.bf16.msra.mxu0 0
      %1460 = vmatprep.subr.bf16.mxu0 0
      %1461 = vmatpush1.bf16.msra.mxu0 0
      %1462 = vmatprep.subr.bf16.mxu0 0
      %1463 = vmatpush1.bf16.msra.mxu0 0
      %1464 = vmatprep.subr.bf16.mxu0 0
      %1465 = vmatpush1.bf16.msra.mxu0 0
      %1466 = vmatprep.subr.bf16.mxu0 0
      %1467 = vmatpush1.bf16.msra.mxu0 0
      %1468 = vmatprep.subr.bf16.mxu0 0
      %1469 = vmatpush1.bf16.msra.mxu0 0
      %1470 = vmatprep.subr.bf16.mxu0 0
      %1471 = vmatpush1.bf16.msra.mxu0 0
      %1472 = vmatprep.subr.bf16.mxu0 0
      %1473 = vmatpush1.bf16.msra.mxu0 0
      %1474 = vmatprep.subr.bf16.mxu0 0
      %1475 = vmatpush1.bf16.msra.mxu0 0
      %1476 = vmatprep.mubr.bf16.mxu0 0
      %1477 = vmatmul.mubr.bf16.gmra.mrb[0].mxu0 %v1442
      %v1478 = vpop.f32.mrb[0].mxu0
      %v1479 = vadd.f32 0.0, %v1478
      %v1480 = vpop.f32.mrb[0].mxu0
      %v1481 = vpop.f32.mrb[0].mxu0
      %v1482 = vadd.f32 0.0, %v1481
      %v1483 = vpop.f32.mrb[0].mxu0
      %1484 = vdwg.mxu0
      %1485 = vrot.lane.b32.xlu0 %v601, 56
      %v1486 = vpop.permute.xlu0 %1485
      %v1489 = vsel %vm806, %v1389, 0
      %1491 = vmatprep.subr.bf16.mxu0 0
      %1492 = vmatpush1.bf16.msra.mxu0 %v1486
      %1493 = vmatprep.subr.bf16.mxu0 0
      %1494 = vmatpush1.bf16.msra.mxu0 0
      %1495 = vmatprep.subr.bf16.mxu0 0
      %1496 = vmatpush1.bf16.msra.mxu0 0
      %1497 = vmatprep.subr.bf16.mxu0 0
      %1498 = vmatpush1.bf16.msra.mxu0 0
      %1499 = vmatprep.subr.bf16.mxu0 0
      %1500 = vmatpush1.bf16.msra.mxu0 0
      %1501 = vmatprep.subr.bf16.mxu0 0
      %1502 = vmatpush1.bf16.msra.mxu0 0
      %1503 = vmatprep.subr.bf16.mxu0 0
      %1504 = vmatpush1.bf16.msra.mxu0 0
      %1505 = vmatprep.subr.bf16.mxu0 0
      %1506 = vmatpush1.bf16.msra.mxu0 0
      %1507 = vmatprep.subr.bf16.mxu0 0
      %1508 = vmatpush1.bf16.msra.mxu0 0
      %1509 = vmatprep.subr.bf16.mxu0 0
      %1510 = vmatpush1.bf16.msra.mxu0 0
      %1511 = vmatprep.subr.bf16.mxu0 0
      %1512 = vmatpush1.bf16.msra.mxu0 0
      %1513 = vmatprep.subr.bf16.mxu0 0
      %1514 = vmatpush1.bf16.msra.mxu0 0
      %1515 = vmatprep.subr.bf16.mxu0 0
      %1516 = vmatpush1.bf16.msra.mxu0 0
      %1517 = vmatprep.subr.bf16.mxu0 0
      %1518 = vmatpush1.bf16.msra.mxu0 0
      %1519 = vmatprep.subr.bf16.mxu0 0
      %1520 = vmatpush1.bf16.msra.mxu0 0
      %1521 = vmatprep.subr.bf16.mxu0 0
      %1522 = vmatpush1.bf16.msra.mxu0 0
      %1523 = vmatprep.mubr.bf16.mxu0 0
      %1524 = vmatmul.mubr.bf16.gmra.mrb[0].mxu0 %v1489
      %v1525 = vpop.f32.mrb[0].mxu0
      %v1526 = vadd.f32 0.0, %v1525
      %v1527 = vpop.f32.mrb[0].mxu0
      %v1528 = vpop.f32.mrb[0].mxu0
      %v1529 = vadd.f32 0.0, %v1528
      %v1530 = vpop.f32.mrb[0].mxu0
      %1531 = vdwg.mxu0
      %1532 = vrot.lane.b32.xlu0 %v602, 56
      %v1533 = vpop.permute.xlu0 %1532
      %v1536 = vsel %vm806, %v1390, 0
      %1538 = vmatprep.subr.bf16.mxu0 0
      %1539 = vmatpush1.bf16.msra.mxu0 %v1533
      %1540 = vmatprep.subr.bf16.mxu0 0
      %1541 = vmatpush1.bf16.msra.mxu0 0
      %1542 = vmatprep.subr.bf16.mxu0 0
      %1543 = vmatpush1.bf16.msra.mxu0 0
      %1544 = vmatprep.subr.bf16.mxu0 0
      %1545 = vmatpush1.bf16.msra.mxu0 0
      %1546 = vmatprep.subr.bf16.mxu0 0
      %1547 = vmatpush1.bf16.msra.mxu0 0
      %1548 = vmatprep.subr.bf16.mxu0 0
      %1549 = vmatpush1.bf16.msra.mxu0 0
      %1550 = vmatprep.subr.bf16.mxu0 0
      %1551 = vmatpush1.bf16.msra.mxu0 0
      %1552 = vmatprep.subr.bf16.mxu0 0
      %1553 = vmatpush1.bf16.msra.mxu0 0
      %1554 = vmatprep.subr.bf16.mxu0 0
      %1555 = vmatpush1.bf16.msra.mxu0 0
      %1556 = vmatprep.subr.bf16.mxu0 0
      %1557 = vmatpush1.bf16.msra.mxu0 0
      %1558 = vmatprep.subr.bf16.mxu0 0
      %1559 = vmatpush1.bf16.msra.mxu0 0
      %1560 = vmatprep.subr.bf16.mxu0 0
      %1561 = vmatpush1.bf16.msra.mxu0 0
      %1562 = vmatprep.subr.bf16.mxu0 0
      %1563 = vmatpush1.bf16.msra.mxu0 0
      %1564 = vmatprep.subr.bf16.mxu0 0
      %1565 = vmatpush1.bf16.msra.mxu0 0
      %1566 = vmatprep.subr.bf16.mxu0 0
      %1567 = vmatpush1.bf16.msra.mxu0 0
      %1568 = vmatprep.subr.bf16.mxu0 0
      %1569 = vmatpush1.bf16.msra.mxu0 0
      %1570 = vmatprep.mubr.bf16.mxu0 0
      %1571 = vmatmul.mubr.bf16.gmra.mrb[0].mxu0 %v1536
      %v1572 = vpop.f32.mrb[0].mxu0
      %v1573 = vadd.f32 0.0, %v1572
      %v1574 = vpop.f32.mrb[0].mxu0
      %v1575 = vpop.f32.mrb[0].mxu0
      %v1576 = vadd.f32 0.0, %v1575
      %v1577 = vpop.f32.mrb[0].mxu0
      %1578 = vdwg.mxu0
      %v1579 = vpack.c.bf16 %v1435, %v1432
      %v1580 = vpack.c.bf16 %v1482, %v1479
      %v1581 = vpack.c.bf16 %v1529, %v1526
      %v1582 = vpack.c.bf16 %v1576, %v1573
      %v1583 = vld [vmem:[%s4 + $0x4] sm:$0xf]
      %v1585 = vsel %vm608, %v1579, 0
      %v1588 = vsel %vm608, %v1580, 0
      %v1591 = vsel %vm608, %v1581, 0
      %v1594 = vsel %vm608, %v1582, 0
      %vm1596 = vcmask 1043456
      %v1598 = vsel %vm1596, %v1583, 0
      %1600 = vmatprep.subr.bf16.mxu0 0
      %1601 = vmatpush1.bf16.msra.mxu0 %v1598
      %1602 = vmatprep.subr.bf16.mxu0 0
      %1603 = vmatpush1.bf16.msra.mxu0 0
      %1604 = vmatprep.subr.bf16.mxu0 0
      %1605 = vmatpush1.bf16.msra.mxu0 0
      %1606 = vmatprep.subr.bf16.mxu0 0
      %1607 = vmatpush1.bf16.msra.mxu0 0
      %1608 = vmatprep.subr.bf16.mxu0 0
      %1609 = vmatpush1.bf16.msra.mxu0 0
      %1610 = vmatprep.subr.bf16.mxu0 0
      %1611 = vmatpush1.bf16.msra.mxu0 0
      %1612 = vmatprep.subr.bf16.mxu0 0
      %1613 = vmatpush1.bf16.msra.mxu0 0
      %1614 = vmatprep.subr.bf16.mxu0 0
      %1615 = vmatpush1.bf16.msra.mxu0 0
      %1616 = vmatprep.subr.bf16.mxu0 0
      %1617 = vmatpush1.bf16.msra.mxu0 0
      %1618 = vmatprep.subr.bf16.mxu0 0
      %1619 = vmatpush1.bf16.msra.mxu0 0
      %1620 = vmatprep.subr.bf16.mxu0 0
      %1621 = vmatpush1.bf16.msra.mxu0 0
      %1622 = vmatprep.subr.bf16.mxu0 0
      %1623 = vmatpush1.bf16.msra.mxu0 0
      %1624 = vmatprep.subr.bf16.mxu0 0
      %1625 = vmatpush1.bf16.msra.mxu0 0
      %1626 = vmatprep.subr.bf16.mxu0 0
      %1627 = vmatpush1.bf16.msra.mxu0 0
      %1628 = vmatprep.subr.bf16.mxu0 0
      %1629 = vmatpush1.bf16.msra.mxu0 0
      %1630 = vmatprep.subr.bf16.mxu0 0
      %1631 = vmatpush1.bf16.msra.mxu0 0
      %1632 = vmatprep.mubr.bf16.mxu0 0
      %1633 = vmatmul.mubr.bf16.gmra.mrb[0].mxu0 %v1585
      %v1634 = vpop.f32.mrb[0].mxu0
      %v1635 = vadd.f32 0.0, %v1634
      %v1636 = vpop.f32.mrb[0].mxu0
      %v1637 = vpop.f32.mrb[0].mxu0
      %v1638 = vadd.f32 0.0, %v1637
      %v1639 = vpop.f32.mrb[0].mxu0
      %1640 = vmatprep.mubr.bf16.mxu0 0
      %1641 = vmatmul.mubr.bf16.gmra.mrb[0].mxu0 %v1588
      %v1642 = vpop.f32.mrb[0].mxu0
      %v1643 = vadd.f32 0.0, %v1642
      %v1644 = vpop.f32.mrb[0].mxu0
      %v1645 = vpop.f32.mrb[0].mxu0
      %v1646 = vadd.f32 0.0, %v1645
      %v1647 = vpop.f32.mrb[0].mxu0
      %1648 = vmatprep.mubr.bf16.mxu0 0
      %1649 = vmatmul.mubr.bf16.gmra.mrb[0].mxu0 %v1591
      %v1650 = vpop.f32.mrb[0].mxu0
      %v1651 = vadd.f32 0.0, %v1650
      %v1652 = vpop.f32.mrb[0].mxu0
      %v1653 = vpop.f32.mrb[0].mxu0
      %v1654 = vadd.f32 0.0, %v1653
      %v1655 = vpop.f32.mrb[0].mxu0
      %1656 = vmatprep.mubr.bf16.mxu0 0
      %1657 = vmatmul.mubr.bf16.gmra.mrb[0].mxu0 %v1594
      %v1658 = vpop.f32.mrb[0].mxu0
      %v1659 = vadd.f32 0.0, %v1658
      %v1660 = vpop.f32.mrb[0].mxu0
      %v1661 = vpop.f32.mrb[0].mxu0
      %v1662 = vadd.f32 0.0, %v1661
      %v1663 = vpop.f32.mrb[0].mxu0
      %1664 = vdwg.mxu0
      %v1666 = vsel %vm608, %v1087, 0
      %v1669 = vsel %vm608, %v1088, 0
      %v1672 = vsel %vm608, %v1089, 0
      %v1675 = vsel %vm608, %v1090, 0
      %v1678 = vsel %vm1596, %v1091, 0
      %1680 = vmatprep.subr.bf16.mxu0 0
      %1681 = vmatpush1.bf16.msra.mxu0 %v1678
      %1682 = vmatprep.subr.bf16.mxu0 0
      %1683 = vmatpush1.bf16.msra.mxu0 0
      %1684 = vmatprep.subr.bf16.mxu0 0
      %1685 = vmatpush1.bf16.msra.mxu0 0
      %1686 = vmatprep.subr.bf16.mxu0 0
      %1687 = vmatpush1.bf16.msra.mxu0 0
      %1688 = vmatprep.subr.bf16.mxu0 0
      %1689 = vmatpush1.bf16.msra.mxu0 0
      %1690 = vmatprep.subr.bf16.mxu0 0
      %1691 = vmatpush1.bf16.msra.mxu0 0
      %1692 = vmatprep.subr.bf16.mxu0 0
      %1693 = vmatpush1.bf16.msra.mxu0 0
      %1694 = vmatprep.subr.bf16.mxu0 0
      %1695 = vmatpush1.bf16.msra.mxu0 0
      %1696 = vmatprep.subr.bf16.mxu0 0
      %1697 = vmatpush1.bf16.msra.mxu0 0
      %1698 = vmatprep.subr.bf16.mxu0 0
      %1699 = vmatpush1.bf16.msra.mxu0 0
      %1700 = vmatprep.subr.bf16.mxu0 0
      %1701 = vmatpush1.bf16.msra.mxu0 0
      %1702 = vmatprep.subr.bf16.mxu0 0
      %1703 = vmatpush1.bf16.msra.mxu0 0
      %1704 = vmatprep.subr.bf16.mxu0 0
      %1705 = vmatpush1.bf16.msra.mxu0 0
      %1706 = vmatprep.subr.bf16.mxu0 0
      %1707 = vmatpush1.bf16.msra.mxu0 0
      %1708 = vmatprep.subr.bf16.mxu0 0
      %1709 = vmatpush1.bf16.msra.mxu0 0
      %1710 = vmatprep.subr.bf16.mxu0 0
      %1711 = vmatpush1.bf16.msra.mxu0 0
      %1712 = vmatprep.mubr.bf16.mxu0 0
      %1713 = vmatmul.mubr.bf16.gmra.mrb[0].mxu0 %v1666
      %v1714 = vpop.f32.mrb[0].mxu0
      %v1715 = vadd.f32 %v1635, %v1714
      %v1716 = vpop.f32.mrb[0].mxu0
      %v1717 = vpop.f32.mrb[0].mxu0
      %v1718 = vadd.f32 %v1638, %v1717
      %v1719 = vpop.f32.mrb[0].mxu0
      %1720 = vmatprep.mubr.bf16.mxu0 0
      %1721 = vmatmul.mubr.bf16.gmra.mrb[0].mxu0 %v1669
      %v1722 = vpop.f32.mrb[0].mxu0
      %v1723 = vadd.f32 %v1643, %v1722
      %v1724 = vpop.f32.mrb[0].mxu0
      %v1725 = vpop.f32.mrb[0].mxu0
      %v1726 = vadd.f32 %v1646, %v1725
      %v1727 = vpop.f32.mrb[0].mxu0
      %1728 = vmatprep.mubr.bf16.mxu0 0
      %1729 = vmatmul.mubr.bf16.gmra.mrb[0].mxu0 %v1672
      %v1730 = vpop.f32.mrb[0].mxu0
      %v1731 = vadd.f32 %v1651, %v1730
      %v1732 = vpop.f32.mrb[0].mxu0
      %v1733 = vpop.f32.mrb[0].mxu0
      %v1734 = vadd.f32 %v1654, %v1733
      %v1735 = vpop.f32.mrb[0].mxu0
      %1736 = vmatprep.mubr.bf16.mxu0 0
      %1737 = vmatmul.mubr.bf16.gmra.mrb[0].mxu0 %v1675
      %v1738 = vpop.f32.mrb[0].mxu0
      %v1739 = vadd.f32 %v1659, %v1738
      %v1740 = vpop.f32.mrb[0].mxu0
      %v1741 = vpop.f32.mrb[0].mxu0
      %v1742 = vadd.f32 %v1662, %v1741
      %v1743 = vpop.f32.mrb[0].mxu0
      %1744 = vdwg.mxu0
      %s1745 = scalar_lea.vmem %s1, 32
      %v1746 = vld [vmem:[%s1745] sm:$0xff]
      %v1747 = vld [vmem:[%s1745 + $0x8] sm:$0xff]
      %1748 = vrot.lane.b32.xlu0 %v599, 112
      %v1749 = vpop.permute.xlu0 %1748
      %1750 = vrot.lane.b32.xlu0 %v599, 80
      %v1751 = vpop.permute.xlu0 %1750
      %v1753 = vsel %vm608, %v1749, 0
      %v1756 = vsel %vm608, %v1751, 0
      %1758 = vmatprep.subr.bf16.mxu0 0
      %1759 = vmatpush1.bf16.xpose.msra.mxu0 %v1756
      %1760 = vmatprep.subr.bf16.mxu0 0
      %1761 = vmatpush1.bf16.xpose.msra.mxu0 0
      %1762 = vmatprep.subr.bf16.mxu0 0
      %1763 = vmatpush1.bf16.xpose.msra.mxu0 0
      %1764 = vmatprep.subr.bf16.mxu0 0
      %1765 = vmatpush1.bf16.xpose.msra.mxu0 0
      %1766 = vmatprep.subr.bf16.mxu0 0
      %1767 = vmatpush1.bf16.xpose.msra.mxu0 0
      %1768 = vmatprep.subr.bf16.mxu0 0
      %1769 = vmatpush1.bf16.xpose.msra.mxu0 0
      %1770 = vmatprep.subr.bf16.mxu0 0
      %1771 = vmatpush1.bf16.xpose.msra.mxu0 0
      %1772 = vmatprep.subr.bf16.mxu0 0
      %1773 = vmatpush1.bf16.xpose.msra.mxu0 0
      %1774 = vmatprep.subr.bf16.mxu0 0
      %1775 = vmatpush1.bf16.xpose.msra.mxu0 0
      %1776 = vmatprep.subr.bf16.mxu0 0
      %1777 = vmatpush1.bf16.xpose.msra.mxu0 0
      %1778 = vmatprep.subr.bf16.mxu0 0
      %1779 = vmatpush1.bf16.xpose.msra.mxu0 0
      %1780 = vmatprep.subr.bf16.mxu0 0
      %1781 = vmatpush1.bf16.xpose.msra.mxu0 0
      %1782 = vmatprep.subr.bf16.mxu0 0
      %1783 = vmatpush1.bf16.xpose.msra.mxu0 0
      %1784 = vmatprep.subr.bf16.mxu0 0
      %1785 = vmatpush1.bf16.xpose.msra.mxu0 0
      %1786 = vmatprep.subr.bf16.mxu0 0
      %1787 = vmatpush1.bf16.xpose.msra.mxu0 0
      %1788 = vmatprep.subr.bf16.mxu0 0
      %1789 = vmatpush1.bf16.xpose.msra.mxu0 0
      %1790 = vmatprep.mubr.bf16.mxu0 0
      %1791 = vmatmul.mubr.bf16.gmra.mrb[0].mxu0 %v1753
      %v1792 = vpop.f32.mrb[0].mxu0
      %v1793 = vadd.f32 %v1746, %v1792
      %v1794 = vpop.f32.mrb[0].mxu0
      %v1795 = vpop.f32.mrb[0].mxu0
      %v1796 = vadd.f32 %v1747, %v1795
      %v1797 = vpop.f32.mrb[0].mxu0
      %1798 = vdwg.mxu0
      %1799 = vrot.lane.b32.xlu0 %v600, 112
      %v1800 = vpop.permute.xlu0 %1799
      %1801 = vrot.lane.b32.xlu0 %v600, 80
      %v1802 = vpop.permute.xlu0 %1801
      %v1804 = vsel %vm608, %v1800, 0
      %v1807 = vsel %vm608, %v1802, 0
      %1809 = vmatprep.subr.bf16.mxu0 0
      %1810 = vmatpush1.bf16.xpose.msra.mxu0 %v1807
      %1811 = vmatprep.subr.bf16.mxu0 0
      %1812 = vmatpush1.bf16.xpose.msra.mxu0 0
      %1813 = vmatprep.subr.bf16.mxu0 0
      %1814 = vmatpush1.bf16.xpose.msra.mxu0 0
      %1815 = vmatprep.subr.bf16.mxu0 0
      %1816 = vmatpush1.bf16.xpose.msra.mxu0 0
      %1817 = vmatprep.subr.bf16.mxu0 0
      %1818 = vmatpush1.bf16.xpose.msra.mxu0 0
      %1819 = vmatprep.subr.bf16.mxu0 0
      %1820 = vmatpush1.bf16.xpose.msra.mxu0 0
      %1821 = vmatprep.subr.bf16.mxu0 0
      %1822 = vmatpush1.bf16.xpose.msra.mxu0 0
      %1823 = vmatprep.subr.bf16.mxu0 0
      %1824 = vmatpush1.bf16.xpose.msra.mxu0 0
      %1825 = vmatprep.subr.bf16.mxu0 0
      %1826 = vmatpush1.bf16.xpose.msra.mxu0 0
      %1827 = vmatprep.subr.bf16.mxu0 0
      %1828 = vmatpush1.bf16.xpose.msra.mxu0 0
      %1829 = vmatprep.subr.bf16.mxu0 0
      %1830 = vmatpush1.bf16.xpose.msra.mxu0 0
      %1831 = vmatprep.subr.bf16.mxu0 0
      %1832 = vmatpush1.bf16.xpose.msra.mxu0 0
      %1833 = vmatprep.subr.bf16.mxu0 0
      %1834 = vmatpush1.bf16.xpose.msra.mxu0 0
      %1835 = vmatprep.subr.bf16.mxu0 0
      %1836 = vmatpush1.bf16.xpose.msra.mxu0 0
      %1837 = vmatprep.subr.bf16.mxu0 0
      %1838 = vmatpush1.bf16.xpose.msra.mxu0 0
      %1839 = vmatprep.subr.bf16.mxu0 0
      %1840 = vmatpush1.bf16.xpose.msra.mxu0 0
      %1841 = vmatprep.mubr.bf16.mxu0 0
      %1842 = vmatmul.mubr.bf16.gmra.mrb[0].mxu0 %v1804
      %v1843 = vpop.f32.mrb[0].mxu0
      %v1844 = vadd.f32 %v1746, %v1843
      %v1845 = vpop.f32.mrb[0].mxu0
      %v1846 = vpop.f32.mrb[0].mxu0
      %v1847 = vadd.f32 %v1747, %v1846
      %v1848 = vpop.f32.mrb[0].mxu0
      %1849 = vdwg.mxu0
      %1850 = vrot.lane.b32.xlu0 %v601, 112
      %v1851 = vpop.permute.xlu0 %1850
      %1852 = vrot.lane.b32.xlu0 %v601, 80
      %v1853 = vpop.permute.xlu0 %1852
      %v1855 = vsel %vm608, %v1851, 0
      %v1858 = vsel %vm608, %v1853, 0
      %1860 = vmatprep.subr.bf16.mxu0 0
      %1861 = vmatpush1.bf16.xpose.msra.mxu0 %v1858
      %1862 = vmatprep.subr.bf16.mxu0 0
      %1863 = vmatpush1.bf16.xpose.msra.mxu0 0
      %1864 = vmatprep.subr.bf16.mxu0 0
      %1865 = vmatpush1.bf16.xpose.msra.mxu0 0
      %1866 = vmatprep.subr.bf16.mxu0 0
      %1867 = vmatpush1.bf16.xpose.msra.mxu0 0
      %1868 = vmatprep.subr.bf16.mxu0 0
      %1869 = vmatpush1.bf16.xpose.msra.mxu0 0
      %1870 = vmatprep.subr.bf16.mxu0 0
      %1871 = vmatpush1.bf16.xpose.msra.mxu0 0
      %1872 = vmatprep.subr.bf16.mxu0 0
      %1873 = vmatpush1.bf16.xpose.msra.mxu0 0
      %1874 = vmatprep.subr.bf16.mxu0 0
      %1875 = vmatpush1.bf16.xpose.msra.mxu0 0
      %1876 = vmatprep.subr.bf16.mxu0 0
      %1877 = vmatpush1.bf16.xpose.msra.mxu0 0
      %1878 = vmatprep.subr.bf16.mxu0 0
      %1879 = vmatpush1.bf16.xpose.msra.mxu0 0
      %1880 = vmatprep.subr.bf16.mxu0 0
      %1881 = vmatpush1.bf16.xpose.msra.mxu0 0
      %1882 = vmatprep.subr.bf16.mxu0 0
      %1883 = vmatpush1.bf16.xpose.msra.mxu0 0
      %1884 = vmatprep.subr.bf16.mxu0 0
      %1885 = vmatpush1.bf16.xpose.msra.mxu0 0
      %1886 = vmatprep.subr.bf16.mxu0 0
      %1887 = vmatpush1.bf16.xpose.msra.mxu0 0
      %1888 = vmatprep.subr.bf16.mxu0 0
      %1889 = vmatpush1.bf16.xpose.msra.mxu0 0
      %1890 = vmatprep.subr.bf16.mxu0 0
      %1891 = vmatpush1.bf16.xpose.msra.mxu0 0
      %1892 = vmatprep.mubr.bf16.mxu0 0
      %1893 = vmatmul.mubr.bf16.gmra.mrb[0].mxu0 %v1855
      %v1894 = vpop.f32.mrb[0].mxu0
      %v1895 = vadd.f32 %v1746, %v1894
      %v1896 = vpop.f32.mrb[0].mxu0
      %v1897 = vpop.f32.mrb[0].mxu0
      %v1898 = vadd.f32 %v1747, %v1897
      %v1899 = vpop.f32.mrb[0].mxu0
      %1900 = vdwg.mxu0
      %1901 = vrot.lane.b32.xlu0 %v602, 112
      %v1902 = vpop.permute.xlu0 %1901
      %1903 = vrot.lane.b32.xlu0 %v602, 80
      %v1904 = vpop.permute.xlu0 %1903
      %v1906 = vsel %vm608, %v1902, 0
      %v1909 = vsel %vm608, %v1904, 0
      %1911 = vmatprep.subr.bf16.mxu0 0
      %1912 = vmatpush1.bf16.xpose.msra.mxu0 %v1909
      %1913 = vmatprep.subr.bf16.mxu0 0
      %1914 = vmatpush1.bf16.xpose.msra.mxu0 0
      %1915 = vmatprep.subr.bf16.mxu0 0
      %1916 = vmatpush1.bf16.xpose.msra.mxu0 0
      %1917 = vmatprep.subr.bf16.mxu0 0
      %1918 = vmatpush1.bf16.xpose.msra.mxu0 0
      %1919 = vmatprep.subr.bf16.mxu0 0
      %1920 = vmatpush1.bf16.xpose.msra.mxu0 0
      %1921 = vmatprep.subr.bf16.mxu0 0
      %1922 = vmatpush1.bf16.xpose.msra.mxu0 0
      %1923 = vmatprep.subr.bf16.mxu0 0
      %1924 = vmatpush1.bf16.xpose.msra.mxu0 0
      %1925 = vmatprep.subr.bf16.mxu0 0
      %1926 = vmatpush1.bf16.xpose.msra.mxu0 0
      %1927 = vmatprep.subr.bf16.mxu0 0
      %1928 = vmatpush1.bf16.xpose.msra.mxu0 0
      %1929 = vmatprep.subr.bf16.mxu0 0
      %1930 = vmatpush1.bf16.xpose.msra.mxu0 0
      %1931 = vmatprep.subr.bf16.mxu0 0
      %1932 = vmatpush1.bf16.xpose.msra.mxu0 0
      %1933 = vmatprep.subr.bf16.mxu0 0
      %1934 = vmatpush1.bf16.xpose.msra.mxu0 0
      %1935 = vmatprep.subr.bf16.mxu0 0
      %1936 = vmatpush1.bf16.xpose.msra.mxu0 0
      %1937 = vmatprep.subr.bf16.mxu0 0
      %1938 = vmatpush1.bf16.xpose.msra.mxu0 0
      %1939 = vmatprep.subr.bf16.mxu0 0
      %1940 = vmatpush1.bf16.xpose.msra.mxu0 0
      %1941 = vmatprep.subr.bf16.mxu0 0
      %1942 = vmatpush1.bf16.xpose.msra.mxu0 0
      %1943 = vmatprep.mubr.bf16.mxu0 0
      %1944 = vmatmul.mubr.bf16.gmra.mrb[0].mxu0 %v1906
      %v1945 = vpop.f32.mrb[0].mxu0
      %v1946 = vadd.f32 %v1746, %v1945
      %v1947 = vpop.f32.mrb[0].mxu0
      %v1948 = vpop.f32.mrb[0].mxu0
      %v1949 = vadd.f32 %v1747, %v1948
      %v1950 = vpop.f32.mrb[0].mxu0
      %1951 = vdwg.mxu0
      %v1952 = vsel %vm806, %v1793, -inf
      %1953 = vmax.xlane.f32.xlu0 %v1952
      %v1954 = vpop.xlane.xlu0 %1953
      %v1955 = vsel %vm806, %v1796, -inf
      %1956 = vmax.xlane.f32.xlu0 %v1955
      %v1957 = vpop.xlane.xlu0 %1956
      %v1958 = vsel %vm806, %v1844, -inf
      %1959 = vmax.xlane.f32.xlu0 %v1958
      %v1960 = vpop.xlane.xlu0 %1959
      %v1961 = vsel %vm806, %v1847, -inf
      %1962 = vmax.xlane.f32.xlu0 %v1961
      %v1963 = vpop.xlane.xlu0 %1962
      %v1964 = vsel %vm806, %v1895, -inf
      %1965 = vmax.xlane.f32.xlu0 %v1964
      %v1966 = vpop.xlane.xlu0 %1965
      %v1967 = vsel %vm806, %v1898, -inf
      %1968 = vmax.xlane.f32.xlu0 %v1967
      %v1969 = vpop.xlane.xlu0 %1968
      %v1970 = vsel %vm806, %v1946, -inf
      %1971 = vmax.xlane.f32.xlu0 %v1970
      %v1972 = vpop.xlane.xlu0 %1971
      %v1973 = vsel %vm806, %v1949, -inf
      %1974 = vmax.xlane.f32.xlu0 %v1973
      %v1975 = vpop.xlane.xlu0 %1974
      %v1976 = vsub.f32 %v1793, %v1954
      %v1977 = vsub.f32 %v1796, %v1957
      %v1978 = vsub.f32 %v1844, %v1960
      %v1979 = vsub.f32 %v1847, %v1963
      %v1980 = vsub.f32 %v1895, %v1966
      %v1981 = vsub.f32 %v1898, %v1969
      %v1982 = vsub.f32 %v1946, %v1972
      %v1983 = vsub.f32 %v1949, %v1975
      %v1984 = vmul.f32 %v1976, 1.442695
      %v1985 = vpow.pop %v1984
      %v1986 = vmul.f32 %v1977, 1.442695
      %v1987 = vpow.pop %v1986
      %v1988 = vmul.f32 %v1978, 1.442695
      %v1989 = vpow.pop %v1988
      %v1990 = vmul.f32 %v1979, 1.442695
      %v1991 = vpow.pop %v1990
      %v1992 = vmul.f32 %v1980, 1.442695
      %v1993 = vpow.pop %v1992
      %v1994 = vmul.f32 %v1981, 1.442695
      %v1995 = vpow.pop %v1994
      %v1996 = vmul.f32 %v1982, 1.442695
      %v1997 = vpow.pop %v1996
      %v1998 = vmul.f32 %v1983, 1.442695
      %v1999 = vpow.pop %v1998
      %v2000 = vsel %vm806, %v1985, 0.0
      %2001 = vadd.xlane.f32.xlu0 %v2000
      %v2002 = vpop.xlane.xlu0 %2001
      %v2003 = vsel %vm806, %v1987, 0.0
      %2004 = vadd.xlane.f32.xlu0 %v2003
      %v2005 = vpop.xlane.xlu0 %2004
      %v2006 = vsel %vm806, %v1989, 0.0
      %2007 = vadd.xlane.f32.xlu0 %v2006
      %v2008 = vpop.xlane.xlu0 %2007
      %v2009 = vsel %vm806, %v1991, 0.0
      %2010 = vadd.xlane.f32.xlu0 %v2009
      %v2011 = vpop.xlane.xlu0 %2010
      %v2012 = vsel %vm806, %v1993, 0.0
      %2013 = vadd.xlane.f32.xlu0 %v2012
      %v2014 = vpop.xlane.xlu0 %2013
      %v2015 = vsel %vm806, %v1995, 0.0
      %2016 = vadd.xlane.f32.xlu0 %v2015
      %v2017 = vpop.xlane.xlu0 %2016
      %v2018 = vsel %vm806, %v1997, 0.0
      %2019 = vadd.xlane.f32.xlu0 %v2018
      %v2020 = vpop.xlane.xlu0 %2019
      %v2021 = vsel %vm806, %v1999, 0.0
      %2022 = vadd.xlane.f32.xlu0 %v2021
      %v2023 = vpop.xlane.xlu0 %2022
      %v2024 = vrcp.pop %v2002
      %v2025 = vrcp.pop %v2005
      %v2026 = vrcp.pop %v2008
      %v2027 = vrcp.pop %v2011
      %v2028 = vrcp.pop %v2014
      %v2029 = vrcp.pop %v2017
      %v2030 = vrcp.pop %v2020
      %v2031 = vrcp.pop %v2023
      %v2032 = vmul.f32 %v1985, %v2024
      %v2033 = vmul.f32 %v1987, %v2025
      %v2034 = vmul.f32 %v1989, %v2026
      %v2035 = vmul.f32 %v1991, %v2027
      %v2036 = vmul.f32 %v1993, %v2028
      %v2037 = vmul.f32 %v1995, %v2029
      %v2038 = vmul.f32 %v1997, %v2030
      %v2039 = vmul.f32 %v1999, %v2031
      %v2040 = vpack.c.bf16 %v2033, %v2032
      %v2041 = vpack.c.bf16 %v2035, %v2034
      %v2042 = vpack.c.bf16 %v2037, %v2036
      %v2043 = vpack.c.bf16 %v2039, %v2038
      %2044 = vrot.lane.b32.xlu0 %v599, 48
      %v2045 = vpop.permute.xlu0 %2044
      %v2048 = vsel %vm806, %v2040, 0
      %2050 = vmatprep.subr.bf16.mxu0 0
      %2051 = vmatpush1.bf16.msra.mxu0 %v2045
      %2052 = vmatprep.subr.bf16.mxu0 0
      %2053 = vmatpush1.bf16.msra.mxu0 0
      %2054 = vmatprep.subr.bf16.mxu0 0
      %2055 = vmatpush1.bf16.msra.mxu0 0
      %2056 = vmatprep.subr.bf16.mxu0 0
      %2057 = vmatpush1.bf16.msra.mxu0 0
      %2058 = vmatprep.subr.bf16.mxu0 0
      %2059 = vmatpush1.bf16.msra.mxu0 0
      %2060 = vmatprep.subr.bf16.mxu0 0
      %2061 = vmatpush1.bf16.msra.mxu0 0
      %2062 = vmatprep.subr.bf16.mxu0 0
      %2063 = vmatpush1.bf16.msra.mxu0 0
      %2064 = vmatprep.subr.bf16.mxu0 0
      %2065 = vmatpush1.bf16.msra.mxu0 0
      %2066 = vmatprep.subr.bf16.mxu0 0
      %2067 = vmatpush1.bf16.msra.mxu0 0
      %2068 = vmatprep.subr.bf16.mxu0 0
      %2069 = vmatpush1.bf16.msra.mxu0 0
      %2070 = vmatprep.subr.bf16.mxu0 0
      %2071 = vmatpush1.bf16.msra.mxu0 0
      %2072 = vmatprep.subr.bf16.mxu0 0
      %2073 = vmatpush1.bf16.msra.mxu0 0
      %2074 = vmatprep.subr.bf16.mxu0 0
      %2075 = vmatpush1.bf16.msra.mxu0 0
      %2076 = vmatprep.subr.bf16.mxu0 0
      %2077 = vmatpush1.bf16.msra.mxu0 0
      %2078 = vmatprep.subr.bf16.mxu0 0
      %2079 = vmatpush1.bf16.msra.mxu0 0
      %2080 = vmatprep.subr.bf16.mxu0 0
      %2081 = vmatpush1.bf16.msra.mxu0 0
      %2082 = vmatprep.mubr.bf16.mxu0 0
      %2083 = vmatmul.mubr.bf16.gmra.mrb[0].mxu0 %v2048
      %v2084 = vpop.f32.mrb[0].mxu0
      %v2085 = vadd.f32 0.0, %v2084
      %v2086 = vpop.f32.mrb[0].mxu0
      %v2087 = vpop.f32.mrb[0].mxu0
      %v2088 = vadd.f32 0.0, %v2087
      %v2089 = vpop.f32.mrb[0].mxu0
      %2090 = vdwg.mxu0
      %2091 = vrot.lane.b32.xlu0 %v600, 48
      %v2092 = vpop.permute.xlu0 %2091
      %v2095 = vsel %vm806, %v2041, 0
      %2097 = vmatprep.subr.bf16.mxu0 0
      %2098 = vmatpush1.bf16.msra.mxu0 %v2092
      %2099 = vmatprep.subr.bf16.mxu0 0
      %2100 = vmatpush1.bf16.msra.mxu0 0
      %2101 = vmatprep.subr.bf16.mxu0 0
      %2102 = vmatpush1.bf16.msra.mxu0 0
      %2103 = vmatprep.subr.bf16.mxu0 0
      %2104 = vmatpush1.bf16.msra.mxu0 0
      %2105 = vmatprep.subr.bf16.mxu0 0
      %2106 = vmatpush1.bf16.msra.mxu0 0
      %2107 = vmatprep.subr.bf16.mxu0 0
      %2108 = vmatpush1.bf16.msra.mxu0 0
      %2109 = vmatprep.subr.bf16.mxu0 0
      %2110 = vmatpush1.bf16.msra.mxu0 0
      %2111 = vmatprep.subr.bf16.mxu0 0
      %2112 = vmatpush1.bf16.msra.mxu0 0
      %2113 = vmatprep.subr.bf16.mxu0 0
      %2114 = vmatpush1.bf16.msra.mxu0 0
      %2115 = vmatprep.subr.bf16.mxu0 0
      %2116 = vmatpush1.bf16.msra.mxu0 0
      %2117 = vmatprep.subr.bf16.mxu0 0
      %2118 = vmatpush1.bf16.msra.mxu0 0
      %2119 = vmatprep.subr.bf16.mxu0 0
      %2120 = vmatpush1.bf16.msra.mxu0 0
      %2121 = vmatprep.subr.bf16.mxu0 0
      %2122 = vmatpush1.bf16.msra.mxu0 0
      %2123 = vmatprep.subr.bf16.mxu0 0
      %2124 = vmatpush1.bf16.msra.mxu0 0
      %2125 = vmatprep.subr.bf16.mxu0 0
      %2126 = vmatpush1.bf16.msra.mxu0 0
      %2127 = vmatprep.subr.bf16.mxu0 0
      %2128 = vmatpush1.bf16.msra.mxu0 0
      %2129 = vmatprep.mubr.bf16.mxu0 0
      %2130 = vmatmul.mubr.bf16.gmra.mrb[0].mxu0 %v2095
      %v2131 = vpop.f32.mrb[0].mxu0
      %v2132 = vadd.f32 0.0, %v2131
      %v2133 = vpop.f32.mrb[0].mxu0
      %v2134 = vpop.f32.mrb[0].mxu0
      %v2135 = vadd.f32 0.0, %v2134
      %v2136 = vpop.f32.mrb[0].mxu0
      %2137 = vdwg.mxu0
      %2138 = vrot.lane.b32.xlu0 %v601, 48
      %v2139 = vpop.permute.xlu0 %2138
      %v2142 = vsel %vm806, %v2042, 0
      %2144 = vmatprep.subr.bf16.mxu0 0
      %2145 = vmatpush1.bf16.msra.mxu0 %v2139
      %2146 = vmatprep.subr.bf16.mxu0 0
      %2147 = vmatpush1.bf16.msra.mxu0 0
      %2148 = vmatprep.subr.bf16.mxu0 0
      %2149 = vmatpush1.bf16.msra.mxu0 0
      %2150 = vmatprep.subr.bf16.mxu0 0
      %2151 = vmatpush1.bf16.msra.mxu0 0
      %2152 = vmatprep.subr.bf16.mxu0 0
      %2153 = vmatpush1.bf16.msra.mxu0 0
      %2154 = vmatprep.subr.bf16.mxu0 0
      %2155 = vmatpush1.bf16.msra.mxu0 0
      %2156 = vmatprep.subr.bf16.mxu0 0
      %2157 = vmatpush1.bf16.msra.mxu0 0
      %2158 = vmatprep.subr.bf16.mxu0 0
      %2159 = vmatpush1.bf16.msra.mxu0 0
      %2160 = vmatprep.subr.bf16.mxu0 0
      %2161 = vmatpush1.bf16.msra.mxu0 0
      %2162 = vmatprep.subr.bf16.mxu0 0
      %2163 = vmatpush1.bf16.msra.mxu0 0
      %2164 = vmatprep.subr.bf16.mxu0 0
      %2165 = vmatpush1.bf16.msra.mxu0 0
      %2166 = vmatprep.subr.bf16.mxu0 0
      %2167 = vmatpush1.bf16.msra.mxu0 0
      %2168 = vmatprep.subr.bf16.mxu0 0
      %2169 = vmatpush1.bf16.msra.mxu0 0
      %2170 = vmatprep.subr.bf16.mxu0 0
      %2171 = vmatpush1.bf16.msra.mxu0 0
      %2172 = vmatprep.subr.bf16.mxu0 0
      %2173 = vmatpush1.bf16.msra.mxu0 0
      %2174 = vmatprep.subr.bf16.mxu0 0
      %2175 = vmatpush1.bf16.msra.mxu0 0
      %2176 = vmatprep.mubr.bf16.mxu0 0
      %2177 = vmatmul.mubr.bf16.gmra.mrb[0].mxu0 %v2142
      %v2178 = vpop.f32.mrb[0].mxu0
      %v2179 = vadd.f32 0.0, %v2178
      %v2180 = vpop.f32.mrb[0].mxu0
      %v2181 = vpop.f32.mrb[0].mxu0
      %v2182 = vadd.f32 0.0, %v2181
      %v2183 = vpop.f32.mrb[0].mxu0
      %2184 = vdwg.mxu0
      %2185 = vrot.lane.b32.xlu0 %v602, 48
      %v2186 = vpop.permute.xlu0 %2185
      %v2189 = vsel %vm806, %v2043, 0
      %2191 = vmatprep.subr.bf16.mxu0 0
      %2192 = vmatpush1.bf16.msra.mxu0 %v2186
      %2193 = vmatprep.subr.bf16.mxu0 0
      %2194 = vmatpush1.bf16.msra.mxu0 0
      %2195 = vmatprep.subr.bf16.mxu0 0
      %2196 = vmatpush1.bf16.msra.mxu0 0
      %2197 = vmatprep.subr.bf16.mxu0 0
      %2198 = vmatpush1.bf16.msra.mxu0 0
      %2199 = vmatprep.subr.bf16.mxu0 0
      %2200 = vmatpush1.bf16.msra.mxu0 0
      %2201 = vmatprep.subr.bf16.mxu0 0
      %2202 = vmatpush1.bf16.msra.mxu0 0
      %2203 = vmatprep.subr.bf16.mxu0 0
      %2204 = vmatpush1.bf16.msra.mxu0 0
      %2205 = vmatprep.subr.bf16.mxu0 0
      %2206 = vmatpush1.bf16.msra.mxu0 0
      %2207 = vmatprep.subr.bf16.mxu0 0
      %2208 = vmatpush1.bf16.msra.mxu0 0
      %2209 = vmatprep.subr.bf16.mxu0 0
      %2210 = vmatpush1.bf16.msra.mxu0 0
      %2211 = vmatprep.subr.bf16.mxu0 0
      %2212 = vmatpush1.bf16.msra.mxu0 0
      %2213 = vmatprep.subr.bf16.mxu0 0
      %2214 = vmatpush1.bf16.msra.mxu0 0
      %2215 = vmatprep.subr.bf16.mxu0 0
      %2216 = vmatpush1.bf16.msra.mxu0 0
      %2217 = vmatprep.subr.bf16.mxu0 0
      %2218 = vmatpush1.bf16.msra.mxu0 0
      %2219 = vmatprep.subr.bf16.mxu0 0
      %2220 = vmatpush1.bf16.msra.mxu0 0
      %2221 = vmatprep.subr.bf16.mxu0 0
      %2222 = vmatpush1.bf16.msra.mxu0 0
      %2223 = vmatprep.mubr.bf16.mxu0 0
      %2224 = vmatmul.mubr.bf16.gmra.mrb[0].mxu0 %v2189
      %v2225 = vpop.f32.mrb[0].mxu0
      %v2226 = vadd.f32 0.0, %v2225
      %v2227 = vpop.f32.mrb[0].mxu0
      %v2228 = vpop.f32.mrb[0].mxu0
      %v2229 = vadd.f32 0.0, %v2228
      %v2230 = vpop.f32.mrb[0].mxu0
      %2231 = vdwg.mxu0
      %v2232 = vpack.c.bf16 %v2088, %v2085
      %v2233 = vpack.c.bf16 %v2135, %v2132
      %v2234 = vpack.c.bf16 %v2182, %v2179
      %v2235 = vpack.c.bf16 %v2229, %v2226
      %v2236 = vld [vmem:[%s4 + $0x8] sm:$0xf]
      %v2238 = vsel %vm608, %v2232, 0
      %v2241 = vsel %vm608, %v2233, 0
      %v2244 = vsel %vm608, %v2234, 0
      %v2247 = vsel %vm608, %v2235, 0
      %v2250 = vsel %vm1596, %v2236, 0
      %2252 = vmatprep.subr.bf16.mxu0 0
      %2253 = vmatpush1.bf16.msra.mxu0 %v2250
      %2254 = vmatprep.subr.bf16.mxu0 0
      %2255 = vmatpush1.bf16.msra.mxu0 0
      %2256 = vmatprep.subr.bf16.mxu0 0
      %2257 = vmatpush1.bf16.msra.mxu0 0
      %2258 = vmatprep.subr.bf16.mxu0 0
      %2259 = vmatpush1.bf16.msra.mxu0 0
      %2260 = vmatprep.subr.bf16.mxu0 0
      %2261 = vmatpush1.bf16.msra.mxu0 0
      %2262 = vmatprep.subr.bf16.mxu0 0
      %2263 = vmatpush1.bf16.msra.mxu0 0
      %2264 = vmatprep.subr.bf16.mxu0 0
      %2265 = vmatpush1.bf16.msra.mxu0 0
      %2266 = vmatprep.subr.bf16.mxu0 0
      %2267 = vmatpush1.bf16.msra.mxu0 0
      %2268 = vmatprep.subr.bf16.mxu0 0
      %2269 = vmatpush1.bf16.msra.mxu0 0
      %2270 = vmatprep.subr.bf16.mxu0 0
      %2271 = vmatpush1.bf16.msra.mxu0 0
      %2272 = vmatprep.subr.bf16.mxu0 0
      %2273 = vmatpush1.bf16.msra.mxu0 0
      %2274 = vmatprep.subr.bf16.mxu0 0
      %2275 = vmatpush1.bf16.msra.mxu0 0
      %2276 = vmatprep.subr.bf16.mxu0 0
      %2277 = vmatpush1.bf16.msra.mxu0 0
      %2278 = vmatprep.subr.bf16.mxu0 0
      %2279 = vmatpush1.bf16.msra.mxu0 0
      %2280 = vmatprep.subr.bf16.mxu0 0
      %2281 = vmatpush1.bf16.msra.mxu0 0
      %2282 = vmatprep.subr.bf16.mxu0 0
      %2283 = vmatpush1.bf16.msra.mxu0 0
      %2284 = vmatprep.mubr.bf16.mxu0 0
      %2285 = vmatmul.mubr.bf16.gmra.mrb[0].mxu0 %v2238
      %v2286 = vpop.f32.mrb[0].mxu0
      %v2287 = vadd.f32 0.0, %v2286
      %v2288 = vpop.f32.mrb[0].mxu0
      %v2289 = vpop.f32.mrb[0].mxu0
      %v2290 = vadd.f32 0.0, %v2289
      %v2291 = vpop.f32.mrb[0].mxu0
      %2292 = vmatprep.mubr.bf16.mxu0 0
      %2293 = vmatmul.mubr.bf16.gmra.mrb[0].mxu0 %v2241
      %v2294 = vpop.f32.mrb[0].mxu0
      %v2295 = vadd.f32 0.0, %v2294
      %v2296 = vpop.f32.mrb[0].mxu0
      %v2297 = vpop.f32.mrb[0].mxu0
      %v2298 = vadd.f32 0.0, %v2297
      %v2299 = vpop.f32.mrb[0].mxu0
      %2300 = vmatprep.mubr.bf16.mxu0 0
      %2301 = vmatmul.mubr.bf16.gmra.mrb[0].mxu0 %v2244
      %v2302 = vpop.f32.mrb[0].mxu0
      %v2303 = vadd.f32 0.0, %v2302
      %v2304 = vpop.f32.mrb[0].mxu0
      %v2305 = vpop.f32.mrb[0].mxu0
      %v2306 = vadd.f32 0.0, %v2305
      %v2307 = vpop.f32.mrb[0].mxu0
      %2308 = vmatprep.mubr.bf16.mxu0 0
      %2309 = vmatmul.mubr.bf16.gmra.mrb[0].mxu0 %v2247
      %v2310 = vpop.f32.mrb[0].mxu0
      %v2311 = vadd.f32 0.0, %v2310
      %v2312 = vpop.f32.mrb[0].mxu0
      %v2313 = vpop.f32.mrb[0].mxu0
      %v2314 = vadd.f32 0.0, %v2313
      %v2315 = vpop.f32.mrb[0].mxu0
      %2316 = vdwg.mxu0
      %v2317 = vadd.f32 %v1715, %v2287
      %v2318 = vadd.f32 %v1718, %v2290
      %v2319 = vadd.f32 %v1723, %v2295
      %v2320 = vadd.f32 %v1726, %v2298
      %v2321 = vadd.f32 %v1731, %v2303
      %v2322 = vadd.f32 %v1734, %v2306
      %v2323 = vadd.f32 %v1739, %v2311
      %v2324 = vadd.f32 %v1742, %v2314
      %s2325 = scalar_lea.vmem %s1, 48
      %v2326 = vld [vmem:[%s2325] sm:$0xff]
      %v2327 = vld [vmem:[%s2325 + $0x8] sm:$0xff]
      %2328 = vrot.lane.b32.xlu0 %v599, 104
      %v2329 = vpop.permute.xlu0 %2328
      %2330 = vrot.lane.b32.xlu0 %v599, 72
      %v2331 = vpop.permute.xlu0 %2330
      %v2333 = vsel %vm608, %v2329, 0
      %v2336 = vsel %vm608, %v2331, 0
      %2338 = vmatprep.subr.bf16.mxu0 0
      %2339 = vmatpush1.bf16.xpose.msra.mxu0 %v2336
      %2340 = vmatprep.subr.bf16.mxu0 0
      %2341 = vmatpush1.bf16.xpose.msra.mxu0 0
      %2342 = vmatprep.subr.bf16.mxu0 0
      %2343 = vmatpush1.bf16.xpose.msra.mxu0 0
      %2344 = vmatprep.subr.bf16.mxu0 0
      %2345 = vmatpush1.bf16.xpose.msra.mxu0 0
      %2346 = vmatprep.subr.bf16.mxu0 0
      %2347 = vmatpush1.bf16.xpose.msra.mxu0 0
      %2348 = vmatprep.subr.bf16.mxu0 0
      %2349 = vmatpush1.bf16.xpose.msra.mxu0 0
      %2350 = vmatprep.subr.bf16.mxu0 0
      %2351 = vmatpush1.bf16.xpose.msra.mxu0 0
      %2352 = vmatprep.subr.bf16.mxu0 0
      %2353 = vmatpush1.bf16.xpose.msra.mxu0 0
      %2354 = vmatprep.subr.bf16.mxu0 0
      %2355 = vmatpush1.bf16.xpose.msra.mxu0 0
      %2356 = vmatprep.subr.bf16.mxu0 0
      %2357 = vmatpush1.bf16.xpose.msra.mxu0 0
      %2358 = vmatprep.subr.bf16.mxu0 0
      %2359 = vmatpush1.bf16.xpose.msra.mxu0 0
      %2360 = vmatprep.subr.bf16.mxu0 0
      %2361 = vmatpush1.bf16.xpose.msra.mxu0 0
      %2362 = vmatprep.subr.bf16.mxu0 0
      %2363 = vmatpush1.bf16.xpose.msra.mxu0 0
      %2364 = vmatprep.subr.bf16.mxu0 0
      %2365 = vmatpush1.bf16.xpose.msra.mxu0 0
      %2366 = vmatprep.subr.bf16.mxu0 0
      %2367 = vmatpush1.bf16.xpose.msra.mxu0 0
      %2368 = vmatprep.subr.bf16.mxu0 0
      %2369 = vmatpush1.bf16.xpose.msra.mxu0 0
      %2370 = vmatprep.mubr.bf16.mxu0 0
      %2371 = vmatmul.mubr.bf16.gmra.mrb[0].mxu0 %v2333
      %v2372 = vpop.f32.mrb[0].mxu0
      %v2373 = vadd.f32 %v2326, %v2372
      %v2374 = vpop.f32.mrb[0].mxu0
      %v2375 = vpop.f32.mrb[0].mxu0
      %v2376 = vadd.f32 %v2327, %v2375
      %v2377 = vpop.f32.mrb[0].mxu0
      %2378 = vdwg.mxu0
      %2379 = vrot.lane.b32.xlu0 %v600, 104
      %v2380 = vpop.permute.xlu0 %2379
      %2381 = vrot.lane.b32.xlu0 %v600, 72
      %v2382 = vpop.permute.xlu0 %2381
      %v2384 = vsel %vm608, %v2380, 0
      %v2387 = vsel %vm608, %v2382, 0
      %2389 = vmatprep.subr.bf16.mxu0 0
      %2390 = vmatpush1.bf16.xpose.msra.mxu0 %v2387
      %2391 = vmatprep.subr.bf16.mxu0 0
      %2392 = vmatpush1.bf16.xpose.msra.mxu0 0
      %2393 = vmatprep.subr.bf16.mxu0 0
      %2394 = vmatpush1.bf16.xpose.msra.mxu0 0
      %2395 = vmatprep.subr.bf16.mxu0 0
      %2396 = vmatpush1.bf16.xpose.msra.mxu0 0
      %2397 = vmatprep.subr.bf16.mxu0 0
      %2398 = vmatpush1.bf16.xpose.msra.mxu0 0
      %2399 = vmatprep.subr.bf16.mxu0 0
      %2400 = vmatpush1.bf16.xpose.msra.mxu0 0
      %2401 = vmatprep.subr.bf16.mxu0 0
      %2402 = vmatpush1.bf16.xpose.msra.mxu0 0
      %2403 = vmatprep.subr.bf16.mxu0 0
      %2404 = vmatpush1.bf16.xpose.msra.mxu0 0
      %2405 = vmatprep.subr.bf16.mxu0 0
      %2406 = vmatpush1.bf16.xpose.msra.mxu0 0
      %2407 = vmatprep.subr.bf16.mxu0 0
      %2408 = vmatpush1.bf16.xpose.msra.mxu0 0
      %2409 = vmatprep.subr.bf16.mxu0 0
      %2410 = vmatpush1.bf16.xpose.msra.mxu0 0
      %2411 = vmatprep.subr.bf16.mxu0 0
      %2412 = vmatpush1.bf16.xpose.msra.mxu0 0
      %2413 = vmatprep.subr.bf16.mxu0 0
      %2414 = vmatpush1.bf16.xpose.msra.mxu0 0
      %2415 = vmatprep.subr.bf16.mxu0 0
      %2416 = vmatpush1.bf16.xpose.msra.mxu0 0
      %2417 = vmatprep.subr.bf16.mxu0 0
      %2418 = vmatpush1.bf16.xpose.msra.mxu0 0
      %2419 = vmatprep.subr.bf16.mxu0 0
      %2420 = vmatpush1.bf16.xpose.msra.mxu0 0
      %2421 = vmatprep.mubr.bf16.mxu0 0
      %2422 = vmatmul.mubr.bf16.gmra.mrb[0].mxu0 %v2384
      %v2423 = vpop.f32.mrb[0].mxu0
      %v2424 = vadd.f32 %v2326, %v2423
      %v2425 = vpop.f32.mrb[0].mxu0
      %v2426 = vpop.f32.mrb[0].mxu0
      %v2427 = vadd.f32 %v2327, %v2426
      %v2428 = vpop.f32.mrb[0].mxu0
      %2429 = vdwg.mxu0
      %2430 = vrot.lane.b32.xlu0 %v601, 104
      %v2431 = vpop.permute.xlu0 %2430
      %2432 = vrot.lane.b32.xlu0 %v601, 72
      %v2433 = vpop.permute.xlu0 %2432
      %v2435 = vsel %vm608, %v2431, 0
      %v2438 = vsel %vm608, %v2433, 0
      %2440 = vmatprep.subr.bf16.mxu0 0
      %2441 = vmatpush1.bf16.xpose.msra.mxu0 %v2438
      %2442 = vmatprep.subr.bf16.mxu0 0
      %2443 = vmatpush1.bf16.xpose.msra.mxu0 0
      %2444 = vmatprep.subr.bf16.mxu0 0
      %2445 = vmatpush1.bf16.xpose.msra.mxu0 0
      %2446 = vmatprep.subr.bf16.mxu0 0
      %2447 = vmatpush1.bf16.xpose.msra.mxu0 0
      %2448 = vmatprep.subr.bf16.mxu0 0
      %2449 = vmatpush1.bf16.xpose.msra.mxu0 0
      %2450 = vmatprep.subr.bf16.mxu0 0
      %2451 = vmatpush1.bf16.xpose.msra.mxu0 0
      %2452 = vmatprep.subr.bf16.mxu0 0
      %2453 = vmatpush1.bf16.xpose.msra.mxu0 0
      %2454 = vmatprep.subr.bf16.mxu0 0
      %2455 = vmatpush1.bf16.xpose.msra.mxu0 0
      %2456 = vmatprep.subr.bf16.mxu0 0
      %2457 = vmatpush1.bf16.xpose.msra.mxu0 0
      %2458 = vmatprep.subr.bf16.mxu0 0
      %2459 = vmatpush1.bf16.xpose.msra.mxu0 0
      %2460 = vmatprep.subr.bf16.mxu0 0
      %2461 = vmatpush1.bf16.xpose.msra.mxu0 0
      %2462 = vmatprep.subr.bf16.mxu0 0
      %2463 = vmatpush1.bf16.xpose.msra.mxu0 0
      %2464 = vmatprep.subr.bf16.mxu0 0
      %2465 = vmatpush1.bf16.xpose.msra.mxu0 0
      %2466 = vmatprep.subr.bf16.mxu0 0
      %2467 = vmatpush1.bf16.xpose.msra.mxu0 0
      %2468 = vmatprep.subr.bf16.mxu0 0
      %2469 = vmatpush1.bf16.xpose.msra.mxu0 0
      %2470 = vmatprep.subr.bf16.mxu0 0
      %2471 = vmatpush1.bf16.xpose.msra.mxu0 0
      %2472 = vmatprep.mubr.bf16.mxu0 0
      %2473 = vmatmul.mubr.bf16.gmra.mrb[0].mxu0 %v2435
      %v2474 = vpop.f32.mrb[0].mxu0
      %v2475 = vadd.f32 %v2326, %v2474
      %v2476 = vpop.f32.mrb[0].mxu0
      %v2477 = vpop.f32.mrb[0].mxu0
      %v2478 = vadd.f32 %v2327, %v2477
      %v2479 = vpop.f32.mrb[0].mxu0
      %2480 = vdwg.mxu0
      %2481 = vrot.lane.b32.xlu0 %v602, 104
      %v2482 = vpop.permute.xlu0 %2481
      %2483 = vrot.lane.b32.xlu0 %v602, 72
      %v2484 = vpop.permute.xlu0 %2483
      %v2486 = vsel %vm608, %v2482, 0
      %v2489 = vsel %vm608, %v2484, 0
      %2491 = vmatprep.subr.bf16.mxu0 0
      %2492 = vmatpush1.bf16.xpose.msra.mxu0 %v2489
      %2493 = vmatprep.subr.bf16.mxu0 0
      %2494 = vmatpush1.bf16.xpose.msra.mxu0 0
      %2495 = vmatprep.subr.bf16.mxu0 0
      %2496 = vmatpush1.bf16.xpose.msra.mxu0 0
      %2497 = vmatprep.subr.bf16.mxu0 0
      %2498 = vmatpush1.bf16.xpose.msra.mxu0 0
      %2499 = vmatprep.subr.bf16.mxu0 0
      %2500 = vmatpush1.bf16.xpose.msra.mxu0 0
      %2501 = vmatprep.subr.bf16.mxu0 0
      %2502 = vmatpush1.bf16.xpose.msra.mxu0 0
      %2503 = vmatprep.subr.bf16.mxu0 0
      %2504 = vmatpush1.bf16.xpose.msra.mxu0 0
      %2505 = vmatprep.subr.bf16.mxu0 0
      %2506 = vmatpush1.bf16.xpose.msra.mxu0 0
      %2507 = vmatprep.subr.bf16.mxu0 0
      %2508 = vmatpush1.bf16.xpose.msra.mxu0 0
      %2509 = vmatprep.subr.bf16.mxu0 0
      %2510 = vmatpush1.bf16.xpose.msra.mxu0 0
      %2511 = vmatprep.subr.bf16.mxu0 0
      %2512 = vmatpush1.bf16.xpose.msra.mxu0 0
      %2513 = vmatprep.subr.bf16.mxu0 0
      %2514 = vmatpush1.bf16.xpose.msra.mxu0 0
      %2515 = vmatprep.subr.bf16.mxu0 0
      %2516 = vmatpush1.bf16.xpose.msra.mxu0 0
      %2517 = vmatprep.subr.bf16.mxu0 0
      %2518 = vmatpush1.bf16.xpose.msra.mxu0 0
      %2519 = vmatprep.subr.bf16.mxu0 0
      %2520 = vmatpush1.bf16.xpose.msra.mxu0 0
      %2521 = vmatprep.subr.bf16.mxu0 0
      %2522 = vmatpush1.bf16.xpose.msra.mxu0 0
      %2523 = vmatprep.mubr.bf16.mxu0 0
      %2524 = vmatmul.mubr.bf16.gmra.mrb[0].mxu0 %v2486
      %v2525 = vpop.f32.mrb[0].mxu0
      %v2526 = vadd.f32 %v2326, %v2525
      %v2527 = vpop.f32.mrb[0].mxu0
      %v2528 = vpop.f32.mrb[0].mxu0
      %v2529 = vadd.f32 %v2327, %v2528
      %v2530 = vpop.f32.mrb[0].mxu0
      %2531 = vdwg.mxu0
      %v2532 = vsel %vm806, %v2373, -inf
      %2533 = vmax.xlane.f32.xlu0 %v2532
      %v2534 = vpop.xlane.xlu0 %2533
      %v2535 = vsel %vm806, %v2376, -inf
      %2536 = vmax.xlane.f32.xlu0 %v2535
      %v2537 = vpop.xlane.xlu0 %2536
      %v2538 = vsel %vm806, %v2424, -inf
      %2539 = vmax.xlane.f32.xlu0 %v2538
      %v2540 = vpop.xlane.xlu0 %2539
      %v2541 = vsel %vm806, %v2427, -inf
      %2542 = vmax.xlane.f32.xlu0 %v2541
      %v2543 = vpop.xlane.xlu0 %2542
      %v2544 = vsel %vm806, %v2475, -inf
      %2545 = vmax.xlane.f32.xlu0 %v2544
      %v2546 = vpop.xlane.xlu0 %2545
      %v2547 = vsel %vm806, %v2478, -inf
      %2548 = vmax.xlane.f32.xlu0 %v2547
      %v2549 = vpop.xlane.xlu0 %2548
      %v2550 = vsel %vm806, %v2526, -inf
      %2551 = vmax.xlane.f32.xlu0 %v2550
      %v2552 = vpop.xlane.xlu0 %2551
      %v2553 = vsel %vm806, %v2529, -inf
      %2554 = vmax.xlane.f32.xlu0 %v2553
      %v2555 = vpop.xlane.xlu0 %2554
      %v2556 = vsub.f32 %v2373, %v2534
      %v2557 = vsub.f32 %v2376, %v2537
      %v2558 = vsub.f32 %v2424, %v2540
      %v2559 = vsub.f32 %v2427, %v2543
      %v2560 = vsub.f32 %v2475, %v2546
      %v2561 = vsub.f32 %v2478, %v2549
      %v2562 = vsub.f32 %v2526, %v2552
      %v2563 = vsub.f32 %v2529, %v2555
      %v2564 = vmul.f32 %v2556, 1.442695
      %v2565 = vpow.pop %v2564
      %v2566 = vmul.f32 %v2557, 1.442695
      %v2567 = vpow.pop %v2566
      %v2568 = vmul.f32 %v2558, 1.442695
      %v2569 = vpow.pop %v2568
      %v2570 = vmul.f32 %v2559, 1.442695
      %v2571 = vpow.pop %v2570
      %v2572 = vmul.f32 %v2560, 1.442695
      %v2573 = vpow.pop %v2572
      %v2574 = vmul.f32 %v2561, 1.442695
      %v2575 = vpow.pop %v2574
      %v2576 = vmul.f32 %v2562, 1.442695
      %v2577 = vpow.pop %v2576
      %v2578 = vmul.f32 %v2563, 1.442695
      %v2579 = vpow.pop %v2578
      %v2580 = vsel %vm806, %v2565, 0.0
      %2581 = vadd.xlane.f32.xlu0 %v2580
      %v2582 = vpop.xlane.xlu0 %2581
      %v2583 = vsel %vm806, %v2567, 0.0
      %2584 = vadd.xlane.f32.xlu0 %v2583
      %v2585 = vpop.xlane.xlu0 %2584
      %v2586 = vsel %vm806, %v2569, 0.0
      %2587 = vadd.xlane.f32.xlu0 %v2586
      %v2588 = vpop.xlane.xlu0 %2587
      %v2589 = vsel %vm806, %v2571, 0.0
      %2590 = vadd.xlane.f32.xlu0 %v2589
      %v2591 = vpop.xlane.xlu0 %2590
      %v2592 = vsel %vm806, %v2573, 0.0
      %2593 = vadd.xlane.f32.xlu0 %v2592
      %v2594 = vpop.xlane.xlu0 %2593
      %v2595 = vsel %vm806, %v2575, 0.0
      %2596 = vadd.xlane.f32.xlu0 %v2595
      %v2597 = vpop.xlane.xlu0 %2596
      %v2598 = vsel %vm806, %v2577, 0.0
      %2599 = vadd.xlane.f32.xlu0 %v2598
      %v2600 = vpop.xlane.xlu0 %2599
      %v2601 = vsel %vm806, %v2579, 0.0
      %2602 = vadd.xlane.f32.xlu0 %v2601
      %v2603 = vpop.xlane.xlu0 %2602
      %v2604 = vrcp.pop %v2582
      %v2605 = vrcp.pop %v2585
      %v2606 = vrcp.pop %v2588
      %v2607 = vrcp.pop %v2591
      %v2608 = vrcp.pop %v2594
      %v2609 = vrcp.pop %v2597
      %v2610 = vrcp.pop %v2600
      %v2611 = vrcp.pop %v2603
      %v2612 = vmul.f32 %v2565, %v2604
      %v2613 = vmul.f32 %v2567, %v2605
      %v2614 = vmul.f32 %v2569, %v2606
      %v2615 = vmul.f32 %v2571, %v2607
      %v2616 = vmul.f32 %v2573, %v2608
      %v2617 = vmul.f32 %v2575, %v2609
      %v2618 = vmul.f32 %v2577, %v2610
      %v2619 = vmul.f32 %v2579, %v2611
      %v2620 = vpack.c.bf16 %v2613, %v2612
      %v2621 = vpack.c.bf16 %v2615, %v2614
      %v2622 = vpack.c.bf16 %v2617, %v2616
      %v2623 = vpack.c.bf16 %v2619, %v2618
      %2624 = vrot.lane.b32.xlu0 %v599, 40
      %v2625 = vpop.permute.xlu0 %2624
      %v2628 = vsel %vm806, %v2620, 0
      %2630 = vmatprep.subr.bf16.mxu0 0
      %2631 = vmatpush1.bf16.msra.mxu0 %v2625
      %2632 = vmatprep.subr.bf16.mxu0 0
      %2633 = vmatpush1.bf16.msra.mxu0 0
      %2634 = vmatprep.subr.bf16.mxu0 0
      %2635 = vmatpush1.bf16.msra.mxu0 0
      %2636 = vmatprep.subr.bf16.mxu0 0
      %2637 = vmatpush1.bf16.msra.mxu0 0
      %2638 = vmatprep.subr.bf16.mxu0 0
      %2639 = vmatpush1.bf16.msra.mxu0 0
      %2640 = vmatprep.subr.bf16.mxu0 0
      %2641 = vmatpush1.bf16.msra.mxu0 0
      %2642 = vmatprep.subr.bf16.mxu0 0
      %2643 = vmatpush1.bf16.msra.mxu0 0
      %2644 = vmatprep.subr.bf16.mxu0 0
      %2645 = vmatpush1.bf16.msra.mxu0 0
      %2646 = vmatprep.subr.bf16.mxu0 0
      %2647 = vmatpush1.bf16.msra.mxu0 0
      %2648 = vmatprep.subr.bf16.mxu0 0
      %2649 = vmatpush1.bf16.msra.mxu0 0
      %2650 = vmatprep.subr.bf16.mxu0 0
      %2651 = vmatpush1.bf16.msra.mxu0 0
      %2652 = vmatprep.subr.bf16.mxu0 0
      %2653 = vmatpush1.bf16.msra.mxu0 0
      %2654 = vmatprep.subr.bf16.mxu0 0
      %2655 = vmatpush1.bf16.msra.mxu0 0
      %2656 = vmatprep.subr.bf16.mxu0 0
      %2657 = vmatpush1.bf16.msra.mxu0 0
      %2658 = vmatprep.subr.bf16.mxu0 0
      %2659 = vmatpush1.bf16.msra.mxu0 0
      %2660 = vmatprep.subr.bf16.mxu0 0
      %2661 = vmatpush1.bf16.msra.mxu0 0
      %2662 = vmatprep.mubr.bf16.mxu0 0
      %2663 = vmatmul.mubr.bf16.gmra.mrb[0].mxu0 %v2628
      %v2664 = vpop.f32.mrb[0].mxu0
      %v2665 = vadd.f32 0.0, %v2664
      %v2666 = vpop.f32.mrb[0].mxu0
      %v2667 = vpop.f32.mrb[0].mxu0
      %v2668 = vadd.f32 0.0, %v2667
      %v2669 = vpop.f32.mrb[0].mxu0
      %2670 = vdwg.mxu0
      %2671 = vrot.lane.b32.xlu0 %v600, 40
      %v2672 = vpop.permute.xlu0 %2671
      %v2675 = vsel %vm806, %v2621, 0
      %2677 = vmatprep.subr.bf16.mxu0 0
      %2678 = vmatpush1.bf16.msra.mxu0 %v2672
      %2679 = vmatprep.subr.bf16.mxu0 0
      %2680 = vmatpush1.bf16.msra.mxu0 0
      %2681 = vmatprep.subr.bf16.mxu0 0
      %2682 = vmatpush1.bf16.msra.mxu0 0
      %2683 = vmatprep.subr.bf16.mxu0 0
      %2684 = vmatpush1.bf16.msra.mxu0 0
      %2685 = vmatprep.subr.bf16.mxu0 0
      %2686 = vmatpush1.bf16.msra.mxu0 0
      %2687 = vmatprep.subr.bf16.mxu0 0
      %2688 = vmatpush1.bf16.msra.mxu0 0
      %2689 = vmatprep.subr.bf16.mxu0 0
      %2690 = vmatpush1.bf16.msra.mxu0 0
      %2691 = vmatprep.subr.bf16.mxu0 0
      %2692 = vmatpush1.bf16.msra.mxu0 0
      %2693 = vmatprep.subr.bf16.mxu0 0
      %2694 = vmatpush1.bf16.msra.mxu0 0
      %2695 = vmatprep.subr.bf16.mxu0 0
      %2696 = vmatpush1.bf16.msra.mxu0 0
      %2697 = vmatprep.subr.bf16.mxu0 0
      %2698 = vmatpush1.bf16.msra.mxu0 0
      %2699 = vmatprep.subr.bf16.mxu0 0
      %2700 = vmatpush1.bf16.msra.mxu0 0
      %2701 = vmatprep.subr.bf16.mxu0 0
      %2702 = vmatpush1.bf16.msra.mxu0 0
      %2703 = vmatprep.subr.bf16.mxu0 0
      %2704 = vmatpush1.bf16.msra.mxu0 0
      %2705 = vmatprep.subr.bf16.mxu0 0
      %2706 = vmatpush1.bf16.msra.mxu0 0
      %2707 = vmatprep.subr.bf16.mxu0 0
      %2708 = vmatpush1.bf16.msra.mxu0 0
      %2709 = vmatprep.mubr.bf16.mxu0 0
      %2710 = vmatmul.mubr.bf16.gmra.mrb[0].mxu0 %v2675
      %v2711 = vpop.f32.mrb[0].mxu0
      %v2712 = vadd.f32 0.0, %v2711
      %v2713 = vpop.f32.mrb[0].mxu0
      %v2714 = vpop.f32.mrb[0].mxu0
      %v2715 = vadd.f32 0.0, %v2714
      %v2716 = vpop.f32.mrb[0].mxu0
      %2717 = vdwg.mxu0
      %2718 = vrot.lane.b32.xlu0 %v601, 40
      %v2719 = vpop.permute.xlu0 %2718
      %v2722 = vsel %vm806, %v2622, 0
      %2724 = vmatprep.subr.bf16.mxu0 0
      %2725 = vmatpush1.bf16.msra.mxu0 %v2719
      %2726 = vmatprep.subr.bf16.mxu0 0
      %2727 = vmatpush1.bf16.msra.mxu0 0
      %2728 = vmatprep.subr.bf16.mxu0 0
      %2729 = vmatpush1.bf16.msra.mxu0 0
      %2730 = vmatprep.subr.bf16.mxu0 0
      %2731 = vmatpush1.bf16.msra.mxu0 0
      %2732 = vmatprep.subr.bf16.mxu0 0
      %2733 = vmatpush1.bf16.msra.mxu0 0
      %2734 = vmatprep.subr.bf16.mxu0 0
      %2735 = vmatpush1.bf16.msra.mxu0 0
      %2736 = vmatprep.subr.bf16.mxu0 0
      %2737 = vmatpush1.bf16.msra.mxu0 0
      %2738 = vmatprep.subr.bf16.mxu0 0
      %2739 = vmatpush1.bf16.msra.mxu0 0
      %2740 = vmatprep.subr.bf16.mxu0 0
      %2741 = vmatpush1.bf16.msra.mxu0 0
      %2742 = vmatprep.subr.bf16.mxu0 0
      %2743 = vmatpush1.bf16.msra.mxu0 0
      %2744 = vmatprep.subr.bf16.mxu0 0
      %2745 = vmatpush1.bf16.msra.mxu0 0
      %2746 = vmatprep.subr.bf16.mxu0 0
      %2747 = vmatpush1.bf16.msra.mxu0 0
      %2748 = vmatprep.subr.bf16.mxu0 0
      %2749 = vmatpush1.bf16.msra.mxu0 0
      %2750 = vmatprep.subr.bf16.mxu0 0
      %2751 = vmatpush1.bf16.msra.mxu0 0
      %2752 = vmatprep.subr.bf16.mxu0 0
      %2753 = vmatpush1.bf16.msra.mxu0 0
      %2754 = vmatprep.subr.bf16.mxu0 0
      %2755 = vmatpush1.bf16.msra.mxu0 0
      %2756 = vmatprep.mubr.bf16.mxu0 0
      %2757 = vmatmul.mubr.bf16.gmra.mrb[0].mxu0 %v2722
      %v2758 = vpop.f32.mrb[0].mxu0
      %v2759 = vadd.f32 0.0, %v2758
      %v2760 = vpop.f32.mrb[0].mxu0
      %v2761 = vpop.f32.mrb[0].mxu0
      %v2762 = vadd.f32 0.0, %v2761
      %v2763 = vpop.f32.mrb[0].mxu0
      %2764 = vdwg.mxu0
      %2765 = vrot.lane.b32.xlu0 %v602, 40
      %v2766 = vpop.permute.xlu0 %2765
      %v2769 = vsel %vm806, %v2623, 0
      %2771 = vmatprep.subr.bf16.mxu0 0
      %2772 = vmatpush1.bf16.msra.mxu0 %v2766
      %2773 = vmatprep.subr.bf16.mxu0 0
      %2774 = vmatpush1.bf16.msra.mxu0 0
      %2775 = vmatprep.subr.bf16.mxu0 0
      %2776 = vmatpush1.bf16.msra.mxu0 0
      %2777 = vmatprep.subr.bf16.mxu0 0
      %2778 = vmatpush1.bf16.msra.mxu0 0
      %2779 = vmatprep.subr.bf16.mxu0 0
      %2780 = vmatpush1.bf16.msra.mxu0 0
      %2781 = vmatprep.subr.bf16.mxu0 0
      %2782 = vmatpush1.bf16.msra.mxu0 0
      %2783 = vmatprep.subr.bf16.mxu0 0
      %2784 = vmatpush1.bf16.msra.mxu0 0
      %2785 = vmatprep.subr.bf16.mxu0 0
      %2786 = vmatpush1.bf16.msra.mxu0 0
      %2787 = vmatprep.subr.bf16.mxu0 0
      %2788 = vmatpush1.bf16.msra.mxu0 0
      %2789 = vmatprep.subr.bf16.mxu0 0
      %2790 = vmatpush1.bf16.msra.mxu0 0
      %2791 = vmatprep.subr.bf16.mxu0 0
      %2792 = vmatpush1.bf16.msra.mxu0 0
      %2793 = vmatprep.subr.bf16.mxu0 0
      %2794 = vmatpush1.bf16.msra.mxu0 0
      %2795 = vmatprep.subr.bf16.mxu0 0
      %2796 = vmatpush1.bf16.msra.mxu0 0
      %2797 = vmatprep.subr.bf16.mxu0 0
      %2798 = vmatpush1.bf16.msra.mxu0 0
      %2799 = vmatprep.subr.bf16.mxu0 0
      %2800 = vmatpush1.bf16.msra.mxu0 0
      %2801 = vmatprep.subr.bf16.mxu0 0
      %2802 = vmatpush1.bf16.msra.mxu0 0
      %2803 = vmatprep.mubr.bf16.mxu0 0
      %2804 = vmatmul.mubr.bf16.gmra.mrb[0].mxu0 %v2769
      %v2805 = vpop.f32.mrb[0].mxu0
      %v2806 = vadd.f32 0.0, %v2805
      %v2807 = vpop.f32.mrb[0].mxu0
      %v2808 = vpop.f32.mrb[0].mxu0
      %v2809 = vadd.f32 0.0, %v2808
      %v2810 = vpop.f32.mrb[0].mxu0
      %2811 = vdwg.mxu0
      %v2812 = vpack.c.bf16 %v2668, %v2665
      %v2813 = vpack.c.bf16 %v2715, %v2712
      %v2814 = vpack.c.bf16 %v2762, %v2759
      %v2815 = vpack.c.bf16 %v2809, %v2806
      %v2816 = vld [vmem:[%s4 + $0xc] sm:$0xf]
      %v2818 = vsel %vm608, %v2812, 0
      %v2821 = vsel %vm608, %v2813, 0
      %v2824 = vsel %vm608, %v2814, 0
      %v2827 = vsel %vm608, %v2815, 0
      %v2830 = vsel %vm1596, %v2816, 0
      %2832 = vmatprep.subr.bf16.mxu0 0
      %2833 = vmatpush1.bf16.msra.mxu0 %v2830
      %2834 = vmatprep.subr.bf16.mxu0 0
      %2835 = vmatpush1.bf16.msra.mxu0 0
      %2836 = vmatprep.subr.bf16.mxu0 0
      %2837 = vmatpush1.bf16.msra.mxu0 0
      %2838 = vmatprep.subr.bf16.mxu0 0
      %2839 = vmatpush1.bf16.msra.mxu0 0
      %2840 = vmatprep.subr.bf16.mxu0 0
      %2841 = vmatpush1.bf16.msra.mxu0 0
      %2842 = vmatprep.subr.bf16.mxu0 0
      %2843 = vmatpush1.bf16.msra.mxu0 0
      %2844 = vmatprep.subr.bf16.mxu0 0
      %2845 = vmatpush1.bf16.msra.mxu0 0
      %2846 = vmatprep.subr.bf16.mxu0 0
      %2847 = vmatpush1.bf16.msra.mxu0 0
      %2848 = vmatprep.subr.bf16.mxu0 0
      %2849 = vmatpush1.bf16.msra.mxu0 0
      %2850 = vmatprep.subr.bf16.mxu0 0
      %2851 = vmatpush1.bf16.msra.mxu0 0
      %2852 = vmatprep.subr.bf16.mxu0 0
      %2853 = vmatpush1.bf16.msra.mxu0 0
      %2854 = vmatprep.subr.bf16.mxu0 0
      %2855 = vmatpush1.bf16.msra.mxu0 0
      %2856 = vmatprep.subr.bf16.mxu0 0
      %2857 = vmatpush1.bf16.msra.mxu0 0
      %2858 = vmatprep.subr.bf16.mxu0 0
      %2859 = vmatpush1.bf16.msra.mxu0 0
      %2860 = vmatprep.subr.bf16.mxu0 0
      %2861 = vmatpush1.bf16.msra.mxu0 0
      %2862 = vmatprep.subr.bf16.mxu0 0
      %2863 = vmatpush1.bf16.msra.mxu0 0
      %2864 = vmatprep.mubr.bf16.mxu0 0
      %2865 = vmatmul.mubr.bf16.gmra.mrb[0].mxu0 %v2818
      %v2866 = vpop.f32.mrb[0].mxu0
      %v2867 = vadd.f32 0.0, %v2866
      %v2868 = vpop.f32.mrb[0].mxu0
      %v2869 = vpop.f32.mrb[0].mxu0
      %v2870 = vadd.f32 0.0, %v2869
      %v2871 = vpop.f32.mrb[0].mxu0
      %2872 = vmatprep.mubr.bf16.mxu0 0
      %2873 = vmatmul.mubr.bf16.gmra.mrb[0].mxu0 %v2821
      %v2874 = vpop.f32.mrb[0].mxu0
      %v2875 = vadd.f32 0.0, %v2874
      %v2876 = vpop.f32.mrb[0].mxu0
      %v2877 = vpop.f32.mrb[0].mxu0
      %v2878 = vadd.f32 0.0, %v2877
      %v2879 = vpop.f32.mrb[0].mxu0
      %2880 = vmatprep.mubr.bf16.mxu0 0
      %2881 = vmatmul.mubr.bf16.gmra.mrb[0].mxu0 %v2824
      %v2882 = vpop.f32.mrb[0].mxu0
      %v2883 = vadd.f32 0.0, %v2882
      %v2884 = vpop.f32.mrb[0].mxu0
      %v2885 = vpop.f32.mrb[0].mxu0
      %v2886 = vadd.f32 0.0, %v2885
      %v2887 = vpop.f32.mrb[0].mxu0
      %2888 = vmatprep.mubr.bf16.mxu0 0
      %2889 = vmatmul.mubr.bf16.gmra.mrb[0].mxu0 %v2827
      %v2890 = vpop.f32.mrb[0].mxu0
      %v2891 = vadd.f32 0.0, %v2890
      %v2892 = vpop.f32.mrb[0].mxu0
      %v2893 = vpop.f32.mrb[0].mxu0
      %v2894 = vadd.f32 0.0, %v2893
      %v2895 = vpop.f32.mrb[0].mxu0
      %2896 = vdwg.mxu0
      %v2897 = vadd.f32 %v2317, %v2867
      %v2898 = vadd.f32 %v2318, %v2870
      %v2899 = vadd.f32 %v2319, %v2875
      %v2900 = vadd.f32 %v2320, %v2878
      %v2901 = vadd.f32 %v2321, %v2883
      %v2902 = vadd.f32 %v2322, %v2886
      %v2903 = vadd.f32 %v2323, %v2891
      %v2904 = vadd.f32 %v2324, %v2894
      %v2905 = vld [vmem:[%s5] sm:$0x1]
      %v2907 = vlaneseq
      %v2908 = vshrl.u32 %v2907, 7
      %v2909 = vsub.s32 0, %v2908
      %v2910 = vrot.slane %v2905, %v2909
      %v2912 = vadd.f32 %v2897, %v2910
      %v2913 = vadd.f32 %v2898, %v2910
      %v2914 = vadd.f32 %v2899, %v2910
      %v2915 = vadd.f32 %v2900, %v2910
      %v2916 = vadd.f32 %v2901, %v2910
      %v2917 = vadd.f32 %v2902, %v2910
      %v2918 = vadd.f32 %v2903, %v2910
      %v2919 = vadd.f32 %v2904, %v2910
      %2920 = vst.msk [vmem:[%s348] sm:$0xff] %vm359, %v2912
      %2921 = vst.msk [vmem:[%s348 + $0x8] sm:$0xff] %vm359, %v2913
      %2922 = vst.msk [vmem:[%s348 + $0x10] sm:$0xff] %vm359, %v2914
      %2923 = vst.msk [vmem:[%s348 + $0x18] sm:$0xff] %vm359, %v2915
      %2924 = vst.msk [vmem:[%s348 + $0x20] sm:$0xff] %vm359, %v2916
      %2925 = vst.msk [vmem:[%s348 + $0x28] sm:$0xff] %vm359, %v2917
      %2926 = vst.msk [vmem:[%s348 + $0x30] sm:$0xff] %vm359, %v2918
      %2927 = vst.msk [vmem:[%s348 + $0x38] sm:$0xff] %vm359, %v2919
      %s2928 = smul.u32 4, %s24
      %p2929 = scmp.lt.s32.totalorder %s23, 1
      %s2930 = scalar_select %p2929, %s23, 1
      %p2931 = scmp.lt.s32.totalorder %s2928, 3
      %s2932 = scalar_select %p2931, %s2928, 3
      %s2933 = smul.addr %s2932, 2
      %s2934 = smul.addr %s2930, 8
      %s2935 = sadd.s32 %s2933, %s2934
      %s2936 = smul.addr %s2935, 8
      %s2937 = scalar_lea.vmem %s8, %s2936
      // Predicated region
      $region53: #{_forward_impl.4} parent=51 // pred_check
        %p2938 = pneg %p226
      $region54: #{_forward_impl.4} parent=51 // pred_check_branch
        %2940 = sbr.rel (%p2938) target = $region56
      $region55: #{_forward_impl.4} parent=51 // pred_region
        %s2941 = smul.u32 4, %s24
      $region56: #{_forward_impl.4} parent=51 // pred_fallthru
        _
    $region52: #{_forward_impl.4} parent=5 // pred_fallthru
      _
    %p2942 = scmp.le.s32.totalorder 2, %s14
    // Predicated region
    $region57: #{_forward_impl.4} parent=5 // pred_check
      %p2943 = pneg %p2942
    $region58: #{_forward_impl.4} parent=5 // pred_check_branch
      %2945 = sbr.rel (%p2943) target = $region60
    $region59: #{_forward_impl.4} parent=5 // pred_region
      %s2946 = ssub.s32 %s14, 2
      // Predicated region
      $region61: #{_forward_impl.4} parent=59 // pred_check
        %p2947 = pneg %p232
      $region62: #{_forward_impl.4} parent=59 // pred_check_branch
        %2949 = sbr.rel (%p2947) target = $region64
      $region63: #{_forward_impl.4} parent=59 // pred_region
        %s2950 = smul.u32 4, %s26
        %p2951 = scmp.lt.s32.totalorder %s25, 1
        %s2952 = scalar_select %p2951, %s25, 1
        %p2953 = scmp.lt.s32.totalorder %s2950, 3
        %s2954 = scalar_select %p2953, %s2950, 3
        %s2955 = smul.addr %s2954, 2
        %s2956 = smul.addr %s2952, 8
        %s2957 = sadd.s32 %s2955, %s2956
        %s2958 = smul.addr %s2957, 8
        %s2959 = scalar_lea.vmem %s8, %s2958
      $region64: #{_forward_impl.4} parent=59 // pred_fallthru
        _
    $region60: #{_forward_impl.4} parent=5 // pred_fallthru
      _
  $region6: #{_forward_impl.4} parent=0 // loop_footer
    %s18 = sadd.s32 1, %s14
  $region7: #{_forward_impl.4} parent=0 // loop_footer_branch
    %13 = sbr.rel target = $region3
  $region8: #{_forward_impl.4} parent=0 // loop_exit
    _

// kernel: _forward_impl.6
$region0: #{_forward_impl.6}
  #allocation0 [shape = 'u32[]', space=smem, size = 0x4, offset = 0x4, fixed_abs, tag = 'smem constant byte address 0x4 - core index']
  #allocation1 [shape = 'u32[144,128]{1,0:T(1,128)}', space=vmem, size = 0x12000, scoped, tag = 'internal scratch']
  %s0 = inlined_call_operand.vmem [shape: f32[2,4,16,32], index: 0, kind: input, shape index: {}]
  %s1 = inlined_call_operand.vmem [shape: f32[4,16,16], index: 1, kind: input, shape index: {}]
  %s2 = inlined_call_operand.vmem [shape: f32[4,16,16], index: 2, kind: input, shape index: {}]
  %s3 = inlined_call_operand.vmem [shape: bf16[32,96], index: 3, kind: input, shape index: {}]
  %s4 = inlined_call_operand.vmem [shape: f32[1,96], index: 4, kind: input, shape index: {}]
  %s5 = inlined_call_operand.vmem [shape: bf16[32,32], index: 5, kind: input, shape index: {}]
  %s6 = inlined_call_operand.vmem [shape: f32[1,32], index: 6, kind: input, shape index: {}]
  %s7 = inlined_call_operand.vmem [shape: f32[1,32], index: 7, kind: input, shape index: {}]
  %s8 = inlined_call_operand.vmem [shape: f32[1,32], index: 8, kind: input, shape index: {}]
  %s9 = inlined_call_operand.vmem [shape: f32[2,4,16,32], index: 9, kind: output, shape index: {}]
  %s10 = sld [smem:[#allocation0]]
  $region69: #{_forward_impl.6} parent=0
    _
  %s12 = ssub.s32 1, %s10
  %s13 = scalar_select 0, %s12, %s10
  loop: start=0, step=1, limit=4
  $region2: #{_forward_impl.6} parent=0 // loop_pre_header
    _
  $region3: #{_forward_impl.6} parent=0 // loop_header
    %s15 = sphi 0, %s19
    %p16 = scmp.ge.s32.totalorder %s15, 4
    %s22 = sphi 0, %s34
    %s23 = sphi 0, %s30
    %s24 = sphi 0, %s22
    %s25 = sphi 0, %s23
    %s26 = sphi 0, %s24
    %s27 = sphi 0, %s25
    %s39 = sphi 0, %s41
    %s42 = sphi 0, %s39
    %s43 = sphi 0, %s42
    %s59 = sphi 0, %s43
    %s65 = sphi 0, %s67
    %s68 = sphi 0, %s65
    %s69 = sphi 0, %s68
    %s85 = sphi 0, %s69
    %s89 = sphi 0, %s89
    %s91 = sphi 0, %s89
    %s92 = sphi 0, %s91
    %s106 = sphi 0, %s92
    %s110 = sphi 0, %s110
    %s112 = sphi 0, %s110
    %s113 = sphi 0, %s112
    %s127 = sphi 0, %s113
    %s131 = sphi 0, %s131
    %s133 = sphi 0, %s131
    %s134 = sphi 0, %s133
    %s148 = sphi 0, %s134
    %s152 = sphi 0, %s152
    %s154 = sphi 0, %s152
    %s155 = sphi 0, %s154
    %s169 = sphi 0, %s155
    %s173 = sphi 0, %s173
    %s175 = sphi 0, %s173
    %s176 = sphi 0, %s175
    %s190 = sphi 0, %s176
    %s194 = sphi 0, %s194
    %s196 = sphi 0, %s194
    %s197 = sphi 0, %s196
    %s211 = sphi 0, %s197
    %s215 = sphi 0, %s215
    %s217 = sphi 0, %s215
    %s218 = sphi 0, %s217
    %s232 = sphi 0, %s218
    %s240 = sphi 0, %s242
    %s243 = sphi 0, %s240
    %s244 = sphi 0, %s243
    %s260 = sphi 0, %s244
  $region4: #{_forward_impl.6} parent=0 // loop_header_branch
    %18 = sbr.rel (%p16) target = $region8
  $region5: #{_forward_impl.6} parent=0 // loop_body
    %s20 = ssub.s32 %s15, 1
    %s21 = ssub.s32 %s15, 2
    %s28 = sadd.s32 1, %s23
    %p29 = scmp.ge.s32.totalorder %s28, 1
    %s30 = scalar_select %p29, 0, %s28
    %s31 = sadd.s32 1, %s22
    %s32 = scalar_select %p29, %s31, %s22
    %p33 = scmp.ge.s32.totalorder %s32, 2
    %s34 = scalar_select %p33, 0, %s32
    %s35 = ssub.s32 %s22, %s34
    %s36 = ssub.s32 %s23, %s30
    %s37 = sor.u32 %s35, %s36
    %p38 = scmp.eq.s32.totalorder %s37, 0
    %s40 = sadd.s32 %s39, 1
    %s41 = scalar_select %p38, %s39, %s40
    %p44 = pneg %p38
    %p45 = scmp.eq.s32.totalorder %s15, 1
    %p46 = por %p44, %p45
    %p47 = scmp.ne.s32.totalorder %s39, %s42
    %p48 = scmp.eq.s32.totalorder %s15, 0
    %p49 = por %p47, %p48
    %p50 = scmp.ne.s32.totalorder %s39, %s42
    %p51 = scmp.eq.s32.totalorder %s20, 1
    %p52 = por %p50, %p51
    %p53 = scmp.ne.s32.totalorder %s42, %s43
    %p54 = scmp.eq.s32.totalorder %s20, 0
    %p55 = por %p53, %p54
    %p56 = scmp.ne.s32.totalorder %s42, %s43
    %p57 = scmp.eq.s32.totalorder %s21, 1
    %p58 = por %p56, %p57
    %p60 = scmp.ne.s32.totalorder %s43, %s59
    %p61 = scmp.eq.s32.totalorder %s21, 0
    %p62 = por %p60, %p61
    %s63 = ssub.s32 %s23, %s30
    %p64 = scmp.eq.s32.totalorder %s63, 0
    %s66 = sadd.s32 %s65, 1
    %s67 = scalar_select %p64, %s65, %s66
    %p70 = pneg %p64
    %p71 = scmp.eq.s32.totalorder %s15, 1
    %p72 = por %p70, %p71
    %p73 = scmp.ne.s32.totalorder %s65, %s68
    %p74 = scmp.eq.s32.totalorder %s15, 0
    %p75 = por %p73, %p74
    %p76 = scmp.ne.s32.totalorder %s65, %s68
    %p77 = scmp.eq.s32.totalorder %s20, 1
    %p78 = por %p76, %p77
    %p79 = scmp.ne.s32.totalorder %s68, %s69
    %p80 = scmp.eq.s32.totalorder %s20, 0
    %p81 = por %p79, %p80
    %p82 = scmp.ne.s32.totalorder %s68, %s69
    %p83 = scmp.eq.s32.totalorder %s21, 1
    %p84 = por %p82, %p83
    %p86 = scmp.ne.s32.totalorder %s69, %s85
    %p87 = scmp.eq.s32.totalorder %s21, 0
    %p88 = por %p86, %p87
    %s90 = sadd.s32 %s89, 1
    %p93 = scmp.eq.s32.totalorder %s15, 1
    %p94 = scmp.ne.s32.totalorder %s89, %s91
    %p95 = scmp.eq.s32.totalorder %s15, 0
    %p96 = por %p94, %p95
    %p97 = scmp.ne.s32.totalorder %s89, %s91
    %p98 = scmp.eq.s32.totalorder %s20, 1
    %p99 = por %p97, %p98
    %p100 = scmp.ne.s32.totalorder %s91, %s92
    %p101 = scmp.eq.s32.totalorder %s20, 0
    %p102 = por %p100, %p101
    %p103 = scmp.ne.s32.totalorder %s91, %s92
    %p104 = scmp.eq.s32.totalorder %s21, 1
    %p105 = por %p103, %p104
    %p107 = scmp.ne.s32.totalorder %s92, %s106
    %p108 = scmp.eq.s32.totalorder %s21, 0
    %p109 = por %p107, %p108
    %s111 = sadd.s32 %s110, 1
    %p114 = scmp.eq.s32.totalorder %s15, 1
    %p115 = scmp.ne.s32.totalorder %s110, %s112
    %p116 = scmp.eq.s32.totalorder %s15, 0
    %p117 = por %p115, %p116
    %p118 = scmp.ne.s32.totalorder %s110, %s112
    %p119 = scmp.eq.s32.totalorder %s20, 1
    %p120 = por %p118, %p119
    %p121 = scmp.ne.s32.totalorder %s112, %s113
    %p122 = scmp.eq.s32.totalorder %s20, 0
    %p123 = por %p121, %p122
    %p124 = scmp.ne.s32.totalorder %s112, %s113
    %p125 = scmp.eq.s32.totalorder %s21, 1
    %p126 = por %p124, %p125
    %p128 = scmp.ne.s32.totalorder %s113, %s127
    %p129 = scmp.eq.s32.totalorder %s21, 0
    %p130 = por %p128, %p129
    %s132 = sadd.s32 %s131, 1
    %p135 = scmp.eq.s32.totalorder %s15, 1
    %p136 = scmp.ne.s32.totalorder %s131, %s133
    %p137 = scmp.eq.s32.totalorder %s15, 0
    %p138 = por %p136, %p137
    %p139 = scmp.ne.s32.totalorder %s131, %s133
    %p140 = scmp.eq.s32.totalorder %s20, 1
    %p141 = por %p139, %p140
    %p142 = scmp.ne.s32.totalorder %s133, %s134
    %p143 = scmp.eq.s32.totalorder %s20, 0
    %p144 = por %p142, %p143
    %p145 = scmp.ne.s32.totalorder %s133, %s134
    %p146 = scmp.eq.s32.totalorder %s21, 1
    %p147 = por %p145, %p146
    %p149 = scmp.ne.s32.totalorder %s134, %s148
    %p150 = scmp.eq.s32.totalorder %s21, 0
    %p151 = por %p149, %p150
    %s153 = sadd.s32 %s152, 1
    %p156 = scmp.eq.s32.totalorder %s15, 1
    %p157 = scmp.ne.s32.totalorder %s152, %s154
    %p158 = scmp.eq.s32.totalorder %s15, 0
    %p159 = por %p157, %p158
    %p160 = scmp.ne.s32.totalorder %s152, %s154
    %p161 = scmp.eq.s32.totalorder %s20, 1
    %p162 = por %p160, %p161
    %p163 = scmp.ne.s32.totalorder %s154, %s155
    %p164 = scmp.eq.s32.totalorder %s20, 0
    %p165 = por %p163, %p164
    %p166 = scmp.ne.s32.totalorder %s154, %s155
    %p167 = scmp.eq.s32.totalorder %s21, 1
    %p168 = por %p166, %p167
    %p170 = scmp.ne.s32.totalorder %s155, %s169
    %p171 = scmp.eq.s32.totalorder %s21, 0
    %p172 = por %p170, %p171
    %s174 = sadd.s32 %s173, 1
    %p177 = scmp.eq.s32.totalorder %s15, 1
    %p178 = scmp.ne.s32.totalorder %s173, %s175
    %p179 = scmp.eq.s32.totalorder %s15, 0
    %p180 = por %p178, %p179
    %p181 = scmp.ne.s32.totalorder %s173, %s175
    %p182 = scmp.eq.s32.totalorder %s20, 1
    %p183 = por %p181, %p182
    %p184 = scmp.ne.s32.totalorder %s175, %s176
    %p185 = scmp.eq.s32.totalorder %s20, 0
    %p186 = por %p184, %p185
    %p187 = scmp.ne.s32.totalorder %s175, %s176
    %p188 = scmp.eq.s32.totalorder %s21, 1
    %p189 = por %p187, %p188
    %p191 = scmp.ne.s32.totalorder %s176, %s190
    %p192 = scmp.eq.s32.totalorder %s21, 0
    %p193 = por %p191, %p192
    %s195 = sadd.s32 %s194, 1
    %p198 = scmp.eq.s32.totalorder %s15, 1
    %p199 = scmp.ne.s32.totalorder %s194, %s196
    %p200 = scmp.eq.s32.totalorder %s15, 0
    %p201 = por %p199, %p200
    %p202 = scmp.ne.s32.totalorder %s194, %s196
    %p203 = scmp.eq.s32.totalorder %s20, 1
    %p204 = por %p202, %p203
    %p205 = scmp.ne.s32.totalorder %s196, %s197
    %p206 = scmp.eq.s32.totalorder %s20, 0
    %p207 = por %p205, %p206
    %p208 = scmp.ne.s32.totalorder %s196, %s197
    %p209 = scmp.eq.s32.totalorder %s21, 1
    %p210 = por %p208, %p209
    %p212 = scmp.ne.s32.totalorder %s197, %s211
    %p213 = scmp.eq.s32.totalorder %s21, 0
    %p214 = por %p212, %p213
    %s216 = sadd.s32 %s215, 1
    %p219 = scmp.eq.s32.totalorder %s15, 1
    %p220 = scmp.ne.s32.totalorder %s215, %s217
    %p221 = scmp.eq.s32.totalorder %s15, 0
    %p222 = por %p220, %p221
    %p223 = scmp.ne.s32.totalorder %s215, %s217
    %p224 = scmp.eq.s32.totalorder %s20, 1
    %p225 = por %p223, %p224
    %p226 = scmp.ne.s32.totalorder %s217, %s218
    %p227 = scmp.eq.s32.totalorder %s20, 0
    %p228 = por %p226, %p227
    %p229 = scmp.ne.s32.totalorder %s217, %s218
    %p230 = scmp.eq.s32.totalorder %s21, 1
    %p231 = por %p229, %p230
    %p233 = scmp.ne.s32.totalorder %s218, %s232
    %p234 = scmp.eq.s32.totalorder %s21, 0
    %p235 = por %p233, %p234
    %s236 = ssub.s32 %s22, %s34
    %s237 = ssub.s32 %s23, %s30
    %s238 = sor.u32 %s236, %s237
    %p239 = scmp.eq.s32.totalorder %s238, 0
    %s241 = sadd.s32 %s240, 1
    %s242 = scalar_select %p239, %s240, %s241
    %p245 = pneg %p239
    %p246 = scmp.eq.s32.totalorder %s15, 1
    %p247 = por %p245, %p246
    %p248 = scmp.ne.s32.totalorder %s240, %s243
    %p249 = scmp.eq.s32.totalorder %s15, 0
    %p250 = por %p248, %p249
    %p251 = scmp.ne.s32.totalorder %s240, %s243
    %p252 = scmp.eq.s32.totalorder %s20, 1
    %p253 = por %p251, %p252
    %p254 = scmp.ne.s32.totalorder %s243, %s244
    %p255 = scmp.eq.s32.totalorder %s20, 0
    %p256 = por %p254, %p255
    %p257 = scmp.ne.s32.totalorder %s243, %s244
    %p258 = scmp.eq.s32.totalorder %s21, 1
    %p259 = por %p257, %p258
    %p261 = scmp.ne.s32.totalorder %s244, %s260
    %p262 = scmp.eq.s32.totalorder %s21, 0
    %p263 = por %p261, %p262
    %p264 = scmp.le.s32.totalorder 1, %s15
    %p265 = scmp.lt.s32.totalorder %s15, 3
    %p266 = pnand %p264, %p265
    %p267 = pneg %p266
    // Predicated region
    $region9: #{_forward_impl.6} parent=5 // pred_check
      _
    $region10: #{_forward_impl.6} parent=5 // pred_check_branch
      %269 = sbr.rel (%p266) target = $region12
    $region11: #{_forward_impl.6} parent=5 // pred_region
      %s270 = ssub.s32 %s15, 1
      // Predicated region
      $region13: #{_forward_impl.6} parent=11 // pred_check
        %p271 = pneg %p81
      $region14: #{_forward_impl.6} parent=11 // pred_check_branch
        %273 = sbr.rel (%p271) target = $region16
      $region15: #{_forward_impl.6} parent=11 // pred_region
        %s274 = smul.u32 4, %s25
        %p275 = scmp.lt.s32.totalorder %s274, 3
        %s276 = scalar_select %p275, %s274, 3
        %s277 = smul.addr %s276, 2
        %s278 = smul.addr %s277, 8
        %s279 = scalar_lea.vmem %s1, %s278
        %s280 = smul.u32 4, %s25
      $region16: #{_forward_impl.6} parent=11 // pred_fallthru
        _
      // Predicated region
      $region17: #{_forward_impl.6} parent=11 // pred_check
        %p281 = pneg %p102
      $region18: #{_forward_impl.6} parent=11 // pred_check_branch
        %283 = sbr.rel (%p281) target = $region20
      $region19: #{_forward_impl.6} parent=11 // pred_region
        _
      $region20: #{_forward_impl.6} parent=11 // pred_fallthru
        _
      // Predicated region
      $region21: #{_forward_impl.6} parent=11 // pred_check
        %p284 = pneg %p123
      $region22: #{_forward_impl.6} parent=11 // pred_check_branch
        %286 = sbr.rel (%p284) target = $region24
      $region23: #{_forward_impl.6} parent=11 // pred_region
        _
      $region24: #{_forward_impl.6} parent=11 // pred_fallthru
        _
      // Predicated region
      $region25: #{_forward_impl.6} parent=11 // pred_check
        %p287 = pneg %p144
      $region26: #{_forward_impl.6} parent=11 // pred_check_branch
        %289 = sbr.rel (%p287) target = $region28
      $region27: #{_forward_impl.6} parent=11 // pred_region
        _
      $region28: #{_forward_impl.6} parent=11 // pred_fallthru
        _
      // Predicated region
      $region29: #{_forward_impl.6} parent=11 // pred_check
        %p290 = pneg %p165
      $region30: #{_forward_impl.6} parent=11 // pred_check_branch
        %292 = sbr.rel (%p290) target = $region32
      $region31: #{_forward_impl.6} parent=11 // pred_region
        _
      $region32: #{_forward_impl.6} parent=11 // pred_fallthru
        _
      // Predicated region
      $region33: #{_forward_impl.6} parent=11 // pred_check
        %p293 = pneg %p186
      $region34: #{_forward_impl.6} parent=11 // pred_check_branch
        %295 = sbr.rel (%p293) target = $region36
      $region35: #{_forward_impl.6} parent=11 // pred_region
        _
      $region36: #{_forward_impl.6} parent=11 // pred_fallthru
        _
      // Predicated region
      $region37: #{_forward_impl.6} parent=11 // pred_check
        %p296 = pneg %p207
      $region38: #{_forward_impl.6} parent=11 // pred_check_branch
        %298 = sbr.rel (%p296) target = $region40
      $region39: #{_forward_impl.6} parent=11 // pred_region
        _
      $region40: #{_forward_impl.6} parent=11 // pred_fallthru
        _
      // Predicated region
      $region41: #{_forward_impl.6} parent=11 // pred_check
        %p299 = pneg %p228
      $region42: #{_forward_impl.6} parent=11 // pred_check_branch
        %301 = sbr.rel (%p299) target = $region44
      $region43: #{_forward_impl.6} parent=11 // pred_region
        _
      $region44: #{_forward_impl.6} parent=11 // pred_fallthru
        _
    $region12: #{_forward_impl.6} parent=5 // pred_fallthru
      _
    %p302 = scmp.lt.s32.totalorder %s15, 2
    // Predicated region
    $region45: #{_forward_impl.6} parent=5 // pred_check
      %p303 = pneg %p302
    $region46: #{_forward_impl.6} parent=5 // pred_check_branch
      %305 = sbr.rel (%p303) target = $region48
    $region47: #{_forward_impl.6} parent=5 // pred_region
      // Predicated region
      $region49: #{_forward_impl.6} parent=47 // pred_check
        %p306 = pneg %p49
      $region50: #{_forward_impl.6} parent=47 // pred_check_branch
        %308 = sbr.rel (%p306) target = $region52
      $region51: #{_forward_impl.6} parent=47 // pred_region
        %s309 = smul.u32 4, %s23
        %p310 = scmp.lt.s32.totalorder %s22, 1
        %s311 = scalar_select %p310, %s22, 1
        %p312 = scmp.lt.s32.totalorder %s309, 3
        %s313 = scalar_select %p312, %s309, 3
        %s314 = smul.addr %s313, 2
        %s315 = smul.addr %s311, 8
        %s316 = sadd.s32 %s314, %s315
        %s317 = smul.addr %s316, 8
        %s318 = scalar_lea.vmem %s0, %s317
        %s319 = smul.u32 4, %s23
      $region52: #{_forward_impl.6} parent=47 // pred_fallthru
        _
    $region48: #{_forward_impl.6} parent=5 // pred_fallthru
      _
    %p320 = scmp.le.s32.totalorder 1, %s15
    %p321 = scmp.lt.s32.totalorder %s15, 3
    %p322 = pnand %p320, %p321
    %p323 = pneg %p322
    // Predicated region
    $region53: #{_forward_impl.6} parent=5 // pred_check
      _
    $region54: #{_forward_impl.6} parent=5 // pred_check_branch
      %325 = sbr.rel (%p322) target = $region56
    $region55: #{_forward_impl.6} parent=5 // pred_region
      %s326 = ssub.s32 %s15, 1
      %s327 = smul.u32 4, %s25
      %p328 = scmp.lt.s32.totalorder %s24, 1
      %s329 = scalar_select %p328, %s24, 1
      %p330 = scmp.lt.s32.totalorder %s327, 3
      %s331 = scalar_select %p330, %s327, 3
      %s332 = smul.addr %s331, 2
      %s333 = smul.addr %s329, 8
      %s334 = sadd.s32 %s332, %s333
      %s335 = smul.addr %s334, 8
      %s336 = scalar_lea.vmem %s0, %s335
      %p337 = pneg %p55
      %p338 = pneg %p52
      %s339 = smul.u32 4, %s25
      %p340 = scmp.lt.s32.totalorder %s339, 3
      %s341 = scalar_select %p340, %s339, 3
      %s342 = smul.addr %s341, 2
      %s343 = smul.addr %s342, 8
      %s344 = scalar_lea.vmem %s1, %s343
      %p345 = pneg %p81
      %p346 = pneg %p78
      %p347 = pneg %p102
      %p348 = pneg %p99
      %p349 = pneg %p123
      %p350 = pneg %p120
      %p351 = pneg %p144
      %p352 = pneg %p141
      %p353 = pneg %p165
      %p354 = pneg %p162
      %p355 = pneg %p186
      %p356 = pneg %p183
      %p357 = pneg %p207
      %p358 = pneg %p204
      %p359 = pneg %p228
      %p360 = pneg %p225
      %p361 = pneg %p256
      %p362 = pneg %p253
      %s363 = smul.u32 4, %s25
      %p364 = scmp.lt.s32.totalorder %s24, 1
      %s365 = scalar_select %p364, %s24, 1
      %p366 = scmp.lt.s32.totalorder %s363, 3
      %s367 = scalar_select %p366, %s363, 3
      %s368 = smul.addr %s367, 2
      %s369 = smul.addr %s365, 8
      %s370 = sadd.s32 %s368, %s369
      %s371 = smul.addr %s370, 8
      %s372 = scalar_lea.vmem %s9, %s371
      %s373 = smul.u32 4, %s25
      %p374 = scmp.lt.s32.totalorder %s24, 1
      %s375 = scalar_select %p374, %s24, 1
      %p376 = scmp.lt.s32.totalorder %s373, 3
      %s377 = scalar_select %p376, %s373, 3
      %s378 = smul.addr %s377, 2
      %s379 = smul.addr %s375, 8
      %s380 = sadd.s32 %s378, %s379
      %s381 = smul.addr %s380, 8
      %s382 = scalar_lea.vmem %s0, %s381
      %s383 = smul.u32 4, %s25
      %s384 = smul.u32 4, %s25
      %p385 = scmp.lt.s32.totalorder %s384, 3
      %s386 = scalar_select %p385, %s384, 3
      %s387 = smul.addr %s386, 2
      %s388 = smul.addr %s387, 8
      %s389 = scalar_lea.vmem %s1, %s388
      %s390 = smul.u32 4, %s25
      %s391 = smul.u32 4, %s25
      %p392 = scmp.lt.s32.totalorder %s24, 1
      %s393 = scalar_select %p392, %s24, 1
      %p394 = scmp.lt.s32.totalorder %s391, 3
      %s395 = scalar_select %p394, %s391, 3
      %s396 = smul.addr %s395, 2
      %s397 = smul.addr %s393, 8
      %s398 = sadd.s32 %s396, %s397
      %s399 = smul.addr %s398, 8
      %s400 = scalar_lea.vmem %s9, %s399
      %s401 = smul.u32 4, %s25
      %v403 = vld [vmem:[%s382] sm:$0xff]
      %v404 = vld [vmem:[%s382 + $0x8] sm:$0xff]
      %v405 = vld [vmem:[%s382 + $0x10] sm:$0xff]
      %v406 = vld [vmem:[%s382 + $0x18] sm:$0xff]
      %v407 = vld [vmem:[%s382 + $0x20] sm:$0xff]
      %v408 = vld [vmem:[%s382 + $0x28] sm:$0xff]
      %v409 = vld [vmem:[%s382 + $0x30] sm:$0xff]
      %v410 = vld [vmem:[%s382 + $0x38] sm:$0xff]
      %vm411 = vcmask 261120
      %v412 = vsel %vm411, %v403, 0.0
      %413 = vadd.xlane.f32.xlu0 %v412
      %v414 = vpop.xlane.xlu0 %413
      %v415 = vsel %vm411, %v404, 0.0
      %416 = vadd.xlane.f32.xlu0 %v415
      %v417 = vpop.xlane.xlu0 %416
      %v418 = vsel %vm411, %v405, 0.0
      %419 = vadd.xlane.f32.xlu0 %v418
      %v420 = vpop.xlane.xlu0 %419
      %v421 = vsel %vm411, %v406, 0.0
      %422 = vadd.xlane.f32.xlu0 %v421
      %v423 = vpop.xlane.xlu0 %422
      %v424 = vsel %vm411, %v407, 0.0
      %425 = vadd.xlane.f32.xlu0 %v424
      %v426 = vpop.xlane.xlu0 %425
      %v427 = vsel %vm411, %v408, 0.0
      %428 = vadd.xlane.f32.xlu0 %v427
      %v429 = vpop.xlane.xlu0 %428
      %v430 = vsel %vm411, %v409, 0.0
      %431 = vadd.xlane.f32.xlu0 %v430
      %v432 = vpop.xlane.xlu0 %431
      %v433 = vsel %vm411, %v410, 0.0
      %434 = vadd.xlane.f32.xlu0 %v433
      %v435 = vpop.xlane.xlu0 %434
      %v436 = vrcp.pop 32.0
      %v437 = vmul.f32 %v414, %v436
      %v438 = vmul.f32 %v417, %v436
      %v439 = vmul.f32 %v420, %v436
      %v440 = vmul.f32 %v423, %v436
      %v441 = vmul.f32 %v426, %v436
      %v442 = vmul.f32 %v429, %v436
      %v443 = vmul.f32 %v432, %v436
      %v444 = vmul.f32 %v435, %v436
      %v445 = vsub.f32 %v403, %v437
      %v446 = vsub.f32 %v404, %v438
      %v447 = vsub.f32 %v405, %v439
      %v448 = vsub.f32 %v406, %v440
      %v449 = vsub.f32 %v407, %v441
      %v450 = vsub.f32 %v408, %v442
      %v451 = vsub.f32 %v409, %v443
      %v452 = vsub.f32 %v410, %v444
      %v453 = vmul.f32 %v445, %v445
      %v454 = vmul.f32 %v446, %v446
      %v455 = vmul.f32 %v447, %v447
      %v456 = vmul.f32 %v448, %v448
      %v457 = vmul.f32 %v449, %v449
      %v458 = vmul.f32 %v450, %v450
      %v459 = vmul.f32 %v451, %v451
      %v460 = vmul.f32 %v452, %v452
      %v461 = vsel %vm411, %v453, 0.0
      %462 = vadd.xlane.f32.xlu0 %v461
      %v463 = vpop.xlane.xlu0 %462
      %v464 = vsel %vm411, %v454, 0.0
      %465 = vadd.xlane.f32.xlu0 %v464
      %v466 = vpop.xlane.xlu0 %465
      %v467 = vsel %vm411, %v455, 0.0
      %468 = vadd.xlane.f32.xlu0 %v467
      %v469 = vpop.xlane.xlu0 %468
      %v470 = vsel %vm411, %v456, 0.0
      %471 = vadd.xlane.f32.xlu0 %v470
      %v472 = vpop.xlane.xlu0 %471
      %v473 = vsel %vm411, %v457, 0.0
      %474 = vadd.xlane.f32.xlu0 %v473
      %v475 = vpop.xlane.xlu0 %474
      %v476 = vsel %vm411, %v458, 0.0
      %477 = vadd.xlane.f32.xlu0 %v476
      %v478 = vpop.xlane.xlu0 %477
      %v479 = vsel %vm411, %v459, 0.0
      %480 = vadd.xlane.f32.xlu0 %v479
      %v481 = vpop.xlane.xlu0 %480
      %v482 = vsel %vm411, %v460, 0.0
      %483 = vadd.xlane.f32.xlu0 %v482
      %v484 = vpop.xlane.xlu0 %483
      %v485 = vmul.f32 %v463, %v436
      %v486 = vmul.f32 %v466, %v436
      %v487 = vmul.f32 %v469, %v436
      %v488 = vmul.f32 %v472, %v436
      %v489 = vmul.f32 %v475, %v436
      %v490 = vmul.f32 %v478, %v436
      %v491 = vmul.f32 %v481, %v436
      %v492 = vmul.f32 %v484, %v436
      %v493 = vadd.f32 %v485, 1e-05
      %v494 = vadd.f32 %v486, 1e-05
      %v495 = vadd.f32 %v487, 1e-05
      %v496 = vadd.f32 %v488, 1e-05
      %v497 = vadd.f32 %v489, 1e-05
      %v498 = vadd.f32 %v490, 1e-05
      %v499 = vadd.f32 %v491, 1e-05
      %v500 = vadd.f32 %v492, 1e-05
      %v501 = vrsqrt.pop %v493
      %v502 = vrsqrt.pop %v494
      %v503 = vrsqrt.pop %v495
      %v504 = vrsqrt.pop %v496
      %v505 = vrsqrt.pop %v497
      %v506 = vrsqrt.pop %v498
      %v507 = vrsqrt.pop %v499
      %v508 = vrsqrt.pop %v500
      %v509 = vmul.f32 %v445, %v501
      %v510 = vmul.f32 %v446, %v502
      %v511 = vmul.f32 %v447, %v503
      %v512 = vmul.f32 %v448, %v504
      %v513 = vmul.f32 %v449, %v505
      %v514 = vmul.f32 %v450, %v506
      %v515 = vmul.f32 %v451, %v507
      %v516 = vmul.f32 %v452, %v508
      %v517 = vld [vmem:[%s7] sm:$0x1]
      %v519 = vlaneseq
      %v520 = vshrl.u32 %v519, 7
      %v521 = vsub.s32 0, %v520
      %v522 = vrot.slane %v517, %v521
      %v524 = vmul.f32 %v509, %v522
      %v525 = vmul.f32 %v510, %v522
      %v526 = vmul.f32 %v511, %v522
      %v527 = vmul.f32 %v512, %v522
      %v528 = vmul.f32 %v513, %v522
      %v529 = vmul.f32 %v514, %v522
      %v530 = vmul.f32 %v515, %v522
      %v531 = vmul.f32 %v516, %v522
      %v532 = vld [vmem:[%s8] sm:$0x1]
      %v534 = vlaneseq
      %v535 = vshrl.u32 %v534, 7
      %v536 = vsub.s32 0, %v535
      %v537 = vrot.slane %v532, %v536
      %v539 = vadd.f32 %v524, %v537
      %v540 = vadd.f32 %v525, %v537
      %v541 = vadd.f32 %v526, %v537
      %v542 = vadd.f32 %v527, %v537
      %v543 = vadd.f32 %v528, %v537
      %v544 = vadd.f32 %v529, %v537
      %v545 = vadd.f32 %v530, %v537
      %v546 = vadd.f32 %v531, %v537
      %v547 = vpack.c.bf16 %v540, %v539
      %v548 = vpack.c.bf16 %v542, %v541
      %v549 = vpack.c.bf16 %v544, %v543
      %v550 = vpack.c.bf16 %v546, %v545
      %v551 = vld [vmem:[%s3] sm:$0xf]
      %v552 = vld [vmem:[%s3 + $0x4] sm:$0xf]
      %v553 = vld [vmem:[%s3 + $0x8] sm:$0xf]
      %v554 = vld [vmem:[%s3 + $0xc] sm:$0xf]
      %v555 = vld [vmem:[%s4] sm:$0x1]
      %v557 = vlaneseq
      %v558 = vshrl.u32 %v557, 7
      %v559 = vsub.s32 0, %v558
      %v560 = vrot.slane %v555, %v559
      %v566 = vunpack.c.l.b16 %v551
      %v567 = vunpack.c.l.b16 %v552
      %v568 = vunpack.c.l.b16 %v553
      %v569 = vunpack.c.l.b16 %v554
      %v570 = vpack.c.b16 %v567, %v566
      %v571 = vpack.c.b16 %v569, %v568
      %v575 = vsel %vm411, %v547, 0
      %v578 = vsel %vm411, %v548, 0
      %v581 = vsel %vm411, %v549, 0
      %v584 = vsel %vm411, %v550, 0
      %586 = vmatprep.subr.bf16.mxu0 0
      %587 = vmatpush1.bf16.msra.mxu0 %v570
      %588 = vmatprep.subr.bf16.mxu0 0
      %589 = vmatpush1.bf16.msra.mxu0 %v571
      %590 = vmatprep.subr.bf16.mxu0 0
      %591 = vmatpush1.bf16.msra.mxu0 0
      %592 = vmatprep.subr.bf16.mxu0 0
      %593 = vmatpush1.bf16.msra.mxu0 0
      %594 = vmatprep.subr.bf16.mxu0 0
      %595 = vmatpush1.bf16.msra.mxu0 0
      %596 = vmatprep.subr.bf16.mxu0 0
      %597 = vmatpush1.bf16.msra.mxu0 0
      %598 = vmatprep.subr.bf16.mxu0 0
      %599 = vmatpush1.bf16.msra.mxu0 0
      %600 = vmatprep.subr.bf16.mxu0 0
      %601 = vmatpush1.bf16.msra.mxu0 0
      %602 = vmatprep.subr.bf16.mxu0 0
      %603 = vmatpush1.bf16.msra.mxu0 0
      %604 = vmatprep.subr.bf16.mxu0 0
      %605 = vmatpush1.bf16.msra.mxu0 0
      %606 = vmatprep.subr.bf16.mxu0 0
      %607 = vmatpush1.bf16.msra.mxu0 0
      %608 = vmatprep.subr.bf16.mxu0 0
      %609 = vmatpush1.bf16.msra.mxu0 0
      %610 = vmatprep.subr.bf16.mxu0 0
      %611 = vmatpush1.bf16.msra.mxu0 0
      %612 = vmatprep.subr.bf16.mxu0 0
      %613 = vmatpush1.bf16.msra.mxu0 0
      %614 = vmatprep.subr.bf16.mxu0 0
      %615 = vmatpush1.bf16.msra.mxu0 0
      %616 = vmatprep.subr.bf16.mxu0 0
      %617 = vmatpush1.bf16.msra.mxu0 0
      %618 = vmatprep.mubr.bf16.mxu0 0
      %619 = vmatmul.mubr.bf16.gmra.mrb[0].mxu0 %v575
      %v620 = vpop.f32.mrb[0].mxu0
      %v621 = vadd.f32 %v560, %v620
      %v622 = vpop.f32.mrb[0].mxu0
      %v623 = vpop.f32.mrb[0].mxu0
      %v624 = vadd.f32 %v560, %v623
      %v625 = vpop.f32.mrb[0].mxu0
      %626 = vmatprep.mubr.bf16.mxu0 0
      %627 = vmatmul.mubr.bf16.gmra.mrb[0].mxu0 %v578
      %v628 = vpop.f32.mrb[0].mxu0
      %v629 = vadd.f32 %v560, %v628
      %v630 = vpop.f32.mrb[0].mxu0
      %v631 = vpop.f32.mrb[0].mxu0
      %v632 = vadd.f32 %v560, %v631
      %v633 = vpop.f32.mrb[0].mxu0
      %634 = vmatprep.mubr.bf16.mxu0 0
      %635 = vmatmul.mubr.bf16.gmra.mrb[0].mxu0 %v581
      %v636 = vpop.f32.mrb[0].mxu0
      %v637 = vadd.f32 %v560, %v636
      %v638 = vpop.f32.mrb[0].mxu0
      %v639 = vpop.f32.mrb[0].mxu0
      %v640 = vadd.f32 %v560, %v639
      %v641 = vpop.f32.mrb[0].mxu0
      %642 = vmatprep.mubr.bf16.mxu0 0
      %643 = vmatmul.mubr.bf16.gmra.mrb[0].mxu0 %v584
      %v644 = vpop.f32.mrb[0].mxu0
      %v645 = vadd.f32 %v560, %v644
      %v646 = vpop.f32.mrb[0].mxu0
      %v647 = vpop.f32.mrb[0].mxu0
      %v648 = vadd.f32 %v560, %v647
      %v649 = vpop.f32.mrb[0].mxu0
      %650 = vdwg.mxu0
      %v651 = vld [vmem:[%s389] sm:$0xff]
      %v652 = vld [vmem:[%s389 + $0x8] sm:$0xff]
      %v653 = vld [vmem:[%s389 + $0x10] sm:$0xff]
      %v654 = vld [vmem:[%s389 + $0x18] sm:$0xff]
      %v655 = vld [vmem:[%s389 + $0x20] sm:$0xff]
      %v656 = vld [vmem:[%s389 + $0x28] sm:$0xff]
      %v657 = vld [vmem:[%s389 + $0x30] sm:$0xff]
      %v658 = vld [vmem:[%s389 + $0x38] sm:$0xff]
      %v659 = vpack.c.bf16 %v624, %v621
      %v660 = vpack.c.bf16 %v632, %v629
      %v661 = vpack.c.bf16 %v640, %v637
      %v662 = vpack.c.bf16 %v648, %v645
      %v663 = vld [vmem:[%s2] sm:$0xff]
      %v664 = vld [vmem:[%s2 + $0x8] sm:$0xff]
      %666 = vrot.lane.b32.xlu0 %v659, 96
      %v667 = vpop.permute.xlu0 %666
      %vm668 = vcmask 64512
      %v670 = vsel %vm668, %v659, 0
      %v673 = vsel %vm668, %v667, 0
      %675 = vmatprep.subr.bf16.mxu0 0
      %676 = vmatpush1.bf16.xpose.msra.mxu0 %v673
      %677 = vmatprep.subr.bf16.mxu0 0
      %678 = vmatpush1.bf16.xpose.msra.mxu0 0
      %679 = vmatprep.subr.bf16.mxu0 0
      %680 = vmatpush1.bf16.xpose.msra.mxu0 0
      %681 = vmatprep.subr.bf16.mxu0 0
      %682 = vmatpush1.bf16.xpose.msra.mxu0 0
      %683 = vmatprep.subr.bf16.mxu0 0
      %684 = vmatpush1.bf16.xpose.msra.mxu0 0
      %685 = vmatprep.subr.bf16.mxu0 0
      %686 = vmatpush1.bf16.xpose.msra.mxu0 0
      %687 = vmatprep.subr.bf16.mxu0 0
      %688 = vmatpush1.bf16.xpose.msra.mxu0 0
      %689 = vmatprep.subr.bf16.mxu0 0
      %690 = vmatpush1.bf16.xpose.msra.mxu0 0
      %691 = vmatprep.subr.bf16.mxu0 0
      %692 = vmatpush1.bf16.xpose.msra.mxu0 0
      %693 = vmatprep.subr.bf16.mxu0 0
      %694 = vmatpush1.bf16.xpose.msra.mxu0 0
      %695 = vmatprep.subr.bf16.mxu0 0
      %696 = vmatpush1.bf16.xpose.msra.mxu0 0
      %697 = vmatprep.subr.bf16.mxu0 0
      %698 = vmatpush1.bf16.xpose.msra.mxu0 0
      %699 = vmatprep.subr.bf16.mxu0 0
      %700 = vmatpush1.bf16.xpose.msra.mxu0 0
      %701 = vmatprep.subr.bf16.mxu0 0
      %702 = vmatpush1.bf16.xpose.msra.mxu0 0
      %703 = vmatprep.subr.bf16.mxu0 0
      %704 = vmatpush1.bf16.xpose.msra.mxu0 0
      %705 = vmatprep.subr.bf16.mxu0 0
      %706 = vmatpush1.bf16.xpose.msra.mxu0 0
      %707 = vmatprep.mubr.bf16.mxu0 0
      %708 = vmatmul.mubr.bf16.gmra.mrb[0].mxu0 %v670
      %v709 = vpop.f32.mrb[0].mxu0
      %v710 = vadd.f32 %v663, %v709
      %v711 = vpop.f32.mrb[0].mxu0
      %v712 = vpop.f32.mrb[0].mxu0
      %v713 = vadd.f32 %v664, %v712
      %v714 = vpop.f32.mrb[0].mxu0
      %715 = vdwg.mxu0
      %717 = vrot.lane.b32.xlu0 %v660, 96
      %v718 = vpop.permute.xlu0 %717
      %v720 = vsel %vm668, %v660, 0
      %v723 = vsel %vm668, %v718, 0
      %725 = vmatprep.subr.bf16.mxu0 0
      %726 = vmatpush1.bf16.xpose.msra.mxu0 %v723
      %727 = vmatprep.subr.bf16.mxu0 0
      %728 = vmatpush1.bf16.xpose.msra.mxu0 0
      %729 = vmatprep.subr.bf16.mxu0 0
      %730 = vmatpush1.bf16.xpose.msra.mxu0 0
      %731 = vmatprep.subr.bf16.mxu0 0
      %732 = vmatpush1.bf16.xpose.msra.mxu0 0
      %733 = vmatprep.subr.bf16.mxu0 0
      %734 = vmatpush1.bf16.xpose.msra.mxu0 0
      %735 = vmatprep.subr.bf16.mxu0 0
      %736 = vmatpush1.bf16.xpose.msra.mxu0 0
      %737 = vmatprep.subr.bf16.mxu0 0
      %738 = vmatpush1.bf16.xpose.msra.mxu0 0
      %739 = vmatprep.subr.bf16.mxu0 0
      %740 = vmatpush1.bf16.xpose.msra.mxu0 0
      %741 = vmatprep.subr.bf16.mxu0 0
      %742 = vmatpush1.bf16.xpose.msra.mxu0 0
      %743 = vmatprep.subr.bf16.mxu0 0
      %744 = vmatpush1.bf16.xpose.msra.mxu0 0
      %745 = vmatprep.subr.bf16.mxu0 0
      %746 = vmatpush1.bf16.xpose.msra.mxu0 0
      %747 = vmatprep.subr.bf16.mxu0 0
      %748 = vmatpush1.bf16.xpose.msra.mxu0 0
      %749 = vmatprep.subr.bf16.mxu0 0
      %750 = vmatpush1.bf16.xpose.msra.mxu0 0
      %751 = vmatprep.subr.bf16.mxu0 0
      %752 = vmatpush1.bf16.xpose.msra.mxu0 0
      %753 = vmatprep.subr.bf16.mxu0 0
      %754 = vmatpush1.bf16.xpose.msra.mxu0 0
      %755 = vmatprep.subr.bf16.mxu0 0
      %756 = vmatpush1.bf16.xpose.msra.mxu0 0
      %757 = vmatprep.mubr.bf16.mxu0 0
      %758 = vmatmul.mubr.bf16.gmra.mrb[0].mxu0 %v720
      %v759 = vpop.f32.mrb[0].mxu0
      %v760 = vadd.f32 %v663, %v759
      %v761 = vpop.f32.mrb[0].mxu0
      %v762 = vpop.f32.mrb[0].mxu0
      %v763 = vadd.f32 %v664, %v762
      %v764 = vpop.f32.mrb[0].mxu0
      %765 = vdwg.mxu0
      %767 = vrot.lane.b32.xlu0 %v661, 96
      %v768 = vpop.permute.xlu0 %767
      %v770 = vsel %vm668, %v661, 0
      %v773 = vsel %vm668, %v768, 0
      %775 = vmatprep.subr.bf16.mxu0 0
      %776 = vmatpush1.bf16.xpose.msra.mxu0 %v773
      %777 = vmatprep.subr.bf16.mxu0 0
      %778 = vmatpush1.bf16.xpose.msra.mxu0 0
      %779 = vmatprep.subr.bf16.mxu0 0
      %780 = vmatpush1.bf16.xpose.msra.mxu0 0
      %781 = vmatprep.subr.bf16.mxu0 0
      %782 = vmatpush1.bf16.xpose.msra.mxu0 0
      %783 = vmatprep.subr.bf16.mxu0 0
      %784 = vmatpush1.bf16.xpose.msra.mxu0 0
      %785 = vmatprep.subr.bf16.mxu0 0
      %786 = vmatpush1.bf16.xpose.msra.mxu0 0
      %787 = vmatprep.subr.bf16.mxu0 0
      %788 = vmatpush1.bf16.xpose.msra.mxu0 0
      %789 = vmatprep.subr.bf16.mxu0 0
      %790 = vmatpush1.bf16.xpose.msra.mxu0 0
      %791 = vmatprep.subr.bf16.mxu0 0
      %792 = vmatpush1.bf16.xpose.msra.mxu0 0
      %793 = vmatprep.subr.bf16.mxu0 0
      %794 = vmatpush1.bf16.xpose.msra.mxu0 0
      %795 = vmatprep.subr.bf16.mxu0 0
      %796 = vmatpush1.bf16.xpose.msra.mxu0 0
      %797 = vmatprep.subr.bf16.mxu0 0
      %798 = vmatpush1.bf16.xpose.msra.mxu0 0
      %799 = vmatprep.subr.bf16.mxu0 0
      %800 = vmatpush1.bf16.xpose.msra.mxu0 0
      %801 = vmatprep.subr.bf16.mxu0 0
      %802 = vmatpush1.bf16.xpose.msra.mxu0 0
      %803 = vmatprep.subr.bf16.mxu0 0
      %804 = vmatpush1.bf16.xpose.msra.mxu0 0
      %805 = vmatprep.subr.bf16.mxu0 0
      %806 = vmatpush1.bf16.xpose.msra.mxu0 0
      %807 = vmatprep.mubr.bf16.mxu0 0
      %808 = vmatmul.mubr.bf16.gmra.mrb[0].mxu0 %v770
      %v809 = vpop.f32.mrb[0].mxu0
      %v810 = vadd.f32 %v663, %v809
      %v811 = vpop.f32.mrb[0].mxu0
      %v812 = vpop.f32.mrb[0].mxu0
      %v813 = vadd.f32 %v664, %v812
      %v814 = vpop.f32.mrb[0].mxu0
      %815 = vdwg.mxu0
      %817 = vrot.lane.b32.xlu0 %v662, 96
      %v818 = vpop.permute.xlu0 %817
      %v820 = vsel %vm668, %v662, 0
      %v823 = vsel %vm668, %v818, 0
      %825 = vmatprep.subr.bf16.mxu0 0
      %826 = vmatpush1.bf16.xpose.msra.mxu0 %v823
      %827 = vmatprep.subr.bf16.mxu0 0
      %828 = vmatpush1.bf16.xpose.msra.mxu0 0
      %829 = vmatprep.subr.bf16.mxu0 0
      %830 = vmatpush1.bf16.xpose.msra.mxu0 0
      %831 = vmatprep.subr.bf16.mxu0 0
      %832 = vmatpush1.bf16.xpose.msra.mxu0 0
      %833 = vmatprep.subr.bf16.mxu0 0
      %834 = vmatpush1.bf16.xpose.msra.mxu0 0
      %835 = vmatprep.subr.bf16.mxu0 0
      %836 = vmatpush1.bf16.xpose.msra.mxu0 0
      %837 = vmatprep.subr.bf16.mxu0 0
      %838 = vmatpush1.bf16.xpose.msra.mxu0 0
      %839 = vmatprep.subr.bf16.mxu0 0
      %840 = vmatpush1.bf16.xpose.msra.mxu0 0
      %841 = vmatprep.subr.bf16.mxu0 0
      %842 = vmatpush1.bf16.xpose.msra.mxu0 0
      %843 = vmatprep.subr.bf16.mxu0 0
      %844 = vmatpush1.bf16.xpose.msra.mxu0 0
      %845 = vmatprep.subr.bf16.mxu0 0
      %846 = vmatpush1.bf16.xpose.msra.mxu0 0
      %847 = vmatprep.subr.bf16.mxu0 0
      %848 = vmatpush1.bf16.xpose.msra.mxu0 0
      %849 = vmatprep.subr.bf16.mxu0 0
      %850 = vmatpush1.bf16.xpose.msra.mxu0 0
      %851 = vmatprep.subr.bf16.mxu0 0
      %852 = vmatpush1.bf16.xpose.msra.mxu0 0
      %853 = vmatprep.subr.bf16.mxu0 0
      %854 = vmatpush1.bf16.xpose.msra.mxu0 0
      %855 = vmatprep.subr.bf16.mxu0 0
      %856 = vmatpush1.bf16.xpose.msra.mxu0 0
      %857 = vmatprep.mubr.bf16.mxu0 0
      %858 = vmatmul.mubr.bf16.gmra.mrb[0].mxu0 %v820
      %v859 = vpop.f32.mrb[0].mxu0
      %v860 = vadd.f32 %v663, %v859
      %v861 = vpop.f32.mrb[0].mxu0
      %v862 = vpop.f32.mrb[0].mxu0
      %v863 = vadd.f32 %v664, %v862
      %v864 = vpop.f32.mrb[0].mxu0
      %865 = vdwg.mxu0
      %v866 = vadd.f32 %v710, %v651
      %v867 = vadd.f32 %v713, %v652
      %v868 = vadd.f32 %v760, %v653
      %v869 = vadd.f32 %v763, %v654
      %v870 = vadd.f32 %v810, %v655
      %v871 = vadd.f32 %v813, %v656
      %v872 = vadd.f32 %v860, %v657
      %v873 = vadd.f32 %v863, %v658
      %vm874 = vcmask 130048
      %v875 = vsel %vm874, %v866, -inf
      %876 = vmax.xlane.f32.xlu0 %v875
      %v877 = vpop.xlane.xlu0 %876
      %v878 = vsel %vm874, %v867, -inf
      %879 = vmax.xlane.f32.xlu0 %v878
      %v880 = vpop.xlane.xlu0 %879
      %v881 = vsel %vm874, %v868, -inf
      %882 = vmax.xlane.f32.xlu0 %v881
      %v883 = vpop.xlane.xlu0 %882
      %v884 = vsel %vm874, %v869, -inf
      %885 = vmax.xlane.f32.xlu0 %v884
      %v886 = vpop.xlane.xlu0 %885
      %v887 = vsel %vm874, %v870, -inf
      %888 = vmax.xlane.f32.xlu0 %v887
      %v889 = vpop.xlane.xlu0 %888
      %v890 = vsel %vm874, %v871, -inf
      %891 = vmax.xlane.f32.xlu0 %v890
      %v892 = vpop.xlane.xlu0 %891
      %v893 = vsel %vm874, %v872, -inf
      %894 = vmax.xlane.f32.xlu0 %v893
      %v895 = vpop.xlane.xlu0 %894
      %v896 = vsel %vm874, %v873, -inf
      %897 = vmax.xlane.f32.xlu0 %v896
      %v898 = vpop.xlane.xlu0 %897
      %v899 = vsub.f32 %v866, %v877
      %v900 = vsub.f32 %v867, %v880
      %v901 = vsub.f32 %v868, %v883
      %v902 = vsub.f32 %v869, %v886
      %v903 = vsub.f32 %v870, %v889
      %v904 = vsub.f32 %v871, %v892
      %v905 = vsub.f32 %v872, %v895
      %v906 = vsub.f32 %v873, %v898
      %v907 = vmul.f32 %v899, 1.442695
      %v908 = vpow.pop %v907
      %v909 = vmul.f32 %v900, 1.442695
      %v910 = vpow.pop %v909
      %v911 = vmul.f32 %v901, 1.442695
      %v912 = vpow.pop %v911
      %v913 = vmul.f32 %v902, 1.442695
      %v914 = vpow.pop %v913
      %v915 = vmul.f32 %v903, 1.442695
      %v916 = vpow.pop %v915
      %v917 = vmul.f32 %v904, 1.442695
      %v918 = vpow.pop %v917
      %v919 = vmul.f32 %v905, 1.442695
      %v920 = vpow.pop %v919
      %v921 = vmul.f32 %v906, 1.442695
      %v922 = vpow.pop %v921
      %v923 = vsel %vm874, %v908, 0.0
      %924 = vadd.xlane.f32.xlu0 %v923
      %v925 = vpop.xlane.xlu0 %924
      %v926 = vsel %vm874, %v910, 0.0
      %927 = vadd.xlane.f32.xlu0 %v926
      %v928 = vpop.xlane.xlu0 %927
      %v929 = vsel %vm874, %v912, 0.0
      %930 = vadd.xlane.f32.xlu0 %v929
      %v931 = vpop.xlane.xlu0 %930
      %v932 = vsel %vm874, %v914, 0.0
      %933 = vadd.xlane.f32.xlu0 %v932
      %v934 = vpop.xlane.xlu0 %933
      %v935 = vsel %vm874, %v916, 0.0
      %936 = vadd.xlane.f32.xlu0 %v935
      %v937 = vpop.xlane.xlu0 %936
      %v938 = vsel %vm874, %v918, 0.0
      %939 = vadd.xlane.f32.xlu0 %v938
      %v940 = vpop.xlane.xlu0 %939
      %v941 = vsel %vm874, %v920, 0.0
      %942 = vadd.xlane.f32.xlu0 %v941
      %v943 = vpop.xlane.xlu0 %942
      %v944 = vsel %vm874, %v922, 0.0
      %945 = vadd.xlane.f32.xlu0 %v944
      %v946 = vpop.xlane.xlu0 %945
      %v947 = vrcp.pop %v925
      %v948 = vrcp.pop %v928
      %v949 = vrcp.pop %v931
      %v950 = vrcp.pop %v934
      %v951 = vrcp.pop %v937
      %v952 = vrcp.pop %v940
      %v953 = vrcp.pop %v943
      %v954 = vrcp.pop %v946
      %v955 = vmul.f32 %v908, %v947
      %v956 = vmul.f32 %v910, %v948
      %v957 = vmul.f32 %v912, %v949
      %v958 = vmul.f32 %v914, %v950
      %v959 = vmul.f32 %v916, %v951
      %v960 = vmul.f32 %v918, %v952
      %v961 = vmul.f32 %v920, %v953
      %v962 = vmul.f32 %v922, %v954
      %v963 = vpack.c.bf16 %v956, %v955
      %v964 = vpack.c.bf16 %v958, %v957
      %v965 = vpack.c.bf16 %v960, %v959
      %v966 = vpack.c.bf16 %v962, %v961
      %967 = vrot.lane.b32.xlu0 %v659, 64
      %v968 = vpop.permute.xlu0 %967
      %v971 = vsel %vm874, %v963, 0
      %973 = vmatprep.subr.bf16.mxu0 0
      %974 = vmatpush1.bf16.msra.mxu0 %v968
      %975 = vmatprep.subr.bf16.mxu0 0
      %976 = vmatpush1.bf16.msra.mxu0 0
      %977 = vmatprep.subr.bf16.mxu0 0
      %978 = vmatpush1.bf16.msra.mxu0 0
      %979 = vmatprep.subr.bf16.mxu0 0
      %980 = vmatpush1.bf16.msra.mxu0 0
      %981 = vmatprep.subr.bf16.mxu0 0
      %982 = vmatpush1.bf16.msra.mxu0 0
      %983 = vmatprep.subr.bf16.mxu0 0
      %984 = vmatpush1.bf16.msra.mxu0 0
      %985 = vmatprep.subr.bf16.mxu0 0
      %986 = vmatpush1.bf16.msra.mxu0 0
      %987 = vmatprep.subr.bf16.mxu0 0
      %988 = vmatpush1.bf16.msra.mxu0 0
      %989 = vmatprep.subr.bf16.mxu0 0
      %990 = vmatpush1.bf16.msra.mxu0 0
      %991 = vmatprep.subr.bf16.mxu0 0
      %992 = vmatpush1.bf16.msra.mxu0 0
      %993 = vmatprep.subr.bf16.mxu0 0
      %994 = vmatpush1.bf16.msra.mxu0 0
      %995 = vmatprep.subr.bf16.mxu0 0
      %996 = vmatpush1.bf16.msra.mxu0 0
      %997 = vmatprep.subr.bf16.mxu0 0
      %998 = vmatpush1.bf16.msra.mxu0 0
      %999 = vmatprep.subr.bf16.mxu0 0
      %1000 = vmatpush1.bf16.msra.mxu0 0
      %1001 = vmatprep.subr.bf16.mxu0 0
      %1002 = vmatpush1.bf16.msra.mxu0 0
      %1003 = vmatprep.subr.bf16.mxu0 0
      %1004 = vmatpush1.bf16.msra.mxu0 0
      %1005 = vmatprep.mubr.bf16.mxu0 0
      %1006 = vmatmul.mubr.bf16.gmra.mrb[0].mxu0 %v971
      %v1007 = vpop.f32.mrb[0].mxu0
      %v1008 = vadd.f32 0.0, %v1007
      %v1009 = vpop.f32.mrb[0].mxu0
      %v1010 = vpop.f32.mrb[0].mxu0
      %v1011 = vadd.f32 0.0, %v1010
      %v1012 = vpop.f32.mrb[0].mxu0
      %1013 = vdwg.mxu0
      %1014 = vrot.lane.b32.xlu0 %v660, 64
      %v1015 = vpop.permute.xlu0 %1014
      %v1018 = vsel %vm874, %v964, 0
      %1020 = vmatprep.subr.bf16.mxu0 0
      %1021 = vmatpush1.bf16.msra.mxu0 %v1015
      %1022 = vmatprep.subr.bf16.mxu0 0
      %1023 = vmatpush1.bf16.msra.mxu0 0
      %1024 = vmatprep.subr.bf16.mxu0 0
      %1025 = vmatpush1.bf16.msra.mxu0 0
      %1026 = vmatprep.subr.bf16.mxu0 0
      %1027 = vmatpush1.bf16.msra.mxu0 0
      %1028 = vmatprep.subr.bf16.mxu0 0
      %1029 = vmatpush1.bf16.msra.mxu0 0
      %1030 = vmatprep.subr.bf16.mxu0 0
      %1031 = vmatpush1.bf16.msra.mxu0 0
      %1032 = vmatprep.subr.bf16.mxu0 0
      %1033 = vmatpush1.bf16.msra.mxu0 0
      %1034 = vmatprep.subr.bf16.mxu0 0
      %1035 = vmatpush1.bf16.msra.mxu0 0
      %1036 = vmatprep.subr.bf16.mxu0 0
      %1037 = vmatpush1.bf16.msra.mxu0 0
      %1038 = vmatprep.subr.bf16.mxu0 0
      %1039 = vmatpush1.bf16.msra.mxu0 0
      %1040 = vmatprep.subr.bf16.mxu0 0
      %1041 = vmatpush1.bf16.msra.mxu0 0
      %1042 = vmatprep.subr.bf16.mxu0 0
      %1043 = vmatpush1.bf16.msra.mxu0 0
      %1044 = vmatprep.subr.bf16.mxu0 0
      %1045 = vmatpush1.bf16.msra.mxu0 0
      %1046 = vmatprep.subr.bf16.mxu0 0
      %1047 = vmatpush1.bf16.msra.mxu0 0
      %1048 = vmatprep.subr.bf16.mxu0 0
      %1049 = vmatpush1.bf16.msra.mxu0 0
      %1050 = vmatprep.subr.bf16.mxu0 0
      %1051 = vmatpush1.bf16.msra.mxu0 0
      %1052 = vmatprep.mubr.bf16.mxu0 0
      %1053 = vmatmul.mubr.bf16.gmra.mrb[0].mxu0 %v1018
      %v1054 = vpop.f32.mrb[0].mxu0
      %v1055 = vadd.f32 0.0, %v1054
      %v1056 = vpop.f32.mrb[0].mxu0
      %v1057 = vpop.f32.mrb[0].mxu0
      %v1058 = vadd.f32 0.0, %v1057
      %v1059 = vpop.f32.mrb[0].mxu0
      %1060 = vdwg.mxu0
      %1061 = vrot.lane.b32.xlu0 %v661, 64
      %v1062 = vpop.permute.xlu0 %1061
      %v1065 = vsel %vm874, %v965, 0
      %1067 = vmatprep.subr.bf16.mxu0 0
      %1068 = vmatpush1.bf16.msra.mxu0 %v1062
      %1069 = vmatprep.subr.bf16.mxu0 0
      %1070 = vmatpush1.bf16.msra.mxu0 0
      %1071 = vmatprep.subr.bf16.mxu0 0
      %1072 = vmatpush1.bf16.msra.mxu0 0
      %1073 = vmatprep.subr.bf16.mxu0 0
      %1074 = vmatpush1.bf16.msra.mxu0 0
      %1075 = vmatprep.subr.bf16.mxu0 0
      %1076 = vmatpush1.bf16.msra.mxu0 0
      %1077 = vmatprep.subr.bf16.mxu0 0
      %1078 = vmatpush1.bf16.msra.mxu0 0
      %1079 = vmatprep.subr.bf16.mxu0 0
      %1080 = vmatpush1.bf16.msra.mxu0 0
      %1081 = vmatprep.subr.bf16.mxu0 0
      %1082 = vmatpush1.bf16.msra.mxu0 0
      %1083 = vmatprep.subr.bf16.mxu0 0
      %1084 = vmatpush1.bf16.msra.mxu0 0
      %1085 = vmatprep.subr.bf16.mxu0 0
      %1086 = vmatpush1.bf16.msra.mxu0 0
      %1087 = vmatprep.subr.bf16.mxu0 0
      %1088 = vmatpush1.bf16.msra.mxu0 0
      %1089 = vmatprep.subr.bf16.mxu0 0
      %1090 = vmatpush1.bf16.msra.mxu0 0
      %1091 = vmatprep.subr.bf16.mxu0 0
      %1092 = vmatpush1.bf16.msra.mxu0 0
      %1093 = vmatprep.subr.bf16.mxu0 0
      %1094 = vmatpush1.bf16.msra.mxu0 0
      %1095 = vmatprep.subr.bf16.mxu0 0
      %1096 = vmatpush1.bf16.msra.mxu0 0
      %1097 = vmatprep.subr.bf16.mxu0 0
      %1098 = vmatpush1.bf16.msra.mxu0 0
      %1099 = vmatprep.mubr.bf16.mxu0 0
      %1100 = vmatmul.mubr.bf16.gmra.mrb[0].mxu0 %v1065
      %v1101 = vpop.f32.mrb[0].mxu0
      %v1102 = vadd.f32 0.0, %v1101
      %v1103 = vpop.f32.mrb[0].mxu0
      %v1104 = vpop.f32.mrb[0].mxu0
      %v1105 = vadd.f32 0.0, %v1104
      %v1106 = vpop.f32.mrb[0].mxu0
      %1107 = vdwg.mxu0
      %1108 = vrot.lane.b32.xlu0 %v662, 64
      %v1109 = vpop.permute.xlu0 %1108
      %v1112 = vsel %vm874, %v966, 0
      %1114 = vmatprep.subr.bf16.mxu0 0
      %1115 = vmatpush1.bf16.msra.mxu0 %v1109
      %1116 = vmatprep.subr.bf16.mxu0 0
      %1117 = vmatpush1.bf16.msra.mxu0 0
      %1118 = vmatprep.subr.bf16.mxu0 0
      %1119 = vmatpush1.bf16.msra.mxu0 0
      %1120 = vmatprep.subr.bf16.mxu0 0
      %1121 = vmatpush1.bf16.msra.mxu0 0
      %1122 = vmatprep.subr.bf16.mxu0 0
      %1123 = vmatpush1.bf16.msra.mxu0 0
      %1124 = vmatprep.subr.bf16.mxu0 0
      %1125 = vmatpush1.bf16.msra.mxu0 0
      %1126 = vmatprep.subr.bf16.mxu0 0
      %1127 = vmatpush1.bf16.msra.mxu0 0
      %1128 = vmatprep.subr.bf16.mxu0 0
      %1129 = vmatpush1.bf16.msra.mxu0 0
      %1130 = vmatprep.subr.bf16.mxu0 0
      %1131 = vmatpush1.bf16.msra.mxu0 0
      %1132 = vmatprep.subr.bf16.mxu0 0
      %1133 = vmatpush1.bf16.msra.mxu0 0
      %1134 = vmatprep.subr.bf16.mxu0 0
      %1135 = vmatpush1.bf16.msra.mxu0 0
      %1136 = vmatprep.subr.bf16.mxu0 0
      %1137 = vmatpush1.bf16.msra.mxu0 0
      %1138 = vmatprep.subr.bf16.mxu0 0
      %1139 = vmatpush1.bf16.msra.mxu0 0
      %1140 = vmatprep.subr.bf16.mxu0 0
      %1141 = vmatpush1.bf16.msra.mxu0 0
      %1142 = vmatprep.subr.bf16.mxu0 0
      %1143 = vmatpush1.bf16.msra.mxu0 0
      %1144 = vmatprep.subr.bf16.mxu0 0
      %1145 = vmatpush1.bf16.msra.mxu0 0
      %1146 = vmatprep.mubr.bf16.mxu0 0
      %1147 = vmatmul.mubr.bf16.gmra.mrb[0].mxu0 %v1112
      %v1148 = vpop.f32.mrb[0].mxu0
      %v1149 = vadd.f32 0.0, %v1148
      %v1150 = vpop.f32.mrb[0].mxu0
      %v1151 = vpop.f32.mrb[0].mxu0
      %v1152 = vadd.f32 0.0, %v1151
      %v1153 = vpop.f32.mrb[0].mxu0
      %1154 = vdwg.mxu0
      %v1155 = vpack.c.bf16 %v1011, %v1008
      %v1156 = vpack.c.bf16 %v1058, %v1055
      %v1157 = vpack.c.bf16 %v1105, %v1102
      %v1158 = vpack.c.bf16 %v1152, %v1149
      %v1159 = vld [vmem:[%s5] sm:$0xf]
      %s1160 = scalar_lea.vmem %s2, 16
      %v1161 = vld [vmem:[%s1160] sm:$0xff]
      %v1162 = vld [vmem:[%s1160 + $0x8] sm:$0xff]
      %1163 = vrot.lane.b32.xlu0 %v659, 120
      %v1164 = vpop.permute.xlu0 %1163
      %1165 = vrot.lane.b32.xlu0 %v659, 88
      %v1166 = vpop.permute.xlu0 %1165
      %v1168 = vsel %vm668, %v1164, 0
      %v1171 = vsel %vm668, %v1166, 0
      %1173 = vmatprep.subr.bf16.mxu0 0
      %1174 = vmatpush1.bf16.xpose.msra.mxu0 %v1171
      %1175 = vmatprep.subr.bf16.mxu0 0
      %1176 = vmatpush1.bf16.xpose.msra.mxu0 0
      %1177 = vmatprep.subr.bf16.mxu0 0
      %1178 = vmatpush1.bf16.xpose.msra.mxu0 0
      %1179 = vmatprep.subr.bf16.mxu0 0
      %1180 = vmatpush1.bf16.xpose.msra.mxu0 0
      %1181 = vmatprep.subr.bf16.mxu0 0
      %1182 = vmatpush1.bf16.xpose.msra.mxu0 0
      %1183 = vmatprep.subr.bf16.mxu0 0
      %1184 = vmatpush1.bf16.xpose.msra.mxu0 0
      %1185 = vmatprep.subr.bf16.mxu0 0
      %1186 = vmatpush1.bf16.xpose.msra.mxu0 0
      %1187 = vmatprep.subr.bf16.mxu0 0
      %1188 = vmatpush1.bf16.xpose.msra.mxu0 0
      %1189 = vmatprep.subr.bf16.mxu0 0
      %1190 = vmatpush1.bf16.xpose.msra.mxu0 0
      %1191 = vmatprep.subr.bf16.mxu0 0
      %1192 = vmatpush1.bf16.xpose.msra.mxu0 0
      %1193 = vmatprep.subr.bf16.mxu0 0
      %1194 = vmatpush1.bf16.xpose.msra.mxu0 0
      %1195 = vmatprep.subr.bf16.mxu0 0
      %1196 = vmatpush1.bf16.xpose.msra.mxu0 0
      %1197 = vmatprep.subr.bf16.mxu0 0
      %1198 = vmatpush1.bf16.xpose.msra.mxu0 0
      %1199 = vmatprep.subr.bf16.mxu0 0
      %1200 = vmatpush1.bf16.xpose.msra.mxu0 0
      %1201 = vmatprep.subr.bf16.mxu0 0
      %1202 = vmatpush1.bf16.xpose.msra.mxu0 0
      %1203 = vmatprep.subr.bf16.mxu0 0
      %1204 = vmatpush1.bf16.xpose.msra.mxu0 0
      %1205 = vmatprep.mubr.bf16.mxu0 0
      %1206 = vmatmul.mubr.bf16.gmra.mrb[0].mxu0 %v1168
      %v1207 = vpop.f32.mrb[0].mxu0
      %v1208 = vadd.f32 %v1161, %v1207
      %v1209 = vpop.f32.mrb[0].mxu0
      %v1210 = vpop.f32.mrb[0].mxu0
      %v1211 = vadd.f32 %v1162, %v1210
      %v1212 = vpop.f32.mrb[0].mxu0
      %1213 = vdwg.mxu0
      %1214 = vrot.lane.b32.xlu0 %v660, 120
      %v1215 = vpop.permute.xlu0 %1214
      %1216 = vrot.lane.b32.xlu0 %v660, 88
      %v1217 = vpop.permute.xlu0 %1216
      %v1219 = vsel %vm668, %v1215, 0
      %v1222 = vsel %vm668, %v1217, 0
      %1224 = vmatprep.subr.bf16.mxu0 0
      %1225 = vmatpush1.bf16.xpose.msra.mxu0 %v1222
      %1226 = vmatprep.subr.bf16.mxu0 0
      %1227 = vmatpush1.bf16.xpose.msra.mxu0 0
      %1228 = vmatprep.subr.bf16.mxu0 0
      %1229 = vmatpush1.bf16.xpose.msra.mxu0 0
      %1230 = vmatprep.subr.bf16.mxu0 0
      %1231 = vmatpush1.bf16.xpose.msra.mxu0 0
      %1232 = vmatprep.subr.bf16.mxu0 0
      %1233 = vmatpush1.bf16.xpose.msra.mxu0 0
      %1234 = vmatprep.subr.bf16.mxu0 0
      %1235 = vmatpush1.bf16.xpose.msra.mxu0 0
      %1236 = vmatprep.subr.bf16.mxu0 0
      %1237 = vmatpush1.bf16.xpose.msra.mxu0 0
      %1238 = vmatprep.subr.bf16.mxu0 0
      %1239 = vmatpush1.bf16.xpose.msra.mxu0 0
      %1240 = vmatprep.subr.bf16.mxu0 0
      %1241 = vmatpush1.bf16.xpose.msra.mxu0 0
      %1242 = vmatprep.subr.bf16.mxu0 0
      %1243 = vmatpush1.bf16.xpose.msra.mxu0 0
      %1244 = vmatprep.subr.bf16.mxu0 0
      %1245 = vmatpush1.bf16.xpose.msra.mxu0 0
      %1246 = vmatprep.subr.bf16.mxu0 0
      %1247 = vmatpush1.bf16.xpose.msra.mxu0 0
      %1248 = vmatprep.subr.bf16.mxu0 0
      %1249 = vmatpush1.bf16.xpose.msra.mxu0 0
      %1250 = vmatprep.subr.bf16.mxu0 0
      %1251 = vmatpush1.bf16.xpose.msra.mxu0 0
      %1252 = vmatprep.subr.bf16.mxu0 0
      %1253 = vmatpush1.bf16.xpose.msra.mxu0 0
      %1254 = vmatprep.subr.bf16.mxu0 0
      %1255 = vmatpush1.bf16.xpose.msra.mxu0 0
      %1256 = vmatprep.mubr.bf16.mxu0 0
      %1257 = vmatmul.mubr.bf16.gmra.mrb[0].mxu0 %v1219
      %v1258 = vpop.f32.mrb[0].mxu0
      %v1259 = vadd.f32 %v1161, %v1258
      %v1260 = vpop.f32.mrb[0].mxu0
      %v1261 = vpop.f32.mrb[0].mxu0
      %v1262 = vadd.f32 %v1162, %v1261
      %v1263 = vpop.f32.mrb[0].mxu0
      %1264 = vdwg.mxu0
      %1265 = vrot.lane.b32.xlu0 %v661, 120
      %v1266 = vpop.permute.xlu0 %1265
      %1267 = vrot.lane.b32.xlu0 %v661, 88
      %v1268 = vpop.permute.xlu0 %1267
      %v1270 = vsel %vm668, %v1266, 0
      %v1273 = vsel %vm668, %v1268, 0
      %1275 = vmatprep.subr.bf16.mxu0 0
      %1276 = vmatpush1.bf16.xpose.msra.mxu0 %v1273
      %1277 = vmatprep.subr.bf16.mxu0 0
      %1278 = vmatpush1.bf16.xpose.msra.mxu0 0
      %1279 = vmatprep.subr.bf16.mxu0 0
      %1280 = vmatpush1.bf16.xpose.msra.mxu0 0
      %1281 = vmatprep.subr.bf16.mxu0 0
      %1282 = vmatpush1.bf16.xpose.msra.mxu0 0
      %1283 = vmatprep.subr.bf16.mxu0 0
      %1284 = vmatpush1.bf16.xpose.msra.mxu0 0
      %1285 = vmatprep.subr.bf16.mxu0 0
      %1286 = vmatpush1.bf16.xpose.msra.mxu0 0
      %1287 = vmatprep.subr.bf16.mxu0 0
      %1288 = vmatpush1.bf16.xpose.msra.mxu0 0
      %1289 = vmatprep.subr.bf16.mxu0 0
      %1290 = vmatpush1.bf16.xpose.msra.mxu0 0
      %1291 = vmatprep.subr.bf16.mxu0 0
      %1292 = vmatpush1.bf16.xpose.msra.mxu0 0
      %1293 = vmatprep.subr.bf16.mxu0 0
      %1294 = vmatpush1.bf16.xpose.msra.mxu0 0
      %1295 = vmatprep.subr.bf16.mxu0 0
      %1296 = vmatpush1.bf16.xpose.msra.mxu0 0
      %1297 = vmatprep.subr.bf16.mxu0 0
      %1298 = vmatpush1.bf16.xpose.msra.mxu0 0
      %1299 = vmatprep.subr.bf16.mxu0 0
      %1300 = vmatpush1.bf16.xpose.msra.mxu0 0
      %1301 = vmatprep.subr.bf16.mxu0 0
      %1302 = vmatpush1.bf16.xpose.msra.mxu0 0
      %1303 = vmatprep.subr.bf16.mxu0 0
      %1304 = vmatpush1.bf16.xpose.msra.mxu0 0
      %1305 = vmatprep.subr.bf16.mxu0 0
      %1306 = vmatpush1.bf16.xpose.msra.mxu0 0
      %1307 = vmatprep.mubr.bf16.mxu0 0
      %1308 = vmatmul.mubr.bf16.gmra.mrb[0].mxu0 %v1270
      %v1309 = vpop.f32.mrb[0].mxu0
      %v1310 = vadd.f32 %v1161, %v1309
      %v1311 = vpop.f32.mrb[0].mxu0
      %v1312 = vpop.f32.mrb[0].mxu0
      %v1313 = vadd.f32 %v1162, %v1312
      %v1314 = vpop.f32.mrb[0].mxu0
      %1315 = vdwg.mxu0
      %1316 = vrot.lane.b32.xlu0 %v662, 120
      %v1317 = vpop.permute.xlu0 %1316
      %1318 = vrot.lane.b32.xlu0 %v662, 88
      %v1319 = vpop.permute.xlu0 %1318
      %v1321 = vsel %vm668, %v1317, 0
      %v1324 = vsel %vm668, %v1319, 0
      %1326 = vmatprep.subr.bf16.mxu0 0
      %1327 = vmatpush1.bf16.xpose.msra.mxu0 %v1324
      %1328 = vmatprep.subr.bf16.mxu0 0
      %1329 = vmatpush1.bf16.xpose.msra.mxu0 0
      %1330 = vmatprep.subr.bf16.mxu0 0
      %1331 = vmatpush1.bf16.xpose.msra.mxu0 0
      %1332 = vmatprep.subr.bf16.mxu0 0
      %1333 = vmatpush1.bf16.xpose.msra.mxu0 0
      %1334 = vmatprep.subr.bf16.mxu0 0
      %1335 = vmatpush1.bf16.xpose.msra.mxu0 0
      %1336 = vmatprep.subr.bf16.mxu0 0
      %1337 = vmatpush1.bf16.xpose.msra.mxu0 0
      %1338 = vmatprep.subr.bf16.mxu0 0
      %1339 = vmatpush1.bf16.xpose.msra.mxu0 0
      %1340 = vmatprep.subr.bf16.mxu0 0
      %1341 = vmatpush1.bf16.xpose.msra.mxu0 0
      %1342 = vmatprep.subr.bf16.mxu0 0
      %1343 = vmatpush1.bf16.xpose.msra.mxu0 0
      %1344 = vmatprep.subr.bf16.mxu0 0
      %1345 = vmatpush1.bf16.xpose.msra.mxu0 0
      %1346 = vmatprep.subr.bf16.mxu0 0
      %1347 = vmatpush1.bf16.xpose.msra.mxu0 0
      %1348 = vmatprep.subr.bf16.mxu0 0
      %1349 = vmatpush1.bf16.xpose.msra.mxu0 0
      %1350 = vmatprep.subr.bf16.mxu0 0
      %1351 = vmatpush1.bf16.xpose.msra.mxu0 0
      %1352 = vmatprep.subr.bf16.mxu0 0
      %1353 = vmatpush1.bf16.xpose.msra.mxu0 0
      %1354 = vmatprep.subr.bf16.mxu0 0
      %1355 = vmatpush1.bf16.xpose.msra.mxu0 0
      %1356 = vmatprep.subr.bf16.mxu0 0
      %1357 = vmatpush1.bf16.xpose.msra.mxu0 0
      %1358 = vmatprep.mubr.bf16.mxu0 0
      %1359 = vmatmul.mubr.bf16.gmra.mrb[0].mxu0 %v1321
      %v1360 = vpop.f32.mrb[0].mxu0
      %v1361 = vadd.f32 %v1161, %v1360
      %v1362 = vpop.f32.mrb[0].mxu0
      %v1363 = vpop.f32.mrb[0].mxu0
      %v1364 = vadd.f32 %v1162, %v1363
      %v1365 = vpop.f32.mrb[0].mxu0
      %1366 = vdwg.mxu0
      %v1367 = vadd.f32 %v1208, %v651
      %v1368 = vadd.f32 %v1211, %v652
      %v1369 = vadd.f32 %v1259, %v653
      %v1370 = vadd.f32 %v1262, %v654
      %v1371 = vadd.f32 %v1310, %v655
      %v1372 = vadd.f32 %v1313, %v656
      %v1373 = vadd.f32 %v1361, %v657
      %v1374 = vadd.f32 %v1364, %v658
      %v1375 = vsel %vm874, %v1367, -inf
      %1376 = vmax.xlane.f32.xlu0 %v1375
      %v1377 = vpop.xlane.xlu0 %1376
      %v1378 = vsel %vm874, %v1368, -inf
      %1379 = vmax.xlane.f32.xlu0 %v1378
      %v1380 = vpop.xlane.xlu0 %1379
      %v1381 = vsel %vm874, %v1369, -inf
      %1382 = vmax.xlane.f32.xlu0 %v1381
      %v1383 = vpop.xlane.xlu0 %1382
      %v1384 = vsel %vm874, %v1370, -inf
      %1385 = vmax.xlane.f32.xlu0 %v1384
      %v1386 = vpop.xlane.xlu0 %1385
      %v1387 = vsel %vm874, %v1371, -inf
      %1388 = vmax.xlane.f32.xlu0 %v1387
      %v1389 = vpop.xlane.xlu0 %1388
      %v1390 = vsel %vm874, %v1372, -inf
      %1391 = vmax.xlane.f32.xlu0 %v1390
      %v1392 = vpop.xlane.xlu0 %1391
      %v1393 = vsel %vm874, %v1373, -inf
      %1394 = vmax.xlane.f32.xlu0 %v1393
      %v1395 = vpop.xlane.xlu0 %1394
      %v1396 = vsel %vm874, %v1374, -inf
      %1397 = vmax.xlane.f32.xlu0 %v1396
      %v1398 = vpop.xlane.xlu0 %1397
      %v1399 = vsub.f32 %v1367, %v1377
      %v1400 = vsub.f32 %v1368, %v1380
      %v1401 = vsub.f32 %v1369, %v1383
      %v1402 = vsub.f32 %v1370, %v1386
      %v1403 = vsub.f32 %v1371, %v1389
      %v1404 = vsub.f32 %v1372, %v1392
      %v1405 = vsub.f32 %v1373, %v1395
      %v1406 = vsub.f32 %v1374, %v1398
      %v1407 = vmul.f32 %v1399, 1.442695
      %v1408 = vpow.pop %v1407
      %v1409 = vmul.f32 %v1400, 1.442695
      %v1410 = vpow.pop %v1409
      %v1411 = vmul.f32 %v1401, 1.442695
      %v1412 = vpow.pop %v1411
      %v1413 = vmul.f32 %v1402, 1.442695
      %v1414 = vpow.pop %v1413
      %v1415 = vmul.f32 %v1403, 1.442695
      %v1416 = vpow.pop %v1415
      %v1417 = vmul.f32 %v1404, 1.442695
      %v1418 = vpow.pop %v1417
      %v1419 = vmul.f32 %v1405, 1.442695
      %v1420 = vpow.pop %v1419
      %v1421 = vmul.f32 %v1406, 1.442695
      %v1422 = vpow.pop %v1421
      %v1423 = vsel %vm874, %v1408, 0.0
      %1424 = vadd.xlane.f32.xlu0 %v1423
      %v1425 = vpop.xlane.xlu0 %1424
      %v1426 = vsel %vm874, %v1410, 0.0
      %1427 = vadd.xlane.f32.xlu0 %v1426
      %v1428 = vpop.xlane.xlu0 %1427
      %v1429 = vsel %vm874, %v1412, 0.0
      %1430 = vadd.xlane.f32.xlu0 %v1429
      %v1431 = vpop.xlane.xlu0 %1430
      %v1432 = vsel %vm874, %v1414, 0.0
      %1433 = vadd.xlane.f32.xlu0 %v1432
      %v1434 = vpop.xlane.xlu0 %1433
      %v1435 = vsel %vm874, %v1416, 0.0
      %1436 = vadd.xlane.f32.xlu0 %v1435
      %v1437 = vpop.xlane.xlu0 %1436
      %v1438 = vsel %vm874, %v1418, 0.0
      %1439 = vadd.xlane.f32.xlu0 %v1438
      %v1440 = vpop.xlane.xlu0 %1439
      %v1441 = vsel %vm874, %v1420, 0.0
      %1442 = vadd.xlane.f32.xlu0 %v1441
      %v1443 = vpop.xlane.xlu0 %1442
      %v1444 = vsel %vm874, %v1422, 0.0
      %1445 = vadd.xlane.f32.xlu0 %v1444
      %v1446 = vpop.xlane.xlu0 %1445
      %v1447 = vrcp.pop %v1425
      %v1448 = vrcp.pop %v1428
      %v1449 = vrcp.pop %v1431
      %v1450 = vrcp.pop %v1434
      %v1451 = vrcp.pop %v1437
      %v1452 = vrcp.pop %v1440
      %v1453 = vrcp.pop %v1443
      %v1454 = vrcp.pop %v1446
      %v1455 = vmul.f32 %v1408, %v1447
      %v1456 = vmul.f32 %v1410, %v1448
      %v1457 = vmul.f32 %v1412, %v1449
      %v1458 = vmul.f32 %v1414, %v1450
      %v1459 = vmul.f32 %v1416, %v1451
      %v1460 = vmul.f32 %v1418, %v1452
      %v1461 = vmul.f32 %v1420, %v1453
      %v1462 = vmul.f32 %v1422, %v1454
      %v1463 = vpack.c.bf16 %v1456, %v1455
      %v1464 = vpack.c.bf16 %v1458, %v1457
      %v1465 = vpack.c.bf16 %v1460, %v1459
      %v1466 = vpack.c.bf16 %v1462, %v1461
      %1467 = vrot.lane.b32.xlu0 %v659, 56
      %v1468 = vpop.permute.xlu0 %1467
      %v1471 = vsel %vm874, %v1463, 0
      %1473 = vmatprep.subr.bf16.mxu0 0
      %1474 = vmatpush1.bf16.msra.mxu0 %v1468
      %1475 = vmatprep.subr.bf16.mxu0 0
      %1476 = vmatpush1.bf16.msra.mxu0 0
      %1477 = vmatprep.subr.bf16.mxu0 0
      %1478 = vmatpush1.bf16.msra.mxu0 0
      %1479 = vmatprep.subr.bf16.mxu0 0
      %1480 = vmatpush1.bf16.msra.mxu0 0
      %1481 = vmatprep.subr.bf16.mxu0 0
      %1482 = vmatpush1.bf16.msra.mxu0 0
      %1483 = vmatprep.subr.bf16.mxu0 0
      %1484 = vmatpush1.bf16.msra.mxu0 0
      %1485 = vmatprep.subr.bf16.mxu0 0
      %1486 = vmatpush1.bf16.msra.mxu0 0
      %1487 = vmatprep.subr.bf16.mxu0 0
      %1488 = vmatpush1.bf16.msra.mxu0 0
      %1489 = vmatprep.subr.bf16.mxu0 0
      %1490 = vmatpush1.bf16.msra.mxu0 0
      %1491 = vmatprep.subr.bf16.mxu0 0
      %1492 = vmatpush1.bf16.msra.mxu0 0
      %1493 = vmatprep.subr.bf16.mxu0 0
      %1494 = vmatpush1.bf16.msra.mxu0 0
      %1495 = vmatprep.subr.bf16.mxu0 0
      %1496 = vmatpush1.bf16.msra.mxu0 0
      %1497 = vmatprep.subr.bf16.mxu0 0
      %1498 = vmatpush1.bf16.msra.mxu0 0
      %1499 = vmatprep.subr.bf16.mxu0 0
      %1500 = vmatpush1.bf16.msra.mxu0 0
      %1501 = vmatprep.subr.bf16.mxu0 0
      %1502 = vmatpush1.bf16.msra.mxu0 0
      %1503 = vmatprep.subr.bf16.mxu0 0
      %1504 = vmatpush1.bf16.msra.mxu0 0
      %1505 = vmatprep.mubr.bf16.mxu0 0
      %1506 = vmatmul.mubr.bf16.gmra.mrb[0].mxu0 %v1471
      %v1507 = vpop.f32.mrb[0].mxu0
      %v1508 = vadd.f32 0.0, %v1507
      %v1509 = vpop.f32.mrb[0].mxu0
      %v1510 = vpop.f32.mrb[0].mxu0
      %v1511 = vadd.f32 0.0, %v1510
      %v1512 = vpop.f32.mrb[0].mxu0
      %1513 = vdwg.mxu0
      %1514 = vrot.lane.b32.xlu0 %v660, 56
      %v1515 = vpop.permute.xlu0 %1514
      %v1518 = vsel %vm874, %v1464, 0
      %1520 = vmatprep.subr.bf16.mxu0 0
      %1521 = vmatpush1.bf16.msra.mxu0 %v1515
      %1522 = vmatprep.subr.bf16.mxu0 0
      %1523 = vmatpush1.bf16.msra.mxu0 0
      %1524 = vmatprep.subr.bf16.mxu0 0
      %1525 = vmatpush1.bf16.msra.mxu0 0
      %1526 = vmatprep.subr.bf16.mxu0 0
      %1527 = vmatpush1.bf16.msra.mxu0 0
      %1528 = vmatprep.subr.bf16.mxu0 0
      %1529 = vmatpush1.bf16.msra.mxu0 0
      %1530 = vmatprep.subr.bf16.mxu0 0
      %1531 = vmatpush1.bf16.msra.mxu0 0
      %1532 = vmatprep.subr.bf16.mxu0 0
      %1533 = vmatpush1.bf16.msra.mxu0 0
      %1534 = vmatprep.subr.bf16.mxu0 0
      %1535 = vmatpush1.bf16.msra.mxu0 0
      %1536 = vmatprep.subr.bf16.mxu0 0
      %1537 = vmatpush1.bf16.msra.mxu0 0
      %1538 = vmatprep.subr.bf16.mxu0 0
      %1539 = vmatpush1.bf16.msra.mxu0 0
      %1540 = vmatprep.subr.bf16.mxu0 0
      %1541 = vmatpush1.bf16.msra.mxu0 0
      %1542 = vmatprep.subr.bf16.mxu0 0
      %1543 = vmatpush1.bf16.msra.mxu0 0
      %1544 = vmatprep.subr.bf16.mxu0 0
      %1545 = vmatpush1.bf16.msra.mxu0 0
      %1546 = vmatprep.subr.bf16.mxu0 0
      %1547 = vmatpush1.bf16.msra.mxu0 0
      %1548 = vmatprep.subr.bf16.mxu0 0
      %1549 = vmatpush1.bf16.msra.mxu0 0
      %1550 = vmatprep.subr.bf16.mxu0 0
      %1551 = vmatpush1.bf16.msra.mxu0 0
      %1552 = vmatprep.mubr.bf16.mxu0 0
      %1553 = vmatmul.mubr.bf16.gmra.mrb[0].mxu0 %v1518
      %v1554 = vpop.f32.mrb[0].mxu0
      %v1555 = vadd.f32 0.0, %v1554
      %v1556 = vpop.f32.mrb[0].mxu0
      %v1557 = vpop.f32.mrb[0].mxu0
      %v1558 = vadd.f32 0.0, %v1557
      %v1559 = vpop.f32.mrb[0].mxu0
      %1560 = vdwg.mxu0
      %1561 = vrot.lane.b32.xlu0 %v661, 56
      %v1562 = vpop.permute.xlu0 %1561
      %v1565 = vsel %vm874, %v1465, 0
      %1567 = vmatprep.subr.bf16.mxu0 0
      %1568 = vmatpush1.bf16.msra.mxu0 %v1562
      %1569 = vmatprep.subr.bf16.mxu0 0
      %1570 = vmatpush1.bf16.msra.mxu0 0
      %1571 = vmatprep.subr.bf16.mxu0 0
      %1572 = vmatpush1.bf16.msra.mxu0 0
      %1573 = vmatprep.subr.bf16.mxu0 0
      %1574 = vmatpush1.bf16.msra.mxu0 0
      %1575 = vmatprep.subr.bf16.mxu0 0
      %1576 = vmatpush1.bf16.msra.mxu0 0
      %1577 = vmatprep.subr.bf16.mxu0 0
      %1578 = vmatpush1.bf16.msra.mxu0 0
      %1579 = vmatprep.subr.bf16.mxu0 0
      %1580 = vmatpush1.bf16.msra.mxu0 0
      %1581 = vmatprep.subr.bf16.mxu0 0
      %1582 = vmatpush1.bf16.msra.mxu0 0
      %1583 = vmatprep.subr.bf16.mxu0 0
      %1584 = vmatpush1.bf16.msra.mxu0 0
      %1585 = vmatprep.subr.bf16.mxu0 0
      %1586 = vmatpush1.bf16.msra.mxu0 0
      %1587 = vmatprep.subr.bf16.mxu0 0
      %1588 = vmatpush1.bf16.msra.mxu0 0
      %1589 = vmatprep.subr.bf16.mxu0 0
      %1590 = vmatpush1.bf16.msra.mxu0 0
      %1591 = vmatprep.subr.bf16.mxu0 0
      %1592 = vmatpush1.bf16.msra.mxu0 0
      %1593 = vmatprep.subr.bf16.mxu0 0
      %1594 = vmatpush1.bf16.msra.mxu0 0
      %1595 = vmatprep.subr.bf16.mxu0 0
      %1596 = vmatpush1.bf16.msra.mxu0 0
      %1597 = vmatprep.subr.bf16.mxu0 0
      %1598 = vmatpush1.bf16.msra.mxu0 0
      %1599 = vmatprep.mubr.bf16.mxu0 0
      %1600 = vmatmul.mubr.bf16.gmra.mrb[0].mxu0 %v1565
      %v1601 = vpop.f32.mrb[0].mxu0
      %v1602 = vadd.f32 0.0, %v1601
      %v1603 = vpop.f32.mrb[0].mxu0
      %v1604 = vpop.f32.mrb[0].mxu0
      %v1605 = vadd.f32 0.0, %v1604
      %v1606 = vpop.f32.mrb[0].mxu0
      %1607 = vdwg.mxu0
      %1608 = vrot.lane.b32.xlu0 %v662, 56
      %v1609 = vpop.permute.xlu0 %1608
      %v1612 = vsel %vm874, %v1466, 0
      %1614 = vmatprep.subr.bf16.mxu0 0
      %1615 = vmatpush1.bf16.msra.mxu0 %v1609
      %1616 = vmatprep.subr.bf16.mxu0 0
      %1617 = vmatpush1.bf16.msra.mxu0 0
      %1618 = vmatprep.subr.bf16.mxu0 0
      %1619 = vmatpush1.bf16.msra.mxu0 0
      %1620 = vmatprep.subr.bf16.mxu0 0
      %1621 = vmatpush1.bf16.msra.mxu0 0
      %1622 = vmatprep.subr.bf16.mxu0 0
      %1623 = vmatpush1.bf16.msra.mxu0 0
      %1624 = vmatprep.subr.bf16.mxu0 0
      %1625 = vmatpush1.bf16.msra.mxu0 0
      %1626 = vmatprep.subr.bf16.mxu0 0
      %1627 = vmatpush1.bf16.msra.mxu0 0
      %1628 = vmatprep.subr.bf16.mxu0 0
      %1629 = vmatpush1.bf16.msra.mxu0 0
      %1630 = vmatprep.subr.bf16.mxu0 0
      %1631 = vmatpush1.bf16.msra.mxu0 0
      %1632 = vmatprep.subr.bf16.mxu0 0
      %1633 = vmatpush1.bf16.msra.mxu0 0
      %1634 = vmatprep.subr.bf16.mxu0 0
      %1635 = vmatpush1.bf16.msra.mxu0 0
      %1636 = vmatprep.subr.bf16.mxu0 0
      %1637 = vmatpush1.bf16.msra.mxu0 0
      %1638 = vmatprep.subr.bf16.mxu0 0
      %1639 = vmatpush1.bf16.msra.mxu0 0
      %1640 = vmatprep.subr.bf16.mxu0 0
      %1641 = vmatpush1.bf16.msra.mxu0 0
      %1642 = vmatprep.subr.bf16.mxu0 0
      %1643 = vmatpush1.bf16.msra.mxu0 0
      %1644 = vmatprep.subr.bf16.mxu0 0
      %1645 = vmatpush1.bf16.msra.mxu0 0
      %1646 = vmatprep.mubr.bf16.mxu0 0
      %1647 = vmatmul.mubr.bf16.gmra.mrb[0].mxu0 %v1612
      %v1648 = vpop.f32.mrb[0].mxu0
      %v1649 = vadd.f32 0.0, %v1648
      %v1650 = vpop.f32.mrb[0].mxu0
      %v1651 = vpop.f32.mrb[0].mxu0
      %v1652 = vadd.f32 0.0, %v1651
      %v1653 = vpop.f32.mrb[0].mxu0
      %1654 = vdwg.mxu0
      %v1655 = vpack.c.bf16 %v1511, %v1508
      %v1656 = vpack.c.bf16 %v1558, %v1555
      %v1657 = vpack.c.bf16 %v1605, %v1602
      %v1658 = vpack.c.bf16 %v1652, %v1649
      %v1659 = vld [vmem:[%s5 + $0x4] sm:$0xf]
      %v1661 = vsel %vm668, %v1655, 0
      %v1664 = vsel %vm668, %v1656, 0
      %v1667 = vsel %vm668, %v1657, 0
      %v1670 = vsel %vm668, %v1658, 0
      %vm1672 = vcmask 1043456
      %v1674 = vsel %vm1672, %v1659, 0
      %1676 = vmatprep.subr.bf16.mxu0 0
      %1677 = vmatpush1.bf16.msra.mxu0 %v1674
      %1678 = vmatprep.subr.bf16.mxu0 0
      %1679 = vmatpush1.bf16.msra.mxu0 0
      %1680 = vmatprep.subr.bf16.mxu0 0
      %1681 = vmatpush1.bf16.msra.mxu0 0
      %1682 = vmatprep.subr.bf16.mxu0 0
      %1683 = vmatpush1.bf16.msra.mxu0 0
      %1684 = vmatprep.subr.bf16.mxu0 0
      %1685 = vmatpush1.bf16.msra.mxu0 0
      %1686 = vmatprep.subr.bf16.mxu0 0
      %1687 = vmatpush1.bf16.msra.mxu0 0
      %1688 = vmatprep.subr.bf16.mxu0 0
      %1689 = vmatpush1.bf16.msra.mxu0 0
      %1690 = vmatprep.subr.bf16.mxu0 0
      %1691 = vmatpush1.bf16.msra.mxu0 0
      %1692 = vmatprep.subr.bf16.mxu0 0
      %1693 = vmatpush1.bf16.msra.mxu0 0
      %1694 = vmatprep.subr.bf16.mxu0 0
      %1695 = vmatpush1.bf16.msra.mxu0 0
      %1696 = vmatprep.subr.bf16.mxu0 0
      %1697 = vmatpush1.bf16.msra.mxu0 0
      %1698 = vmatprep.subr.bf16.mxu0 0
      %1699 = vmatpush1.bf16.msra.mxu0 0
      %1700 = vmatprep.subr.bf16.mxu0 0
      %1701 = vmatpush1.bf16.msra.mxu0 0
      %1702 = vmatprep.subr.bf16.mxu0 0
      %1703 = vmatpush1.bf16.msra.mxu0 0
      %1704 = vmatprep.subr.bf16.mxu0 0
      %1705 = vmatpush1.bf16.msra.mxu0 0
      %1706 = vmatprep.subr.bf16.mxu0 0
      %1707 = vmatpush1.bf16.msra.mxu0 0
      %1708 = vmatprep.mubr.bf16.mxu0 0
      %1709 = vmatmul.mubr.bf16.gmra.mrb[0].mxu0 %v1661
      %v1710 = vpop.f32.mrb[0].mxu0
      %v1711 = vadd.f32 0.0, %v1710
      %v1712 = vpop.f32.mrb[0].mxu0
      %v1713 = vpop.f32.mrb[0].mxu0
      %v1714 = vadd.f32 0.0, %v1713
      %v1715 = vpop.f32.mrb[0].mxu0
      %1716 = vmatprep.mubr.bf16.mxu0 0
      %1717 = vmatmul.mubr.bf16.gmra.mrb[0].mxu0 %v1664
      %v1718 = vpop.f32.mrb[0].mxu0
      %v1719 = vadd.f32 0.0, %v1718
      %v1720 = vpop.f32.mrb[0].mxu0
      %v1721 = vpop.f32.mrb[0].mxu0
      %v1722 = vadd.f32 0.0, %v1721
      %v1723 = vpop.f32.mrb[0].mxu0
      %1724 = vmatprep.mubr.bf16.mxu0 0
      %1725 = vmatmul.mubr.bf16.gmra.mrb[0].mxu0 %v1667
      %v1726 = vpop.f32.mrb[0].mxu0
      %v1727 = vadd.f32 0.0, %v1726
      %v1728 = vpop.f32.mrb[0].mxu0
      %v1729 = vpop.f32.mrb[0].mxu0
      %v1730 = vadd.f32 0.0, %v1729
      %v1731 = vpop.f32.mrb[0].mxu0
      %1732 = vmatprep.mubr.bf16.mxu0 0
      %1733 = vmatmul.mubr.bf16.gmra.mrb[0].mxu0 %v1670
      %v1734 = vpop.f32.mrb[0].mxu0
      %v1735 = vadd.f32 0.0, %v1734
      %v1736 = vpop.f32.mrb[0].mxu0
      %v1737 = vpop.f32.mrb[0].mxu0
      %v1738 = vadd.f32 0.0, %v1737
      %v1739 = vpop.f32.mrb[0].mxu0
      %1740 = vdwg.mxu0
      %v1742 = vsel %vm668, %v1155, 0
      %v1745 = vsel %vm668, %v1156, 0
      %v1748 = vsel %vm668, %v1157, 0
      %v1751 = vsel %vm668, %v1158, 0
      %v1754 = vsel %vm1672, %v1159, 0
      %1756 = vmatprep.subr.bf16.mxu0 0
      %1757 = vmatpush1.bf16.msra.mxu0 %v1754
      %1758 = vmatprep.subr.bf16.mxu0 0
      %1759 = vmatpush1.bf16.msra.mxu0 0
      %1760 = vmatprep.subr.bf16.mxu0 0
      %1761 = vmatpush1.bf16.msra.mxu0 0
      %1762 = vmatprep.subr.bf16.mxu0 0
      %1763 = vmatpush1.bf16.msra.mxu0 0
      %1764 = vmatprep.subr.bf16.mxu0 0
      %1765 = vmatpush1.bf16.msra.mxu0 0
      %1766 = vmatprep.subr.bf16.mxu0 0
      %1767 = vmatpush1.bf16.msra.mxu0 0
      %1768 = vmatprep.subr.bf16.mxu0 0
      %1769 = vmatpush1.bf16.msra.mxu0 0
      %1770 = vmatprep.subr.bf16.mxu0 0
      %1771 = vmatpush1.bf16.msra.mxu0 0
      %1772 = vmatprep.subr.bf16.mxu0 0
      %1773 = vmatpush1.bf16.msra.mxu0 0
      %1774 = vmatprep.subr.bf16.mxu0 0
      %1775 = vmatpush1.bf16.msra.mxu0 0
      %1776 = vmatprep.subr.bf16.mxu0 0
      %1777 = vmatpush1.bf16.msra.mxu0 0
      %1778 = vmatprep.subr.bf16.mxu0 0
      %1779 = vmatpush1.bf16.msra.mxu0 0
      %1780 = vmatprep.subr.bf16.mxu0 0
      %1781 = vmatpush1.bf16.msra.mxu0 0
      %1782 = vmatprep.subr.bf16.mxu0 0
      %1783 = vmatpush1.bf16.msra.mxu0 0
      %1784 = vmatprep.subr.bf16.mxu0 0
      %1785 = vmatpush1.bf16.msra.mxu0 0
      %1786 = vmatprep.subr.bf16.mxu0 0
      %1787 = vmatpush1.bf16.msra.mxu0 0
      %1788 = vmatprep.mubr.bf16.mxu0 0
      %1789 = vmatmul.mubr.bf16.gmra.mrb[0].mxu0 %v1742
      %v1790 = vpop.f32.mrb[0].mxu0
      %v1791 = vadd.f32 %v1711, %v1790
      %v1792 = vpop.f32.mrb[0].mxu0
      %v1793 = vpop.f32.mrb[0].mxu0
      %v1794 = vadd.f32 %v1714, %v1793
      %v1795 = vpop.f32.mrb[0].mxu0
      %1796 = vmatprep.mubr.bf16.mxu0 0
      %1797 = vmatmul.mubr.bf16.gmra.mrb[0].mxu0 %v1745
      %v1798 = vpop.f32.mrb[0].mxu0
      %v1799 = vadd.f32 %v1719, %v1798
      %v1800 = vpop.f32.mrb[0].mxu0
      %v1801 = vpop.f32.mrb[0].mxu0
      %v1802 = vadd.f32 %v1722, %v1801
      %v1803 = vpop.f32.mrb[0].mxu0
      %1804 = vmatprep.mubr.bf16.mxu0 0
      %1805 = vmatmul.mubr.bf16.gmra.mrb[0].mxu0 %v1748
      %v1806 = vpop.f32.mrb[0].mxu0
      %v1807 = vadd.f32 %v1727, %v1806
      %v1808 = vpop.f32.mrb[0].mxu0
      %v1809 = vpop.f32.mrb[0].mxu0
      %v1810 = vadd.f32 %v1730, %v1809
      %v1811 = vpop.f32.mrb[0].mxu0
      %1812 = vmatprep.mubr.bf16.mxu0 0
      %1813 = vmatmul.mubr.bf16.gmra.mrb[0].mxu0 %v1751
      %v1814 = vpop.f32.mrb[0].mxu0
      %v1815 = vadd.f32 %v1735, %v1814
      %v1816 = vpop.f32.mrb[0].mxu0
      %v1817 = vpop.f32.mrb[0].mxu0
      %v1818 = vadd.f32 %v1738, %v1817
      %v1819 = vpop.f32.mrb[0].mxu0
      %1820 = vdwg.mxu0
      %s1821 = scalar_lea.vmem %s2, 32
      %v1822 = vld [vmem:[%s1821] sm:$0xff]
      %v1823 = vld [vmem:[%s1821 + $0x8] sm:$0xff]
      %1824 = vrot.lane.b32.xlu0 %v659, 112
      %v1825 = vpop.permute.xlu0 %1824
      %1826 = vrot.lane.b32.xlu0 %v659, 80
      %v1827 = vpop.permute.xlu0 %1826
      %v1829 = vsel %vm668, %v1825, 0
      %v1832 = vsel %vm668, %v1827, 0
      %1834 = vmatprep.subr.bf16.mxu0 0
      %1835 = vmatpush1.bf16.xpose.msra.mxu0 %v1832
      %1836 = vmatprep.subr.bf16.mxu0 0
      %1837 = vmatpush1.bf16.xpose.msra.mxu0 0
      %1838 = vmatprep.subr.bf16.mxu0 0
      %1839 = vmatpush1.bf16.xpose.msra.mxu0 0
      %1840 = vmatprep.subr.bf16.mxu0 0
      %1841 = vmatpush1.bf16.xpose.msra.mxu0 0
      %1842 = vmatprep.subr.bf16.mxu0 0
      %1843 = vmatpush1.bf16.xpose.msra.mxu0 0
      %1844 = vmatprep.subr.bf16.mxu0 0
      %1845 = vmatpush1.bf16.xpose.msra.mxu0 0
      %1846 = vmatprep.subr.bf16.mxu0 0
      %1847 = vmatpush1.bf16.xpose.msra.mxu0 0
      %1848 = vmatprep.subr.bf16.mxu0 0
      %1849 = vmatpush1.bf16.xpose.msra.mxu0 0
      %1850 = vmatprep.subr.bf16.mxu0 0
      %1851 = vmatpush1.bf16.xpose.msra.mxu0 0
      %1852 = vmatprep.subr.bf16.mxu0 0
      %1853 = vmatpush1.bf16.xpose.msra.mxu0 0
      %1854 = vmatprep.subr.bf16.mxu0 0
      %1855 = vmatpush1.bf16.xpose.msra.mxu0 0
      %1856 = vmatprep.subr.bf16.mxu0 0
      %1857 = vmatpush1.bf16.xpose.msra.mxu0 0
      %1858 = vmatprep.subr.bf16.mxu0 0
      %1859 = vmatpush1.bf16.xpose.msra.mxu0 0
      %1860 = vmatprep.subr.bf16.mxu0 0
      %1861 = vmatpush1.bf16.xpose.msra.mxu0 0
      %1862 = vmatprep.subr.bf16.mxu0 0
      %1863 = vmatpush1.bf16.xpose.msra.mxu0 0
      %1864 = vmatprep.subr.bf16.mxu0 0
      %1865 = vmatpush1.bf16.xpose.msra.mxu0 0
      %1866 = vmatprep.mubr.bf16.mxu0 0
      %1867 = vmatmul.mubr.bf16.gmra.mrb[0].mxu0 %v1829
      %v1868 = vpop.f32.mrb[0].mxu0
      %v1869 = vadd.f32 %v1822, %v1868
      %v1870 = vpop.f32.mrb[0].mxu0
      %v1871 = vpop.f32.mrb[0].mxu0
      %v1872 = vadd.f32 %v1823, %v1871
      %v1873 = vpop.f32.mrb[0].mxu0
      %1874 = vdwg.mxu0
      %1875 = vrot.lane.b32.xlu0 %v660, 112
      %v1876 = vpop.permute.xlu0 %1875
      %1877 = vrot.lane.b32.xlu0 %v660, 80
      %v1878 = vpop.permute.xlu0 %1877
      %v1880 = vsel %vm668, %v1876, 0
      %v1883 = vsel %vm668, %v1878, 0
      %1885 = vmatprep.subr.bf16.mxu0 0
      %1886 = vmatpush1.bf16.xpose.msra.mxu0 %v1883
      %1887 = vmatprep.subr.bf16.mxu0 0
      %1888 = vmatpush1.bf16.xpose.msra.mxu0 0
      %1889 = vmatprep.subr.bf16.mxu0 0
      %1890 = vmatpush1.bf16.xpose.msra.mxu0 0
      %1891 = vmatprep.subr.bf16.mxu0 0
      %1892 = vmatpush1.bf16.xpose.msra.mxu0 0
      %1893 = vmatprep.subr.bf16.mxu0 0
      %1894 = vmatpush1.bf16.xpose.msra.mxu0 0
      %1895 = vmatprep.subr.bf16.mxu0 0
      %1896 = vmatpush1.bf16.xpose.msra.mxu0 0
      %1897 = vmatprep.subr.bf16.mxu0 0
      %1898 = vmatpush1.bf16.xpose.msra.mxu0 0
      %1899 = vmatprep.subr.bf16.mxu0 0
      %1900 = vmatpush1.bf16.xpose.msra.mxu0 0
      %1901 = vmatprep.subr.bf16.mxu0 0
      %1902 = vmatpush1.bf16.xpose.msra.mxu0 0
      %1903 = vmatprep.subr.bf16.mxu0 0
      %1904 = vmatpush1.bf16.xpose.msra.mxu0 0
      %1905 = vmatprep.subr.bf16.mxu0 0
      %1906 = vmatpush1.bf16.xpose.msra.mxu0 0
      %1907 = vmatprep.subr.bf16.mxu0 0
      %1908 = vmatpush1.bf16.xpose.msra.mxu0 0
      %1909 = vmatprep.subr.bf16.mxu0 0
      %1910 = vmatpush1.bf16.xpose.msra.mxu0 0
      %1911 = vmatprep.subr.bf16.mxu0 0
      %1912 = vmatpush1.bf16.xpose.msra.mxu0 0
      %1913 = vmatprep.subr.bf16.mxu0 0
      %1914 = vmatpush1.bf16.xpose.msra.mxu0 0
      %1915 = vmatprep.subr.bf16.mxu0 0
      %1916 = vmatpush1.bf16.xpose.msra.mxu0 0
      %1917 = vmatprep.mubr.bf16.mxu0 0
      %1918 = vmatmul.mubr.bf16.gmra.mrb[0].mxu0 %v1880
      %v1919 = vpop.f32.mrb[0].mxu0
      %v1920 = vadd.f32 %v1822, %v1919
      %v1921 = vpop.f32.mrb[0].mxu0
      %v1922 = vpop.f32.mrb[0].mxu0
      %v1923 = vadd.f32 %v1823, %v1922
      %v1924 = vpop.f32.mrb[0].mxu0
      %1925 = vdwg.mxu0
      %1926 = vrot.lane.b32.xlu0 %v661, 112
      %v1927 = vpop.permute.xlu0 %1926
      %1928 = vrot.lane.b32.xlu0 %v661, 80
      %v1929 = vpop.permute.xlu0 %1928
      %v1931 = vsel %vm668, %v1927, 0
      %v1934 = vsel %vm668, %v1929, 0
      %1936 = vmatprep.subr.bf16.mxu0 0
      %1937 = vmatpush1.bf16.xpose.msra.mxu0 %v1934
      %1938 = vmatprep.subr.bf16.mxu0 0
      %1939 = vmatpush1.bf16.xpose.msra.mxu0 0
      %1940 = vmatprep.subr.bf16.mxu0 0
      %1941 = vmatpush1.bf16.xpose.msra.mxu0 0
      %1942 = vmatprep.subr.bf16.mxu0 0
      %1943 = vmatpush1.bf16.xpose.msra.mxu0 0
      %1944 = vmatprep.subr.bf16.mxu0 0
      %1945 = vmatpush1.bf16.xpose.msra.mxu0 0
      %1946 = vmatprep.subr.bf16.mxu0 0
      %1947 = vmatpush1.bf16.xpose.msra.mxu0 0
      %1948 = vmatprep.subr.bf16.mxu0 0
      %1949 = vmatpush1.bf16.xpose.msra.mxu0 0
      %1950 = vmatprep.subr.bf16.mxu0 0
      %1951 = vmatpush1.bf16.xpose.msra.mxu0 0
      %1952 = vmatprep.subr.bf16.mxu0 0
      %1953 = vmatpush1.bf16.xpose.msra.mxu0 0
      %1954 = vmatprep.subr.bf16.mxu0 0
      %1955 = vmatpush1.bf16.xpose.msra.mxu0 0
      %1956 = vmatprep.subr.bf16.mxu0 0
      %1957 = vmatpush1.bf16.xpose.msra.mxu0 0
      %1958 = vmatprep.subr.bf16.mxu0 0
      %1959 = vmatpush1.bf16.xpose.msra.mxu0 0
      %1960 = vmatprep.subr.bf16.mxu0 0
      %1961 = vmatpush1.bf16.xpose.msra.mxu0 0
      %1962 = vmatprep.subr.bf16.mxu0 0
      %1963 = vmatpush1.bf16.xpose.msra.mxu0 0
      %1964 = vmatprep.subr.bf16.mxu0 0
      %1965 = vmatpush1.bf16.xpose.msra.mxu0 0
      %1966 = vmatprep.subr.bf16.mxu0 0
      %1967 = vmatpush1.bf16.xpose.msra.mxu0 0
      %1968 = vmatprep.mubr.bf16.mxu0 0
      %1969 = vmatmul.mubr.bf16.gmra.mrb[0].mxu0 %v1931
      %v1970 = vpop.f32.mrb[0].mxu0
      %v1971 = vadd.f32 %v1822, %v1970
      %v1972 = vpop.f32.mrb[0].mxu0
      %v1973 = vpop.f32.mrb[0].mxu0
      %v1974 = vadd.f32 %v1823, %v1973
      %v1975 = vpop.f32.mrb[0].mxu0
      %1976 = vdwg.mxu0
      %1977 = vrot.lane.b32.xlu0 %v662, 112
      %v1978 = vpop.permute.xlu0 %1977
      %1979 = vrot.lane.b32.xlu0 %v662, 80
      %v1980 = vpop.permute.xlu0 %1979
      %v1982 = vsel %vm668, %v1978, 0
      %v1985 = vsel %vm668, %v1980, 0
      %1987 = vmatprep.subr.bf16.mxu0 0
      %1988 = vmatpush1.bf16.xpose.msra.mxu0 %v1985
      %1989 = vmatprep.subr.bf16.mxu0 0
      %1990 = vmatpush1.bf16.xpose.msra.mxu0 0
      %1991 = vmatprep.subr.bf16.mxu0 0
      %1992 = vmatpush1.bf16.xpose.msra.mxu0 0
      %1993 = vmatprep.subr.bf16.mxu0 0
      %1994 = vmatpush1.bf16.xpose.msra.mxu0 0
      %1995 = vmatprep.subr.bf16.mxu0 0
      %1996 = vmatpush1.bf16.xpose.msra.mxu0 0
      %1997 = vmatprep.subr.bf16.mxu0 0
      %1998 = vmatpush1.bf16.xpose.msra.mxu0 0
      %1999 = vmatprep.subr.bf16.mxu0 0
      %2000 = vmatpush1.bf16.xpose.msra.mxu0 0
      %2001 = vmatprep.subr.bf16.mxu0 0
      %2002 = vmatpush1.bf16.xpose.msra.mxu0 0
      %2003 = vmatprep.subr.bf16.mxu0 0
      %2004 = vmatpush1.bf16.xpose.msra.mxu0 0
      %2005 = vmatprep.subr.bf16.mxu0 0
      %2006 = vmatpush1.bf16.xpose.msra.mxu0 0
      %2007 = vmatprep.subr.bf16.mxu0 0
      %2008 = vmatpush1.bf16.xpose.msra.mxu0 0
      %2009 = vmatprep.subr.bf16.mxu0 0
      %2010 = vmatpush1.bf16.xpose.msra.mxu0 0
      %2011 = vmatprep.subr.bf16.mxu0 0
      %2012 = vmatpush1.bf16.xpose.msra.mxu0 0
      %2013 = vmatprep.subr.bf16.mxu0 0
      %2014 = vmatpush1.bf16.xpose.msra.mxu0 0
      %2015 = vmatprep.subr.bf16.mxu0 0
      %2016 = vmatpush1.bf16.xpose.msra.mxu0 0
      %2017 = vmatprep.subr.bf16.mxu0 0
      %2018 = vmatpush1.bf16.xpose.msra.mxu0 0
      %2019 = vmatprep.mubr.bf16.mxu0 0
      %2020 = vmatmul.mubr.bf16.gmra.mrb[0].mxu0 %v1982
      %v2021 = vpop.f32.mrb[0].mxu0
      %v2022 = vadd.f32 %v1822, %v2021
      %v2023 = vpop.f32.mrb[0].mxu0
      %v2024 = vpop.f32.mrb[0].mxu0
      %v2025 = vadd.f32 %v1823, %v2024
      %v2026 = vpop.f32.mrb[0].mxu0
      %2027 = vdwg.mxu0
      %v2028 = vadd.f32 %v1869, %v651
      %v2029 = vadd.f32 %v1872, %v652
      %v2030 = vadd.f32 %v1920, %v653
      %v2031 = vadd.f32 %v1923, %v654
      %v2032 = vadd.f32 %v1971, %v655
      %v2033 = vadd.f32 %v1974, %v656
      %v2034 = vadd.f32 %v2022, %v657
      %v2035 = vadd.f32 %v2025, %v658
      %v2036 = vsel %vm874, %v2028, -inf
      %2037 = vmax.xlane.f32.xlu0 %v2036
      %v2038 = vpop.xlane.xlu0 %2037
      %v2039 = vsel %vm874, %v2029, -inf
      %2040 = vmax.xlane.f32.xlu0 %v2039
      %v2041 = vpop.xlane.xlu0 %2040
      %v2042 = vsel %vm874, %v2030, -inf
      %2043 = vmax.xlane.f32.xlu0 %v2042
      %v2044 = vpop.xlane.xlu0 %2043
      %v2045 = vsel %vm874, %v2031, -inf
      %2046 = vmax.xlane.f32.xlu0 %v2045
      %v2047 = vpop.xlane.xlu0 %2046
      %v2048 = vsel %vm874, %v2032, -inf
      %2049 = vmax.xlane.f32.xlu0 %v2048
      %v2050 = vpop.xlane.xlu0 %2049
      %v2051 = vsel %vm874, %v2033, -inf
      %2052 = vmax.xlane.f32.xlu0 %v2051
      %v2053 = vpop.xlane.xlu0 %2052
      %v2054 = vsel %vm874, %v2034, -inf
      %2055 = vmax.xlane.f32.xlu0 %v2054
      %v2056 = vpop.xlane.xlu0 %2055
      %v2057 = vsel %vm874, %v2035, -inf
      %2058 = vmax.xlane.f32.xlu0 %v2057
      %v2059 = vpop.xlane.xlu0 %2058
      %v2060 = vsub.f32 %v2028, %v2038
      %v2061 = vsub.f32 %v2029, %v2041
      %v2062 = vsub.f32 %v2030, %v2044
      %v2063 = vsub.f32 %v2031, %v2047
      %v2064 = vsub.f32 %v2032, %v2050
      %v2065 = vsub.f32 %v2033, %v2053
      %v2066 = vsub.f32 %v2034, %v2056
      %v2067 = vsub.f32 %v2035, %v2059
      %v2068 = vmul.f32 %v2060, 1.442695
      %v2069 = vpow.pop %v2068
      %v2070 = vmul.f32 %v2061, 1.442695
      %v2071 = vpow.pop %v2070
      %v2072 = vmul.f32 %v2062, 1.442695
      %v2073 = vpow.pop %v2072
      %v2074 = vmul.f32 %v2063, 1.442695
      %v2075 = vpow.pop %v2074
      %v2076 = vmul.f32 %v2064, 1.442695
      %v2077 = vpow.pop %v2076
      %v2078 = vmul.f32 %v2065, 1.442695
      %v2079 = vpow.pop %v2078
      %v2080 = vmul.f32 %v2066, 1.442695
      %v2081 = vpow.pop %v2080
      %v2082 = vmul.f32 %v2067, 1.442695
      %v2083 = vpow.pop %v2082
      %v2084 = vsel %vm874, %v2069, 0.0
      %2085 = vadd.xlane.f32.xlu0 %v2084
      %v2086 = vpop.xlane.xlu0 %2085
      %v2087 = vsel %vm874, %v2071, 0.0
      %2088 = vadd.xlane.f32.xlu0 %v2087
      %v2089 = vpop.xlane.xlu0 %2088
      %v2090 = vsel %vm874, %v2073, 0.0
      %2091 = vadd.xlane.f32.xlu0 %v2090
      %v2092 = vpop.xlane.xlu0 %2091
      %v2093 = vsel %vm874, %v2075, 0.0
      %2094 = vadd.xlane.f32.xlu0 %v2093
      %v2095 = vpop.xlane.xlu0 %2094
      %v2096 = vsel %vm874, %v2077, 0.0
      %2097 = vadd.xlane.f32.xlu0 %v2096
      %v2098 = vpop.xlane.xlu0 %2097
      %v2099 = vsel %vm874, %v2079, 0.0
      %2100 = vadd.xlane.f32.xlu0 %v2099
      %v2101 = vpop.xlane.xlu0 %2100
      %v2102 = vsel %vm874, %v2081, 0.0
      %2103 = vadd.xlane.f32.xlu0 %v2102
      %v2104 = vpop.xlane.xlu0 %2103
      %v2105 = vsel %vm874, %v2083, 0.0
      %2106 = vadd.xlane.f32.xlu0 %v2105
      %v2107 = vpop.xlane.xlu0 %2106
      %v2108 = vrcp.pop %v2086
      %v2109 = vrcp.pop %v2089
      %v2110 = vrcp.pop %v2092
      %v2111 = vrcp.pop %v2095
      %v2112 = vrcp.pop %v2098
      %v2113 = vrcp.pop %v2101
      %v2114 = vrcp.pop %v2104
      %v2115 = vrcp.pop %v2107
      %v2116 = vmul.f32 %v2069, %v2108
      %v2117 = vmul.f32 %v2071, %v2109
      %v2118 = vmul.f32 %v2073, %v2110
      %v2119 = vmul.f32 %v2075, %v2111
      %v2120 = vmul.f32 %v2077, %v2112
      %v2121 = vmul.f32 %v2079, %v2113
      %v2122 = vmul.f32 %v2081, %v2114
      %v2123 = vmul.f32 %v2083, %v2115
      %v2124 = vpack.c.bf16 %v2117, %v2116
      %v2125 = vpack.c.bf16 %v2119, %v2118
      %v2126 = vpack.c.bf16 %v2121, %v2120
      %v2127 = vpack.c.bf16 %v2123, %v2122
      %2128 = vrot.lane.b32.xlu0 %v659, 48
      %v2129 = vpop.permute.xlu0 %2128
      %v2132 = vsel %vm874, %v2124, 0
      %2134 = vmatprep.subr.bf16.mxu0 0
      %2135 = vmatpush1.bf16.msra.mxu0 %v2129
      %2136 = vmatprep.subr.bf16.mxu0 0
      %2137 = vmatpush1.bf16.msra.mxu0 0
      %2138 = vmatprep.subr.bf16.mxu0 0
      %2139 = vmatpush1.bf16.msra.mxu0 0
      %2140 = vmatprep.subr.bf16.mxu0 0
      %2141 = vmatpush1.bf16.msra.mxu0 0
      %2142 = vmatprep.subr.bf16.mxu0 0
      %2143 = vmatpush1.bf16.msra.mxu0 0
      %2144 = vmatprep.subr.bf16.mxu0 0
      %2145 = vmatpush1.bf16.msra.mxu0 0
      %2146 = vmatprep.subr.bf16.mxu0 0
      %2147 = vmatpush1.bf16.msra.mxu0 0
      %2148 = vmatprep.subr.bf16.mxu0 0
      %2149 = vmatpush1.bf16.msra.mxu0 0
      %2150 = vmatprep.subr.bf16.mxu0 0
      %2151 = vmatpush1.bf16.msra.mxu0 0
      %2152 = vmatprep.subr.bf16.mxu0 0
      %2153 = vmatpush1.bf16.msra.mxu0 0
      %2154 = vmatprep.subr.bf16.mxu0 0
      %2155 = vmatpush1.bf16.msra.mxu0 0
      %2156 = vmatprep.subr.bf16.mxu0 0
      %2157 = vmatpush1.bf16.msra.mxu0 0
      %2158 = vmatprep.subr.bf16.mxu0 0
      %2159 = vmatpush1.bf16.msra.mxu0 0
      %2160 = vmatprep.subr.bf16.mxu0 0
      %2161 = vmatpush1.bf16.msra.mxu0 0
      %2162 = vmatprep.subr.bf16.mxu0 0
      %2163 = vmatpush1.bf16.msra.mxu0 0
      %2164 = vmatprep.subr.bf16.mxu0 0
      %2165 = vmatpush1.bf16.msra.mxu0 0
      %2166 = vmatprep.mubr.bf16.mxu0 0
      %2167 = vmatmul.mubr.bf16.gmra.mrb[0].mxu0 %v2132
      %v2168 = vpop.f32.mrb[0].mxu0
      %v2169 = vadd.f32 0.0, %v2168
      %v2170 = vpop.f32.mrb[0].mxu0
      %v2171 = vpop.f32.mrb[0].mxu0
      %v2172 = vadd.f32 0.0, %v2171
      %v2173 = vpop.f32.mrb[0].mxu0
      %2174 = vdwg.mxu0
      %2175 = vrot.lane.b32.xlu0 %v660, 48
      %v2176 = vpop.permute.xlu0 %2175
      %v2179 = vsel %vm874, %v2125, 0
      %2181 = vmatprep.subr.bf16.mxu0 0
      %2182 = vmatpush1.bf16.msra.mxu0 %v2176
      %2183 = vmatprep.subr.bf16.mxu0 0
      %2184 = vmatpush1.bf16.msra.mxu0 0
      %2185 = vmatprep.subr.bf16.mxu0 0
      %2186 = vmatpush1.bf16.msra.mxu0 0
      %2187 = vmatprep.subr.bf16.mxu0 0
      %2188 = vmatpush1.bf16.msra.mxu0 0
      %2189 = vmatprep.subr.bf16.mxu0 0
      %2190 = vmatpush1.bf16.msra.mxu0 0
      %2191 = vmatprep.subr.bf16.mxu0 0
      %2192 = vmatpush1.bf16.msra.mxu0 0
      %2193 = vmatprep.subr.bf16.mxu0 0
      %2194 = vmatpush1.bf16.msra.mxu0 0
      %2195 = vmatprep.subr.bf16.mxu0 0
      %2196 = vmatpush1.bf16.msra.mxu0 0
      %2197 = vmatprep.subr.bf16.mxu0 0
      %2198 = vmatpush1.bf16.msra.mxu0 0
      %2199 = vmatprep.subr.bf16.mxu0 0
      %2200 = vmatpush1.bf16.msra.mxu0 0
      %2201 = vmatprep.subr.bf16.mxu0 0
      %2202 = vmatpush1.bf16.msra.mxu0 0
      %2203 = vmatprep.subr.bf16.mxu0 0
      %2204 = vmatpush1.bf16.msra.mxu0 0
      %2205 = vmatprep.subr.bf16.mxu0 0
      %2206 = vmatpush1.bf16.msra.mxu0 0
      %2207 = vmatprep.subr.bf16.mxu0 0
      %2208 = vmatpush1.bf16.msra.mxu0 0
      %2209 = vmatprep.subr.bf16.mxu0 0
      %2210 = vmatpush1.bf16.msra.mxu0 0
      %2211 = vmatprep.subr.bf16.mxu0 0
      %2212 = vmatpush1.bf16.msra.mxu0 0
      %2213 = vmatprep.mubr.bf16.mxu0 0
      %2214 = vmatmul.mubr.bf16.gmra.mrb[0].mxu0 %v2179
      %v2215 = vpop.f32.mrb[0].mxu0
      %v2216 = vadd.f32 0.0, %v2215
      %v2217 = vpop.f32.mrb[0].mxu0
      %v2218 = vpop.f32.mrb[0].mxu0
      %v2219 = vadd.f32 0.0, %v2218
      %v2220 = vpop.f32.mrb[0].mxu0
      %2221 = vdwg.mxu0
      %2222 = vrot.lane.b32.xlu0 %v661, 48
      %v2223 = vpop.permute.xlu0 %2222
      %v2226 = vsel %vm874, %v2126, 0
      %2228 = vmatprep.subr.bf16.mxu0 0
      %2229 = vmatpush1.bf16.msra.mxu0 %v2223
      %2230 = vmatprep.subr.bf16.mxu0 0
      %2231 = vmatpush1.bf16.msra.mxu0 0
      %2232 = vmatprep.subr.bf16.mxu0 0
      %2233 = vmatpush1.bf16.msra.mxu0 0
      %2234 = vmatprep.subr.bf16.mxu0 0
      %2235 = vmatpush1.bf16.msra.mxu0 0
      %2236 = vmatprep.subr.bf16.mxu0 0
      %2237 = vmatpush1.bf16.msra.mxu0 0
      %2238 = vmatprep.subr.bf16.mxu0 0
      %2239 = vmatpush1.bf16.msra.mxu0 0
      %2240 = vmatprep.subr.bf16.mxu0 0
      %2241 = vmatpush1.bf16.msra.mxu0 0
      %2242 = vmatprep.subr.bf16.mxu0 0
      %2243 = vmatpush1.bf16.msra.mxu0 0
      %2244 = vmatprep.subr.bf16.mxu0 0
      %2245 = vmatpush1.bf16.msra.mxu0 0
      %2246 = vmatprep.subr.bf16.mxu0 0
      %2247 = vmatpush1.bf16.msra.mxu0 0
      %2248 = vmatprep.subr.bf16.mxu0 0
      %2249 = vmatpush1.bf16.msra.mxu0 0
      %2250 = vmatprep.subr.bf16.mxu0 0
      %2251 = vmatpush1.bf16.msra.mxu0 0
      %2252 = vmatprep.subr.bf16.mxu0 0
      %2253 = vmatpush1.bf16.msra.mxu0 0
      %2254 = vmatprep.subr.bf16.mxu0 0
      %2255 = vmatpush1.bf16.msra.mxu0 0
      %2256 = vmatprep.subr.bf16.mxu0 0
      %2257 = vmatpush1.bf16.msra.mxu0 0
      %2258 = vmatprep.subr.bf16.mxu0 0
      %2259 = vmatpush1.bf16.msra.mxu0 0
      %2260 = vmatprep.mubr.bf16.mxu0 0
      %2261 = vmatmul.mubr.bf16.gmra.mrb[0].mxu0 %v2226
      %v2262 = vpop.f32.mrb[0].mxu0
      %v2263 = vadd.f32 0.0, %v2262
      %v2264 = vpop.f32.mrb[0].mxu0
      %v2265 = vpop.f32.mrb[0].mxu0
      %v2266 = vadd.f32 0.0, %v2265
      %v2267 = vpop.f32.mrb[0].mxu0
      %2268 = vdwg.mxu0
      %2269 = vrot.lane.b32.xlu0 %v662, 48
      %v2270 = vpop.permute.xlu0 %2269
      %v2273 = vsel %vm874, %v2127, 0
      %2275 = vmatprep.subr.bf16.mxu0 0
      %2276 = vmatpush1.bf16.msra.mxu0 %v2270
      %2277 = vmatprep.subr.bf16.mxu0 0
      %2278 = vmatpush1.bf16.msra.mxu0 0
      %2279 = vmatprep.subr.bf16.mxu0 0
      %2280 = vmatpush1.bf16.msra.mxu0 0
      %2281 = vmatprep.subr.bf16.mxu0 0
      %2282 = vmatpush1.bf16.msra.mxu0 0
      %2283 = vmatprep.subr.bf16.mxu0 0
      %2284 = vmatpush1.bf16.msra.mxu0 0
      %2285 = vmatprep.subr.bf16.mxu0 0
      %2286 = vmatpush1.bf16.msra.mxu0 0
      %2287 = vmatprep.subr.bf16.mxu0 0
      %2288 = vmatpush1.bf16.msra.mxu0 0
      %2289 = vmatprep.subr.bf16.mxu0 0
      %2290 = vmatpush1.bf16.msra.mxu0 0
      %2291 = vmatprep.subr.bf16.mxu0 0
      %2292 = vmatpush1.bf16.msra.mxu0 0
      %2293 = vmatprep.subr.bf16.mxu0 0
      %2294 = vmatpush1.bf16.msra.mxu0 0
      %2295 = vmatprep.subr.bf16.mxu0 0
      %2296 = vmatpush1.bf16.msra.mxu0 0
      %2297 = vmatprep.subr.bf16.mxu0 0
      %2298 = vmatpush1.bf16.msra.mxu0 0
      %2299 = vmatprep.subr.bf16.mxu0 0
      %2300 = vmatpush1.bf16.msra.mxu0 0
      %2301 = vmatprep.subr.bf16.mxu0 0
      %2302 = vmatpush1.bf16.msra.mxu0 0
      %2303 = vmatprep.subr.bf16.mxu0 0
      %2304 = vmatpush1.bf16.msra.mxu0 0
      %2305 = vmatprep.subr.bf16.mxu0 0
      %2306 = vmatpush1.bf16.msra.mxu0 0
      %2307 = vmatprep.mubr.bf16.mxu0 0
      %2308 = vmatmul.mubr.bf16.gmra.mrb[0].mxu0 %v2273
      %v2309 = vpop.f32.mrb[0].mxu0
      %v2310 = vadd.f32 0.0, %v2309
      %v2311 = vpop.f32.mrb[0].mxu0
      %v2312 = vpop.f32.mrb[0].mxu0
      %v2313 = vadd.f32 0.0, %v2312
      %v2314 = vpop.f32.mrb[0].mxu0
      %2315 = vdwg.mxu0
      %v2316 = vpack.c.bf16 %v2172, %v2169
      %v2317 = vpack.c.bf16 %v2219, %v2216
      %v2318 = vpack.c.bf16 %v2266, %v2263
      %v2319 = vpack.c.bf16 %v2313, %v2310
      %v2320 = vld [vmem:[%s5 + $0x8] sm:$0xf]
      %v2322 = vsel %vm668, %v2316, 0
      %v2325 = vsel %vm668, %v2317, 0
      %v2328 = vsel %vm668, %v2318, 0
      %v2331 = vsel %vm668, %v2319, 0
      %v2334 = vsel %vm1672, %v2320, 0
      %2336 = vmatprep.subr.bf16.mxu0 0
      %2337 = vmatpush1.bf16.msra.mxu0 %v2334
      %2338 = vmatprep.subr.bf16.mxu0 0
      %2339 = vmatpush1.bf16.msra.mxu0 0
      %2340 = vmatprep.subr.bf16.mxu0 0
      %2341 = vmatpush1.bf16.msra.mxu0 0
      %2342 = vmatprep.subr.bf16.mxu0 0
      %2343 = vmatpush1.bf16.msra.mxu0 0
      %2344 = vmatprep.subr.bf16.mxu0 0
      %2345 = vmatpush1.bf16.msra.mxu0 0
      %2346 = vmatprep.subr.bf16.mxu0 0
      %2347 = vmatpush1.bf16.msra.mxu0 0
      %2348 = vmatprep.subr.bf16.mxu0 0
      %2349 = vmatpush1.bf16.msra.mxu0 0
      %2350 = vmatprep.subr.bf16.mxu0 0
      %2351 = vmatpush1.bf16.msra.mxu0 0
      %2352 = vmatprep.subr.bf16.mxu0 0
      %2353 = vmatpush1.bf16.msra.mxu0 0
      %2354 = vmatprep.subr.bf16.mxu0 0
      %2355 = vmatpush1.bf16.msra.mxu0 0
      %2356 = vmatprep.subr.bf16.mxu0 0
      %2357 = vmatpush1.bf16.msra.mxu0 0
      %2358 = vmatprep.subr.bf16.mxu0 0
      %2359 = vmatpush1.bf16.msra.mxu0 0
      %2360 = vmatprep.subr.bf16.mxu0 0
      %2361 = vmatpush1.bf16.msra.mxu0 0
      %2362 = vmatprep.subr.bf16.mxu0 0
      %2363 = vmatpush1.bf16.msra.mxu0 0
      %2364 = vmatprep.subr.bf16.mxu0 0
      %2365 = vmatpush1.bf16.msra.mxu0 0
      %2366 = vmatprep.subr.bf16.mxu0 0
      %2367 = vmatpush1.bf16.msra.mxu0 0
      %2368 = vmatprep.mubr.bf16.mxu0 0
      %2369 = vmatmul.mubr.bf16.gmra.mrb[0].mxu0 %v2322
      %v2370 = vpop.f32.mrb[0].mxu0
      %v2371 = vadd.f32 0.0, %v2370
      %v2372 = vpop.f32.mrb[0].mxu0
      %v2373 = vpop.f32.mrb[0].mxu0
      %v2374 = vadd.f32 0.0, %v2373
      %v2375 = vpop.f32.mrb[0].mxu0
      %2376 = vmatprep.mubr.bf16.mxu0 0
      %2377 = vmatmul.mubr.bf16.gmra.mrb[0].mxu0 %v2325
      %v2378 = vpop.f32.mrb[0].mxu0
      %v2379 = vadd.f32 0.0, %v2378
      %v2380 = vpop.f32.mrb[0].mxu0
      %v2381 = vpop.f32.mrb[0].mxu0
      %v2382 = vadd.f32 0.0, %v2381
      %v2383 = vpop.f32.mrb[0].mxu0
      %2384 = vmatprep.mubr.bf16.mxu0 0
      %2385 = vmatmul.mubr.bf16.gmra.mrb[0].mxu0 %v2328
      %v2386 = vpop.f32.mrb[0].mxu0
      %v2387 = vadd.f32 0.0, %v2386
      %v2388 = vpop.f32.mrb[0].mxu0
      %v2389 = vpop.f32.mrb[0].mxu0
      %v2390 = vadd.f32 0.0, %v2389
      %v2391 = vpop.f32.mrb[0].mxu0
      %2392 = vmatprep.mubr.bf16.mxu0 0
      %2393 = vmatmul.mubr.bf16.gmra.mrb[0].mxu0 %v2331
      %v2394 = vpop.f32.mrb[0].mxu0
      %v2395 = vadd.f32 0.0, %v2394
      %v2396 = vpop.f32.mrb[0].mxu0
      %v2397 = vpop.f32.mrb[0].mxu0
      %v2398 = vadd.f32 0.0, %v2397
      %v2399 = vpop.f32.mrb[0].mxu0
      %2400 = vdwg.mxu0
      %v2401 = vadd.f32 %v1791, %v2371
      %v2402 = vadd.f32 %v1794, %v2374
      %v2403 = vadd.f32 %v1799, %v2379
      %v2404 = vadd.f32 %v1802, %v2382
      %v2405 = vadd.f32 %v1807, %v2387
      %v2406 = vadd.f32 %v1810, %v2390
      %v2407 = vadd.f32 %v1815, %v2395
      %v2408 = vadd.f32 %v1818, %v2398
      %s2409 = scalar_lea.vmem %s2, 48
      %v2410 = vld [vmem:[%s2409] sm:$0xff]
      %v2411 = vld [vmem:[%s2409 + $0x8] sm:$0xff]
      %2412 = vrot.lane.b32.xlu0 %v659, 104
      %v2413 = vpop.permute.xlu0 %2412
      %2414 = vrot.lane.b32.xlu0 %v659, 72
      %v2415 = vpop.permute.xlu0 %2414
      %v2417 = vsel %vm668, %v2413, 0
      %v2420 = vsel %vm668, %v2415, 0
      %2422 = vmatprep.subr.bf16.mxu0 0
      %2423 = vmatpush1.bf16.xpose.msra.mxu0 %v2420
      %2424 = vmatprep.subr.bf16.mxu0 0
      %2425 = vmatpush1.bf16.xpose.msra.mxu0 0
      %2426 = vmatprep.subr.bf16.mxu0 0
      %2427 = vmatpush1.bf16.xpose.msra.mxu0 0
      %2428 = vmatprep.subr.bf16.mxu0 0
      %2429 = vmatpush1.bf16.xpose.msra.mxu0 0
      %2430 = vmatprep.subr.bf16.mxu0 0
      %2431 = vmatpush1.bf16.xpose.msra.mxu0 0
      %2432 = vmatprep.subr.bf16.mxu0 0
      %2433 = vmatpush1.bf16.xpose.msra.mxu0 0
      %2434 = vmatprep.subr.bf16.mxu0 0
      %2435 = vmatpush1.bf16.xpose.msra.mxu0 0
      %2436 = vmatprep.subr.bf16.mxu0 0
      %2437 = vmatpush1.bf16.xpose.msra.mxu0 0
      %2438 = vmatprep.subr.bf16.mxu0 0
      %2439 = vmatpush1.bf16.xpose.msra.mxu0 0
      %2440 = vmatprep.subr.bf16.mxu0 0
      %2441 = vmatpush1.bf16.xpose.msra.mxu0 0
      %2442 = vmatprep.subr.bf16.mxu0 0
      %2443 = vmatpush1.bf16.xpose.msra.mxu0 0
      %2444 = vmatprep.subr.bf16.mxu0 0
      %2445 = vmatpush1.bf16.xpose.msra.mxu0 0
      %2446 = vmatprep.subr.bf16.mxu0 0
      %2447 = vmatpush1.bf16.xpose.msra.mxu0 0
      %2448 = vmatprep.subr.bf16.mxu0 0
      %2449 = vmatpush1.bf16.xpose.msra.mxu0 0
      %2450 = vmatprep.subr.bf16.mxu0 0
      %2451 = vmatpush1.bf16.xpose.msra.mxu0 0
      %2452 = vmatprep.subr.bf16.mxu0 0
      %2453 = vmatpush1.bf16.xpose.msra.mxu0 0
      %2454 = vmatprep.mubr.bf16.mxu0 0
      %2455 = vmatmul.mubr.bf16.gmra.mrb[0].mxu0 %v2417
      %v2456 = vpop.f32.mrb[0].mxu0
      %v2457 = vadd.f32 %v2410, %v2456
      %v2458 = vpop.f32.mrb[0].mxu0
      %v2459 = vpop.f32.mrb[0].mxu0
      %v2460 = vadd.f32 %v2411, %v2459
      %v2461 = vpop.f32.mrb[0].mxu0
      %2462 = vdwg.mxu0
      %2463 = vrot.lane.b32.xlu0 %v660, 104
      %v2464 = vpop.permute.xlu0 %2463
      %2465 = vrot.lane.b32.xlu0 %v660, 72
      %v2466 = vpop.permute.xlu0 %2465
      %v2468 = vsel %vm668, %v2464, 0
      %v2471 = vsel %vm668, %v2466, 0
      %2473 = vmatprep.subr.bf16.mxu0 0
      %2474 = vmatpush1.bf16.xpose.msra.mxu0 %v2471
      %2475 = vmatprep.subr.bf16.mxu0 0
      %2476 = vmatpush1.bf16.xpose.msra.mxu0 0
      %2477 = vmatprep.subr.bf16.mxu0 0
      %2478 = vmatpush1.bf16.xpose.msra.mxu0 0
      %2479 = vmatprep.subr.bf16.mxu0 0
      %2480 = vmatpush1.bf16.xpose.msra.mxu0 0
      %2481 = vmatprep.subr.bf16.mxu0 0
      %2482 = vmatpush1.bf16.xpose.msra.mxu0 0
      %2483 = vmatprep.subr.bf16.mxu0 0
      %2484 = vmatpush1.bf16.xpose.msra.mxu0 0
      %2485 = vmatprep.subr.bf16.mxu0 0
      %2486 = vmatpush1.bf16.xpose.msra.mxu0 0
      %2487 = vmatprep.subr.bf16.mxu0 0
      %2488 = vmatpush1.bf16.xpose.msra.mxu0 0
      %2489 = vmatprep.subr.bf16.mxu0 0
      %2490 = vmatpush1.bf16.xpose.msra.mxu0 0
      %2491 = vmatprep.subr.bf16.mxu0 0
      %2492 = vmatpush1.bf16.xpose.msra.mxu0 0
      %2493 = vmatprep.subr.bf16.mxu0 0
      %2494 = vmatpush1.bf16.xpose.msra.mxu0 0
      %2495 = vmatprep.subr.bf16.mxu0 0
      %2496 = vmatpush1.bf16.xpose.msra.mxu0 0
      %2497 = vmatprep.subr.bf16.mxu0 0
      %2498 = vmatpush1.bf16.xpose.msra.mxu0 0
      %2499 = vmatprep.subr.bf16.mxu0 0
      %2500 = vmatpush1.bf16.xpose.msra.mxu0 0
      %2501 = vmatprep.subr.bf16.mxu0 0
      %2502 = vmatpush1.bf16.xpose.msra.mxu0 0
      %2503 = vmatprep.subr.bf16.mxu0 0
      %2504 = vmatpush1.bf16.xpose.msra.mxu0 0
      %2505 = vmatprep.mubr.bf16.mxu0 0
      %2506 = vmatmul.mubr.bf16.gmra.mrb[0].mxu0 %v2468
      %v2507 = vpop.f32.mrb[0].mxu0
      %v2508 = vadd.f32 %v2410, %v2507
      %v2509 = vpop.f32.mrb[0].mxu0
      %v2510 = vpop.f32.mrb[0].mxu0
      %v2511 = vadd.f32 %v2411, %v2510
      %v2512 = vpop.f32.mrb[0].mxu0
      %2513 = vdwg.mxu0
      %2514 = vrot.lane.b32.xlu0 %v661, 104
      %v2515 = vpop.permute.xlu0 %2514
      %2516 = vrot.lane.b32.xlu0 %v661, 72
      %v2517 = vpop.permute.xlu0 %2516
      %v2519 = vsel %vm668, %v2515, 0
      %v2522 = vsel %vm668, %v2517, 0
      %2524 = vmatprep.subr.bf16.mxu0 0
      %2525 = vmatpush1.bf16.xpose.msra.mxu0 %v2522
      %2526 = vmatprep.subr.bf16.mxu0 0
      %2527 = vmatpush1.bf16.xpose.msra.mxu0 0
      %2528 = vmatprep.subr.bf16.mxu0 0
      %2529 = vmatpush1.bf16.xpose.msra.mxu0 0
      %2530 = vmatprep.subr.bf16.mxu0 0
      %2531 = vmatpush1.bf16.xpose.msra.mxu0 0
      %2532 = vmatprep.subr.bf16.mxu0 0
      %2533 = vmatpush1.bf16.xpose.msra.mxu0 0
      %2534 = vmatprep.subr.bf16.mxu0 0
      %2535 = vmatpush1.bf16.xpose.msra.mxu0 0
      %2536 = vmatprep.subr.bf16.mxu0 0
      %2537 = vmatpush1.bf16.xpose.msra.mxu0 0
      %2538 = vmatprep.subr.bf16.mxu0 0
      %2539 = vmatpush1.bf16.xpose.msra.mxu0 0
      %2540 = vmatprep.subr.bf16.mxu0 0
      %2541 = vmatpush1.bf16.xpose.msra.mxu0 0
      %2542 = vmatprep.subr.bf16.mxu0 0
      %2543 = vmatpush1.bf16.xpose.msra.mxu0 0
      %2544 = vmatprep.subr.bf16.mxu0 0
      %2545 = vmatpush1.bf16.xpose.msra.mxu0 0
      %2546 = vmatprep.subr.bf16.mxu0 0
      %2547 = vmatpush1.bf16.xpose.msra.mxu0 0
      %2548 = vmatprep.subr.bf16.mxu0 0
      %2549 = vmatpush1.bf16.xpose.msra.mxu0 0
      %2550 = vmatprep.subr.bf16.mxu0 0
      %2551 = vmatpush1.bf16.xpose.msra.mxu0 0
      %2552 = vmatprep.subr.bf16.mxu0 0
      %2553 = vmatpush1.bf16.xpose.msra.mxu0 0
      %2554 = vmatprep.subr.bf16.mxu0 0
      %2555 = vmatpush1.bf16.xpose.msra.mxu0 0
      %2556 = vmatprep.mubr.bf16.mxu0 0
      %2557 = vmatmul.mubr.bf16.gmra.mrb[0].mxu0 %v2519
      %v2558 = vpop.f32.mrb[0].mxu0
      %v2559 = vadd.f32 %v2410, %v2558
      %v2560 = vpop.f32.mrb[0].mxu0
      %v2561 = vpop.f32.mrb[0].mxu0
      %v2562 = vadd.f32 %v2411, %v2561
      %v2563 = vpop.f32.mrb[0].mxu0
      %2564 = vdwg.mxu0
      %2565 = vrot.lane.b32.xlu0 %v662, 104
      %v2566 = vpop.permute.xlu0 %2565
      %2567 = vrot.lane.b32.xlu0 %v662, 72
      %v2568 = vpop.permute.xlu0 %2567
      %v2570 = vsel %vm668, %v2566, 0
      %v2573 = vsel %vm668, %v2568, 0
      %2575 = vmatprep.subr.bf16.mxu0 0
      %2576 = vmatpush1.bf16.xpose.msra.mxu0 %v2573
      %2577 = vmatprep.subr.bf16.mxu0 0
      %2578 = vmatpush1.bf16.xpose.msra.mxu0 0
      %2579 = vmatprep.subr.bf16.mxu0 0
      %2580 = vmatpush1.bf16.xpose.msra.mxu0 0
      %2581 = vmatprep.subr.bf16.mxu0 0
      %2582 = vmatpush1.bf16.xpose.msra.mxu0 0
      %2583 = vmatprep.subr.bf16.mxu0 0
      %2584 = vmatpush1.bf16.xpose.msra.mxu0 0
      %2585 = vmatprep.subr.bf16.mxu0 0
      %2586 = vmatpush1.bf16.xpose.msra.mxu0 0
      %2587 = vmatprep.subr.bf16.mxu0 0
      %2588 = vmatpush1.bf16.xpose.msra.mxu0 0
      %2589 = vmatprep.subr.bf16.mxu0 0
      %2590 = vmatpush1.bf16.xpose.msra.mxu0 0
      %2591 = vmatprep.subr.bf16.mxu0 0
      %2592 = vmatpush1.bf16.xpose.msra.mxu0 0
      %2593 = vmatprep.subr.bf16.mxu0 0
      %2594 = vmatpush1.bf16.xpose.msra.mxu0 0
      %2595 = vmatprep.subr.bf16.mxu0 0
      %2596 = vmatpush1.bf16.xpose.msra.mxu0 0
      %2597 = vmatprep.subr.bf16.mxu0 0
      %2598 = vmatpush1.bf16.xpose.msra.mxu0 0
      %2599 = vmatprep.subr.bf16.mxu0 0
      %2600 = vmatpush1.bf16.xpose.msra.mxu0 0
      %2601 = vmatprep.subr.bf16.mxu0 0
      %2602 = vmatpush1.bf16.xpose.msra.mxu0 0
      %2603 = vmatprep.subr.bf16.mxu0 0
      %2604 = vmatpush1.bf16.xpose.msra.mxu0 0
      %2605 = vmatprep.subr.bf16.mxu0 0
      %2606 = vmatpush1.bf16.xpose.msra.mxu0 0
      %2607 = vmatprep.mubr.bf16.mxu0 0
      %2608 = vmatmul.mubr.bf16.gmra.mrb[0].mxu0 %v2570
      %v2609 = vpop.f32.mrb[0].mxu0
      %v2610 = vadd.f32 %v2410, %v2609
      %v2611 = vpop.f32.mrb[0].mxu0
      %v2612 = vpop.f32.mrb[0].mxu0
      %v2613 = vadd.f32 %v2411, %v2612
      %v2614 = vpop.f32.mrb[0].mxu0
      %2615 = vdwg.mxu0
      %v2616 = vadd.f32 %v2457, %v651
      %v2617 = vadd.f32 %v2460, %v652
      %v2618 = vadd.f32 %v2508, %v653
      %v2619 = vadd.f32 %v2511, %v654
      %v2620 = vadd.f32 %v2559, %v655
      %v2621 = vadd.f32 %v2562, %v656
      %v2622 = vadd.f32 %v2610, %v657
      %v2623 = vadd.f32 %v2613, %v658
      %v2624 = vsel %vm874, %v2616, -inf
      %2625 = vmax.xlane.f32.xlu0 %v2624
      %v2626 = vpop.xlane.xlu0 %2625
      %v2627 = vsel %vm874, %v2617, -inf
      %2628 = vmax.xlane.f32.xlu0 %v2627
      %v2629 = vpop.xlane.xlu0 %2628
      %v2630 = vsel %vm874, %v2618, -inf
      %2631 = vmax.xlane.f32.xlu0 %v2630
      %v2632 = vpop.xlane.xlu0 %2631
      %v2633 = vsel %vm874, %v2619, -inf
      %2634 = vmax.xlane.f32.xlu0 %v2633
      %v2635 = vpop.xlane.xlu0 %2634
      %v2636 = vsel %vm874, %v2620, -inf
      %2637 = vmax.xlane.f32.xlu0 %v2636
      %v2638 = vpop.xlane.xlu0 %2637
      %v2639 = vsel %vm874, %v2621, -inf
      %2640 = vmax.xlane.f32.xlu0 %v2639
      %v2641 = vpop.xlane.xlu0 %2640
      %v2642 = vsel %vm874, %v2622, -inf
      %2643 = vmax.xlane.f32.xlu0 %v2642
      %v2644 = vpop.xlane.xlu0 %2643
      %v2645 = vsel %vm874, %v2623, -inf
      %2646 = vmax.xlane.f32.xlu0 %v2645
      %v2647 = vpop.xlane.xlu0 %2646
      %v2648 = vsub.f32 %v2616, %v2626
      %v2649 = vsub.f32 %v2617, %v2629
      %v2650 = vsub.f32 %v2618, %v2632
      %v2651 = vsub.f32 %v2619, %v2635
      %v2652 = vsub.f32 %v2620, %v2638
      %v2653 = vsub.f32 %v2621, %v2641
      %v2654 = vsub.f32 %v2622, %v2644
      %v2655 = vsub.f32 %v2623, %v2647
      %v2656 = vmul.f32 %v2648, 1.442695
      %v2657 = vpow.pop %v2656
      %v2658 = vmul.f32 %v2649, 1.442695
      %v2659 = vpow.pop %v2658
      %v2660 = vmul.f32 %v2650, 1.442695
      %v2661 = vpow.pop %v2660
      %v2662 = vmul.f32 %v2651, 1.442695
      %v2663 = vpow.pop %v2662
      %v2664 = vmul.f32 %v2652, 1.442695
      %v2665 = vpow.pop %v2664
      %v2666 = vmul.f32 %v2653, 1.442695
      %v2667 = vpow.pop %v2666
      %v2668 = vmul.f32 %v2654, 1.442695
      %v2669 = vpow.pop %v2668
      %v2670 = vmul.f32 %v2655, 1.442695
      %v2671 = vpow.pop %v2670
      %v2672 = vsel %vm874, %v2657, 0.0
      %2673 = vadd.xlane.f32.xlu0 %v2672
      %v2674 = vpop.xlane.xlu0 %2673
      %v2675 = vsel %vm874, %v2659, 0.0
      %2676 = vadd.xlane.f32.xlu0 %v2675
      %v2677 = vpop.xlane.xlu0 %2676
      %v2678 = vsel %vm874, %v2661, 0.0
      %2679 = vadd.xlane.f32.xlu0 %v2678
      %v2680 = vpop.xlane.xlu0 %2679
      %v2681 = vsel %vm874, %v2663, 0.0
      %2682 = vadd.xlane.f32.xlu0 %v2681
      %v2683 = vpop.xlane.xlu0 %2682
      %v2684 = vsel %vm874, %v2665, 0.0
      %2685 = vadd.xlane.f32.xlu0 %v2684
      %v2686 = vpop.xlane.xlu0 %2685
      %v2687 = vsel %vm874, %v2667, 0.0
      %2688 = vadd.xlane.f32.xlu0 %v2687
      %v2689 = vpop.xlane.xlu0 %2688
      %v2690 = vsel %vm874, %v2669, 0.0
      %2691 = vadd.xlane.f32.xlu0 %v2690
      %v2692 = vpop.xlane.xlu0 %2691
      %v2693 = vsel %vm874, %v2671, 0.0
      %2694 = vadd.xlane.f32.xlu0 %v2693
      %v2695 = vpop.xlane.xlu0 %2694
      %v2696 = vrcp.pop %v2674
      %v2697 = vrcp.pop %v2677
      %v2698 = vrcp.pop %v2680
      %v2699 = vrcp.pop %v2683
      %v2700 = vrcp.pop %v2686
      %v2701 = vrcp.pop %v2689
      %v2702 = vrcp.pop %v2692
      %v2703 = vrcp.pop %v2695
      %v2704 = vmul.f32 %v2657, %v2696
      %v2705 = vmul.f32 %v2659, %v2697
      %v2706 = vmul.f32 %v2661, %v2698
      %v2707 = vmul.f32 %v2663, %v2699
      %v2708 = vmul.f32 %v2665, %v2700
      %v2709 = vmul.f32 %v2667, %v2701
      %v2710 = vmul.f32 %v2669, %v2702
      %v2711 = vmul.f32 %v2671, %v2703
      %v2712 = vpack.c.bf16 %v2705, %v2704
      %v2713 = vpack.c.bf16 %v2707, %v2706
      %v2714 = vpack.c.bf16 %v2709, %v2708
      %v2715 = vpack.c.bf16 %v2711, %v2710
      %2716 = vrot.lane.b32.xlu0 %v659, 40
      %v2717 = vpop.permute.xlu0 %2716
      %v2720 = vsel %vm874, %v2712, 0
      %2722 = vmatprep.subr.bf16.mxu0 0
      %2723 = vmatpush1.bf16.msra.mxu0 %v2717
      %2724 = vmatprep.subr.bf16.mxu0 0
      %2725 = vmatpush1.bf16.msra.mxu0 0
      %2726 = vmatprep.subr.bf16.mxu0 0
      %2727 = vmatpush1.bf16.msra.mxu0 0
      %2728 = vmatprep.subr.bf16.mxu0 0
      %2729 = vmatpush1.bf16.msra.mxu0 0
      %2730 = vmatprep.subr.bf16.mxu0 0
      %2731 = vmatpush1.bf16.msra.mxu0 0
      %2732 = vmatprep.subr.bf16.mxu0 0
      %2733 = vmatpush1.bf16.msra.mxu0 0
      %2734 = vmatprep.subr.bf16.mxu0 0
      %2735 = vmatpush1.bf16.msra.mxu0 0
      %2736 = vmatprep.subr.bf16.mxu0 0
      %2737 = vmatpush1.bf16.msra.mxu0 0
      %2738 = vmatprep.subr.bf16.mxu0 0
      %2739 = vmatpush1.bf16.msra.mxu0 0
      %2740 = vmatprep.subr.bf16.mxu0 0
      %2741 = vmatpush1.bf16.msra.mxu0 0
      %2742 = vmatprep.subr.bf16.mxu0 0
      %2743 = vmatpush1.bf16.msra.mxu0 0
      %2744 = vmatprep.subr.bf16.mxu0 0
      %2745 = vmatpush1.bf16.msra.mxu0 0
      %2746 = vmatprep.subr.bf16.mxu0 0
      %2747 = vmatpush1.bf16.msra.mxu0 0
      %2748 = vmatprep.subr.bf16.mxu0 0
      %2749 = vmatpush1.bf16.msra.mxu0 0
      %2750 = vmatprep.subr.bf16.mxu0 0
      %2751 = vmatpush1.bf16.msra.mxu0 0
      %2752 = vmatprep.subr.bf16.mxu0 0
      %2753 = vmatpush1.bf16.msra.mxu0 0
      %2754 = vmatprep.mubr.bf16.mxu0 0
      %2755 = vmatmul.mubr.bf16.gmra.mrb[0].mxu0 %v2720
      %v2756 = vpop.f32.mrb[0].mxu0
      %v2757 = vadd.f32 0.0, %v2756
      %v2758 = vpop.f32.mrb[0].mxu0
      %v2759 = vpop.f32.mrb[0].mxu0
      %v2760 = vadd.f32 0.0, %v2759
      %v2761 = vpop.f32.mrb[0].mxu0
      %2762 = vdwg.mxu0
      %2763 = vrot.lane.b32.xlu0 %v660, 40
      %v2764 = vpop.permute.xlu0 %2763
      %v2767 = vsel %vm874, %v2713, 0
      %2769 = vmatprep.subr.bf16.mxu0 0
      %2770 = vmatpush1.bf16.msra.mxu0 %v2764
      %2771 = vmatprep.subr.bf16.mxu0 0
      %2772 = vmatpush1.bf16.msra.mxu0 0
      %2773 = vmatprep.subr.bf16.mxu0 0
      %2774 = vmatpush1.bf16.msra.mxu0 0
      %2775 = vmatprep.subr.bf16.mxu0 0
      %2776 = vmatpush1.bf16.msra.mxu0 0
      %2777 = vmatprep.subr.bf16.mxu0 0
      %2778 = vmatpush1.bf16.msra.mxu0 0
      %2779 = vmatprep.subr.bf16.mxu0 0
      %2780 = vmatpush1.bf16.msra.mxu0 0
      %2781 = vmatprep.subr.bf16.mxu0 0
      %2782 = vmatpush1.bf16.msra.mxu0 0
      %2783 = vmatprep.subr.bf16.mxu0 0
      %2784 = vmatpush1.bf16.msra.mxu0 0
      %2785 = vmatprep.subr.bf16.mxu0 0
      %2786 = vmatpush1.bf16.msra.mxu0 0
      %2787 = vmatprep.subr.bf16.mxu0 0
      %2788 = vmatpush1.bf16.msra.mxu0 0
      %2789 = vmatprep.subr.bf16.mxu0 0
      %2790 = vmatpush1.bf16.msra.mxu0 0
      %2791 = vmatprep.subr.bf16.mxu0 0
      %2792 = vmatpush1.bf16.msra.mxu0 0
      %2793 = vmatprep.subr.bf16.mxu0 0
      %2794 = vmatpush1.bf16.msra.mxu0 0
      %2795 = vmatprep.subr.bf16.mxu0 0
      %2796 = vmatpush1.bf16.msra.mxu0 0
      %2797 = vmatprep.subr.bf16.mxu0 0
      %2798 = vmatpush1.bf16.msra.mxu0 0
      %2799 = vmatprep.subr.bf16.mxu0 0
      %2800 = vmatpush1.bf16.msra.mxu0 0
      %2801 = vmatprep.mubr.bf16.mxu0 0
      %2802 = vmatmul.mubr.bf16.gmra.mrb[0].mxu0 %v2767
      %v2803 = vpop.f32.mrb[0].mxu0
      %v2804 = vadd.f32 0.0, %v2803
      %v2805 = vpop.f32.mrb[0].mxu0
      %v2806 = vpop.f32.mrb[0].mxu0
      %v2807 = vadd.f32 0.0, %v2806
      %v2808 = vpop.f32.mrb[0].mxu0
      %2809 = vdwg.mxu0
      %2810 = vrot.lane.b32.xlu0 %v661, 40
      %v2811 = vpop.permute.xlu0 %2810
      %v2814 = vsel %vm874, %v2714, 0
      %2816 = vmatprep.subr.bf16.mxu0 0
      %2817 = vmatpush1.bf16.msra.mxu0 %v2811
      %2818 = vmatprep.subr.bf16.mxu0 0
      %2819 = vmatpush1.bf16.msra.mxu0 0
      %2820 = vmatprep.subr.bf16.mxu0 0
      %2821 = vmatpush1.bf16.msra.mxu0 0
      %2822 = vmatprep.subr.bf16.mxu0 0
      %2823 = vmatpush1.bf16.msra.mxu0 0
      %2824 = vmatprep.subr.bf16.mxu0 0
      %2825 = vmatpush1.bf16.msra.mxu0 0
      %2826 = vmatprep.subr.bf16.mxu0 0
      %2827 = vmatpush1.bf16.msra.mxu0 0
      %2828 = vmatprep.subr.bf16.mxu0 0
      %2829 = vmatpush1.bf16.msra.mxu0 0
      %2830 = vmatprep.subr.bf16.mxu0 0
      %2831 = vmatpush1.bf16.msra.mxu0 0
      %2832 = vmatprep.subr.bf16.mxu0 0
      %2833 = vmatpush1.bf16.msra.mxu0 0
      %2834 = vmatprep.subr.bf16.mxu0 0
      %2835 = vmatpush1.bf16.msra.mxu0 0
      %2836 = vmatprep.subr.bf16.mxu0 0
      %2837 = vmatpush1.bf16.msra.mxu0 0
      %2838 = vmatprep.subr.bf16.mxu0 0
      %2839 = vmatpush1.bf16.msra.mxu0 0
      %2840 = vmatprep.subr.bf16.mxu0 0
      %2841 = vmatpush1.bf16.msra.mxu0 0
      %2842 = vmatprep.subr.bf16.mxu0 0
      %2843 = vmatpush1.bf16.msra.mxu0 0
      %2844 = vmatprep.subr.bf16.mxu0 0
      %2845 = vmatpush1.bf16.msra.mxu0 0
      %2846 = vmatprep.subr.bf16.mxu0 0
      %2847 = vmatpush1.bf16.msra.mxu0 0
      %2848 = vmatprep.mubr.bf16.mxu0 0
      %2849 = vmatmul.mubr.bf16.gmra.mrb[0].mxu0 %v2814
      %v2850 = vpop.f32.mrb[0].mxu0
      %v2851 = vadd.f32 0.0, %v2850
      %v2852 = vpop.f32.mrb[0].mxu0
      %v2853 = vpop.f32.mrb[0].mxu0
      %v2854 = vadd.f32 0.0, %v2853
      %v2855 = vpop.f32.mrb[0].mxu0
      %2856 = vdwg.mxu0
      %2857 = vrot.lane.b32.xlu0 %v662, 40
      %v2858 = vpop.permute.xlu0 %2857
      %v2861 = vsel %vm874, %v2715, 0
      %2863 = vmatprep.subr.bf16.mxu0 0
      %2864 = vmatpush1.bf16.msra.mxu0 %v2858
      %2865 = vmatprep.subr.bf16.mxu0 0
      %2866 = vmatpush1.bf16.msra.mxu0 0
      %2867 = vmatprep.subr.bf16.mxu0 0
      %2868 = vmatpush1.bf16.msra.mxu0 0
      %2869 = vmatprep.subr.bf16.mxu0 0
      %2870 = vmatpush1.bf16.msra.mxu0 0
      %2871 = vmatprep.subr.bf16.mxu0 0
      %2872 = vmatpush1.bf16.msra.mxu0 0
      %2873 = vmatprep.subr.bf16.mxu0 0
      %2874 = vmatpush1.bf16.msra.mxu0 0
      %2875 = vmatprep.subr.bf16.mxu0 0
      %2876 = vmatpush1.bf16.msra.mxu0 0
      %2877 = vmatprep.subr.bf16.mxu0 0
      %2878 = vmatpush1.bf16.msra.mxu0 0
      %2879 = vmatprep.subr.bf16.mxu0 0
      %2880 = vmatpush1.bf16.msra.mxu0 0
      %2881 = vmatprep.subr.bf16.mxu0 0
      %2882 = vmatpush1.bf16.msra.mxu0 0
      %2883 = vmatprep.subr.bf16.mxu0 0
      %2884 = vmatpush1.bf16.msra.mxu0 0
      %2885 = vmatprep.subr.bf16.mxu0 0
      %2886 = vmatpush1.bf16.msra.mxu0 0
      %2887 = vmatprep.subr.bf16.mxu0 0
      %2888 = vmatpush1.bf16.msra.mxu0 0
      %2889 = vmatprep.subr.bf16.mxu0 0
      %2890 = vmatpush1.bf16.msra.mxu0 0
      %2891 = vmatprep.subr.bf16.mxu0 0
      %2892 = vmatpush1.bf16.msra.mxu0 0
      %2893 = vmatprep.subr.bf16.mxu0 0
      %2894 = vmatpush1.bf16.msra.mxu0 0
      %2895 = vmatprep.mubr.bf16.mxu0 0
      %2896 = vmatmul.mubr.bf16.gmra.mrb[0].mxu0 %v2861
      %v2897 = vpop.f32.mrb[0].mxu0
      %v2898 = vadd.f32 0.0, %v2897
      %v2899 = vpop.f32.mrb[0].mxu0
      %v2900 = vpop.f32.mrb[0].mxu0
      %v2901 = vadd.f32 0.0, %v2900
      %v2902 = vpop.f32.mrb[0].mxu0
      %2903 = vdwg.mxu0
      %v2904 = vpack.c.bf16 %v2760, %v2757
      %v2905 = vpack.c.bf16 %v2807, %v2804
      %v2906 = vpack.c.bf16 %v2854, %v2851
      %v2907 = vpack.c.bf16 %v2901, %v2898
      %v2908 = vld [vmem:[%s5 + $0xc] sm:$0xf]
      %v2910 = vsel %vm668, %v2904, 0
      %v2913 = vsel %vm668, %v2905, 0
      %v2916 = vsel %vm668, %v2906, 0
      %v2919 = vsel %vm668, %v2907, 0
      %v2922 = vsel %vm1672, %v2908, 0
      %2924 = vmatprep.subr.bf16.mxu0 0
      %2925 = vmatpush1.bf16.msra.mxu0 %v2922
      %2926 = vmatprep.subr.bf16.mxu0 0
      %2927 = vmatpush1.bf16.msra.mxu0 0
      %2928 = vmatprep.subr.bf16.mxu0 0
      %2929 = vmatpush1.bf16.msra.mxu0 0
      %2930 = vmatprep.subr.bf16.mxu0 0
      %2931 = vmatpush1.bf16.msra.mxu0 0
      %2932 = vmatprep.subr.bf16.mxu0 0
      %2933 = vmatpush1.bf16.msra.mxu0 0
      %2934 = vmatprep.subr.bf16.mxu0 0
      %2935 = vmatpush1.bf16.msra.mxu0 0
      %2936 = vmatprep.subr.bf16.mxu0 0
      %2937 = vmatpush1.bf16.msra.mxu0 0
      %2938 = vmatprep.subr.bf16.mxu0 0
      %2939 = vmatpush1.bf16.msra.mxu0 0
      %2940 = vmatprep.subr.bf16.mxu0 0
      %2941 = vmatpush1.bf16.msra.mxu0 0
      %2942 = vmatprep.subr.bf16.mxu0 0
      %2943 = vmatpush1.bf16.msra.mxu0 0
      %2944 = vmatprep.subr.bf16.mxu0 0
      %2945 = vmatpush1.bf16.msra.mxu0 0
      %2946 = vmatprep.subr.bf16.mxu0 0
      %2947 = vmatpush1.bf16.msra.mxu0 0
      %2948 = vmatprep.subr.bf16.mxu0 0
      %2949 = vmatpush1.bf16.msra.mxu0 0
      %2950 = vmatprep.subr.bf16.mxu0 0
      %2951 = vmatpush1.bf16.msra.mxu0 0
      %2952 = vmatprep.subr.bf16.mxu0 0
      %2953 = vmatpush1.bf16.msra.mxu0 0
      %2954 = vmatprep.subr.bf16.mxu0 0
      %2955 = vmatpush1.bf16.msra.mxu0 0
      %2956 = vmatprep.mubr.bf16.mxu0 0
      %2957 = vmatmul.mubr.bf16.gmra.mrb[0].mxu0 %v2910
      %v2958 = vpop.f32.mrb[0].mxu0
      %v2959 = vadd.f32 0.0, %v2958
      %v2960 = vpop.f32.mrb[0].mxu0
      %v2961 = vpop.f32.mrb[0].mxu0
      %v2962 = vadd.f32 0.0, %v2961
      %v2963 = vpop.f32.mrb[0].mxu0
      %2964 = vmatprep.mubr.bf16.mxu0 0
      %2965 = vmatmul.mubr.bf16.gmra.mrb[0].mxu0 %v2913
      %v2966 = vpop.f32.mrb[0].mxu0
      %v2967 = vadd.f32 0.0, %v2966
      %v2968 = vpop.f32.mrb[0].mxu0
      %v2969 = vpop.f32.mrb[0].mxu0
      %v2970 = vadd.f32 0.0, %v2969
      %v2971 = vpop.f32.mrb[0].mxu0
      %2972 = vmatprep.mubr.bf16.mxu0 0
      %2973 = vmatmul.mubr.bf16.gmra.mrb[0].mxu0 %v2916
      %v2974 = vpop.f32.mrb[0].mxu0
      %v2975 = vadd.f32 0.0, %v2974
      %v2976 = vpop.f32.mrb[0].mxu0
      %v2977 = vpop.f32.mrb[0].mxu0
      %v2978 = vadd.f32 0.0, %v2977
      %v2979 = vpop.f32.mrb[0].mxu0
      %2980 = vmatprep.mubr.bf16.mxu0 0
      %2981 = vmatmul.mubr.bf16.gmra.mrb[0].mxu0 %v2919
      %v2982 = vpop.f32.mrb[0].mxu0
      %v2983 = vadd.f32 0.0, %v2982
      %v2984 = vpop.f32.mrb[0].mxu0
      %v2985 = vpop.f32.mrb[0].mxu0
      %v2986 = vadd.f32 0.0, %v2985
      %v2987 = vpop.f32.mrb[0].mxu0
      %2988 = vdwg.mxu0
      %v2989 = vadd.f32 %v2401, %v2959
      %v2990 = vadd.f32 %v2402, %v2962
      %v2991 = vadd.f32 %v2403, %v2967
      %v2992 = vadd.f32 %v2404, %v2970
      %v2993 = vadd.f32 %v2405, %v2975
      %v2994 = vadd.f32 %v2406, %v2978
      %v2995 = vadd.f32 %v2407, %v2983
      %v2996 = vadd.f32 %v2408, %v2986
      %v2997 = vld [vmem:[%s6] sm:$0x1]
      %v2999 = vlaneseq
      %v3000 = vshrl.u32 %v2999, 7
      %v3001 = vsub.s32 0, %v3000
      %v3002 = vrot.slane %v2997, %v3001
      %v3004 = vadd.f32 %v2989, %v3002
      %v3005 = vadd.f32 %v2990, %v3002
      %v3006 = vadd.f32 %v2991, %v3002
      %v3007 = vadd.f32 %v2992, %v3002
      %v3008 = vadd.f32 %v2993, %v3002
      %v3009 = vadd.f32 %v2994, %v3002
      %v3010 = vadd.f32 %v2995, %v3002
      %v3011 = vadd.f32 %v2996, %v3002
      %3012 = vst.msk [vmem:[%s400] sm:$0xff] %vm411, %v3004
      %3013 = vst.msk [vmem:[%s400 + $0x8] sm:$0xff] %vm411, %v3005
      %3014 = vst.msk [vmem:[%s400 + $0x10] sm:$0xff] %vm411, %v3006
      %3015 = vst.msk [vmem:[%s400 + $0x18] sm:$0xff] %vm411, %v3007
      %3016 = vst.msk [vmem:[%s400 + $0x20] sm:$0xff] %vm411, %v3008
      %3017 = vst.msk [vmem:[%s400 + $0x28] sm:$0xff] %vm411, %v3009
      %3018 = vst.msk [vmem:[%s400 + $0x30] sm:$0xff] %vm411, %v3010
      %3019 = vst.msk [vmem:[%s400 + $0x38] sm:$0xff] %vm411, %v3011
      %s3020 = smul.u32 4, %s25
      %p3021 = scmp.lt.s32.totalorder %s24, 1
      %s3022 = scalar_select %p3021, %s24, 1
      %p3023 = scmp.lt.s32.totalorder %s3020, 3
      %s3024 = scalar_select %p3023, %s3020, 3
      %s3025 = smul.addr %s3024, 2
      %s3026 = smul.addr %s3022, 8
      %s3027 = sadd.s32 %s3025, %s3026
      %s3028 = smul.addr %s3027, 8
      %s3029 = scalar_lea.vmem %s9, %s3028
      // Predicated region
      $region57: #{_forward_impl.6} parent=55 // pred_check
        %p3030 = pneg %p253
      $region58: #{_forward_impl.6} parent=55 // pred_check_branch
        %3032 = sbr.rel (%p3030) target = $region60
      $region59: #{_forward_impl.6} parent=55 // pred_region
        %s3033 = smul.u32 4, %s25
      $region60: #{_forward_impl.6} parent=55 // pred_fallthru
        _
    $region56: #{_forward_impl.6} parent=5 // pred_fallthru
      _
    %p3034 = scmp.le.s32.totalorder 2, %s15
    // Predicated region
    $region61: #{_forward_impl.6} parent=5 // pred_check
      %p3035 = pneg %p3034
    $region62: #{_forward_impl.6} parent=5 // pred_check_branch
      %3037 = sbr.rel (%p3035) target = $region64
    $region63: #{_forward_impl.6} parent=5 // pred_region
      %s3038 = ssub.s32 %s15, 2
      // Predicated region
      $region65: #{_forward_impl.6} parent=63 // pred_check
        %p3039 = pneg %p259
      $region66: #{_forward_impl.6} parent=63 // pred_check_branch
        %3041 = sbr.rel (%p3039) target = $region68
      $region67: #{_forward_impl.6} parent=63 // pred_region
        %s3042 = smul.u32 4, %s27
        %p3043 = scmp.lt.s32.totalorder %s26, 1
        %s3044 = scalar_select %p3043, %s26, 1
        %p3045 = scmp.lt.s32.totalorder %s3042, 3
        %s3046 = scalar_select %p3045, %s3042, 3
        %s3047 = smul.addr %s3046, 2
        %s3048 = smul.addr %s3044, 8
        %s3049 = sadd.s32 %s3047, %s3048
        %s3050 = smul.addr %s3049, 8
        %s3051 = scalar_lea.vmem %s9, %s3050
      $region68: #{_forward_impl.6} parent=63 // pred_fallthru
        _
    $region64: #{_forward_impl.6} parent=5 // pred_fallthru
      _
  $region6: #{_forward_impl.6} parent=0 // loop_footer
    %s19 = sadd.s32 1, %s15
  $region7: #{_forward_impl.6} parent=0 // loop_footer_branch
    %14 = sbr.rel target = $region3
  $region8: #{_forward_impl.6} parent=0 // loop_exit
    _

</llo_original>
